<compile_context>
chip_gen: v6e
topology: v6e:2x2x1
jax: 0.10.0
libtpu: 0.0.40
codegen_flags: <defaults>
</compile_context>

<pallas_src>
import functools

import jax
import jax.numpy as jnp
from jax.experimental import pallas as pl
from jax.experimental.pallas import tpu as pltpu


# ---------------------------------------------------------------------------
# helpers
# ---------------------------------------------------------------------------
def _pick_row_tile(R, block_rows):
    """Largest multiple-of-8 divisor of R that is <= block_rows (or R itself)."""
    if R <= block_rows:
        return R
    best = None
    for d in range(8, block_rows + 1, 8):
        if R % d == 0:
            best = d
    return best if best is not None else R


# ---------------------------------------------------------------------------
# Kernel 1: direct 3x3 convolution (NHWC). One image per grid step; the 9 taps
# are accumulated as shifted matmuls in a VMEM f32 accumulator.
# ---------------------------------------------------------------------------
def _conv3x3_kernel(xp_ref, w_ref, b_ref, o_ref, *, H, W):
    C = xp_ref.shape[-1]
    Cout = o_ref.shape[-1]
    xp = xp_ref[...]                                        # (H+2, W+2, C)
    acc = jnp.zeros((H * W, Cout), jnp.float32)
    for dy in range(3):
        for dx in range(3):
            patch = xp[dy:dy + H, dx:dx + W, :].reshape(H * W, C)
            acc = acc + jnp.dot(patch, w_ref[dy, dx],
                                preferred_element_type=jnp.float32)
    acc = acc + b_ref[...]
    o_ref[...] = acc.reshape(o_ref.shape).astype(o_ref.dtype)


def conv3x3(x_nhwc, w_hwio, b):
    N, H, W, C = x_nhwc.shape
    Cout = w_hwio.shape[-1]
    xp = jnp.pad(x_nhwc, ((0, 0), (1, 1), (1, 1), (0, 0)))
    # TODO(synk): for large H*W, tile rows with a manually-DMA'd halo instead of
    # loading one full (padded) image per grid step.
    return pl.pallas_call(
        functools.partial(_conv3x3_kernel, H=H, W=W),
        out_shape=jax.ShapeDtypeStruct((N, H, W, Cout), x_nhwc.dtype),
        grid_spec=pltpu.PrefetchScalarGridSpec(
            num_scalar_prefetch=0,
            grid=(N,),
            in_specs=[
                pl.BlockSpec((None, H + 2, W + 2, C), lambda n: (n, 0, 0, 0)),
                pl.BlockSpec((3, 3, C, Cout), lambda n: (0, 0, 0, 0)),
                pl.BlockSpec((1, Cout), lambda n: (0, 0)),
            ],
            out_specs=pl.BlockSpec((None, H, W, Cout), lambda n: (n, 0, 0, 0)),
        ),
        compiler_params=pltpu.CompilerParams(dimension_semantics=("parallel",)),
    )(xp, w_hwio, b.reshape(1, Cout))


# ---------------------------------------------------------------------------
# Kernel 2: one-pass column sum / sum-of-squares reduction (BatchNorm stats).
# ---------------------------------------------------------------------------
def _stats_kernel(x_ref, s_ref, q_ref):
    @pl.when(pl.program_id(0) == 0)
    def _():
        s_ref[...] = jnp.zeros_like(s_ref)
        q_ref[...] = jnp.zeros_like(q_ref)

    x = x_ref[...].astype(jnp.float32)
    s_ref[...] += jnp.sum(x, axis=0, keepdims=True)
    q_ref[...] += jnp.sum(x * x, axis=0, keepdims=True)


def _column_stats(x2d, *, block_rows=2048):
    R, L = x2d.shape
    tr = _pick_row_tile(R, block_rows)
    grid = (pl.cdiv(R, tr),)
    return pl.pallas_call(
        _stats_kernel,
        out_shape=(jax.ShapeDtypeStruct((1, L), jnp.float32),
                   jax.ShapeDtypeStruct((1, L), jnp.float32)),
        grid_spec=pltpu.PrefetchScalarGridSpec(
            num_scalar_prefetch=0,
            grid=grid,
            in_specs=[pl.BlockSpec((tr, L), lambda i: (i, 0))],
            out_specs=(pl.BlockSpec((1, L), lambda i: (0, 0)),
                       pl.BlockSpec((1, L), lambda i: (0, 0))),
        ),
        compiler_params=pltpu.CompilerParams(dimension_semantics=("arbitrary",)),
    )(x2d)


# ---------------------------------------------------------------------------
# Kernel 3: fused per-channel affine (BatchNorm fold) + optional mish.
# ---------------------------------------------------------------------------
def _affine_kernel(x_ref, s_ref, t_ref, o_ref, *, apply_mish):
    y = x_ref[...] * s_ref[...] + t_ref[...]
    if apply_mish:
        # mish(y) = y * tanh(softplus(y)) = y * num / (num + 2), num = e^y (e^y + 2)
        e = jnp.exp(jnp.minimum(y, 20.0))       # clamp avoids overflow; exact below 20
        num = e * (e + 2.0)
        y = y * (num / (num + 2.0))
    o_ref[...] = y.astype(o_ref.dtype)


def _affine_act_2d(x2d, scale_row, shift_row, apply_mish, *, block_rows=2048):
    R, L = x2d.shape
    tr = _pick_row_tile(R, block_rows)
    grid = (pl.cdiv(R, tr),)
    return pl.pallas_call(
        functools.partial(_affine_kernel, apply_mish=apply_mish),
        out_shape=jax.ShapeDtypeStruct((R, L), x2d.dtype),
        grid_spec=pltpu.PrefetchScalarGridSpec(
            num_scalar_prefetch=0,
            grid=grid,
            in_specs=[
                pl.BlockSpec((tr, L), lambda i: (i, 0)),
                pl.BlockSpec((1, L), lambda i: (0, 0)),
                pl.BlockSpec((1, L), lambda i: (0, 0)),
            ],
            out_specs=pl.BlockSpec((tr, L), lambda i: (i, 0)),
        ),
        compiler_params=pltpu.CompilerParams(dimension_semantics=("parallel",)),
    )(x2d, scale_row.reshape(1, L), shift_row.reshape(1, L))


def batchnorm_act(x_nhwc, gamma, beta, *, eps=1e-5, apply_mish):
    """BatchNorm2d (training-style batch statistics) + optional mish, fused."""
    N, H, W, C = x_nhwc.shape
    count = float(N * H * W)
    x2 = x_nhwc.reshape(-1, C)
    total = x2.size
    lane_dense = (C <= 128) and (128 % C == 0) and (total % 128 == 0)

    if lane_dense:
        xl = x2.reshape(total // 128, 128)
        s128, q128 = _column_stats(xl)
        s = jnp.sum(s128.reshape(-1, C), axis=0)
        q = jnp.sum(q128.reshape(-1, C), axis=0)
    else:
        s1, q1 = _column_stats(x2)
        s, q = s1[0], q1[0]

    mean = s / count
    var = q / count - mean * mean
    scale = gamma * jax.lax.rsqrt(var + eps)
    shift = beta - mean * scale

    if lane_dense:
        reps = 128 // C
        y = _affine_act_2d(xl, jnp.tile(scale, reps), jnp.tile(shift, reps), apply_mish)
    else:
        y = _affine_act_2d(x2, scale, shift, apply_mish)
    return y.reshape(N, H, W, C)


# ---------------------------------------------------------------------------
# Kernel 4: fused (1x1 conv + bidirectional GRU input projection) matmul.
# Output is written direction-major: (2, M, 3*Hd), so the recurrence can block
# on the leading direction axis without any layout copies.
# ---------------------------------------------------------------------------
def _proj_kernel(x_ref, w_ref, b_ref, o_ref, *, G3):
    acc = jnp.dot(x_ref[...], w_ref[...], preferred_element_type=jnp.float32)
    acc = acc + b_ref[...]
    o_ref[0] = acc[:, :G3].astype(o_ref.dtype)
    o_ref[1] = acc[:, G3:].astype(o_ref.dtype)


def _proj_residual_kernel(x_ref, g_ref, w_ref, b_ref, o_ref, *, G3):
    # Fused residual add: (x + [g_fwd | g_bwd]) @ W + b
    add = jnp.concatenate([g_ref[0], g_ref[1]], axis=-1)
    acc = jnp.dot(x_ref[...] + add, w_ref[...], preferred_element_type=jnp.float32)
    acc = acc + b_ref[...]
    o_ref[0] = acc[:, :G3].astype(o_ref.dtype)
    o_ref[1] = acc[:, G3:].astype(o_ref.dtype)


def gru_input_projection(x2, w_in, b_in, g1=None, *, block_rows=512):
    """x2: (M, C); w_in: (C, 6*Hd); optional g1: (2, M, Hd). Returns (2, M, 3*Hd)."""
    M, C = x2.shape
    G6 = w_in.shape[1]
    G3 = G6 // 2
    tm = M if M <= block_rows else block_rows
    if tm != M and tm % 8 != 0:
        tm = max(8, (tm // 8) * 8)
    grid = (pl.cdiv(M, tm),)

    x_spec = pl.BlockSpec((tm, C), lambda i: (i, 0))
    w_spec = pl.BlockSpec((C, G6), lambda i: (0, 0))
    b_spec = pl.BlockSpec((1, G6), lambda i: (0, 0))
    o_spec = pl.BlockSpec((2, tm, G3), lambda i: (0, i, 0))

    if g1 is None:
        kernel = functools.partial(_proj_kernel, G3=G3)
        in_specs = [x_spec, w_spec, b_spec]
        args = (x2, w_in, b_in.reshape(1, G6))
    else:
        Hd = g1.shape[-1]
        kernel = functools.partial(_proj_residual_kernel, G3=G3)
        g_spec = pl.BlockSpec((2, tm, Hd), lambda i: (0, i, 0))
        in_specs = [x_spec, g_spec, w_spec, b_spec]
        args = (x2, g1, w_in, b_in.reshape(1, G6))

    return pl.pallas_call(
        kernel,
        out_shape=jax.ShapeDtypeStruct((2, M, G3), x2.dtype),
        grid_spec=pltpu.PrefetchScalarGridSpec(
            num_scalar_prefetch=0,
            grid=grid,
            in_specs=in_specs,
            out_specs=o_spec,
        ),
        compiler_params=pltpu.CompilerParams(dimension_semantics=("parallel",)),
    )(*args)


# ---------------------------------------------------------------------------
# Kernel 5: bidirectional GRU recurrence.
# grid = (direction=2 [parallel], T [arbitrary]); gi/out blocks are one time
# step; hidden state lives in VMEM scratch; bwd reversal and the H-vs-W
# sequencing are expressed purely through the index maps.
# ---------------------------------------------------------------------------
def _gru_step_kernel(gi_ref, whh_ref, bhh_ref, o_ref, h_ref, *, Hd):
    t = pl.program_id(1)

    @pl.when(t == 0)
    def _():
        h_ref[...] = jnp.zeros_like(h_ref)

    Bflat = h_ref.shape[0]
    gi = gi_ref[...].reshape(Bflat, 3 * Hd)
    h = h_ref[...]
    # Single packed (Hd, 3*Hd) recurrent matmul for all three gates.
    hg = jnp.dot(h, whh_ref[...], preferred_element_type=jnp.float32) + bhh_ref[...]
    r = jax.nn.sigmoid(gi[:, :Hd] + hg[:, :Hd])
    z = jax.nn.sigmoid(gi[:, Hd:2 * Hd] + hg[:, Hd:2 * Hd])
    n = jnp.tanh(gi[:, 2 * Hd:] + r * hg[:, 2 * Hd:])
    h_new = (1.0 - z) * n + z * h
    h_ref[...] = h_new
    o_ref[...] = h_new.reshape(o_ref.shape).astype(o_ref.dtype)


def gru_recurrence(gi, whh, bhh, *, B1, T, B2, Hd):
    """gi: (2, B1, T, B2, 3*Hd)  ->  hidden sequence (2, B1, T, B2, Hd)."""
    G3 = 3 * Hd
    b2_blk = None if B2 == 1 else B2

    def idx_map(d, t):
        # fwd (d=0): t ; bwd (d=1): T-1-t  -- expressed with pure scalar arithmetic.
        return (d, 0, t * (1 - 2 * d) + d * (T - 1), 0, 0)

    return pl.pallas_call(
        functools.partial(_gru_step_kernel, Hd=Hd),
        out_shape=jax.ShapeDtypeStruct((2, B1, T, B2, Hd), gi.dtype),
        grid_spec=pltpu.PrefetchScalarGridSpec(
            num_scalar_prefetch=0,
            grid=(2, T),
            in_specs=[
                pl.BlockSpec((None, B1, None, b2_blk, G3), idx_map),
                pl.BlockSpec((None, Hd, G3), lambda d, t: (d, 0, 0)),
                pl.BlockSpec((None, 1, G3), lambda d, t: (d, 0, 0)),
            ],
            out_specs=pl.BlockSpec((None, B1, None, b2_blk, Hd), idx_map),
            scratch_shapes=[pltpu.VMEM((B1 * B2, Hd), jnp.float32)],
        ),
        compiler_params=pltpu.CompilerParams(
            dimension_semantics=("parallel", "arbitrary")),
    )(gi, whh, bhh)


# ---------------------------------------------------------------------------
# GruBlock plumbing (weight fusion + wrappers).
# ---------------------------------------------------------------------------
def prepare_gru_params(p):
    """Folds the GruBlock's 1x1 conv into the GRU input projection and packs
    the recurrent weights gate-major for a single per-step matmul."""
    hp = jax.lax.Precision.HIGHEST
    wc, bc = p["conv_w"], p["conv_b"]
    w_in, b_in, whh, bhh = [], [], [], []
    for d in ("fwd", "bwd"):
        wi = p[f"w_ih_{d}"]                                   # (3*Hd, C)
        w_in.append(jnp.dot(wc, wi.T, precision=hp))          # (C, 3*Hd)
        b_in.append(jnp.dot(bc, wi.T, precision=hp) + p[f"b_ih_{d}"])
        whh.append(p[f"w_hh_{d}"].T)                          # (Hd, 3*Hd)
        bhh.append(p[f"b_hh_{d}"].reshape(1, -1))
    return {
        "w_in": jnp.concatenate(w_in, axis=1),                # (C, 6*Hd)
        "b_in": jnp.concatenate(b_in, axis=0),                # (6*Hd,)
        "whh": jnp.stack(whh, axis=0),                        # (2, Hd, 3*Hd)
        "bhh": jnp.stack(bhh, axis=0),                        # (2, 1, 3*Hd)
    }


def gru_block_along_h(x2, pp, *, N, H, W, C):
    """GruBlock whose GRU sequences the H axis (gru1), no transposes needed."""
    Hd = C // 2
    gi = gru_input_projection(x2, pp["w_in"], pp["b_in"], None)       # (2, M, 3Hd)
    gi5 = gi.reshape(2, N, H, W, 3 * Hd)
    return gru_recurrence(gi5, pp["whh"], pp["bhh"], B1=N, T=H, B2=W, Hd=Hd)


def gru_block_along_w(x2, g1_flat, pp, *, N, H, W, C):
    """GruBlock whose GRU sequences the W axis (gru2); residual add fused in."""
    Hd = C // 2
    gi = gru_input_projection(x2, pp["w_in"], pp["b_in"], g1_flat)    # (2, M, 3Hd)
    gi5 = gi.reshape(2, N * H, W, 1, 3 * Hd)
    return gru_recurrence(gi5, pp["whh"], pp["bhh"], B1=N * H, T=W, B2=1, Hd=Hd)


def recurrent_residual_block(x_nchw, params):
    """Forward pass of the PyTorch RecurrentResidualBlock (NCHW in / NCHW out)."""
    N, C, H, W = x_nchw.shape
    Hd = C // 2
    x = jnp.transpose(x_nchw, (0, 2, 3, 1))                           # NHWC internally

    r = conv3x3(x, params["conv1_w"], params["conv1_b"])
    r = batchnorm_act(r, params["bn1_gamma"], params["bn1_beta"], apply_mish=True)
    r = conv3x3(r, params["conv2_w"], params["conv2_b"])
    r = batchnorm_act(r, params["bn2_gamma"], params["bn2_beta"], apply_mish=False)

    g1p = prepare_gru_params(params["gru1"])
    g2p = prepare_gru_params(params["gru2"])

    # gru1: GRU along H (== PyTorch's transpose(-1,-2) sandwich), sequenced
    # directly over the H axis via index maps.
    g1 = gru_block_along_h(r.reshape(-1, C), g1p, N=N, H=H, W=W, C=C)  # (2,N,H,W,Hd)
    g1_flat = g1.reshape(2, N * H * W, Hd)

    # gru2: GRU along W on (x + residual); the add is fused into the projection.
    out = gru_block_along_w(x.reshape(-1, C), g1_flat, g2p, N=N, H=H, W=W, C=C)
    out = out.reshape(2, N, H, W, Hd)
    # (d, n, h, w, j) -> (n, c = d*Hd + j, h, w)
    return jnp.transpose(out, (1, 0, 4, 2, 3)).reshape(N, C, H, W)

    # TODO(synk): bf16 operands with f32 accumulation for the matmuls (re-validate
    # tolerance), and 128-wide channel padding for lane-dense stores at small C.


# ---------------------------------------------------------------------------
# Pure-JAX reference (mirrors the PyTorch forward) for correctness checking.
# ---------------------------------------------------------------------------
def _ref_gru_dir(x_seq, w_ih, b_ih, w_hh, b_hh):
    Hd = w_hh.shape[1]
    hp = jax.lax.Precision.HIGHEST

    def step(h, x_t):
        gi = jnp.dot(x_t, w_ih.T, precision=hp) + b_ih
        gh = jnp.dot(h, w_hh.T, precision=hp) + b_hh
        r = jax.nn.sigmoid(gi[:, :Hd] + gh[:, :Hd])
        z = jax.nn.sigmoid(gi[:, Hd:2 * Hd] + gh[:, Hd:2 * Hd])
        n = jnp.tanh(gi[:, 2 * Hd:] + r * gh[:, 2 * Hd:])
        h_new = (1.0 - z) * n + z * h
        return h_new, h_new

    h0 = jnp.zeros((x_seq.shape[0], Hd), x_seq.dtype)
    _, ys = jax.lax.scan(step, h0, jnp.swapaxes(x_seq, 0, 1))
    return jnp.swapaxes(ys, 0, 1)


def _ref_gru_block(x_nhwc, p):
    N, H, W, C = x_nhwc.shape
    hp = jax.lax.Precision.HIGHEST
    y = jnp.dot(x_nhwc.reshape(-1, C), p["conv_w"], precision=hp) + p["conv_b"]
    seq = y.reshape(N * H, W, C)
    fwd = _ref_gru_dir(seq, p["w_ih_fwd"], p["b_ih_fwd"], p["w_hh_fwd"], p["b_hh_fwd"])
    bwd = _ref_gru_dir(seq[:, ::-1], p["w_ih_bwd"], p["b_ih_bwd"],
                       p["w_hh_bwd"], p["b_hh_bwd"])[:, ::-1]
    return jnp.concatenate([fwd, bwd], axis=-1).reshape(N, H, W, C)


def _ref_forward(x_nchw, p, eps=1e-5):
    hp = jax.lax.Precision.HIGHEST

    def conv(x, w, b):
        y = jax.lax.conv_general_dilated(
            x, w, window_strides=(1, 1), padding=((1, 1), (1, 1)),
            dimension_numbers=("NHWC", "HWIO", "NHWC"), precision=hp)
        return y + b

    def bn(x, gamma, beta):
        mean = jnp.mean(x, axis=(0, 1, 2))
        var = jnp.var(x, axis=(0, 1, 2))
        return (x - mean) * jax.lax.rsqrt(var + eps) * gamma + beta

    x = jnp.transpose(x_nchw, (0, 2, 3, 1))
    r = conv(x, p["conv1_w"], p["conv1_b"])
    r = bn(r, p["bn1_gamma"], p["bn1_beta"])
    r = r * jnp.tanh(jax.nn.softplus(r))                      # mish
    r = conv(r, p["conv2_w"], p["conv2_b"])
    r = bn(r, p["bn2_gamma"], p["bn2_beta"])
    r_t = jnp.transpose(r, (0, 2, 1, 3))
    g1 = _ref_gru_block(r_t, p["gru1"])
    g1 = jnp.transpose(g1, (0, 2, 1, 3))
    out = _ref_gru_block(x + g1, p["gru2"])
    return jnp.transpose(out, (0, 3, 1, 2))


# ---------------------------------------------------------------------------
# Parameter construction and demo.
# ---------------------------------------------------------------------------
def init_params(key, C):
    Hd = C // 2
    keys = iter(jax.random.split(key, 32))

    def nrm(shape, scale):
        return jax.random.normal(next(keys), shape, dtype=jnp.float32) * scale

    def gru_params():
        return {
            "conv_w": nrm((C, C), 0.5),
            "conv_b": nrm((C,), 0.1),
            "w_ih_fwd": nrm((3 * Hd, C), 0.4),
            "w_hh_fwd": nrm((3 * Hd, Hd), 0.4),
            "b_ih_fwd": nrm((3 * Hd,), 0.1),
            "b_hh_fwd": nrm((3 * Hd,), 0.1),
            "w_ih_bwd": nrm((3 * Hd, C), 0.4),
            "w_hh_bwd": nrm((3 * Hd, Hd), 0.4),
            "b_ih_bwd": nrm((3 * Hd,), 0.1),
            "b_hh_bwd": nrm((3 * Hd,), 0.1),
        }

    return {
        "conv1_w": nrm((3, 3, C, C), 0.3),
        "conv1_b": nrm((C,), 0.1),
        "bn1_gamma": 1.0 + nrm((C,), 0.1),
        "bn1_beta": nrm((C,), 0.1),
        "conv2_w": nrm((3, 3, C, C), 0.3),
        "conv2_b": nrm((C,), 0.1),
        "bn2_gamma": 1.0 + nrm((C,), 0.1),
        "bn2_beta": nrm((C,), 0.1),
        "gru1": gru_params(),
        "gru2": gru_params(),
    }


if __name__ == "__main__":
    key = jax.random.PRNGKey(0)
    k_x, k_p = jax.random.split(key)
    N, C, H, W = 2, 4, 16, 16
    x = jax.random.normal(k_x, (N, C, H, W), dtype=jnp.float32)
    params = init_params(k_p, C)

    fwd = jax.jit(recurrent_residual_block)
    y = jax.block_until_ready(fwd(x, params))

    y_ref = jax.block_until_ready(_ref_forward(x, params))

    assert y.shape == x.shape and y.dtype == x.dtype
    err = float(jnp.max(jnp.abs(y - y_ref)))
    assert err < 5e-4, f"mismatch vs reference: max abs err {err:.3e}"
    print("KERNEL_OK")
</pallas_src>

<mosaic_0001>
module attributes {stable_mosaic.version = 11 : i64} {
  func.func @_conv3x3_kernel(%arg0: i32, %arg1: memref<1x18x18x4xf32, #tpu.memory_space<vmem>>, %arg2: memref<3x3x4x4xf32, #tpu.memory_space<vmem>>, %arg3: memref<1x4xf32, #tpu.memory_space<vmem>>, %arg4: memref<1x16x16x4xf32, #tpu.memory_space<vmem>>) attributes {dimension_semantics = [#tpu.dimension_semantics<parallel>], iteration_bounds = array<i64: 2>, scalar_prefetch = 0 : i64, scratch_operands = 0 : i64, tpu.core_type = #tpu.core_type<tc>, window_params = [{transform_indices = @transform_0, window_bounds = array<i64: 1, 18, 18, 4>}, {pipeline_mode = #tpu.pipeline_mode<synchronous>, transform_indices = @transform_1, window_bounds = array<i64: 3, 3, 4, 4>}, {pipeline_mode = #tpu.pipeline_mode<synchronous>, transform_indices = @transform_2, window_bounds = array<i64: 1, 4>}, {transform_indices = @transform_3, window_bounds = array<i64: 1, 16, 16, 4>}]} {
    %c0 = arith.constant 0 : index
    %c0_0 = arith.constant 0 : index
    %c0_1 = arith.constant 0 : index
    %c0_2 = arith.constant 0 : index
    %0 = vector.load %arg1[%c0, %c0_0, %c0_1, %c0_2] : memref<1x18x18x4xf32, #tpu.memory_space<vmem>>, vector<1x18x18x4xf32>
    %1 = vector.shape_cast %0 : vector<1x18x18x4xf32> to vector<18x18x4xf32>
    %cst = arith.constant 0.000000e+00 : f32
    %2 = vector.broadcast %cst : f32 to vector<256x4xf32>
    %3 = vector.extract_strided_slice %1 {offsets = [0, 0, 0], sizes = [16, 16, 4], strides = [1, 1, 1]} : vector<18x18x4xf32> to vector<16x16x4xf32>
    %4 = vector.shape_cast %3 : vector<16x16x4xf32> to vector<256x4xf32>
    %c0_3 = arith.constant 0 : index
    %c0_4 = arith.constant 0 : index
    %c0_5 = arith.constant 0 : index
    %c0_6 = arith.constant 0 : index
    %5 = vector.load %arg2[%c0_3, %c0_4, %c0_5, %c0_6] : memref<3x3x4x4xf32, #tpu.memory_space<vmem>>, vector<1x1x4x4xf32>
    %6 = vector.shape_cast %5 : vector<1x1x4x4xf32> to vector<4x4xf32>
    %cst_7 = arith.constant dense<0.000000e+00> : vector<256x4xf32>
    %7 = tpu.matmul %4, %6, %cst_7 {dimension_numbers = #tpu.dot_dimension_numbers<[1], [0], [0], [1], [0, 0, 1, 1], [], []>} : vector<256x4xf32>, vector<4x4xf32>, vector<256x4xf32> -> vector<256x4xf32>
    %8 = arith.addf %2, %7 : vector<256x4xf32>
    %9 = vector.extract_strided_slice %1 {offsets = [0, 1, 0], sizes = [16, 16, 4], strides = [1, 1, 1]} : vector<18x18x4xf32> to vector<16x16x4xf32>
    %10 = vector.shape_cast %9 : vector<16x16x4xf32> to vector<256x4xf32>
    %c0_8 = arith.constant 0 : index
    %c1 = arith.constant 1 : index
    %c0_9 = arith.constant 0 : index
    %c0_10 = arith.constant 0 : index
    %11 = vector.load %arg2[%c0_8, %c1, %c0_9, %c0_10] : memref<3x3x4x4xf32, #tpu.memory_space<vmem>>, vector<1x1x4x4xf32>
    %12 = vector.shape_cast %11 : vector<1x1x4x4xf32> to vector<4x4xf32>
    %cst_11 = arith.constant dense<0.000000e+00> : vector<256x4xf32>
    %13 = tpu.matmul %10, %12, %cst_11 {dimension_numbers = #tpu.dot_dimension_numbers<[1], [0], [0], [1], [0, 0, 1, 1], [], []>} : vector<256x4xf32>, vector<4x4xf32>, vector<256x4xf32> -> vector<256x4xf32>
    %14 = arith.addf %8, %13 : vector<256x4xf32>
    %15 = vector.extract_strided_slice %1 {offsets = [0, 2, 0], sizes = [16, 16, 4], strides = [1, 1, 1]} : vector<18x18x4xf32> to vector<16x16x4xf32>
    %16 = vector.shape_cast %15 : vector<16x16x4xf32> to vector<256x4xf32>
    %c0_12 = arith.constant 0 : index
    %c2 = arith.constant 2 : index
    %c0_13 = arith.constant 0 : index
    %c0_14 = arith.constant 0 : index
    %17 = vector.load %arg2[%c0_12, %c2, %c0_13, %c0_14] : memref<3x3x4x4xf32, #tpu.memory_space<vmem>>, vector<1x1x4x4xf32>
    %18 = vector.shape_cast %17 : vector<1x1x4x4xf32> to vector<4x4xf32>
    %cst_15 = arith.constant dense<0.000000e+00> : vector<256x4xf32>
    %19 = tpu.matmul %16, %18, %cst_15 {dimension_numbers = #tpu.dot_dimension_numbers<[1], [0], [0], [1], [0, 0, 1, 1], [], []>} : vector<256x4xf32>, vector<4x4xf32>, vector<256x4xf32> -> vector<256x4xf32>
    %20 = arith.addf %14, %19 : vector<256x4xf32>
    %21 = vector.extract_strided_slice %1 {offsets = [1, 0, 0], sizes = [16, 16, 4], strides = [1, 1, 1]} : vector<18x18x4xf32> to vector<16x16x4xf32>
    %22 = vector.shape_cast %21 : vector<16x16x4xf32> to vector<256x4xf32>
    %c1_16 = arith.constant 1 : index
    %c0_17 = arith.constant 0 : index
    %c0_18 = arith.constant 0 : index
    %c0_19 = arith.constant 0 : index
    %23 = vector.load %arg2[%c1_16, %c0_17, %c0_18, %c0_19] : memref<3x3x4x4xf32, #tpu.memory_space<vmem>>, vector<1x1x4x4xf32>
    %24 = vector.shape_cast %23 : vector<1x1x4x4xf32> to vector<4x4xf32>
    %cst_20 = arith.constant dense<0.000000e+00> : vector<256x4xf32>
    %25 = tpu.matmul %22, %24, %cst_20 {dimension_numbers = #tpu.dot_dimension_numbers<[1], [0], [0], [1], [0, 0, 1, 1], [], []>} : vector<256x4xf32>, vector<4x4xf32>, vector<256x4xf32> -> vector<256x4xf32>
    %26 = arith.addf %20, %25 : vector<256x4xf32>
    %27 = vector.extract_strided_slice %1 {offsets = [1, 1, 0], sizes = [16, 16, 4], strides = [1, 1, 1]} : vector<18x18x4xf32> to vector<16x16x4xf32>
    %28 = vector.shape_cast %27 : vector<16x16x4xf32> to vector<256x4xf32>
    %c1_21 = arith.constant 1 : index
    %c1_22 = arith.constant 1 : index
    %c0_23 = arith.constant 0 : index
    %c0_24 = arith.constant 0 : index
    %29 = vector.load %arg2[%c1_21, %c1_22, %c0_23, %c0_24] : memref<3x3x4x4xf32, #tpu.memory_space<vmem>>, vector<1x1x4x4xf32>
    %30 = vector.shape_cast %29 : vector<1x1x4x4xf32> to vector<4x4xf32>
    %cst_25 = arith.constant dense<0.000000e+00> : vector<256x4xf32>
    %31 = tpu.matmul %28, %30, %cst_25 {dimension_numbers = #tpu.dot_dimension_numbers<[1], [0], [0], [1], [0, 0, 1, 1], [], []>} : vector<256x4xf32>, vector<4x4xf32>, vector<256x4xf32> -> vector<256x4xf32>
    %32 = arith.addf %26, %31 : vector<256x4xf32>
    %33 = vector.extract_strided_slice %1 {offsets = [1, 2, 0], sizes = [16, 16, 4], strides = [1, 1, 1]} : vector<18x18x4xf32> to vector<16x16x4xf32>
    %34 = vector.shape_cast %33 : vector<16x16x4xf32> to vector<256x4xf32>
    %c1_26 = arith.constant 1 : index
    %c2_27 = arith.constant 2 : index
    %c0_28 = arith.constant 0 : index
    %c0_29 = arith.constant 0 : index
    %35 = vector.load %arg2[%c1_26, %c2_27, %c0_28, %c0_29] : memref<3x3x4x4xf32, #tpu.memory_space<vmem>>, vector<1x1x4x4xf32>
    %36 = vector.shape_cast %35 : vector<1x1x4x4xf32> to vector<4x4xf32>
    %cst_30 = arith.constant dense<0.000000e+00> : vector<256x4xf32>
    %37 = tpu.matmul %34, %36, %cst_30 {dimension_numbers = #tpu.dot_dimension_numbers<[1], [0], [0], [1], [0, 0, 1, 1], [], []>} : vector<256x4xf32>, vector<4x4xf32>, vector<256x4xf32> -> vector<256x4xf32>
    %38 = arith.addf %32, %37 : vector<256x4xf32>
    %39 = vector.extract_strided_slice %1 {offsets = [2, 0, 0], sizes = [16, 16, 4], strides = [1, 1, 1]} : vector<18x18x4xf32> to vector<16x16x4xf32>
    %40 = vector.shape_cast %39 : vector<16x16x4xf32> to vector<256x4xf32>
    %c2_31 = arith.constant 2 : index
    %c0_32 = arith.constant 0 : index
    %c0_33 = arith.constant 0 : index
    %c0_34 = arith.constant 0 : index
    %41 = vector.load %arg2[%c2_31, %c0_32, %c0_33, %c0_34] : memref<3x3x4x4xf32, #tpu.memory_space<vmem>>, vector<1x1x4x4xf32>
    %42 = vector.shape_cast %41 : vector<1x1x4x4xf32> to vector<4x4xf32>
    %cst_35 = arith.constant dense<0.000000e+00> : vector<256x4xf32>
    %43 = tpu.matmul %40, %42, %cst_35 {dimension_numbers = #tpu.dot_dimension_numbers<[1], [0], [0], [1], [0, 0, 1, 1], [], []>} : vector<256x4xf32>, vector<4x4xf32>, vector<256x4xf32> -> vector<256x4xf32>
    %44 = arith.addf %38, %43 : vector<256x4xf32>
    %45 = vector.extract_strided_slice %1 {offsets = [2, 1, 0], sizes = [16, 16, 4], strides = [1, 1, 1]} : vector<18x18x4xf32> to vector<16x16x4xf32>
    %46 = vector.shape_cast %45 : vector<16x16x4xf32> to vector<256x4xf32>
    %c2_36 = arith.constant 2 : index
    %c1_37 = arith.constant 1 : index
    %c0_38 = arith.constant 0 : index
    %c0_39 = arith.constant 0 : index
    %47 = vector.load %arg2[%c2_36, %c1_37, %c0_38, %c0_39] : memref<3x3x4x4xf32, #tpu.memory_space<vmem>>, vector<1x1x4x4xf32>
    %48 = vector.shape_cast %47 : vector<1x1x4x4xf32> to vector<4x4xf32>
    %cst_40 = arith.constant dense<0.000000e+00> : vector<256x4xf32>
    %49 = tpu.matmul %46, %48, %cst_40 {dimension_numbers = #tpu.dot_dimension_numbers<[1], [0], [0], [1], [0, 0, 1, 1], [], []>} : vector<256x4xf32>, vector<4x4xf32>, vector<256x4xf32> -> vector<256x4xf32>
    %50 = arith.addf %44, %49 : vector<256x4xf32>
    %51 = vector.extract_strided_slice %1 {offsets = [2, 2, 0], sizes = [16, 16, 4], strides = [1, 1, 1]} : vector<18x18x4xf32> to vector<16x16x4xf32>
    %52 = vector.shape_cast %51 : vector<16x16x4xf32> to vector<256x4xf32>
    %c2_41 = arith.constant 2 : index
    %c2_42 = arith.constant 2 : index
    %c0_43 = arith.constant 0 : index
    %c0_44 = arith.constant 0 : index
    %53 = vector.load %arg2[%c2_41, %c2_42, %c0_43, %c0_44] : memref<3x3x4x4xf32, #tpu.memory_space<vmem>>, vector<1x1x4x4xf32>
    %54 = vector.shape_cast %53 : vector<1x1x4x4xf32> to vector<4x4xf32>
    %cst_45 = arith.constant dense<0.000000e+00> : vector<256x4xf32>
    %55 = tpu.matmul %52, %54, %cst_45 {dimension_numbers = #tpu.dot_dimension_numbers<[1], [0], [0], [1], [0, 0, 1, 1], [], []>} : vector<256x4xf32>, vector<4x4xf32>, vector<256x4xf32> -> vector<256x4xf32>
    %56 = arith.addf %50, %55 : vector<256x4xf32>
    %c0_46 = arith.constant 0 : index
    %c0_47 = arith.constant 0 : index
    %57 = vector.load %arg3[%c0_46, %c0_47] : memref<1x4xf32, #tpu.memory_space<vmem>>, vector<1x4xf32>
    %58 = vector.broadcast %57 : vector<1x4xf32> to vector<256x4xf32>
    %59 = arith.addf %56, %58 : vector<256x4xf32>
    %60 = vector.shape_cast %59 : vector<256x4xf32> to vector<16x16x4xf32>
    %c0_48 = arith.constant 0 : index
    %c0_49 = arith.constant 0 : index
    %c0_50 = arith.constant 0 : index
    %c0_51 = arith.constant 0 : index
    %61 = vector.load %arg4[%c0_48, %c0_49, %c0_50, %c0_51] : memref<1x16x16x4xf32, #tpu.memory_space<vmem>>, vector<1x16x16x4xf32>
    %62 = vector.shape_cast %61 : vector<1x16x16x4xf32> to vector<16x16x4xf32>
    %63 = vector.shape_cast %60 : vector<16x16x4xf32> to vector<1x16x16x4xf32>
    tpu.vector_store %arg4[%c0_48, %c0_49, %c0_50, %c0_51], %63 {strides = array<i32>} : memref<1x16x16x4xf32, #tpu.memory_space<vmem>>, vector<1x16x16x4xf32>,
    return
  }
  func.func @transform_0(%arg0: i32) -> (i32, i32, i32, i32) {
    %c0_i32 = arith.constant 0 : i32
    %c0_i32_0 = arith.constant 0 : i32
    %c0_i32_1 = arith.constant 0 : i32
    %c0_i32_2 = arith.constant 0 : i32
    return %arg0, %c0_i32, %c0_i32_0, %c0_i32_1 : i32, i32, i32, i32
  }
  func.func @transform_1(%arg0: i32) -> (i32, i32, i32, i32) {
    %c0_i32 = arith.constant 0 : i32
    %c0_i32_0 = arith.constant 0 : i32
    %c0_i32_1 = arith.constant 0 : i32
    %c0_i32_2 = arith.constant 0 : i32
    %c0_i32_3 = arith.constant 0 : i32
    return %c0_i32, %c0_i32_0, %c0_i32_1, %c0_i32_2 : i32, i32, i32, i32
  }
  func.func @transform_2(%arg0: i32) -> (i32, i32) {
    %c0_i32 = arith.constant 0 : i32
    %c0_i32_0 = arith.constant 0 : i32
    %c0_i32_1 = arith.constant 0 : i32
    return %c0_i32, %c0_i32_0 : i32, i32
  }
  func.func @transform_3(%arg0: i32) -> (i32, i32, i32, i32) {
    %c0_i32 = arith.constant 0 : i32
    %c0_i32_0 = arith.constant 0 : i32
    %c0_i32_1 = arith.constant 0 : i32
    %c0_i32_2 = arith.constant 0 : i32
    return %arg0, %c0_i32, %c0_i32_0, %c0_i32_1 : i32, i32, i32, i32
  }
}

module attributes {stable_mosaic.version = 11 : i64} {
  func.func @_stats_kernel(%arg0: i32, %arg1: memref<16x128xf32, #tpu.memory_space<vmem>>, %arg2: memref<1x128xf32, #tpu.memory_space<vmem>>, %arg3: memref<1x128xf32, #tpu.memory_space<vmem>>) attributes {dimension_semantics = [#tpu.dimension_semantics<arbitrary>], iteration_bounds = array<i64: 1>, scalar_prefetch = 0 : i64, scratch_operands = 0 : i64, tpu.core_type = #tpu.core_type<tc>, window_params = [{transform_indices = @transform_0, window_bounds = array<i64: 16, 128>}, {pipeline_mode = #tpu.pipeline_mode<synchronous>, transform_indices = @transform_1, window_bounds = array<i64: 1, 128>}, {pipeline_mode = #tpu.pipeline_mode<synchronous>, transform_indices = @transform_2, window_bounds = array<i64: 1, 128>}]} {
    %c0_i32 = arith.constant 0 : i32
    %0 = arith.cmpi eq, %arg0, %c0_i32 : i32
    %1 = arith.extui %0 : i1 to i32
    %c0_i32_0 = arith.constant 0 : i32
    %2 = arith.cmpi ne, %1, %c0_i32_0 : i32
    scf.if %2 {
      %cst_11 = arith.constant 0.000000e+00 : f32
      %15 = vector.broadcast %cst_11 : f32 to vector<1x128xf32>
      %c0_12 = arith.constant 0 : index
      %c0_13 = arith.constant 0 : index
      %16 = vector.load %arg2[%c0_12, %c0_13] : memref<1x128xf32, #tpu.memory_space<vmem>>, vector<1x128xf32>
      tpu.vector_store %arg2[%c0_12, %c0_13], %15 {strides = array<i32>} : memref<1x128xf32, #tpu.memory_space<vmem>>, vector<1x128xf32>,
      %cst_14 = arith.constant 0.000000e+00 : f32
      %17 = vector.broadcast %cst_14 : f32 to vector<1x128xf32>
      %c0_15 = arith.constant 0 : index
      %c0_16 = arith.constant 0 : index
      %18 = vector.load %arg3[%c0_15, %c0_16] : memref<1x128xf32, #tpu.memory_space<vmem>>, vector<1x128xf32>
      tpu.vector_store %arg3[%c0_15, %c0_16], %17 {strides = array<i32>} : memref<1x128xf32, #tpu.memory_space<vmem>>, vector<1x128xf32>,
    } else {
    }
    %c0 = arith.constant 0 : index
    %c0_1 = arith.constant 0 : index
    %3 = vector.load %arg1[%c0, %c0_1] : memref<16x128xf32, #tpu.memory_space<vmem>>, vector<16x128xf32>
    %c0_2 = arith.constant 0 : index
    %c0_3 = arith.constant 0 : index
    %4 = vector.load %arg2[%c0_2, %c0_3] : memref<1x128xf32, #tpu.memory_space<vmem>>, vector<1x128xf32>
    %cst = arith.constant dense<0.000000e+00> : vector<128xf32>
    %5 = vector.multi_reduction <add>, %3, %cst [0] : vector<16x128xf32> to vector<128xf32>
    %6 = vector.shape_cast %5 : vector<128xf32> to vector<1x128xf32>
    %7 = arith.addf %4, %6 : vector<1x128xf32>
    %c0_4 = arith.constant 0 : index
    %c0_5 = arith.constant 0 : index
    %8 = vector.load %arg2[%c0_4, %c0_5] : memref<1x128xf32, #tpu.memory_space<vmem>>, vector<1x128xf32>
    tpu.vector_store %arg2[%c0_4, %c0_5], %7 {strides = array<i32>} : memref<1x128xf32, #tpu.memory_space<vmem>>, vector<1x128xf32>,
    %c0_6 = arith.constant 0 : index
    %c0_7 = arith.constant 0 : index
    %9 = vector.load %arg3[%c0_6, %c0_7] : memref<1x128xf32, #tpu.memory_space<vmem>>, vector<1x128xf32>
    %10 = arith.mulf %3, %3 : vector<16x128xf32>
    %cst_8 = arith.constant dense<0.000000e+00> : vector<128xf32>
    %11 = vector.multi_reduction <add>, %10, %cst_8 [0] : vector<16x128xf32> to vector<128xf32>
    %12 = vector.shape_cast %11 : vector<128xf32> to vector<1x128xf32>
    %13 = arith.addf %9, %12 : vector<1x128xf32>
    %c0_9 = arith.constant 0 : index
    %c0_10 = arith.constant 0 : index
    %14 = vector.load %arg3[%c0_9, %c0_10] : memref<1x128xf32, #tpu.memory_space<vmem>>, vector<1x128xf32>
    tpu.vector_store %arg3[%c0_9, %c0_10], %13 {strides = array<i32>} : memref<1x128xf32, #tpu.memory_space<vmem>>, vector<1x128xf32>,
    return
  }
  func.func @transform_0(%arg0: i32) -> (i32, i32) {
    %c0_i32 = arith.constant 0 : i32
    %c0_i32_0 = arith.constant 0 : i32
    return %arg0, %c0_i32 : i32, i32
  }
  func.func @transform_1(%arg0: i32) -> (i32, i32) {
    %c0_i32 = arith.constant 0 : i32
    %c0_i32_0 = arith.constant 0 : i32
    %c0_i32_1 = arith.constant 0 : i32
    return %c0_i32, %c0_i32_0 : i32, i32
  }
  func.func @transform_2(%arg0: i32) -> (i32, i32) {
    %c0_i32 = arith.constant 0 : i32
    %c0_i32_0 = arith.constant 0 : i32
    %c0_i32_1 = arith.constant 0 : i32
    return %c0_i32, %c0_i32_0 : i32, i32
  }
}

module attributes {stable_mosaic.version = 11 : i64} {
  func.func @_affine_kernel(%arg0: i32, %arg1: memref<16x128xf32, #tpu.memory_space<vmem>>, %arg2: memref<1x128xf32, #tpu.memory_space<vmem>>, %arg3: memref<1x128xf32, #tpu.memory_space<vmem>>, %arg4: memref<16x128xf32, #tpu.memory_space<vmem>>) attributes {dimension_semantics = [#tpu.dimension_semantics<parallel>], iteration_bounds = array<i64: 1>, scalar_prefetch = 0 : i64, scratch_operands = 0 : i64, tpu.core_type = #tpu.core_type<tc>, window_params = [{transform_indices = @transform_0, window_bounds = array<i64: 16, 128>}, {pipeline_mode = #tpu.pipeline_mode<synchronous>, transform_indices = @transform_1, window_bounds = array<i64: 1, 128>}, {pipeline_mode = #tpu.pipeline_mode<synchronous>, transform_indices = @transform_2, window_bounds = array<i64: 1, 128>}, {transform_indices = @transform_3, window_bounds = array<i64: 16, 128>}]} {
    %c0 = arith.constant 0 : index
    %c0_0 = arith.constant 0 : index
    %0 = vector.load %arg1[%c0, %c0_0] : memref<16x128xf32, #tpu.memory_space<vmem>>, vector<16x128xf32>
    %c0_1 = arith.constant 0 : index
    %c0_2 = arith.constant 0 : index
    %1 = vector.load %arg2[%c0_1, %c0_2] : memref<1x128xf32, #tpu.memory_space<vmem>>, vector<1x128xf32>
    %2 = vector.broadcast %1 : vector<1x128xf32> to vector<16x128xf32>
    %3 = arith.mulf %0, %2 : vector<16x128xf32>
    %c0_3 = arith.constant 0 : index
    %c0_4 = arith.constant 0 : index
    %4 = vector.load %arg3[%c0_3, %c0_4] : memref<1x128xf32, #tpu.memory_space<vmem>>, vector<1x128xf32>
    %5 = vector.broadcast %4 : vector<1x128xf32> to vector<16x128xf32>
    %6 = arith.addf %3, %5 : vector<16x128xf32>
    %cst = arith.constant 2.000000e+01 : f32
    %7 = vector.broadcast %cst : f32 to vector<16x128xf32>
    %8 = arith.minimumf %6, %7 : vector<16x128xf32>
    %9 = math.exp %8 : vector<16x128xf32>
    %cst_5 = arith.constant 2.000000e+00 : f32
    %10 = vector.broadcast %cst_5 : f32 to vector<16x128xf32>
    %11 = arith.addf %9, %10 : vector<16x128xf32>
    %12 = arith.mulf %9, %11 : vector<16x128xf32>
    %cst_6 = arith.constant 2.000000e+00 : f32
    %13 = vector.broadcast %cst_6 : f32 to vector<16x128xf32>
    %14 = arith.addf %12, %13 : vector<16x128xf32>
    %15 = arith.divf %12, %14 : vector<16x128xf32>
    %16 = arith.mulf %6, %15 : vector<16x128xf32>
    %c0_7 = arith.constant 0 : index
    %c0_8 = arith.constant 0 : index
    %17 = vector.load %arg4[%c0_7, %c0_8] : memref<16x128xf32, #tpu.memory_space<vmem>>, vector<16x128xf32>
    tpu.vector_store %arg4[%c0_7, %c0_8], %16 {strides = array<i32>} : memref<16x128xf32, #tpu.memory_space<vmem>>, vector<16x128xf32>,
    return
  }
  func.func @transform_0(%arg0: i32) -> (i32, i32) {
    %c0_i32 = arith.constant 0 : i32
    %c0_i32_0 = arith.constant 0 : i32
    return %arg0, %c0_i32 : i32, i32
  }
  func.func @transform_1(%arg0: i32) -> (i32, i32) {
    %c0_i32 = arith.constant 0 : i32
    %c0_i32_0 = arith.constant 0 : i32
    %c0_i32_1 = arith.constant 0 : i32
    return %c0_i32, %c0_i32_0 : i32, i32
  }
  func.func @transform_2(%arg0: i32) -> (i32, i32) {
    %c0_i32 = arith.constant 0 : i32
    %c0_i32_0 = arith.constant 0 : i32
    %c0_i32_1 = arith.constant 0 : i32
    return %c0_i32, %c0_i32_0 : i32, i32
  }
  func.func @transform_3(%arg0: i32) -> (i32, i32) {
    %c0_i32 = arith.constant 0 : i32
    %c0_i32_0 = arith.constant 0 : i32
    return %arg0, %c0_i32 : i32, i32
  }
}

module attributes {stable_mosaic.version = 11 : i64} {
  func.func @_affine_kernel(%arg0: i32, %arg1: memref<16x128xf32, #tpu.memory_space<vmem>>, %arg2: memref<1x128xf32, #tpu.memory_space<vmem>>, %arg3: memref<1x128xf32, #tpu.memory_space<vmem>>, %arg4: memref<16x128xf32, #tpu.memory_space<vmem>>) attributes {dimension_semantics = [#tpu.dimension_semantics<parallel>], iteration_bounds = array<i64: 1>, scalar_prefetch = 0 : i64, scratch_operands = 0 : i64, tpu.core_type = #tpu.core_type<tc>, window_params = [{transform_indices = @transform_0, window_bounds = array<i64: 16, 128>}, {pipeline_mode = #tpu.pipeline_mode<synchronous>, transform_indices = @transform_1, window_bounds = array<i64: 1, 128>}, {pipeline_mode = #tpu.pipeline_mode<synchronous>, transform_indices = @transform_2, window_bounds = array<i64: 1, 128>}, {transform_indices = @transform_3, window_bounds = array<i64: 16, 128>}]} {
    %c0 = arith.constant 0 : index
    %c0_0 = arith.constant 0 : index
    %0 = vector.load %arg1[%c0, %c0_0] : memref<16x128xf32, #tpu.memory_space<vmem>>, vector<16x128xf32>
    %c0_1 = arith.constant 0 : index
    %c0_2 = arith.constant 0 : index
    %1 = vector.load %arg2[%c0_1, %c0_2] : memref<1x128xf32, #tpu.memory_space<vmem>>, vector<1x128xf32>
    %2 = vector.broadcast %1 : vector<1x128xf32> to vector<16x128xf32>
    %3 = arith.mulf %0, %2 : vector<16x128xf32>
    %c0_3 = arith.constant 0 : index
    %c0_4 = arith.constant 0 : index
    %4 = vector.load %arg3[%c0_3, %c0_4] : memref<1x128xf32, #tpu.memory_space<vmem>>, vector<1x128xf32>
    %5 = vector.broadcast %4 : vector<1x128xf32> to vector<16x128xf32>
    %6 = arith.addf %3, %5 : vector<16x128xf32>
    %c0_5 = arith.constant 0 : index
    %c0_6 = arith.constant 0 : index
    %7 = vector.load %arg4[%c0_5, %c0_6] : memref<16x128xf32, #tpu.memory_space<vmem>>, vector<16x128xf32>
    tpu.vector_store %arg4[%c0_5, %c0_6], %6 {strides = array<i32>} : memref<16x128xf32, #tpu.memory_space<vmem>>, vector<16x128xf32>,
    return
  }
  func.func @transform_0(%arg0: i32) -> (i32, i32) {
    %c0_i32 = arith.constant 0 : i32
    %c0_i32_0 = arith.constant 0 : i32
    return %arg0, %c0_i32 : i32, i32
  }
  func.func @transform_1(%arg0: i32) -> (i32, i32) {
    %c0_i32 = arith.constant 0 : i32
    %c0_i32_0 = arith.constant 0 : i32
    %c0_i32_1 = arith.constant 0 : i32
    return %c0_i32, %c0_i32_0 : i32, i32
  }
  func.func @transform_2(%arg0: i32) -> (i32, i32) {
    %c0_i32 = arith.constant 0 : i32
    %c0_i32_0 = arith.constant 0 : i32
    %c0_i32_1 = arith.constant 0 : i32
    return %c0_i32, %c0_i32_0 : i32, i32
  }
  func.func @transform_3(%arg0: i32) -> (i32, i32) {
    %c0_i32 = arith.constant 0 : i32
    %c0_i32_0 = arith.constant 0 : i32
    return %arg0, %c0_i32 : i32, i32
  }
}

module attributes {stable_mosaic.version = 11 : i64} {
  func.func @_proj_kernel(%arg0: i32, %arg1: memref<512x4xf32, #tpu.memory_space<vmem>>, %arg2: memref<4x12xf32, #tpu.memory_space<vmem>>, %arg3: memref<1x12xf32, #tpu.memory_space<vmem>>, %arg4: memref<2x512x6xf32, #tpu.memory_space<vmem>>) attributes {dimension_semantics = [#tpu.dimension_semantics<parallel>], iteration_bounds = array<i64: 1>, scalar_prefetch = 0 : i64, scratch_operands = 0 : i64, tpu.core_type = #tpu.core_type<tc>, window_params = [{transform_indices = @transform_0, window_bounds = array<i64: 512, 4>}, {pipeline_mode = #tpu.pipeline_mode<synchronous>, transform_indices = @transform_1, window_bounds = array<i64: 4, 12>}, {pipeline_mode = #tpu.pipeline_mode<synchronous>, transform_indices = @transform_2, window_bounds = array<i64: 1, 12>}, {transform_indices = @transform_3, window_bounds = array<i64: 2, 512, 6>}]} {
    %c0 = arith.constant 0 : index
    %c0_0 = arith.constant 0 : index
    %0 = vector.load %arg1[%c0, %c0_0] : memref<512x4xf32, #tpu.memory_space<vmem>>, vector<512x4xf32>
    %c0_1 = arith.constant 0 : index
    %c0_2 = arith.constant 0 : index
    %1 = vector.load %arg2[%c0_1, %c0_2] : memref<4x12xf32, #tpu.memory_space<vmem>>, vector<4x12xf32>
    %cst = arith.constant dense<0.000000e+00> : vector<512x12xf32>
    %2 = tpu.matmul %0, %1, %cst {dimension_numbers = #tpu.dot_dimension_numbers<[1], [0], [0], [1], [0, 0, 1, 1], [], []>} : vector<512x4xf32>, vector<4x12xf32>, vector<512x12xf32> -> vector<512x12xf32>
    %c0_3 = arith.constant 0 : index
    %c0_4 = arith.constant 0 : index
    %3 = vector.load %arg3[%c0_3, %c0_4] : memref<1x12xf32, #tpu.memory_space<vmem>>, vector<1x12xf32>
    %4 = vector.broadcast %3 : vector<1x12xf32> to vector<512x12xf32>
    %5 = arith.addf %2, %4 : vector<512x12xf32>
    %6 = vector.extract_strided_slice %5 {offsets = [0, 0], sizes = [512, 6], strides = [1, 1]} : vector<512x12xf32> to vector<512x6xf32>
    %c0_5 = arith.constant 0 : index
    %c0_6 = arith.constant 0 : index
    %c0_7 = arith.constant 0 : index
    %7 = vector.load %arg4[%c0_5, %c0_6, %c0_7] : memref<2x512x6xf32, #tpu.memory_space<vmem>>, vector<1x512x6xf32>
    %8 = vector.shape_cast %7 : vector<1x512x6xf32> to vector<512x6xf32>
    %9 = vector.shape_cast %6 : vector<512x6xf32> to vector<1x512x6xf32>
    tpu.vector_store %arg4[%c0_5, %c0_6, %c0_7], %9 {strides = array<i32>} : memref<2x512x6xf32, #tpu.memory_space<vmem>>, vector<1x512x6xf32>,
    %10 = vector.extract_strided_slice %5 {offsets = [0, 6], sizes = [512, 6], strides = [1, 1]} : vector<512x12xf32> to vector<512x6xf32>
    %c1 = arith.constant 1 : index
    %c0_8 = arith.constant 0 : index
    %c0_9 = arith.constant 0 : index
    %11 = vector.load %arg4[%c1, %c0_8, %c0_9] : memref<2x512x6xf32, #tpu.memory_space<vmem>>, vector<1x512x6xf32>
    %12 = vector.shape_cast %11 : vector<1x512x6xf32> to vector<512x6xf32>
    %13 = vector.shape_cast %10 : vector<512x6xf32> to vector<1x512x6xf32>
    tpu.vector_store %arg4[%c1, %c0_8, %c0_9], %13 {strides = array<i32>} : memref<2x512x6xf32, #tpu.memory_space<vmem>>, vector<1x512x6xf32>,
    return
  }
  func.func @transform_0(%arg0: i32) -> (i32, i32) {
    %c0_i32 = arith.constant 0 : i32
    %c0_i32_0 = arith.constant 0 : i32
    return %arg0, %c0_i32 : i32, i32
  }
  func.func @transform_1(%arg0: i32) -> (i32, i32) {
    %c0_i32 = arith.constant 0 : i32
    %c0_i32_0 = arith.constant 0 : i32
    %c0_i32_1 = arith.constant 0 : i32
    return %c0_i32, %c0_i32_0 : i32, i32
  }
  func.func @transform_2(%arg0: i32) -> (i32, i32) {
    %c0_i32 = arith.constant 0 : i32
    %c0_i32_0 = arith.constant 0 : i32
    %c0_i32_1 = arith.constant 0 : i32
    return %c0_i32, %c0_i32_0 : i32, i32
  }
  func.func @transform_3(%arg0: i32) -> (i32, i32, i32) {
    %c0_i32 = arith.constant 0 : i32
    %c0_i32_0 = arith.constant 0 : i32
    %c0_i32_1 = arith.constant 0 : i32
    return %c0_i32, %arg0, %c0_i32_0 : i32, i32, i32
  }
}

module attributes {stable_mosaic.version = 11 : i64} {
  func.func @_gru_step_kernel(%arg0: i32, %arg1: i32, %arg2: memref<1x32x1x1x6xf32, #tpu.memory_space<vmem>>, %arg3: memref<1x2x6xf32, #tpu.memory_space<vmem>>, %arg4: memref<1x1x6xf32, #tpu.memory_space<vmem>>, %arg5: memref<1x32x1x1x2xf32, #tpu.memory_space<vmem>>, %arg6: memref<32x2xf32, #tpu.memory_space<vmem>>) attributes {dimension_semantics = [#tpu.dimension_semantics<parallel>, #tpu.dimension_semantics<arbitrary>], iteration_bounds = array<i64: 2, 16>, scalar_prefetch = 0 : i64, scratch_operands = 1 : i64, tpu.core_type = #tpu.core_type<tc>, window_params = [{transform_indices = @transform_0, window_bounds = array<i64: 1, 32, 1, 1, 6>}, {transform_indices = @transform_1, window_bounds = array<i64: 1, 2, 6>}, {transform_indices = @transform_2, window_bounds = array<i64: 1, 1, 6>}, {transform_indices = @transform_3, window_bounds = array<i64: 1, 32, 1, 1, 2>}]} {
    %c0_i32 = arith.constant 0 : i32
    %0 = arith.cmpi eq, %arg1, %c0_i32 : i32
    %1 = arith.extui %0 : i1 to i32
    %c0_i32_0 = arith.constant 0 : i32
    %2 = arith.cmpi ne, %1, %c0_i32_0 : i32
    scf.if %2 {
      %cst_23 = arith.constant 0.000000e+00 : f32
      %43 = vector.broadcast %cst_23 : f32 to vector<32x2xf32>
      %c0_24 = arith.constant 0 : index
      %c0_25 = arith.constant 0 : index
      %44 = vector.load %arg6[%c0_24, %c0_25] : memref<32x2xf32, #tpu.memory_space<vmem>>, vector<32x2xf32>
      tpu.vector_store %arg6[%c0_24, %c0_25], %43 {strides = array<i32>} : memref<32x2xf32, #tpu.memory_space<vmem>>, vector<32x2xf32>,
    } else {
    }
    %c0 = arith.constant 0 : index
    %c0_1 = arith.constant 0 : index
    %c0_2 = arith.constant 0 : index
    %c0_3 = arith.constant 0 : index
    %c0_4 = arith.constant 0 : index
    %3 = vector.load %arg2[%c0, %c0_1, %c0_2, %c0_3, %c0_4] : memref<1x32x1x1x6xf32, #tpu.memory_space<vmem>>, vector<1x32x1x1x6xf32>
    %4 = vector.shape_cast %3 : vector<1x32x1x1x6xf32> to vector<32x6xf32>
    %c0_5 = arith.constant 0 : index
    %c0_6 = arith.constant 0 : index
    %5 = vector.load %arg6[%c0_5, %c0_6] : memref<32x2xf32, #tpu.memory_space<vmem>>, vector<32x2xf32>
    %c0_7 = arith.constant 0 : index
    %c0_8 = arith.constant 0 : index
    %c0_9 = arith.constant 0 : index
    %6 = vector.load %arg3[%c0_7, %c0_8, %c0_9] : memref<1x2x6xf32, #tpu.memory_space<vmem>>, vector<1x2x6xf32>
    %7 = vector.shape_cast %6 : vector<1x2x6xf32> to vector<2x6xf32>
    %cst = arith.constant dense<0.000000e+00> : vector<32x6xf32>
    %8 = tpu.matmul %5, %7, %cst {dimension_numbers = #tpu.dot_dimension_numbers<[1], [0], [0], [1], [0, 0, 1, 1], [], []>} : vector<32x2xf32>, vector<2x6xf32>, vector<32x6xf32> -> vector<32x6xf32>
    %c0_10 = arith.constant 0 : index
    %c0_11 = arith.constant 0 : index
    %c0_12 = arith.constant 0 : index
    %9 = vector.load %arg4[%c0_10, %c0_11, %c0_12] : memref<1x1x6xf32, #tpu.memory_space<vmem>>, vector<1x1x6xf32>
    %10 = vector.shape_cast %9 : vector<1x1x6xf32> to vector<1x6xf32>
    %11 = vector.broadcast %10 : vector<1x6xf32> to vector<32x6xf32>
    %12 = arith.addf %8, %11 : vector<32x6xf32>
    %13 = vector.extract_strided_slice %4 {offsets = [0, 0], sizes = [32, 2], strides = [1, 1]} : vector<32x6xf32> to vector<32x2xf32>
    %14 = vector.extract_strided_slice %12 {offsets = [0, 0], sizes = [32, 2], strides = [1, 1]} : vector<32x6xf32> to vector<32x2xf32>
    %15 = arith.addf %13, %14 : vector<32x2xf32>
    %16 = arith.negf %15 : vector<32x2xf32>
    %17 = math.exp %16 : vector<32x2xf32>
    %cst_13 = arith.constant 1.000000e+00 : f32
    %18 = vector.broadcast %cst_13 : f32 to vector<32x2xf32>
    %19 = arith.addf %18, %17 : vector<32x2xf32>
    %20 = arith.divf %18, %19 : vector<32x2xf32>
    %21 = vector.extract_strided_slice %4 {offsets = [0, 2], sizes = [32, 2], strides = [1, 1]} : vector<32x6xf32> to vector<32x2xf32>
    %22 = vector.extract_strided_slice %12 {offsets = [0, 2], sizes = [32, 2], strides = [1, 1]} : vector<32x6xf32> to vector<32x2xf32>
    %23 = arith.addf %21, %22 : vector<32x2xf32>
    %24 = arith.negf %23 : vector<32x2xf32>
    %25 = math.exp %24 : vector<32x2xf32>
    %cst_14 = arith.constant 1.000000e+00 : f32
    %26 = vector.broadcast %cst_14 : f32 to vector<32x2xf32>
    %27 = arith.addf %26, %25 : vector<32x2xf32>
    %28 = arith.divf %26, %27 : vector<32x2xf32>
    %29 = vector.extract_strided_slice %4 {offsets = [0, 4], sizes = [32, 2], strides = [1, 1]} : vector<32x6xf32> to vector<32x2xf32>
    %30 = vector.extract_strided_slice %12 {offsets = [0, 4], sizes = [32, 2], strides = [1, 1]} : vector<32x6xf32> to vector<32x2xf32>
    %31 = arith.mulf %20, %30 : vector<32x2xf32>
    %32 = arith.addf %29, %31 : vector<32x2xf32>
    %33 = math.tanh %32 : vector<32x2xf32>
    %cst_15 = arith.constant 1.000000e+00 : f32
    %34 = vector.broadcast %cst_15 : f32 to vector<32x2xf32>
    %35 = arith.subf %34, %28 : vector<32x2xf32>
    %36 = arith.mulf %35, %33 : vector<32x2xf32>
    %37 = arith.mulf %28, %5 : vector<32x2xf32>
    %38 = arith.addf %36, %37 : vector<32x2xf32>
    %c0_16 = arith.constant 0 : index
    %c0_17 = arith.constant 0 : index
    %39 = vector.load %arg6[%c0_16, %c0_17] : memref<32x2xf32, #tpu.memory_space<vmem>>, vector<32x2xf32>
    tpu.vector_store %arg6[%c0_16, %c0_17], %38 {strides = array<i32>} : memref<32x2xf32, #tpu.memory_space<vmem>>, vector<32x2xf32>,
    %c0_18 = arith.constant 0 : index
    %c0_19 = arith.constant 0 : index
    %c0_20 = arith.constant 0 : index
    %c0_21 = arith.constant 0 : index
    %c0_22 = arith.constant 0 : index
    %40 = vector.load %arg5[%c0_18, %c0_19, %c0_20, %c0_21, %c0_22] : memref<1x32x1x1x2xf32, #tpu.memory_space<vmem>>, vector<1x32x1x1x2xf32>
    %41 = vector.shape_cast %40 : vector<1x32x1x1x2xf32> to vector<32x2xf32>
    %42 = vector.shape_cast %38 : vector<32x2xf32> to vector<1x32x1x1x2xf32>
    tpu.vector_store %arg5[%c0_18, %c0_19, %c0_20, %c0_21, %c0_22], %42 {strides = array<i32>} : memref<1x32x1x1x2xf32, #tpu.memory_space<vmem>>, vector<1x32x1x1x2xf32>,
    return
  }
  func.func @transform_0(%arg0: i32, %arg1: i32) -> (i32, i32, i32, i32, i32) {
    %c2_i32 = arith.constant 2 : i32
    %0 = arith.muli %c2_i32, %arg0 : i32
    %c1_i32 = arith.constant 1 : i32
    %1 = arith.subi %c1_i32, %0 : i32
    %2 = arith.muli %arg1, %1 : i32
    %c15_i32 = arith.constant 15 : i32
    %3 = arith.muli %arg0, %c15_i32 : i32
    %4 = arith.addi %2, %3 : i32
    %c0_i32 = arith.constant 0 : i32
    %c0_i32_0 = arith.constant 0 : i32
    %c0_i32_1 = arith.constant 0 : i32
    %c0_i32_2 = arith.constant 0 : i32
    return %arg0, %c0_i32, %4, %c0_i32_0, %c0_i32_1 : i32, i32, i32, i32, i32
  }
  func.func @transform_1(%arg0: i32, %arg1: i32) -> (i32, i32, i32) {
    %c0_i32 = arith.constant 0 : i32
    %c0_i32_0 = arith.constant 0 : i32
    %c0_i32_1 = arith.constant 0 : i32
    return %arg0, %c0_i32, %c0_i32_0 : i32, i32, i32
  }
  func.func @transform_2(%arg0: i32, %arg1: i32) -> (i32, i32, i32) {
    %c0_i32 = arith.constant 0 : i32
    %c0_i32_0 = arith.constant 0 : i32
    %c0_i32_1 = arith.constant 0 : i32
    return %arg0, %c0_i32, %c0_i32_0 : i32, i32, i32
  }
  func.func @transform_3(%arg0: i32, %arg1: i32) -> (i32, i32, i32, i32, i32) {
    %c2_i32 = arith.constant 2 : i32
    %0 = arith.muli %c2_i32, %arg0 : i32
    %c1_i32 = arith.constant 1 : i32
    %1 = arith.subi %c1_i32, %0 : i32
    %2 = arith.muli %arg1, %1 : i32
    %c15_i32 = arith.constant 15 : i32
    %3 = arith.muli %arg0, %c15_i32 : i32
    %4 = arith.addi %2, %3 : i32
    %c0_i32 = arith.constant 0 : i32
    %c0_i32_0 = arith.constant 0 : i32
    %c0_i32_1 = arith.constant 0 : i32
    %c0_i32_2 = arith.constant 0 : i32
    return %arg0, %c0_i32, %4, %c0_i32_0, %c0_i32_1 : i32, i32, i32, i32, i32
  }
}

module attributes {stable_mosaic.version = 11 : i64} {
  func.func @_gru_step_kernel(%arg0: i32, %arg1: i32, %arg2: memref<1x2x1x16x6xf32, #tpu.memory_space<vmem>>, %arg3: memref<1x2x6xf32, #tpu.memory_space<vmem>>, %arg4: memref<1x1x6xf32, #tpu.memory_space<vmem>>, %arg5: memref<1x2x1x16x2xf32, #tpu.memory_space<vmem>>, %arg6: memref<32x2xf32, #tpu.memory_space<vmem>>) attributes {dimension_semantics = [#tpu.dimension_semantics<parallel>, #tpu.dimension_semantics<arbitrary>], iteration_bounds = array<i64: 2, 16>, scalar_prefetch = 0 : i64, scratch_operands = 1 : i64, tpu.core_type = #tpu.core_type<tc>, window_params = [{transform_indices = @transform_0, window_bounds = array<i64: 1, 2, 1, 16, 6>}, {transform_indices = @transform_1, window_bounds = array<i64: 1, 2, 6>}, {transform_indices = @transform_2, window_bounds = array<i64: 1, 1, 6>}, {transform_indices = @transform_3, window_bounds = array<i64: 1, 2, 1, 16, 2>}]} {
    %c0_i32 = arith.constant 0 : i32
    %0 = arith.cmpi eq, %arg1, %c0_i32 : i32
    %1 = arith.extui %0 : i1 to i32
    %c0_i32_0 = arith.constant 0 : i32
    %2 = arith.cmpi ne, %1, %c0_i32_0 : i32
    scf.if %2 {
      %cst_23 = arith.constant 0.000000e+00 : f32
      %45 = vector.broadcast %cst_23 : f32 to vector<32x2xf32>
      %c0_24 = arith.constant 0 : index
      %c0_25 = arith.constant 0 : index
      %46 = vector.load %arg6[%c0_24, %c0_25] : memref<32x2xf32, #tpu.memory_space<vmem>>, vector<32x2xf32>
      tpu.vector_store %arg6[%c0_24, %c0_25], %45 {strides = array<i32>} : memref<32x2xf32, #tpu.memory_space<vmem>>, vector<32x2xf32>,
    } else {
    }
    %c0 = arith.constant 0 : index
    %c0_1 = arith.constant 0 : index
    %c0_2 = arith.constant 0 : index
    %c0_3 = arith.constant 0 : index
    %c0_4 = arith.constant 0 : index
    %3 = vector.load %arg2[%c0, %c0_1, %c0_2, %c0_3, %c0_4] : memref<1x2x1x16x6xf32, #tpu.memory_space<vmem>>, vector<1x2x1x16x6xf32>
    %4 = vector.shape_cast %3 : vector<1x2x1x16x6xf32> to vector<2x16x6xf32>
    %5 = vector.shape_cast %4 : vector<2x16x6xf32> to vector<32x6xf32>
    %c0_5 = arith.constant 0 : index
    %c0_6 = arith.constant 0 : index
    %6 = vector.load %arg6[%c0_5, %c0_6] : memref<32x2xf32, #tpu.memory_space<vmem>>, vector<32x2xf32>
    %c0_7 = arith.constant 0 : index
    %c0_8 = arith.constant 0 : index
    %c0_9 = arith.constant 0 : index
    %7 = vector.load %arg3[%c0_7, %c0_8, %c0_9] : memref<1x2x6xf32, #tpu.memory_space<vmem>>, vector<1x2x6xf32>
    %8 = vector.shape_cast %7 : vector<1x2x6xf32> to vector<2x6xf32>
    %cst = arith.constant dense<0.000000e+00> : vector<32x6xf32>
    %9 = tpu.matmul %6, %8, %cst {dimension_numbers = #tpu.dot_dimension_numbers<[1], [0], [0], [1], [0, 0, 1, 1], [], []>} : vector<32x2xf32>, vector<2x6xf32>, vector<32x6xf32> -> vector<32x6xf32>
    %c0_10 = arith.constant 0 : index
    %c0_11 = arith.constant 0 : index
    %c0_12 = arith.constant 0 : index
    %10 = vector.load %arg4[%c0_10, %c0_11, %c0_12] : memref<1x1x6xf32, #tpu.memory_space<vmem>>, vector<1x1x6xf32>
    %11 = vector.shape_cast %10 : vector<1x1x6xf32> to vector<1x6xf32>
    %12 = vector.broadcast %11 : vector<1x6xf32> to vector<32x6xf32>
    %13 = arith.addf %9, %12 : vector<32x6xf32>
    %14 = vector.extract_strided_slice %5 {offsets = [0, 0], sizes = [32, 2], strides = [1, 1]} : vector<32x6xf32> to vector<32x2xf32>
    %15 = vector.extract_strided_slice %13 {offsets = [0, 0], sizes = [32, 2], strides = [1, 1]} : vector<32x6xf32> to vector<32x2xf32>
    %16 = arith.addf %14, %15 : vector<32x2xf32>
    %17 = arith.negf %16 : vector<32x2xf32>
    %18 = math.exp %17 : vector<32x2xf32>
    %cst_13 = arith.constant 1.000000e+00 : f32
    %19 = vector.broadcast %cst_13 : f32 to vector<32x2xf32>
    %20 = arith.addf %19, %18 : vector<32x2xf32>
    %21 = arith.divf %19, %20 : vector<32x2xf32>
    %22 = vector.extract_strided_slice %5 {offsets = [0, 2], sizes = [32, 2], strides = [1, 1]} : vector<32x6xf32> to vector<32x2xf32>
    %23 = vector.extract_strided_slice %13 {offsets = [0, 2], sizes = [32, 2], strides = [1, 1]} : vector<32x6xf32> to vector<32x2xf32>
    %24 = arith.addf %22, %23 : vector<32x2xf32>
    %25 = arith.negf %24 : vector<32x2xf32>
    %26 = math.exp %25 : vector<32x2xf32>
    %cst_14 = arith.constant 1.000000e+00 : f32
    %27 = vector.broadcast %cst_14 : f32 to vector<32x2xf32>
    %28 = arith.addf %27, %26 : vector<32x2xf32>
    %29 = arith.divf %27, %28 : vector<32x2xf32>
    %30 = vector.extract_strided_slice %5 {offsets = [0, 4], sizes = [32, 2], strides = [1, 1]} : vector<32x6xf32> to vector<32x2xf32>
    %31 = vector.extract_strided_slice %13 {offsets = [0, 4], sizes = [32, 2], strides = [1, 1]} : vector<32x6xf32> to vector<32x2xf32>
    %32 = arith.mulf %21, %31 : vector<32x2xf32>
    %33 = arith.addf %30, %32 : vector<32x2xf32>
    %34 = math.tanh %33 : vector<32x2xf32>
    %cst_15 = arith.constant 1.000000e+00 : f32
    %35 = vector.broadcast %cst_15 : f32 to vector<32x2xf32>
    %36 = arith.subf %35, %29 : vector<32x2xf32>
    %37 = arith.mulf %36, %34 : vector<32x2xf32>
    %38 = arith.mulf %29, %6 : vector<32x2xf32>
    %39 = arith.addf %37, %38 : vector<32x2xf32>
    %c0_16 = arith.constant 0 : index
    %c0_17 = arith.constant 0 : index
    %40 = vector.load %arg6[%c0_16, %c0_17] : memref<32x2xf32, #tpu.memory_space<vmem>>, vector<32x2xf32>
    tpu.vector_store %arg6[%c0_16, %c0_17], %39 {strides = array<i32>} : memref<32x2xf32, #tpu.memory_space<vmem>>, vector<32x2xf32>,
    %41 = vector.shape_cast %39 : vector<32x2xf32> to vector<2x16x2xf32>
    %c0_18 = arith.constant 0 : index
    %c0_19 = arith.constant 0 : index
    %c0_20 = arith.constant 0 : index
    %c0_21 = arith.constant 0 : index
    %c0_22 = arith.constant 0 : index
    %42 = vector.load %arg5[%c0_18, %c0_19, %c0_20, %c0_21, %c0_22] : memref<1x2x1x16x2xf32, #tpu.memory_space<vmem>>, vector<1x2x1x16x2xf32>
    %43 = vector.shape_cast %42 : vector<1x2x1x16x2xf32> to vector<2x16x2xf32>
    %44 = vector.shape_cast %41 : vector<2x16x2xf32> to vector<1x2x1x16x2xf32>
    tpu.vector_store %arg5[%c0_18, %c0_19, %c0_20, %c0_21, %c0_22], %44 {strides = array<i32>} : memref<1x2x1x16x2xf32, #tpu.memory_space<vmem>>, vector<1x2x1x16x2xf32>,
    return
  }
  func.func @transform_0(%arg0: i32, %arg1: i32) -> (i32, i32, i32, i32, i32) {
    %c2_i32 = arith.constant 2 : i32
    %0 = arith.muli %c2_i32, %arg0 : i32
    %c1_i32 = arith.constant 1 : i32
    %1 = arith.subi %c1_i32, %0 : i32
    %2 = arith.muli %arg1, %1 : i32
    %c15_i32 = arith.constant 15 : i32
    %3 = arith.muli %arg0, %c15_i32 : i32
    %4 = arith.addi %2, %3 : i32
    %c0_i32 = arith.constant 0 : i32
    %c0_i32_0 = arith.constant 0 : i32
    %c0_i32_1 = arith.constant 0 : i32
    %c0_i32_2 = arith.constant 0 : i32
    return %arg0, %c0_i32, %4, %c0_i32_0, %c0_i32_1 : i32, i32, i32, i32, i32
  }
  func.func @transform_1(%arg0: i32, %arg1: i32) -> (i32, i32, i32) {
    %c0_i32 = arith.constant 0 : i32
    %c0_i32_0 = arith.constant 0 : i32
    %c0_i32_1 = arith.constant 0 : i32
    return %arg0, %c0_i32, %c0_i32_0 : i32, i32, i32
  }
  func.func @transform_2(%arg0: i32, %arg1: i32) -> (i32, i32, i32) {
    %c0_i32 = arith.constant 0 : i32
    %c0_i32_0 = arith.constant 0 : i32
    %c0_i32_1 = arith.constant 0 : i32
    return %arg0, %c0_i32, %c0_i32_0 : i32, i32, i32
  }
  func.func @transform_3(%arg0: i32, %arg1: i32) -> (i32, i32, i32, i32, i32) {
    %c2_i32 = arith.constant 2 : i32
    %0 = arith.muli %c2_i32, %arg0 : i32
    %c1_i32 = arith.constant 1 : i32
    %1 = arith.subi %c1_i32, %0 : i32
    %2 = arith.muli %arg1, %1 : i32
    %c15_i32 = arith.constant 15 : i32
    %3 = arith.muli %arg0, %c15_i32 : i32
    %4 = arith.addi %2, %3 : i32
    %c0_i32 = arith.constant 0 : i32
    %c0_i32_0 = arith.constant 0 : i32
    %c0_i32_1 = arith.constant 0 : i32
    %c0_i32_2 = arith.constant 0 : i32
    return %arg0, %c0_i32, %4, %c0_i32_0, %c0_i32_1 : i32, i32, i32, i32, i32
  }
}

module attributes {stable_mosaic.version = 11 : i64} {
  func.func @_proj_residual_kernel(%arg0: i32, %arg1: memref<512x4xf32, #tpu.memory_space<vmem>>, %arg2: memref<2x512x2xf32, #tpu.memory_space<vmem>>, %arg3: memref<4x12xf32, #tpu.memory_space<vmem>>, %arg4: memref<1x12xf32, #tpu.memory_space<vmem>>, %arg5: memref<2x512x6xf32, #tpu.memory_space<vmem>>) attributes {dimension_semantics = [#tpu.dimension_semantics<parallel>], iteration_bounds = array<i64: 1>, scalar_prefetch = 0 : i64, scratch_operands = 0 : i64, tpu.core_type = #tpu.core_type<tc>, window_params = [{transform_indices = @transform_0, window_bounds = array<i64: 512, 4>}, {transform_indices = @transform_1, window_bounds = array<i64: 2, 512, 2>}, {pipeline_mode = #tpu.pipeline_mode<synchronous>, transform_indices = @transform_2, window_bounds = array<i64: 4, 12>}, {pipeline_mode = #tpu.pipeline_mode<synchronous>, transform_indices = @transform_3, window_bounds = array<i64: 1, 12>}, {transform_indices = @transform_4, window_bounds = array<i64: 2, 512, 6>}]} {
    %c0 = arith.constant 0 : index
    %c0_0 = arith.constant 0 : index
    %c0_1 = arith.constant 0 : index
    %0 = vector.load %arg2[%c0, %c0_0, %c0_1] : memref<2x512x2xf32, #tpu.memory_space<vmem>>, vector<1x512x2xf32>
    %1 = vector.shape_cast %0 : vector<1x512x2xf32> to vector<512x2xf32>
    %c1 = arith.constant 1 : index
    %c0_2 = arith.constant 0 : index
    %c0_3 = arith.constant 0 : index
    %2 = vector.load %arg2[%c1, %c0_2, %c0_3] : memref<2x512x2xf32, #tpu.memory_space<vmem>>, vector<1x512x2xf32>
    %3 = vector.shape_cast %2 : vector<1x512x2xf32> to vector<512x2xf32>
    %4 = tpu.concatenate %1, %3 in 1 : vector<512x2xf32>, vector<512x2xf32> -> vector<512x4xf32>
    %c0_4 = arith.constant 0 : index
    %c0_5 = arith.constant 0 : index
    %5 = vector.load %arg1[%c0_4, %c0_5] : memref<512x4xf32, #tpu.memory_space<vmem>>, vector<512x4xf32>
    %6 = arith.addf %5, %4 : vector<512x4xf32>
    %c0_6 = arith.constant 0 : index
    %c0_7 = arith.constant 0 : index
    %7 = vector.load %arg3[%c0_6, %c0_7] : memref<4x12xf32, #tpu.memory_space<vmem>>, vector<4x12xf32>
    %cst = arith.constant dense<0.000000e+00> : vector<512x12xf32>
    %8 = tpu.matmul %6, %7, %cst {dimension_numbers = #tpu.dot_dimension_numbers<[1], [0], [0], [1], [0, 0, 1, 1], [], []>} : vector<512x4xf32>, vector<4x12xf32>, vector<512x12xf32> -> vector<512x12xf32>
    %c0_8 = arith.constant 0 : index
    %c0_9 = arith.constant 0 : index
    %9 = vector.load %arg4[%c0_8, %c0_9] : memref<1x12xf32, #tpu.memory_space<vmem>>, vector<1x12xf32>
    %10 = vector.broadcast %9 : vector<1x12xf32> to vector<512x12xf32>
    %11 = arith.addf %8, %10 : vector<512x12xf32>
    %12 = vector.extract_strided_slice %11 {offsets = [0, 0], sizes = [512, 6], strides = [1, 1]} : vector<512x12xf32> to vector<512x6xf32>
    %c0_10 = arith.constant 0 : index
    %c0_11 = arith.constant 0 : index
    %c0_12 = arith.constant 0 : index
    %13 = vector.load %arg5[%c0_10, %c0_11, %c0_12] : memref<2x512x6xf32, #tpu.memory_space<vmem>>, vector<1x512x6xf32>
    %14 = vector.shape_cast %13 : vector<1x512x6xf32> to vector<512x6xf32>
    %15 = vector.shape_cast %12 : vector<512x6xf32> to vector<1x512x6xf32>
    tpu.vector_store %arg5[%c0_10, %c0_11, %c0_12], %15 {strides = array<i32>} : memref<2x512x6xf32, #tpu.memory_space<vmem>>, vector<1x512x6xf32>,
    %16 = vector.extract_strided_slice %11 {offsets = [0, 6], sizes = [512, 6], strides = [1, 1]} : vector<512x12xf32> to vector<512x6xf32>
    %c1_13 = arith.constant 1 : index
    %c0_14 = arith.constant 0 : index
    %c0_15 = arith.constant 0 : index
    %17 = vector.load %arg5[%c1_13, %c0_14, %c0_15] : memref<2x512x6xf32, #tpu.memory_space<vmem>>, vector<1x512x6xf32>
    %18 = vector.shape_cast %17 : vector<1x512x6xf32> to vector<512x6xf32>
    %19 = vector.shape_cast %16 : vector<512x6xf32> to vector<1x512x6xf32>
    tpu.vector_store %arg5[%c1_13, %c0_14, %c0_15], %19 {strides = array<i32>} : memref<2x512x6xf32, #tpu.memory_space<vmem>>, vector<1x512x6xf32>,
    return
  }
  func.func @transform_0(%arg0: i32) -> (i32, i32) {
    %c0_i32 = arith.constant 0 : i32
    %c0_i32_0 = arith.constant 0 : i32
    return %arg0, %c0_i32 : i32, i32
  }
  func.func @transform_1(%arg0: i32) -> (i32, i32, i32) {
    %c0_i32 = arith.constant 0 : i32
    %c0_i32_0 = arith.constant 0 : i32
    %c0_i32_1 = arith.constant 0 : i32
    return %c0_i32, %arg0, %c0_i32_0 : i32, i32, i32
  }
  func.func @transform_2(%arg0: i32) -> (i32, i32) {
    %c0_i32 = arith.constant 0 : i32
    %c0_i32_0 = arith.constant 0 : i32
    %c0_i32_1 = arith.constant 0 : i32
    return %c0_i32, %c0_i32_0 : i32, i32
  }
  func.func @transform_3(%arg0: i32) -> (i32, i32) {
    %c0_i32 = arith.constant 0 : i32
    %c0_i32_0 = arith.constant 0 : i32
    %c0_i32_1 = arith.constant 0 : i32
    return %c0_i32, %c0_i32_0 : i32, i32
  }
  func.func @transform_4(%arg0: i32) -> (i32, i32, i32) {
    %c0_i32 = arith.constant 0 : i32
    %c0_i32_0 = arith.constant 0 : i32
    %c0_i32_1 = arith.constant 0 : i32
    return %c0_i32, %arg0, %c0_i32_0 : i32, i32, i32
  }
}

</mosaic_0001>

<llo_original>
// kernel: tile.23
$region0: #{tile.23}
  #allocation0 [shape = 's32[1]{0}', space=sflag, size = 0x4, scoped, tag = 'scoped memory for tile.23']
  %s0 = inlined_call_operand.vmem [shape: f32[4], index: 0, kind: input, shape index: {}]
  %s1 = inlined_call_operand.vmem [shape: f32[32,4], index: 1, kind: output, shape index: {}]
  // Predicated region
  $region2: #{tile.23} parent=0 // pred_check
    _
  $region3: #{tile.23} parent=0 // pred_check_branch
    %3 = sbr.rel (0) target = $region5
  $region4: #{tile.23} parent=0 // pred_region
    _
  $region5: #{tile.23} parent=0 // pred_fallthru
    _
  %v4 = vld [vmem:[%s0] ss:$0 sm:$0xff]
  %5 = vst [vmem:[%s1] sm:$0xff] %v4
  %s6 = scalar_lea.vmem %s1, 8
  %7 = vst [vmem:[%s6] sm:$0xff] %v4
  %s8 = scalar_lea.vmem %s1, 16
  %9 = vst [vmem:[%s8] sm:$0xff] %v4
  %s10 = scalar_lea.vmem %s1, 24
  %11 = vst [vmem:[%s10] sm:$0xff] %v4

// kernel: tile.28
$region0: #{tile.28}
  %s0 = inlined_call_operand.vmem [shape: f32[32,4], index: 0, kind: input, shape index: {}]
  %s1 = inlined_call_operand.vmem [shape: f32[1,128], index: 1, kind: output, shape index: {}]
  $region1: #{tile.28} parent=0
    #allocation0 [shape = 'u8[4096]{0}', space=vmem, size = 0x1000, scoped, tag = 'scoped mem for output reshape']
    %v2 = vld [vmem:[%s0] sm:$0x1]
    %vm3 = vcmask 31744
    %4 = vst.msk [vmem:[#allocation0] sm:$0x1] %vm3, %v2
    %s5 = scalar_lea.vmem %s0, 31
    %v6 = vld [vmem:[%s5] sm:$0x1]
    %7 = vrot.lane.b32.xlu0 %v6, 124
    %v8 = vpop.permute.xlu0 %7
    %vm9 = vcmask 1048544
    %10 = vst.msk [vmem:[#allocation0] sm:$0x1] %vm9, %v8
    %s11 = scalar_lea.vmem %s0, 30
    %v12 = vld [vmem:[%s11] sm:$0x1]
    %13 = vrot.lane.b32.xlu0 %v12, 120
    %v14 = vpop.permute.xlu0 %13
    %vm15 = vcmask 1015744
    %16 = vst.msk [vmem:[#allocation0] sm:$0x1] %vm15, %v14
    %s17 = scalar_lea.vmem %s0, 29
    %v18 = vld [vmem:[%s17] sm:$0x1]
    %19 = vrot.lane.b32.xlu0 %v18, 116
    %v20 = vpop.permute.xlu0 %19
    %vm21 = vcmask 982944
    %22 = vst.msk [vmem:[#allocation0] sm:$0x1] %vm21, %v20
    %s23 = scalar_lea.vmem %s0, 28
    %v24 = vld [vmem:[%s23] sm:$0x1]
    %25 = vrot.lane.b32.xlu0 %v24, 112
    %v26 = vpop.permute.xlu0 %25
    %vm27 = vcmask 950144
    %28 = vst.msk [vmem:[#allocation0] sm:$0x1] %vm27, %v26
    %s29 = scalar_lea.vmem %s0, 27
    %v30 = vld [vmem:[%s29] sm:$0x1]
    %31 = vrot.lane.b32.xlu0 %v30, 108
    %v32 = vpop.permute.xlu0 %31
    %vm33 = vcmask 917344
    %34 = vst.msk [vmem:[#allocation0] sm:$0x1] %vm33, %v32
    %s35 = scalar_lea.vmem %s0, 26
    %v36 = vld [vmem:[%s35] sm:$0x1]
    %37 = vrot.lane.b32.xlu0 %v36, 104
    %v38 = vpop.permute.xlu0 %37
    %vm39 = vcmask 884544
    %40 = vst.msk [vmem:[#allocation0] sm:$0x1] %vm39, %v38
    %s41 = scalar_lea.vmem %s0, 25
    %v42 = vld [vmem:[%s41] sm:$0x1]
    %43 = vrot.lane.b32.xlu0 %v42, 100
    %v44 = vpop.permute.xlu0 %43
    %vm45 = vcmask 851744
    %46 = vst.msk [vmem:[#allocation0] sm:$0x1] %vm45, %v44
    %s47 = scalar_lea.vmem %s0, 24
    %v48 = vld [vmem:[%s47] sm:$0x1]
    %49 = vrot.lane.b32.xlu0 %v48, 96
    %v50 = vpop.permute.xlu0 %49
    %vm51 = vcmask 818944
    %52 = vst.msk [vmem:[#allocation0] sm:$0x1] %vm51, %v50
    %s53 = scalar_lea.vmem %s0, 23
    %v54 = vld [vmem:[%s53] sm:$0x1]
    %55 = vrot.lane.b32.xlu0 %v54, 92
    %v56 = vpop.permute.xlu0 %55
    %vm57 = vcmask 786144
    %58 = vst.msk [vmem:[#allocation0] sm:$0x1] %vm57, %v56
    %s59 = scalar_lea.vmem %s0, 22
    %v60 = vld [vmem:[%s59] sm:$0x1]
    %61 = vrot.lane.b32.xlu0 %v60, 88
    %v62 = vpop.permute.xlu0 %61
    %vm63 = vcmask 753344
    %64 = vst.msk [vmem:[#allocation0] sm:$0x1] %vm63, %v62
    %s65 = scalar_lea.vmem %s0, 21
    %v66 = vld [vmem:[%s65] sm:$0x1]
    %67 = vrot.lane.b32.xlu0 %v66, 84
    %v68 = vpop.permute.xlu0 %67
    %vm69 = vcmask 720544
    %70 = vst.msk [vmem:[#allocation0] sm:$0x1] %vm69, %v68
    %s71 = scalar_lea.vmem %s0, 20
    %v72 = vld [vmem:[%s71] sm:$0x1]
    %73 = vrot.lane.b32.xlu0 %v72, 80
    %v74 = vpop.permute.xlu0 %73
    %vm75 = vcmask 687744
    %76 = vst.msk [vmem:[#allocation0] sm:$0x1] %vm75, %v74
    %s77 = scalar_lea.vmem %s0, 19
    %v78 = vld [vmem:[%s77] sm:$0x1]
    %79 = vrot.lane.b32.xlu0 %v78, 76
    %v80 = vpop.permute.xlu0 %79
    %vm81 = vcmask 654944
    %82 = vst.msk [vmem:[#allocation0] sm:$0x1] %vm81, %v80
    %s83 = scalar_lea.vmem %s0, 18
    %v84 = vld [vmem:[%s83] sm:$0x1]
    %85 = vrot.lane.b32.xlu0 %v84, 72
    %v86 = vpop.permute.xlu0 %85
    %vm87 = vcmask 622144
    %88 = vst.msk [vmem:[#allocation0] sm:$0x1] %vm87, %v86
    %s89 = scalar_lea.vmem %s0, 17
    %v90 = vld [vmem:[%s89] sm:$0x1]
    %91 = vrot.lane.b32.xlu0 %v90, 68
    %v92 = vpop.permute.xlu0 %91
    %vm93 = vcmask 589344
    %94 = vst.msk [vmem:[#allocation0] sm:$0x1] %vm93, %v92
    %s95 = scalar_lea.vmem %s0, 16
    %v96 = vld [vmem:[%s95] sm:$0x1]
    %97 = vrot.lane.b32.xlu0 %v96, 64
    %v98 = vpop.permute.xlu0 %97
    %vm99 = vcmask 556544
    %100 = vst.msk [vmem:[#allocation0] sm:$0x1] %vm99, %v98
    %s101 = scalar_lea.vmem %s0, 15
    %v102 = vld [vmem:[%s101] sm:$0x1]
    %103 = vrot.lane.b32.xlu0 %v102, 60
    %v104 = vpop.permute.xlu0 %103
    %vm105 = vcmask 523744
    %106 = vst.msk [vmem:[#allocation0] sm:$0x1] %vm105, %v104
    %s107 = scalar_lea.vmem %s0, 14
    %v108 = vld [vmem:[%s107] sm:$0x1]
    %109 = vrot.lane.b32.xlu0 %v108, 56
    %v110 = vpop.permute.xlu0 %109
    %vm111 = vcmask 490944
    %112 = vst.msk [vmem:[#allocation0] sm:$0x1] %vm111, %v110
    %s113 = scalar_lea.vmem %s0, 13
    %v114 = vld [vmem:[%s113] sm:$0x1]
    %115 = vrot.lane.b32.xlu0 %v114, 52
    %v116 = vpop.permute.xlu0 %115
    %vm117 = vcmask 458144
    %118 = vst.msk [vmem:[#allocation0] sm:$0x1] %vm117, %v116
    %s119 = scalar_lea.vmem %s0, 12
    %v120 = vld [vmem:[%s119] sm:$0x1]
    %121 = vrot.lane.b32.xlu0 %v120, 48
    %v122 = vpop.permute.xlu0 %121
    %vm123 = vcmask 425344
    %124 = vst.msk [vmem:[#allocation0] sm:$0x1] %vm123, %v122
    %s125 = scalar_lea.vmem %s0, 11
    %v126 = vld [vmem:[%s125] sm:$0x1]
    %127 = vrot.lane.b32.xlu0 %v126, 44
    %v128 = vpop.permute.xlu0 %127
    %vm129 = vcmask 392544
    %130 = vst.msk [vmem:[#allocation0] sm:$0x1] %vm129, %v128
    %s131 = scalar_lea.vmem %s0, 10
    %v132 = vld [vmem:[%s131] sm:$0x1]
    %133 = vrot.lane.b32.xlu0 %v132, 40
    %v134 = vpop.permute.xlu0 %133
    %vm135 = vcmask 359744
    %136 = vst.msk [vmem:[#allocation0] sm:$0x1] %vm135, %v134
    %s137 = scalar_lea.vmem %s0, 9
    %v138 = vld [vmem:[%s137] sm:$0x1]
    %139 = vrot.lane.b32.xlu0 %v138, 36
    %v140 = vpop.permute.xlu0 %139
    %vm141 = vcmask 326944
    %142 = vst.msk [vmem:[#allocation0] sm:$0x1] %vm141, %v140
    %s143 = scalar_lea.vmem %s0, 8
    %v144 = vld [vmem:[%s143] sm:$0x1]
    %145 = vrot.lane.b32.xlu0 %v144, 32
    %v146 = vpop.permute.xlu0 %145
    %vm147 = vcmask 294144
    %148 = vst.msk [vmem:[#allocation0] sm:$0x1] %vm147, %v146
    %s149 = scalar_lea.vmem %s0, 7
    %v150 = vld [vmem:[%s149] sm:$0x1]
    %151 = vrot.lane.b32.xlu0 %v150, 28
    %v152 = vpop.permute.xlu0 %151
    %vm153 = vcmask 261344
    %154 = vst.msk [vmem:[#allocation0] sm:$0x1] %vm153, %v152
    %s155 = scalar_lea.vmem %s0, 6
    %v156 = vld [vmem:[%s155] sm:$0x1]
    %157 = vrot.lane.b32.xlu0 %v156, 24
    %v158 = vpop.permute.xlu0 %157
    %vm159 = vcmask 228544
    %160 = vst.msk [vmem:[#allocation0] sm:$0x1] %vm159, %v158
    %s161 = scalar_lea.vmem %s0, 5
    %v162 = vld [vmem:[%s161] sm:$0x1]
    %163 = vrot.lane.b32.xlu0 %v162, 20
    %v164 = vpop.permute.xlu0 %163
    %vm165 = vcmask 195744
    %166 = vst.msk [vmem:[#allocation0] sm:$0x1] %vm165, %v164
    %s167 = scalar_lea.vmem %s0, 4
    %v168 = vld [vmem:[%s167] sm:$0x1]
    %169 = vrot.lane.b32.xlu0 %v168, 16
    %v170 = vpop.permute.xlu0 %169
    %vm171 = vcmask 162944
    %172 = vst.msk [vmem:[#allocation0] sm:$0x1] %vm171, %v170
    %s173 = scalar_lea.vmem %s0, 3
    %v174 = vld [vmem:[%s173] sm:$0x1]
    %175 = vrot.lane.b32.xlu0 %v174, 12
    %v176 = vpop.permute.xlu0 %175
    %vm177 = vcmask 130144
    %178 = vst.msk [vmem:[#allocation0] sm:$0x1] %vm177, %v176
    %s179 = scalar_lea.vmem %s0, 2
    %v180 = vld [vmem:[%s179] sm:$0x1]
    %181 = vrot.lane.b32.xlu0 %v180, 8
    %v182 = vpop.permute.xlu0 %181
    %vm183 = vcmask 97344
    %184 = vst.msk [vmem:[#allocation0] sm:$0x1] %vm183, %v182
    %s185 = scalar_lea.vmem %s0, 1
    %v186 = vld [vmem:[%s185] sm:$0x1]
    %187 = vrot.lane.b32.xlu0 %v186, 4
    %v188 = vpop.permute.xlu0 %187
    %vm189 = vcmask 64544
    %190 = vst.msk [vmem:[#allocation0] sm:$0x1] %vm189, %v188
    %s192 = sshll.u32 1, 1
    %s193 = ssub.s32 %s192, 1
    %v195 = vld [vmem:[#allocation0] sm:%s193]
    %s196 = sshll.u32 1, 1
    %s197 = ssub.s32 %s196, 1
    %198 = vst [vmem:[%s1] sm:%s197] %v195

// kernel: recurrent_residual_block.11
$region0: #{recurrent_residual_block.11}
  #allocation0 [shape = 'u32[]', space=smem, size = 0x4, offset = 0x4, fixed_abs, tag = 'smem constant byte address 0x4 - core index']
  #allocation1 [shape = 'u32[144,128]{1,0:T(1,128)}', space=vmem, size = 0x12000, scoped, tag = 'internal scratch']
  %s0 = inlined_call_operand.vmem [shape: f32[16,128], index: 0, kind: input, shape index: {}]
  %s1 = inlined_call_operand.vmem [shape: f32[1,128], index: 1, kind: output, shape index: {0}]
  %s2 = inlined_call_operand.vmem [shape: f32[1,128], index: 2, kind: output, shape index: {1}]
  %3 = xla_tuple %s1, %s2
  %s4 = sld [smem:[#allocation0]]
  $region26: #{recurrent_residual_block.11} parent=0
    _
  %s6 = ssub.s32 1, %s4
  %s7 = scalar_select 0, %s6, %s4
  // Predicated region
  $region2: #{recurrent_residual_block.11} parent=0 // pred_check
    _
  $region3: #{recurrent_residual_block.11} parent=0 // pred_check_branch
    %9 = sbr.rel (0) target = $region5
  $region4: #{recurrent_residual_block.11} parent=0 // pred_region
    _
  $region5: #{recurrent_residual_block.11} parent=0 // pred_fallthru
    _
  %p10 = scmp.eq.s32.totalorder 0, 0
  // Predicated region
  $region6: #{recurrent_residual_block.11} parent=0 // pred_check
    %p11 = pneg %p10
  $region7: #{recurrent_residual_block.11} parent=0 // pred_check_branch
    %13 = sbr.rel (%p11) target = $region9
  $region8: #{recurrent_residual_block.11} parent=0 // pred_region
    %14 = vst [vmem:[%s1] sm:$0x1] 0.0
    %15 = vst [vmem:[%s2] sm:$0x1] 0.0
  $region9: #{recurrent_residual_block.11} parent=0 // pred_fallthru
    _
  %v16 = vld [vmem:[%s0] sm:$0xff]
  %v17 = vld [vmem:[%s0 + $0x8] sm:$0xff]
  %v18 = vld [vmem:[%s1] sm:$0x1]
  %v19 = vadd.f32 %v16, %v17
  %v20 = vrot.slane %v19, 4
  %v21 = vadd.f32 %v19, %v20
  %v22 = vrot.slane %v21, 2
  %v23 = vadd.f32 %v21, %v22
  %v24 = vrot.slane %v23, 1
  %v25 = vadd.f32 %v23, %v24
  %v26 = vadd.f32 %v18, %v25
  %27 = vst [vmem:[%s1] sm:$0x1] %v26
  %v28 = vld [vmem:[%s2] sm:$0x1]
  %v29 = vmul.f32 %v16, %v16
  %v30 = vmul.f32 %v17, %v17
  %v31 = vadd.f32 %v29, %v30
  %v32 = vrot.slane %v31, 4
  %v33 = vadd.f32 %v31, %v32
  %v34 = vrot.slane %v33, 2
  %v35 = vadd.f32 %v33, %v34
  %v36 = vrot.slane %v35, 1
  %v37 = vadd.f32 %v35, %v36
  %v38 = vadd.f32 %v28, %v37
  %39 = vst [vmem:[%s2] sm:$0x1] %v38
  // Predicated region
  $region10: #{recurrent_residual_block.11} parent=0 // pred_check
    _
  $region11: #{recurrent_residual_block.11} parent=0 // pred_check_branch
    %41 = sbr.rel (0) target = $region13
  $region12: #{recurrent_residual_block.11} parent=0 // pred_region
    _
  $region13: #{recurrent_residual_block.11} parent=0 // pred_fallthru
    _
  // Predicated region
  $region14: #{recurrent_residual_block.11} parent=0 // pred_check
    _
  $region15: #{recurrent_residual_block.11} parent=0 // pred_check_branch
    %43 = sbr.rel (0) target = $region17
  $region16: #{recurrent_residual_block.11} parent=0 // pred_region
    _
  $region17: #{recurrent_residual_block.11} parent=0 // pred_fallthru
    _
  // Predicated region
  $region18: #{recurrent_residual_block.11} parent=0 // pred_check
    _
  $region19: #{recurrent_residual_block.11} parent=0 // pred_check_branch
    %45 = sbr.rel (0) target = $region21
  $region20: #{recurrent_residual_block.11} parent=0 // pred_region
    _
  $region21: #{recurrent_residual_block.11} parent=0 // pred_fallthru
    _
  // Predicated region
  $region22: #{recurrent_residual_block.11} parent=0 // pred_check
    _
  $region23: #{recurrent_residual_block.11} parent=0 // pred_check_branch
    %47 = sbr.rel (0) target = $region25
  $region24: #{recurrent_residual_block.11} parent=0 // pred_region
    _
  $region25: #{recurrent_residual_block.11} parent=0 // pred_fallthru
    _

// kernel: recurrent_residual_block.12
$region0: #{recurrent_residual_block.12}
  #allocation0 [shape = 'u32[]', space=smem, size = 0x4, offset = 0x4, fixed_abs, tag = 'smem constant byte address 0x4 - core index']
  #allocation1 [shape = 'u32[144,128]{1,0:T(1,128)}', space=vmem, size = 0x12000, scoped, tag = 'internal scratch']
  %s0 = inlined_call_operand.vmem [shape: f32[16,128], index: 0, kind: input, shape index: {}]
  %s1 = inlined_call_operand.vmem [shape: f32[1,128], index: 1, kind: input, shape index: {}]
  %s2 = inlined_call_operand.vmem [shape: f32[1,128], index: 2, kind: input, shape index: {}]
  %s3 = inlined_call_operand.vmem [shape: f32[16,128], index: 3, kind: output, shape index: {}]
  %s4 = sld [smem:[#allocation0]]
  $region22: #{recurrent_residual_block.12} parent=0
    _
  %s6 = ssub.s32 1, %s4
  %s7 = scalar_select 0, %s6, %s4
  // Predicated region
  $region2: #{recurrent_residual_block.12} parent=0 // pred_check
    _
  $region3: #{recurrent_residual_block.12} parent=0 // pred_check_branch
    %9 = sbr.rel (0) target = $region5
  $region4: #{recurrent_residual_block.12} parent=0 // pred_region
    _
  $region5: #{recurrent_residual_block.12} parent=0 // pred_fallthru
    _
  // Predicated region
  $region6: #{recurrent_residual_block.12} parent=0 // pred_check
    _
  $region7: #{recurrent_residual_block.12} parent=0 // pred_check_branch
    %11 = sbr.rel (0) target = $region9
  $region8: #{recurrent_residual_block.12} parent=0 // pred_region
    _
  $region9: #{recurrent_residual_block.12} parent=0 // pred_fallthru
    _
  // Predicated region
  $region10: #{recurrent_residual_block.12} parent=0 // pred_check
    _
  $region11: #{recurrent_residual_block.12} parent=0 // pred_check_branch
    %13 = sbr.rel (0) target = $region13
  $region12: #{recurrent_residual_block.12} parent=0 // pred_region
    _
  $region13: #{recurrent_residual_block.12} parent=0 // pred_fallthru
    _
  %v14 = vld [vmem:[%s0] sm:$0xff]
  %v15 = vld [vmem:[%s0 + $0x8] sm:$0xff]
  %v16 = vld [vmem:[%s1] sm:$0x1]
  %v18 = vlaneseq
  %v19 = vshrl.u32 %v18, 7
  %v20 = vsub.s32 0, %v19
  %v21 = vrot.slane %v16, %v20
  %v23 = vmul.f32 %v14, %v21
  %v24 = vmul.f32 %v15, %v21
  %v25 = vld [vmem:[%s2] sm:$0x1]
  %v27 = vlaneseq
  %v28 = vshrl.u32 %v27, 7
  %v29 = vsub.s32 0, %v28
  %v30 = vrot.slane %v25, %v29
  %v32 = vadd.f32 %v23, %v30
  %v33 = vadd.f32 %v24, %v30
  %v34 = vmin.f32 %v32, 20.0
  %v35 = vmin.f32 %v33, 20.0
  %v36 = vmul.f32 %v34, 1.442695
  %v37 = vpow.pop %v36
  %v38 = vmul.f32 %v35, 1.442695
  %v39 = vpow.pop %v38
  %v40 = vadd.f32 %v37, 2.0
  %v41 = vadd.f32 %v39, 2.0
  %v42 = vmul.f32 %v37, %v40
  %v43 = vmul.f32 %v39, %v41
  %v44 = vadd.f32 %v42, 2.0
  %v45 = vadd.f32 %v43, 2.0
  %v46 = vrcp.pop %v44
  %v47 = vmul.f32 %v42, %v46
  %v48 = vrcp.pop %v45
  %v49 = vmul.f32 %v43, %v48
  %v50 = vmul.f32 %v32, %v47
  %v51 = vmul.f32 %v33, %v49
  %52 = vst [vmem:[%s3] sm:$0xff] %v50
  %53 = vst [vmem:[%s3 + $0x8] sm:$0xff] %v51
  // Predicated region
  $region14: #{recurrent_residual_block.12} parent=0 // pred_check
    _
  $region15: #{recurrent_residual_block.12} parent=0 // pred_check_branch
    %55 = sbr.rel (0) target = $region17
  $region16: #{recurrent_residual_block.12} parent=0 // pred_region
    _
  $region17: #{recurrent_residual_block.12} parent=0 // pred_fallthru
    _
  // Predicated region
  $region18: #{recurrent_residual_block.12} parent=0 // pred_check
    _
  $region19: #{recurrent_residual_block.12} parent=0 // pred_check_branch
    %57 = sbr.rel (0) target = $region21
  $region20: #{recurrent_residual_block.12} parent=0 // pred_region
    _
  $region21: #{recurrent_residual_block.12} parent=0 // pred_fallthru
    _

// kernel: recurrent_residual_block.15
$region0: #{recurrent_residual_block.15}
  #allocation0 [shape = 'u32[]', space=smem, size = 0x4, offset = 0x4, fixed_abs, tag = 'smem constant byte address 0x4 - core index']
  #allocation1 [shape = 'u32[144,128]{1,0:T(1,128)}', space=vmem, size = 0x12000, scoped, tag = 'internal scratch']
  %s0 = inlined_call_operand.vmem [shape: f32[16,128], index: 0, kind: input, shape index: {}]
  %s1 = inlined_call_operand.vmem [shape: f32[1,128], index: 1, kind: input, shape index: {}]
  %s2 = inlined_call_operand.vmem [shape: f32[1,128], index: 2, kind: input, shape index: {}]
  %s3 = inlined_call_operand.vmem [shape: f32[16,128], index: 3, kind: output, shape index: {}]
  %s4 = sld [smem:[#allocation0]]
  $region22: #{recurrent_residual_block.15} parent=0
    _
  %s6 = ssub.s32 1, %s4
  %s7 = scalar_select 0, %s6, %s4
  // Predicated region
  $region2: #{recurrent_residual_block.15} parent=0 // pred_check
    _
  $region3: #{recurrent_residual_block.15} parent=0 // pred_check_branch
    %9 = sbr.rel (0) target = $region5
  $region4: #{recurrent_residual_block.15} parent=0 // pred_region
    _
  $region5: #{recurrent_residual_block.15} parent=0 // pred_fallthru
    _
  // Predicated region
  $region6: #{recurrent_residual_block.15} parent=0 // pred_check
    _
  $region7: #{recurrent_residual_block.15} parent=0 // pred_check_branch
    %11 = sbr.rel (0) target = $region9
  $region8: #{recurrent_residual_block.15} parent=0 // pred_region
    _
  $region9: #{recurrent_residual_block.15} parent=0 // pred_fallthru
    _
  // Predicated region
  $region10: #{recurrent_residual_block.15} parent=0 // pred_check
    _
  $region11: #{recurrent_residual_block.15} parent=0 // pred_check_branch
    %13 = sbr.rel (0) target = $region13
  $region12: #{recurrent_residual_block.15} parent=0 // pred_region
    _
  $region13: #{recurrent_residual_block.15} parent=0 // pred_fallthru
    _
  %v14 = vld [vmem:[%s0] sm:$0xff]
  %v15 = vld [vmem:[%s0 + $0x8] sm:$0xff]
  %v16 = vld [vmem:[%s1] sm:$0x1]
  %v18 = vlaneseq
  %v19 = vshrl.u32 %v18, 7
  %v20 = vsub.s32 0, %v19
  %v21 = vrot.slane %v16, %v20
  %v23 = vmul.f32 %v14, %v21
  %v24 = vmul.f32 %v15, %v21
  %v25 = vld [vmem:[%s2] sm:$0x1]
  %v27 = vlaneseq
  %v28 = vshrl.u32 %v27, 7
  %v29 = vsub.s32 0, %v28
  %v30 = vrot.slane %v25, %v29
  %v32 = vadd.f32 %v23, %v30
  %v33 = vadd.f32 %v24, %v30
  %34 = vst [vmem:[%s3] sm:$0xff] %v32
  %35 = vst [vmem:[%s3 + $0x8] sm:$0xff] %v33
  // Predicated region
  $region14: #{recurrent_residual_block.15} parent=0 // pred_check
    _
  $region15: #{recurrent_residual_block.15} parent=0 // pred_check_branch
    %37 = sbr.rel (0) target = $region17
  $region16: #{recurrent_residual_block.15} parent=0 // pred_region
    _
  $region17: #{recurrent_residual_block.15} parent=0 // pred_fallthru
    _
  // Predicated region
  $region18: #{recurrent_residual_block.15} parent=0 // pred_check
    _
  $region19: #{recurrent_residual_block.15} parent=0 // pred_check_branch
    %39 = sbr.rel (0) target = $region21
  $region20: #{recurrent_residual_block.15} parent=0 // pred_region
    _
  $region21: #{recurrent_residual_block.15} parent=0 // pred_fallthru
    _

// kernel: recurrent_residual_block.10
$region0: #{recurrent_residual_block.10}
  #allocation0 [shape = 'u32[]', space=smem, size = 0x4, offset = 0x4, fixed_abs, tag = 'smem constant byte address 0x4 - core index']
  #allocation1 [shape = 'u32[144,128]{1,0:T(1,128)}', space=vmem, size = 0x12000, scoped, tag = 'internal scratch']
  %s0 = inlined_call_operand.vmem [shape: f32[2,18,18,4], index: 0, kind: input, shape index: {}]
  %s1 = inlined_call_operand.vmem [shape: f32[3,3,4,4], index: 1, kind: input, shape index: {}]
  %s2 = inlined_call_operand.vmem [shape: f32[1,4], index: 2, kind: input, shape index: {}]
  %s3 = inlined_call_operand.vmem [shape: f32[2,16,16,4], index: 3, kind: output, shape index: {}]
  %s4 = sld [smem:[#allocation0]]
  $region45: #{recurrent_residual_block.10} parent=0
    _
  %s6 = ssub.s32 1, %s4
  %s7 = scalar_select 0, %s6, %s4
  loop: start=0, step=1, limit=4
  $region2: #{recurrent_residual_block.10} parent=0 // loop_pre_header
    _
  $region3: #{recurrent_residual_block.10} parent=0 // loop_header
    %s9 = sphi 0, %s13
    %p10 = scmp.ge.s32.totalorder %s9, 4
    %s19 = sphi 0, %s21
    %s22 = sphi 0, %s19
    %s23 = sphi 0, %s22
    %s39 = sphi 0, %s23
    %s43 = sphi 0, %s43
    %s45 = sphi 0, %s43
    %s46 = sphi 0, %s45
    %s60 = sphi 0, %s46
    %s64 = sphi 0, %s64
    %s66 = sphi 0, %s64
    %s67 = sphi 0, %s66
    %s81 = sphi 0, %s67
    %s87 = sphi 0, %s89
    %s90 = sphi 0, %s87
    %s91 = sphi 0, %s90
    %s107 = sphi 0, %s91
  $region4: #{recurrent_residual_block.10} parent=0 // loop_header_branch
    %12 = sbr.rel (%p10) target = $region8
  $region5: #{recurrent_residual_block.10} parent=0 // loop_body
    %s14 = ssub.s32 %s9, 1
    %s15 = ssub.s32 %s9, 2
    %s16 = sadd.s32 %s9, 1
    %s17 = ssub.s32 %s9, %s16
    %p18 = scmp.eq.s32.totalorder %s17, 0
    %s20 = sadd.s32 %s19, 1
    %s21 = scalar_select %p18, %s19, %s20
    %p24 = pneg %p18
    %p25 = scmp.eq.s32.totalorder %s9, 1
    %p26 = por %p24, %p25
    %p27 = scmp.ne.s32.totalorder %s19, %s22
    %p28 = scmp.eq.s32.totalorder %s9, 0
    %p29 = por %p27, %p28
    %p30 = scmp.ne.s32.totalorder %s19, %s22
    %p31 = scmp.eq.s32.totalorder %s14, 1
    %p32 = por %p30, %p31
    %p33 = scmp.ne.s32.totalorder %s22, %s23
    %p34 = scmp.eq.s32.totalorder %s14, 0
    %p35 = por %p33, %p34
    %p36 = scmp.ne.s32.totalorder %s22, %s23
    %p37 = scmp.eq.s32.totalorder %s15, 1
    %p38 = por %p36, %p37
    %p40 = scmp.ne.s32.totalorder %s23, %s39
    %p41 = scmp.eq.s32.totalorder %s15, 0
    %p42 = por %p40, %p41
    %s44 = sadd.s32 %s43, 1
    %p47 = scmp.eq.s32.totalorder %s9, 1
    %p48 = scmp.ne.s32.totalorder %s43, %s45
    %p49 = scmp.eq.s32.totalorder %s9, 0
    %p50 = por %p48, %p49
    %p51 = scmp.ne.s32.totalorder %s43, %s45
    %p52 = scmp.eq.s32.totalorder %s14, 1
    %p53 = por %p51, %p52
    %p54 = scmp.ne.s32.totalorder %s45, %s46
    %p55 = scmp.eq.s32.totalorder %s14, 0
    %p56 = por %p54, %p55
    %p57 = scmp.ne.s32.totalorder %s45, %s46
    %p58 = scmp.eq.s32.totalorder %s15, 1
    %p59 = por %p57, %p58
    %p61 = scmp.ne.s32.totalorder %s46, %s60
    %p62 = scmp.eq.s32.totalorder %s15, 0
    %p63 = por %p61, %p62
    %s65 = sadd.s32 %s64, 1
    %p68 = scmp.eq.s32.totalorder %s9, 1
    %p69 = scmp.ne.s32.totalorder %s64, %s66
    %p70 = scmp.eq.s32.totalorder %s9, 0
    %p71 = por %p69, %p70
    %p72 = scmp.ne.s32.totalorder %s64, %s66
    %p73 = scmp.eq.s32.totalorder %s14, 1
    %p74 = por %p72, %p73
    %p75 = scmp.ne.s32.totalorder %s66, %s67
    %p76 = scmp.eq.s32.totalorder %s14, 0
    %p77 = por %p75, %p76
    %p78 = scmp.ne.s32.totalorder %s66, %s67
    %p79 = scmp.eq.s32.totalorder %s15, 1
    %p80 = por %p78, %p79
    %p82 = scmp.ne.s32.totalorder %s67, %s81
    %p83 = scmp.eq.s32.totalorder %s15, 0
    %p84 = por %p82, %p83
    %s85 = ssub.s32 %s9, %s16
    %p86 = scmp.eq.s32.totalorder %s85, 0
    %s88 = sadd.s32 %s87, 1
    %s89 = scalar_select %p86, %s87, %s88
    %p92 = pneg %p86
    %p93 = scmp.eq.s32.totalorder %s9, 1
    %p94 = por %p92, %p93
    %p95 = scmp.ne.s32.totalorder %s87, %s90
    %p96 = scmp.eq.s32.totalorder %s9, 0
    %p97 = por %p95, %p96
    %p98 = scmp.ne.s32.totalorder %s87, %s90
    %p99 = scmp.eq.s32.totalorder %s14, 1
    %p100 = por %p98, %p99
    %p101 = scmp.ne.s32.totalorder %s90, %s91
    %p102 = scmp.eq.s32.totalorder %s14, 0
    %p103 = por %p101, %p102
    %p104 = scmp.ne.s32.totalorder %s90, %s91
    %p105 = scmp.eq.s32.totalorder %s15, 1
    %p106 = por %p104, %p105
    %p108 = scmp.ne.s32.totalorder %s91, %s107
    %p109 = scmp.eq.s32.totalorder %s15, 0
    %p110 = por %p108, %p109
    %p111 = scmp.le.s32.totalorder 1, %s9
    %p112 = scmp.lt.s32.totalorder %s9, 3
    %p113 = pnand %p111, %p112
    %p114 = pneg %p113
    // Predicated region
    $region9: #{recurrent_residual_block.10} parent=5 // pred_check
      _
    $region10: #{recurrent_residual_block.10} parent=5 // pred_check_branch
      %116 = sbr.rel (%p113) target = $region12
    $region11: #{recurrent_residual_block.10} parent=5 // pred_region
      %s117 = ssub.s32 %s9, 1
      // Predicated region
      $region13: #{recurrent_residual_block.10} parent=11 // pred_check
        %p118 = pneg %p56
      $region14: #{recurrent_residual_block.10} parent=11 // pred_check_branch
        %120 = sbr.rel (%p118) target = $region16
      $region15: #{recurrent_residual_block.10} parent=11 // pred_region
        _
      $region16: #{recurrent_residual_block.10} parent=11 // pred_fallthru
        _
      // Predicated region
      $region17: #{recurrent_residual_block.10} parent=11 // pred_check
        %p121 = pneg %p77
      $region18: #{recurrent_residual_block.10} parent=11 // pred_check_branch
        %123 = sbr.rel (%p121) target = $region20
      $region19: #{recurrent_residual_block.10} parent=11 // pred_region
        _
      $region20: #{recurrent_residual_block.10} parent=11 // pred_fallthru
        _
    $region12: #{recurrent_residual_block.10} parent=5 // pred_fallthru
      _
    %p124 = scmp.lt.s32.totalorder %s9, 2
    // Predicated region
    $region21: #{recurrent_residual_block.10} parent=5 // pred_check
      %p125 = pneg %p124
    $region22: #{recurrent_residual_block.10} parent=5 // pred_check_branch
      %127 = sbr.rel (%p125) target = $region24
    $region23: #{recurrent_residual_block.10} parent=5 // pred_region
      // Predicated region
      $region25: #{recurrent_residual_block.10} parent=23 // pred_check
        %p128 = pneg %p29
      $region26: #{recurrent_residual_block.10} parent=23 // pred_check_branch
        %130 = sbr.rel (%p128) target = $region28
      $region27: #{recurrent_residual_block.10} parent=23 // pred_region
        %p131 = scmp.lt.s32.totalorder %s9, 1
        %s132 = scalar_select %p131, %s9, 1
        %s133 = smul.addr %s132, 54
        %s134 = smul.addr %s133, 8
        %s135 = scalar_lea.vmem %s0, %s134
      $region28: #{recurrent_residual_block.10} parent=23 // pred_fallthru
        _
    $region24: #{recurrent_residual_block.10} parent=5 // pred_fallthru
      _
    %p136 = scmp.le.s32.totalorder 1, %s9
    %p137 = scmp.lt.s32.totalorder %s9, 3
    %p138 = pnand %p136, %p137
    %p139 = pneg %p138
    // Predicated region
    $region29: #{recurrent_residual_block.10} parent=5 // pred_check
      _
    $region30: #{recurrent_residual_block.10} parent=5 // pred_check_branch
      %141 = sbr.rel (%p138) target = $region32
    $region31: #{recurrent_residual_block.10} parent=5 // pred_region
      %s142 = ssub.s32 %s9, 1
      %p143 = scmp.lt.s32.totalorder %s14, 1
      %s144 = scalar_select %p143, %s14, 1
      %s145 = smul.addr %s144, 54
      %s146 = smul.addr %s145, 8
      %s147 = scalar_lea.vmem %s0, %s146
      %p148 = pneg %p35
      %p149 = pneg %p32
      %p150 = pneg %p56
      %p151 = pneg %p53
      %p152 = pneg %p77
      %p153 = pneg %p74
      %p154 = pneg %p103
      %p155 = pneg %p100
      %p156 = scmp.lt.s32.totalorder %s14, 1
      %s157 = scalar_select %p156, %s14, 1
      %s158 = smul.addr %s157, 32
      %s159 = smul.addr %s158, 8
      %s160 = scalar_lea.vmem %s3, %s159
      %p161 = scmp.lt.s32.totalorder %s14, 1
      %s162 = scalar_select %p161, %s14, 1
      %s163 = smul.addr %s162, 54
      %s164 = smul.addr %s163, 8
      %s165 = scalar_lea.vmem %s0, %s164
      %p166 = scmp.lt.s32.totalorder %s14, 1
      %s167 = scalar_select %p166, %s14, 1
      %s168 = smul.addr %s167, 32
      %s169 = smul.addr %s168, 8
      %s170 = scalar_lea.vmem %s3, %s169
      %v171 = vld [vmem:[%s165] sm:$0xff]
      %v172 = vld [vmem:[%s165 + $0x8] sm:$0xff]
      %v173 = vld [vmem:[%s165 + $0x10] sm:$0x3]
      %v174 = vld [vmem:[%s165 + $0x18] sm:$0xff]
      %v175 = vld [vmem:[%s165 + $0x20] sm:$0xff]
      %v176 = vld [vmem:[%s165 + $0x28] sm:$0x3]
      %v177 = vld [vmem:[%s165 + $0x30] sm:$0xff]
      %v178 = vld [vmem:[%s165 + $0x38] sm:$0xff]
      %v179 = vld [vmem:[%s165 + $0x40] sm:$0x3]
      %v180 = vld [vmem:[%s165 + $0x48] sm:$0xff]
      %v181 = vld [vmem:[%s165 + $0x50] sm:$0xff]
      %v182 = vld [vmem:[%s165 + $0x58] sm:$0x3]
      %v183 = vld [vmem:[%s165 + $0x60] sm:$0xff]
      %v184 = vld [vmem:[%s165 + $0x68] sm:$0xff]
      %v185 = vld [vmem:[%s165 + $0x70] sm:$0x3]
      %v186 = vld [vmem:[%s165 + $0x78] sm:$0xff]
      %v187 = vld [vmem:[%s165 + $0x80] sm:$0xff]
      %v188 = vld [vmem:[%s165 + $0x88] sm:$0x3]
      %v189 = vld [vmem:[%s165 + $0x90] sm:$0xff]
      %v190 = vld [vmem:[%s165 + $0x98] sm:$0xff]
      %v191 = vld [vmem:[%s165 + $0xa0] sm:$0x3]
      %v192 = vld [vmem:[%s165 + $0xa8] sm:$0xff]
      %v193 = vld [vmem:[%s165 + $0xb0] sm:$0xff]
      %v194 = vld [vmem:[%s165 + $0xb8] sm:$0x3]
      %v195 = vld [vmem:[%s165 + $0xc0] sm:$0xff]
      %v196 = vld [vmem:[%s165 + $0xc8] sm:$0xff]
      %v197 = vld [vmem:[%s165 + $0xd0] sm:$0x3]
      %v198 = vld [vmem:[%s165 + $0xd8] sm:$0xff]
      %v199 = vld [vmem:[%s165 + $0xe0] sm:$0xff]
      %v200 = vld [vmem:[%s165 + $0xe8] sm:$0x3]
      %v201 = vld [vmem:[%s165 + $0xf0] sm:$0xff]
      %v202 = vld [vmem:[%s165 + $0xf8] sm:$0xff]
      %v203 = vld [vmem:[%s165 + $0x100] sm:$0x3]
      %v204 = vld [vmem:[%s165 + $0x108] sm:$0xff]
      %v205 = vld [vmem:[%s165 + $0x110] sm:$0xff]
      %v206 = vld [vmem:[%s165 + $0x118] sm:$0x3]
      %v207 = vld [vmem:[%s165 + $0x120] sm:$0xff]
      %v208 = vld [vmem:[%s165 + $0x128] sm:$0xff]
      %v209 = vld [vmem:[%s165 + $0x130] sm:$0x3]
      %v210 = vld [vmem:[%s165 + $0x138] sm:$0xff]
      %v211 = vld [vmem:[%s165 + $0x140] sm:$0xff]
      %v212 = vld [vmem:[%s165 + $0x148] sm:$0x3]
      %v213 = vld [vmem:[%s165 + $0x150] sm:$0xff]
      %v214 = vld [vmem:[%s165 + $0x158] sm:$0xff]
      %v215 = vld [vmem:[%s165 + $0x160] sm:$0x3]
      %v216 = vld [vmem:[%s165 + $0x168] sm:$0xff]
      %v217 = vld [vmem:[%s165 + $0x170] sm:$0xff]
      %v218 = vld [vmem:[%s165 + $0x178] sm:$0x3]
      %v219 = vld [vmem:[%s165 + $0x180] sm:$0xff]
      %v220 = vld [vmem:[%s165 + $0x188] sm:$0xff]
      %v221 = vld [vmem:[%s165 + $0x190] sm:$0x3]
      %v222 = vld [vmem:[%s165 + $0x198] sm:$0xff]
      %v223 = vld [vmem:[%s165 + $0x1a0] sm:$0xff]
      %v224 = vld [vmem:[%s165 + $0x1a8] sm:$0x3]
      %v225 = vld [vmem:[%s1] sm:$0xf]
      %vm274 = vcmask 1046528
      %v275 = vrot.slane %v171, 1
      %v276 = vrot.slane %v172, 1
      %v277 = vsel %vm274, %v275, %v276
      %v278 = vrot.slane %v173, 1
      %v279 = vsel %vm274, %v276, %v278
      %v280 = vrot.slane %v174, 1
      %v281 = vrot.slane %v175, 1
      %v282 = vsel %vm274, %v280, %v281
      %v283 = vrot.slane %v176, 1
      %v284 = vsel %vm274, %v281, %v283
      %v285 = vrot.slane %v177, 1
      %v286 = vrot.slane %v178, 1
      %v287 = vsel %vm274, %v285, %v286
      %v288 = vrot.slane %v179, 1
      %v289 = vsel %vm274, %v286, %v288
      %v290 = vrot.slane %v180, 1
      %v291 = vrot.slane %v181, 1
      %v292 = vsel %vm274, %v290, %v291
      %v293 = vrot.slane %v182, 1
      %v294 = vsel %vm274, %v291, %v293
      %v295 = vrot.slane %v183, 1
      %v296 = vrot.slane %v184, 1
      %v297 = vsel %vm274, %v295, %v296
      %v298 = vrot.slane %v185, 1
      %v299 = vsel %vm274, %v296, %v298
      %v300 = vrot.slane %v186, 1
      %v301 = vrot.slane %v187, 1
      %v302 = vsel %vm274, %v300, %v301
      %v303 = vrot.slane %v188, 1
      %v304 = vsel %vm274, %v301, %v303
      %v305 = vrot.slane %v189, 1
      %v306 = vrot.slane %v190, 1
      %v307 = vsel %vm274, %v305, %v306
      %v308 = vrot.slane %v191, 1
      %v309 = vsel %vm274, %v306, %v308
      %v310 = vrot.slane %v192, 1
      %v311 = vrot.slane %v193, 1
      %v312 = vsel %vm274, %v310, %v311
      %v313 = vrot.slane %v194, 1
      %v314 = vsel %vm274, %v311, %v313
      %v315 = vrot.slane %v195, 1
      %v316 = vrot.slane %v196, 1
      %v317 = vsel %vm274, %v315, %v316
      %v318 = vrot.slane %v197, 1
      %v319 = vsel %vm274, %v316, %v318
      %v320 = vrot.slane %v198, 1
      %v321 = vrot.slane %v199, 1
      %v322 = vsel %vm274, %v320, %v321
      %v323 = vrot.slane %v200, 1
      %v324 = vsel %vm274, %v321, %v323
      %v325 = vrot.slane %v201, 1
      %v326 = vrot.slane %v202, 1
      %v327 = vsel %vm274, %v325, %v326
      %v328 = vrot.slane %v203, 1
      %v329 = vsel %vm274, %v326, %v328
      %v330 = vrot.slane %v204, 1
      %v331 = vrot.slane %v205, 1
      %v332 = vsel %vm274, %v330, %v331
      %v333 = vrot.slane %v206, 1
      %v334 = vsel %vm274, %v331, %v333
      %v335 = vrot.slane %v207, 1
      %v336 = vrot.slane %v208, 1
      %v337 = vsel %vm274, %v335, %v336
      %v338 = vrot.slane %v209, 1
      %v339 = vsel %vm274, %v336, %v338
      %v340 = vrot.slane %v210, 1
      %v341 = vrot.slane %v211, 1
      %v342 = vsel %vm274, %v340, %v341
      %v343 = vrot.slane %v212, 1
      %v344 = vsel %vm274, %v341, %v343
      %v345 = vrot.slane %v213, 1
      %v346 = vrot.slane %v214, 1
      %v347 = vsel %vm274, %v345, %v346
      %v348 = vrot.slane %v215, 1
      %v349 = vsel %vm274, %v346, %v348
      %v350 = vrot.slane %v216, 1
      %v351 = vrot.slane %v217, 1
      %v352 = vsel %vm274, %v350, %v351
      %v353 = vrot.slane %v218, 1
      %v354 = vsel %vm274, %v351, %v353
      %s355 = scalar_lea.vmem %s1, 4
      %v356 = vld [vmem:[%s355] sm:$0xf]
      %vm357 = vcmask 31744
      %v358 = vsel %vm357, %v277, 0
      %v360 = vsel %vm357, %v279, 0
      %v362 = vsel %vm357, %v282, 0
      %v364 = vsel %vm357, %v284, 0
      %v366 = vsel %vm357, %v287, 0
      %v368 = vsel %vm357, %v289, 0
      %v370 = vsel %vm357, %v292, 0
      %v372 = vsel %vm357, %v294, 0
      %v374 = vsel %vm357, %v297, 0
      %v376 = vsel %vm357, %v299, 0
      %v378 = vsel %vm357, %v302, 0
      %v380 = vsel %vm357, %v304, 0
      %v382 = vsel %vm357, %v307, 0
      %v384 = vsel %vm357, %v309, 0
      %v386 = vsel %vm357, %v312, 0
      %v388 = vsel %vm357, %v314, 0
      %v390 = vsel %vm357, %v317, 0
      %v392 = vsel %vm357, %v319, 0
      %v394 = vsel %vm357, %v322, 0
      %v396 = vsel %vm357, %v324, 0
      %v398 = vsel %vm357, %v327, 0
      %v400 = vsel %vm357, %v329, 0
      %v402 = vsel %vm357, %v332, 0
      %v404 = vsel %vm357, %v334, 0
      %v406 = vsel %vm357, %v337, 0
      %v408 = vsel %vm357, %v339, 0
      %v410 = vsel %vm357, %v342, 0
      %v412 = vsel %vm357, %v344, 0
      %v414 = vsel %vm357, %v347, 0
      %v416 = vsel %vm357, %v349, 0
      %v418 = vsel %vm357, %v352, 0
      %v420 = vsel %vm357, %v354, 0
      %vm422 = vcmask 1043456
      %v424 = vsel %vm422, %v356, 0
      %426 = vmatprep.subr.mxu0 0.0
      %427 = vmatpush1.msra.mxu0 0.0
      %428 = vmatprep.subr.mxu0 0.0
      %429 = vmatpush1.msra.mxu0 0.0
      %430 = vmatprep.subr.mxu0 0.0
      %431 = vmatpush1.msra.mxu0 0.0
      %432 = vmatprep.subr.mxu0 0.0
      %433 = vmatpush1.msra.mxu0 0.0
      %434 = vmatprep.subr.mxu0 0.0
      %435 = vmatpush1.msra.mxu0 0.0
      %436 = vmatprep.subr.mxu0 0.0
      %437 = vmatpush1.msra.mxu0 0.0
      %438 = vmatprep.subr.mxu0 0.0
      %439 = vmatpush1.msra.mxu0 0.0
      %440 = vmatprep.subr.mxu0 0.0
      %441 = vmatpush1.msra.mxu0 0.0
      %442 = vmatprep.subr.mxu0 0.0
      %443 = vmatpush1.msra.mxu0 0.0
      %444 = vmatprep.subr.mxu0 0.0
      %445 = vmatpush1.msra.mxu0 0.0
      %446 = vmatprep.subr.mxu0 0.0
      %447 = vmatpush1.msra.mxu0 0.0
      %448 = vmatprep.subr.mxu0 0.0
      %449 = vmatpush1.msra.mxu0 0.0
      %450 = vmatprep.subr.mxu0 0.0
      %451 = vmatpush1.msra.mxu0 0.0
      %452 = vmatprep.subr.mxu0 0.0
      %453 = vmatpush1.msra.mxu0 0.0
      %454 = vmatprep.subr.mxu0 0.0
      %455 = vmatpush1.msra.mxu0 0.0
      %456 = vmatprep.subr.mxu0 0.0
      %457 = vmatpush1.msra.mxu0 %v424
      %458 = vmatprep.subr.mxu0 0.0
      %459 = vmatpush2.msra.mxu0 0.0
      %460 = vmatprep.subr.mxu0 0.0
      %461 = vmatpush2.msra.mxu0 0.0
      %462 = vmatprep.subr.mxu0 0.0
      %463 = vmatpush2.msra.mxu0 0.0
      %464 = vmatprep.subr.mxu0 0.0
      %465 = vmatpush2.msra.mxu0 0.0
      %466 = vmatprep.subr.mxu0 0.0
      %467 = vmatpush2.msra.mxu0 0.0
      %468 = vmatprep.subr.mxu0 0.0
      %469 = vmatpush2.msra.mxu0 0.0
      %470 = vmatprep.subr.mxu0 0.0
      %471 = vmatpush2.msra.mxu0 0.0
      %472 = vmatprep.subr.mxu0 0.0
      %473 = vmatpush2.msra.mxu0 0.0
      %474 = vmatprep.subr.mxu0 0.0
      %475 = vmatpush2.msra.mxu0 0.0
      %476 = vmatprep.subr.mxu0 0.0
      %477 = vmatpush2.msra.mxu0 0.0
      %478 = vmatprep.subr.mxu0 0.0
      %479 = vmatpush2.msra.mxu0 0.0
      %480 = vmatprep.subr.mxu0 0.0
      %481 = vmatpush2.msra.mxu0 0.0
      %482 = vmatprep.subr.mxu0 0.0
      %483 = vmatpush2.msra.mxu0 0.0
      %484 = vmatprep.subr.mxu0 0.0
      %485 = vmatpush2.msra.mxu0 0.0
      %486 = vmatprep.subr.mxu0 0.0
      %487 = vmatpush2.msra.mxu0 0.0
      %488 = vmatprep.subr.mxu0 0.0
      %489 = vmatpush2.msra.mxu0 0.0
      %490 = vmatprep.mubr.f32.mxu0 0.0
      %491 = vmatmul.mubr.f32.gmra.mxu0 %v358
      %v492 = vpop.f32.mrf.mxu0
      %v493 = vadd.f32 0.0, %v492
      %v494 = vpop.f32.mrf.mxu0
      %495 = vmatprep.mubr.f32.mxu0 0.0
      %496 = vmatmul.mubr.f32.gmra.mxu0 %v360
      %v497 = vpop.f32.mrf.mxu0
      %v498 = vadd.f32 0.0, %v497
      %v499 = vpop.f32.mrf.mxu0
      %500 = vmatprep.mubr.f32.mxu0 0.0
      %501 = vmatmul.mubr.f32.gmra.mxu0 %v362
      %v502 = vpop.f32.mrf.mxu0
      %v503 = vadd.f32 0.0, %v502
      %v504 = vpop.f32.mrf.mxu0
      %505 = vmatprep.mubr.f32.mxu0 0.0
      %506 = vmatmul.mubr.f32.gmra.mxu0 %v364
      %v507 = vpop.f32.mrf.mxu0
      %v508 = vadd.f32 0.0, %v507
      %v509 = vpop.f32.mrf.mxu0
      %510 = vmatprep.mubr.f32.mxu0 0.0
      %511 = vmatmul.mubr.f32.gmra.mxu0 %v366
      %v512 = vpop.f32.mrf.mxu0
      %v513 = vadd.f32 0.0, %v512
      %v514 = vpop.f32.mrf.mxu0
      %515 = vmatprep.mubr.f32.mxu0 0.0
      %516 = vmatmul.mubr.f32.gmra.mxu0 %v368
      %v517 = vpop.f32.mrf.mxu0
      %v518 = vadd.f32 0.0, %v517
      %v519 = vpop.f32.mrf.mxu0
      %520 = vmatprep.mubr.f32.mxu0 0.0
      %521 = vmatmul.mubr.f32.gmra.mxu0 %v370
      %v522 = vpop.f32.mrf.mxu0
      %v523 = vadd.f32 0.0, %v522
      %v524 = vpop.f32.mrf.mxu0
      %525 = vmatprep.mubr.f32.mxu0 0.0
      %526 = vmatmul.mubr.f32.gmra.mxu0 %v372
      %v527 = vpop.f32.mrf.mxu0
      %v528 = vadd.f32 0.0, %v527
      %v529 = vpop.f32.mrf.mxu0
      %530 = vmatprep.mubr.f32.mxu0 0.0
      %531 = vmatmul.mubr.f32.gmra.mxu0 %v374
      %v532 = vpop.f32.mrf.mxu0
      %v533 = vadd.f32 0.0, %v532
      %v534 = vpop.f32.mrf.mxu0
      %535 = vmatprep.mubr.f32.mxu0 0.0
      %536 = vmatmul.mubr.f32.gmra.mxu0 %v376
      %v537 = vpop.f32.mrf.mxu0
      %v538 = vadd.f32 0.0, %v537
      %v539 = vpop.f32.mrf.mxu0
      %540 = vmatprep.mubr.f32.mxu0 0.0
      %541 = vmatmul.mubr.f32.gmra.mxu0 %v378
      %v542 = vpop.f32.mrf.mxu0
      %v543 = vadd.f32 0.0, %v542
      %v544 = vpop.f32.mrf.mxu0
      %545 = vmatprep.mubr.f32.mxu0 0.0
      %546 = vmatmul.mubr.f32.gmra.mxu0 %v380
      %v547 = vpop.f32.mrf.mxu0
      %v548 = vadd.f32 0.0, %v547
      %v549 = vpop.f32.mrf.mxu0
      %550 = vmatprep.mubr.f32.mxu0 0.0
      %551 = vmatmul.mubr.f32.gmra.mxu0 %v382
      %v552 = vpop.f32.mrf.mxu0
      %v553 = vadd.f32 0.0, %v552
      %v554 = vpop.f32.mrf.mxu0
      %555 = vmatprep.mubr.f32.mxu0 0.0
      %556 = vmatmul.mubr.f32.gmra.mxu0 %v384
      %v557 = vpop.f32.mrf.mxu0
      %v558 = vadd.f32 0.0, %v557
      %v559 = vpop.f32.mrf.mxu0
      %560 = vmatprep.mubr.f32.mxu0 0.0
      %561 = vmatmul.mubr.f32.gmra.mxu0 %v386
      %v562 = vpop.f32.mrf.mxu0
      %v563 = vadd.f32 0.0, %v562
      %v564 = vpop.f32.mrf.mxu0
      %565 = vmatprep.mubr.f32.mxu0 0.0
      %566 = vmatmul.mubr.f32.gmra.mxu0 %v388
      %v567 = vpop.f32.mrf.mxu0
      %v568 = vadd.f32 0.0, %v567
      %v569 = vpop.f32.mrf.mxu0
      %570 = vmatprep.mubr.f32.mxu0 0.0
      %571 = vmatmul.mubr.f32.gmra.mxu0 %v390
      %v572 = vpop.f32.mrf.mxu0
      %v573 = vadd.f32 0.0, %v572
      %v574 = vpop.f32.mrf.mxu0
      %575 = vmatprep.mubr.f32.mxu0 0.0
      %576 = vmatmul.mubr.f32.gmra.mxu0 %v392
      %v577 = vpop.f32.mrf.mxu0
      %v578 = vadd.f32 0.0, %v577
      %v579 = vpop.f32.mrf.mxu0
      %580 = vmatprep.mubr.f32.mxu0 0.0
      %581 = vmatmul.mubr.f32.gmra.mxu0 %v394
      %v582 = vpop.f32.mrf.mxu0
      %v583 = vadd.f32 0.0, %v582
      %v584 = vpop.f32.mrf.mxu0
      %585 = vmatprep.mubr.f32.mxu0 0.0
      %586 = vmatmul.mubr.f32.gmra.mxu0 %v396
      %v587 = vpop.f32.mrf.mxu0
      %v588 = vadd.f32 0.0, %v587
      %v589 = vpop.f32.mrf.mxu0
      %590 = vmatprep.mubr.f32.mxu0 0.0
      %591 = vmatmul.mubr.f32.gmra.mxu0 %v398
      %v592 = vpop.f32.mrf.mxu0
      %v593 = vadd.f32 0.0, %v592
      %v594 = vpop.f32.mrf.mxu0
      %595 = vmatprep.mubr.f32.mxu0 0.0
      %596 = vmatmul.mubr.f32.gmra.mxu0 %v400
      %v597 = vpop.f32.mrf.mxu0
      %v598 = vadd.f32 0.0, %v597
      %v599 = vpop.f32.mrf.mxu0
      %600 = vmatprep.mubr.f32.mxu0 0.0
      %601 = vmatmul.mubr.f32.gmra.mxu0 %v402
      %v602 = vpop.f32.mrf.mxu0
      %v603 = vadd.f32 0.0, %v602
      %v604 = vpop.f32.mrf.mxu0
      %605 = vmatprep.mubr.f32.mxu0 0.0
      %606 = vmatmul.mubr.f32.gmra.mxu0 %v404
      %v607 = vpop.f32.mrf.mxu0
      %v608 = vadd.f32 0.0, %v607
      %v609 = vpop.f32.mrf.mxu0
      %610 = vmatprep.mubr.f32.mxu0 0.0
      %611 = vmatmul.mubr.f32.gmra.mxu0 %v406
      %v612 = vpop.f32.mrf.mxu0
      %v613 = vadd.f32 0.0, %v612
      %v614 = vpop.f32.mrf.mxu0
      %615 = vmatprep.mubr.f32.mxu0 0.0
      %616 = vmatmul.mubr.f32.gmra.mxu0 %v408
      %v617 = vpop.f32.mrf.mxu0
      %v618 = vadd.f32 0.0, %v617
      %v619 = vpop.f32.mrf.mxu0
      %620 = vmatprep.mubr.f32.mxu0 0.0
      %621 = vmatmul.mubr.f32.gmra.mxu0 %v410
      %v622 = vpop.f32.mrf.mxu0
      %v623 = vadd.f32 0.0, %v622
      %v624 = vpop.f32.mrf.mxu0
      %625 = vmatprep.mubr.f32.mxu0 0.0
      %626 = vmatmul.mubr.f32.gmra.mxu0 %v412
      %v627 = vpop.f32.mrf.mxu0
      %v628 = vadd.f32 0.0, %v627
      %v629 = vpop.f32.mrf.mxu0
      %630 = vmatprep.mubr.f32.mxu0 0.0
      %631 = vmatmul.mubr.f32.gmra.mxu0 %v414
      %v632 = vpop.f32.mrf.mxu0
      %v633 = vadd.f32 0.0, %v632
      %v634 = vpop.f32.mrf.mxu0
      %635 = vmatprep.mubr.f32.mxu0 0.0
      %636 = vmatmul.mubr.f32.gmra.mxu0 %v416
      %v637 = vpop.f32.mrf.mxu0
      %v638 = vadd.f32 0.0, %v637
      %v639 = vpop.f32.mrf.mxu0
      %640 = vmatprep.mubr.f32.mxu0 0.0
      %641 = vmatmul.mubr.f32.gmra.mxu0 %v418
      %v642 = vpop.f32.mrf.mxu0
      %v643 = vadd.f32 0.0, %v642
      %v644 = vpop.f32.mrf.mxu0
      %645 = vmatprep.mubr.f32.mxu0 0.0
      %646 = vmatmul.mubr.f32.gmra.mxu0 %v420
      %v647 = vpop.f32.mrf.mxu0
      %v648 = vadd.f32 0.0, %v647
      %v649 = vpop.f32.mrf.mxu0
      %650 = vdwg.mxu0
      %v651 = vsel %vm357, %v171, 0
      %v653 = vsel %vm357, %v172, 0
      %v655 = vsel %vm357, %v174, 0
      %v657 = vsel %vm357, %v175, 0
      %v659 = vsel %vm357, %v177, 0
      %v661 = vsel %vm357, %v178, 0
      %v663 = vsel %vm357, %v180, 0
      %v665 = vsel %vm357, %v181, 0
      %v667 = vsel %vm357, %v183, 0
      %v669 = vsel %vm357, %v184, 0
      %v671 = vsel %vm357, %v186, 0
      %v673 = vsel %vm357, %v187, 0
      %v675 = vsel %vm357, %v189, 0
      %v677 = vsel %vm357, %v190, 0
      %v679 = vsel %vm357, %v192, 0
      %v681 = vsel %vm357, %v193, 0
      %v683 = vsel %vm357, %v195, 0
      %v685 = vsel %vm357, %v196, 0
      %v687 = vsel %vm357, %v198, 0
      %v689 = vsel %vm357, %v199, 0
      %v691 = vsel %vm357, %v201, 0
      %v693 = vsel %vm357, %v202, 0
      %v695 = vsel %vm357, %v204, 0
      %v697 = vsel %vm357, %v205, 0
      %v699 = vsel %vm357, %v207, 0
      %v701 = vsel %vm357, %v208, 0
      %v703 = vsel %vm357, %v210, 0
      %v705 = vsel %vm357, %v211, 0
      %v707 = vsel %vm357, %v213, 0
      %v709 = vsel %vm357, %v214, 0
      %v711 = vsel %vm357, %v216, 0
      %v713 = vsel %vm357, %v217, 0
      %v716 = vsel %vm422, %v225, 0
      %718 = vmatprep.subr.mxu0 0.0
      %719 = vmatpush1.msra.mxu0 0.0
      %720 = vmatprep.subr.mxu0 0.0
      %721 = vmatpush1.msra.mxu0 0.0
      %722 = vmatprep.subr.mxu0 0.0
      %723 = vmatpush1.msra.mxu0 0.0
      %724 = vmatprep.subr.mxu0 0.0
      %725 = vmatpush1.msra.mxu0 0.0
      %726 = vmatprep.subr.mxu0 0.0
      %727 = vmatpush1.msra.mxu0 0.0
      %728 = vmatprep.subr.mxu0 0.0
      %729 = vmatpush1.msra.mxu0 0.0
      %730 = vmatprep.subr.mxu0 0.0
      %731 = vmatpush1.msra.mxu0 0.0
      %732 = vmatprep.subr.mxu0 0.0
      %733 = vmatpush1.msra.mxu0 0.0
      %734 = vmatprep.subr.mxu0 0.0
      %735 = vmatpush1.msra.mxu0 0.0
      %736 = vmatprep.subr.mxu0 0.0
      %737 = vmatpush1.msra.mxu0 0.0
      %738 = vmatprep.subr.mxu0 0.0
      %739 = vmatpush1.msra.mxu0 0.0
      %740 = vmatprep.subr.mxu0 0.0
      %741 = vmatpush1.msra.mxu0 0.0
      %742 = vmatprep.subr.mxu0 0.0
      %743 = vmatpush1.msra.mxu0 0.0
      %744 = vmatprep.subr.mxu0 0.0
      %745 = vmatpush1.msra.mxu0 0.0
      %746 = vmatprep.subr.mxu0 0.0
      %747 = vmatpush1.msra.mxu0 0.0
      %748 = vmatprep.subr.mxu0 0.0
      %749 = vmatpush1.msra.mxu0 %v716
      %750 = vmatprep.subr.mxu0 0.0
      %751 = vmatpush2.msra.mxu0 0.0
      %752 = vmatprep.subr.mxu0 0.0
      %753 = vmatpush2.msra.mxu0 0.0
      %754 = vmatprep.subr.mxu0 0.0
      %755 = vmatpush2.msra.mxu0 0.0
      %756 = vmatprep.subr.mxu0 0.0
      %757 = vmatpush2.msra.mxu0 0.0
      %758 = vmatprep.subr.mxu0 0.0
      %759 = vmatpush2.msra.mxu0 0.0
      %760 = vmatprep.subr.mxu0 0.0
      %761 = vmatpush2.msra.mxu0 0.0
      %762 = vmatprep.subr.mxu0 0.0
      %763 = vmatpush2.msra.mxu0 0.0
      %764 = vmatprep.subr.mxu0 0.0
      %765 = vmatpush2.msra.mxu0 0.0
      %766 = vmatprep.subr.mxu0 0.0
      %767 = vmatpush2.msra.mxu0 0.0
      %768 = vmatprep.subr.mxu0 0.0
      %769 = vmatpush2.msra.mxu0 0.0
      %770 = vmatprep.subr.mxu0 0.0
      %771 = vmatpush2.msra.mxu0 0.0
      %772 = vmatprep.subr.mxu0 0.0
      %773 = vmatpush2.msra.mxu0 0.0
      %774 = vmatprep.subr.mxu0 0.0
      %775 = vmatpush2.msra.mxu0 0.0
      %776 = vmatprep.subr.mxu0 0.0
      %777 = vmatpush2.msra.mxu0 0.0
      %778 = vmatprep.subr.mxu0 0.0
      %779 = vmatpush2.msra.mxu0 0.0
      %780 = vmatprep.subr.mxu0 0.0
      %781 = vmatpush2.msra.mxu0 0.0
      %782 = vmatprep.mubr.f32.mxu0 0.0
      %783 = vmatmul.mubr.f32.gmra.mxu0 %v651
      %v784 = vpop.f32.mrf.mxu0
      %v785 = vadd.f32 %v493, %v784
      %v786 = vpop.f32.mrf.mxu0
      %787 = vmatprep.mubr.f32.mxu0 0.0
      %788 = vmatmul.mubr.f32.gmra.mxu0 %v653
      %v789 = vpop.f32.mrf.mxu0
      %v790 = vadd.f32 %v498, %v789
      %v791 = vpop.f32.mrf.mxu0
      %792 = vmatprep.mubr.f32.mxu0 0.0
      %793 = vmatmul.mubr.f32.gmra.mxu0 %v655
      %v794 = vpop.f32.mrf.mxu0
      %v795 = vadd.f32 %v503, %v794
      %v796 = vpop.f32.mrf.mxu0
      %797 = vmatprep.mubr.f32.mxu0 0.0
      %798 = vmatmul.mubr.f32.gmra.mxu0 %v657
      %v799 = vpop.f32.mrf.mxu0
      %v800 = vadd.f32 %v508, %v799
      %v801 = vpop.f32.mrf.mxu0
      %802 = vmatprep.mubr.f32.mxu0 0.0
      %803 = vmatmul.mubr.f32.gmra.mxu0 %v659
      %v804 = vpop.f32.mrf.mxu0
      %v805 = vadd.f32 %v513, %v804
      %v806 = vpop.f32.mrf.mxu0
      %807 = vmatprep.mubr.f32.mxu0 0.0
      %808 = vmatmul.mubr.f32.gmra.mxu0 %v661
      %v809 = vpop.f32.mrf.mxu0
      %v810 = vadd.f32 %v518, %v809
      %v811 = vpop.f32.mrf.mxu0
      %812 = vmatprep.mubr.f32.mxu0 0.0
      %813 = vmatmul.mubr.f32.gmra.mxu0 %v663
      %v814 = vpop.f32.mrf.mxu0
      %v815 = vadd.f32 %v523, %v814
      %v816 = vpop.f32.mrf.mxu0
      %817 = vmatprep.mubr.f32.mxu0 0.0
      %818 = vmatmul.mubr.f32.gmra.mxu0 %v665
      %v819 = vpop.f32.mrf.mxu0
      %v820 = vadd.f32 %v528, %v819
      %v821 = vpop.f32.mrf.mxu0
      %822 = vmatprep.mubr.f32.mxu0 0.0
      %823 = vmatmul.mubr.f32.gmra.mxu0 %v667
      %v824 = vpop.f32.mrf.mxu0
      %v825 = vadd.f32 %v533, %v824
      %v826 = vpop.f32.mrf.mxu0
      %827 = vmatprep.mubr.f32.mxu0 0.0
      %828 = vmatmul.mubr.f32.gmra.mxu0 %v669
      %v829 = vpop.f32.mrf.mxu0
      %v830 = vadd.f32 %v538, %v829
      %v831 = vpop.f32.mrf.mxu0
      %832 = vmatprep.mubr.f32.mxu0 0.0
      %833 = vmatmul.mubr.f32.gmra.mxu0 %v671
      %v834 = vpop.f32.mrf.mxu0
      %v835 = vadd.f32 %v543, %v834
      %v836 = vpop.f32.mrf.mxu0
      %837 = vmatprep.mubr.f32.mxu0 0.0
      %838 = vmatmul.mubr.f32.gmra.mxu0 %v673
      %v839 = vpop.f32.mrf.mxu0
      %v840 = vadd.f32 %v548, %v839
      %v841 = vpop.f32.mrf.mxu0
      %842 = vmatprep.mubr.f32.mxu0 0.0
      %843 = vmatmul.mubr.f32.gmra.mxu0 %v675
      %v844 = vpop.f32.mrf.mxu0
      %v845 = vadd.f32 %v553, %v844
      %v846 = vpop.f32.mrf.mxu0
      %847 = vmatprep.mubr.f32.mxu0 0.0
      %848 = vmatmul.mubr.f32.gmra.mxu0 %v677
      %v849 = vpop.f32.mrf.mxu0
      %v850 = vadd.f32 %v558, %v849
      %v851 = vpop.f32.mrf.mxu0
      %852 = vmatprep.mubr.f32.mxu0 0.0
      %853 = vmatmul.mubr.f32.gmra.mxu0 %v679
      %v854 = vpop.f32.mrf.mxu0
      %v855 = vadd.f32 %v563, %v854
      %v856 = vpop.f32.mrf.mxu0
      %857 = vmatprep.mubr.f32.mxu0 0.0
      %858 = vmatmul.mubr.f32.gmra.mxu0 %v681
      %v859 = vpop.f32.mrf.mxu0
      %v860 = vadd.f32 %v568, %v859
      %v861 = vpop.f32.mrf.mxu0
      %862 = vmatprep.mubr.f32.mxu0 0.0
      %863 = vmatmul.mubr.f32.gmra.mxu0 %v683
      %v864 = vpop.f32.mrf.mxu0
      %v865 = vadd.f32 %v573, %v864
      %v866 = vpop.f32.mrf.mxu0
      %867 = vmatprep.mubr.f32.mxu0 0.0
      %868 = vmatmul.mubr.f32.gmra.mxu0 %v685
      %v869 = vpop.f32.mrf.mxu0
      %v870 = vadd.f32 %v578, %v869
      %v871 = vpop.f32.mrf.mxu0
      %872 = vmatprep.mubr.f32.mxu0 0.0
      %873 = vmatmul.mubr.f32.gmra.mxu0 %v687
      %v874 = vpop.f32.mrf.mxu0
      %v875 = vadd.f32 %v583, %v874
      %v876 = vpop.f32.mrf.mxu0
      %877 = vmatprep.mubr.f32.mxu0 0.0
      %878 = vmatmul.mubr.f32.gmra.mxu0 %v689
      %v879 = vpop.f32.mrf.mxu0
      %v880 = vadd.f32 %v588, %v879
      %v881 = vpop.f32.mrf.mxu0
      %882 = vmatprep.mubr.f32.mxu0 0.0
      %883 = vmatmul.mubr.f32.gmra.mxu0 %v691
      %v884 = vpop.f32.mrf.mxu0
      %v885 = vadd.f32 %v593, %v884
      %v886 = vpop.f32.mrf.mxu0
      %887 = vmatprep.mubr.f32.mxu0 0.0
      %888 = vmatmul.mubr.f32.gmra.mxu0 %v693
      %v889 = vpop.f32.mrf.mxu0
      %v890 = vadd.f32 %v598, %v889
      %v891 = vpop.f32.mrf.mxu0
      %892 = vmatprep.mubr.f32.mxu0 0.0
      %893 = vmatmul.mubr.f32.gmra.mxu0 %v695
      %v894 = vpop.f32.mrf.mxu0
      %v895 = vadd.f32 %v603, %v894
      %v896 = vpop.f32.mrf.mxu0
      %897 = vmatprep.mubr.f32.mxu0 0.0
      %898 = vmatmul.mubr.f32.gmra.mxu0 %v697
      %v899 = vpop.f32.mrf.mxu0
      %v900 = vadd.f32 %v608, %v899
      %v901 = vpop.f32.mrf.mxu0
      %902 = vmatprep.mubr.f32.mxu0 0.0
      %903 = vmatmul.mubr.f32.gmra.mxu0 %v699
      %v904 = vpop.f32.mrf.mxu0
      %v905 = vadd.f32 %v613, %v904
      %v906 = vpop.f32.mrf.mxu0
      %907 = vmatprep.mubr.f32.mxu0 0.0
      %908 = vmatmul.mubr.f32.gmra.mxu0 %v701
      %v909 = vpop.f32.mrf.mxu0
      %v910 = vadd.f32 %v618, %v909
      %v911 = vpop.f32.mrf.mxu0
      %912 = vmatprep.mubr.f32.mxu0 0.0
      %913 = vmatmul.mubr.f32.gmra.mxu0 %v703
      %v914 = vpop.f32.mrf.mxu0
      %v915 = vadd.f32 %v623, %v914
      %v916 = vpop.f32.mrf.mxu0
      %917 = vmatprep.mubr.f32.mxu0 0.0
      %918 = vmatmul.mubr.f32.gmra.mxu0 %v705
      %v919 = vpop.f32.mrf.mxu0
      %v920 = vadd.f32 %v628, %v919
      %v921 = vpop.f32.mrf.mxu0
      %922 = vmatprep.mubr.f32.mxu0 0.0
      %923 = vmatmul.mubr.f32.gmra.mxu0 %v707
      %v924 = vpop.f32.mrf.mxu0
      %v925 = vadd.f32 %v633, %v924
      %v926 = vpop.f32.mrf.mxu0
      %927 = vmatprep.mubr.f32.mxu0 0.0
      %928 = vmatmul.mubr.f32.gmra.mxu0 %v709
      %v929 = vpop.f32.mrf.mxu0
      %v930 = vadd.f32 %v638, %v929
      %v931 = vpop.f32.mrf.mxu0
      %932 = vmatprep.mubr.f32.mxu0 0.0
      %933 = vmatmul.mubr.f32.gmra.mxu0 %v711
      %v934 = vpop.f32.mrf.mxu0
      %v935 = vadd.f32 %v643, %v934
      %v936 = vpop.f32.mrf.mxu0
      %937 = vmatprep.mubr.f32.mxu0 0.0
      %938 = vmatmul.mubr.f32.gmra.mxu0 %v713
      %v939 = vpop.f32.mrf.mxu0
      %v940 = vadd.f32 %v648, %v939
      %v941 = vpop.f32.mrf.mxu0
      %942 = vdwg.mxu0
      %vm943 = vcmask 1045504
      %v944 = vrot.slane %v171, 2
      %v945 = vrot.slane %v172, 2
      %v946 = vsel %vm943, %v944, %v945
      %v947 = vrot.slane %v173, 2
      %v948 = vsel %vm943, %v945, %v947
      %v949 = vrot.slane %v174, 2
      %v950 = vrot.slane %v175, 2
      %v951 = vsel %vm943, %v949, %v950
      %v952 = vrot.slane %v176, 2
      %v953 = vsel %vm943, %v950, %v952
      %v954 = vrot.slane %v177, 2
      %v955 = vrot.slane %v178, 2
      %v956 = vsel %vm943, %v954, %v955
      %v957 = vrot.slane %v179, 2
      %v958 = vsel %vm943, %v955, %v957
      %v959 = vrot.slane %v180, 2
      %v960 = vrot.slane %v181, 2
      %v961 = vsel %vm943, %v959, %v960
      %v962 = vrot.slane %v182, 2
      %v963 = vsel %vm943, %v960, %v962
      %v964 = vrot.slane %v183, 2
      %v965 = vrot.slane %v184, 2
      %v966 = vsel %vm943, %v964, %v965
      %v967 = vrot.slane %v185, 2
      %v968 = vsel %vm943, %v965, %v967
      %v969 = vrot.slane %v186, 2
      %v970 = vrot.slane %v187, 2
      %v971 = vsel %vm943, %v969, %v970
      %v972 = vrot.slane %v188, 2
      %v973 = vsel %vm943, %v970, %v972
      %v974 = vrot.slane %v189, 2
      %v975 = vrot.slane %v190, 2
      %v976 = vsel %vm943, %v974, %v975
      %v977 = vrot.slane %v191, 2
      %v978 = vsel %vm943, %v975, %v977
      %v979 = vrot.slane %v192, 2
      %v980 = vrot.slane %v193, 2
      %v981 = vsel %vm943, %v979, %v980
      %v982 = vrot.slane %v194, 2
      %v983 = vsel %vm943, %v980, %v982
      %v984 = vrot.slane %v195, 2
      %v985 = vrot.slane %v196, 2
      %v986 = vsel %vm943, %v984, %v985
      %v987 = vrot.slane %v197, 2
      %v988 = vsel %vm943, %v985, %v987
      %v989 = vrot.slane %v198, 2
      %v990 = vrot.slane %v199, 2
      %v991 = vsel %vm943, %v989, %v990
      %v992 = vrot.slane %v200, 2
      %v993 = vsel %vm943, %v990, %v992
      %v994 = vrot.slane %v201, 2
      %v995 = vrot.slane %v202, 2
      %v996 = vsel %vm943, %v994, %v995
      %v997 = vrot.slane %v203, 2
      %v998 = vsel %vm943, %v995, %v997
      %v999 = vrot.slane %v204, 2
      %v1000 = vrot.slane %v205, 2
      %v1001 = vsel %vm943, %v999, %v1000
      %v1002 = vrot.slane %v206, 2
      %v1003 = vsel %vm943, %v1000, %v1002
      %v1004 = vrot.slane %v207, 2
      %v1005 = vrot.slane %v208, 2
      %v1006 = vsel %vm943, %v1004, %v1005
      %v1007 = vrot.slane %v209, 2
      %v1008 = vsel %vm943, %v1005, %v1007
      %v1009 = vrot.slane %v210, 2
      %v1010 = vrot.slane %v211, 2
      %v1011 = vsel %vm943, %v1009, %v1010
      %v1012 = vrot.slane %v212, 2
      %v1013 = vsel %vm943, %v1010, %v1012
      %v1014 = vrot.slane %v213, 2
      %v1015 = vrot.slane %v214, 2
      %v1016 = vsel %vm943, %v1014, %v1015
      %v1017 = vrot.slane %v215, 2
      %v1018 = vsel %vm943, %v1015, %v1017
      %v1019 = vrot.slane %v216, 2
      %v1020 = vrot.slane %v217, 2
      %v1021 = vsel %vm943, %v1019, %v1020
      %v1022 = vrot.slane %v218, 2
      %v1023 = vsel %vm943, %v1020, %v1022
      %s1024 = scalar_lea.vmem %s1, 8
      %v1025 = vld [vmem:[%s1024] sm:$0xf]
      %v1026 = vsel %vm357, %v946, 0
      %v1028 = vsel %vm357, %v948, 0
      %v1030 = vsel %vm357, %v951, 0
      %v1032 = vsel %vm357, %v953, 0
      %v1034 = vsel %vm357, %v956, 0
      %v1036 = vsel %vm357, %v958, 0
      %v1038 = vsel %vm357, %v961, 0
      %v1040 = vsel %vm357, %v963, 0
      %v1042 = vsel %vm357, %v966, 0
      %v1044 = vsel %vm357, %v968, 0
      %v1046 = vsel %vm357, %v971, 0
      %v1048 = vsel %vm357, %v973, 0
      %v1050 = vsel %vm357, %v976, 0
      %v1052 = vsel %vm357, %v978, 0
      %v1054 = vsel %vm357, %v981, 0
      %v1056 = vsel %vm357, %v983, 0
      %v1058 = vsel %vm357, %v986, 0
      %v1060 = vsel %vm357, %v988, 0
      %v1062 = vsel %vm357, %v991, 0
      %v1064 = vsel %vm357, %v993, 0
      %v1066 = vsel %vm357, %v996, 0
      %v1068 = vsel %vm357, %v998, 0
      %v1070 = vsel %vm357, %v1001, 0
      %v1072 = vsel %vm357, %v1003, 0
      %v1074 = vsel %vm357, %v1006, 0
      %v1076 = vsel %vm357, %v1008, 0
      %v1078 = vsel %vm357, %v1011, 0
      %v1080 = vsel %vm357, %v1013, 0
      %v1082 = vsel %vm357, %v1016, 0
      %v1084 = vsel %vm357, %v1018, 0
      %v1086 = vsel %vm357, %v1021, 0
      %v1088 = vsel %vm357, %v1023, 0
      %v1091 = vsel %vm422, %v1025, 0
      %1093 = vmatprep.subr.mxu0 0.0
      %1094 = vmatpush1.msra.mxu0 0.0
      %1095 = vmatprep.subr.mxu0 0.0
      %1096 = vmatpush1.msra.mxu0 0.0
      %1097 = vmatprep.subr.mxu0 0.0
      %1098 = vmatpush1.msra.mxu0 0.0
      %1099 = vmatprep.subr.mxu0 0.0
      %1100 = vmatpush1.msra.mxu0 0.0
      %1101 = vmatprep.subr.mxu0 0.0
      %1102 = vmatpush1.msra.mxu0 0.0
      %1103 = vmatprep.subr.mxu0 0.0
      %1104 = vmatpush1.msra.mxu0 0.0
      %1105 = vmatprep.subr.mxu0 0.0
      %1106 = vmatpush1.msra.mxu0 0.0
      %1107 = vmatprep.subr.mxu0 0.0
      %1108 = vmatpush1.msra.mxu0 0.0
      %1109 = vmatprep.subr.mxu0 0.0
      %1110 = vmatpush1.msra.mxu0 0.0
      %1111 = vmatprep.subr.mxu0 0.0
      %1112 = vmatpush1.msra.mxu0 0.0
      %1113 = vmatprep.subr.mxu0 0.0
      %1114 = vmatpush1.msra.mxu0 0.0
      %1115 = vmatprep.subr.mxu0 0.0
      %1116 = vmatpush1.msra.mxu0 0.0
      %1117 = vmatprep.subr.mxu0 0.0
      %1118 = vmatpush1.msra.mxu0 0.0
      %1119 = vmatprep.subr.mxu0 0.0
      %1120 = vmatpush1.msra.mxu0 0.0
      %1121 = vmatprep.subr.mxu0 0.0
      %1122 = vmatpush1.msra.mxu0 0.0
      %1123 = vmatprep.subr.mxu0 0.0
      %1124 = vmatpush1.msra.mxu0 %v1091
      %1125 = vmatprep.subr.mxu0 0.0
      %1126 = vmatpush2.msra.mxu0 0.0
      %1127 = vmatprep.subr.mxu0 0.0
      %1128 = vmatpush2.msra.mxu0 0.0
      %1129 = vmatprep.subr.mxu0 0.0
      %1130 = vmatpush2.msra.mxu0 0.0
      %1131 = vmatprep.subr.mxu0 0.0
      %1132 = vmatpush2.msra.mxu0 0.0
      %1133 = vmatprep.subr.mxu0 0.0
      %1134 = vmatpush2.msra.mxu0 0.0
      %1135 = vmatprep.subr.mxu0 0.0
      %1136 = vmatpush2.msra.mxu0 0.0
      %1137 = vmatprep.subr.mxu0 0.0
      %1138 = vmatpush2.msra.mxu0 0.0
      %1139 = vmatprep.subr.mxu0 0.0
      %1140 = vmatpush2.msra.mxu0 0.0
      %1141 = vmatprep.subr.mxu0 0.0
      %1142 = vmatpush2.msra.mxu0 0.0
      %1143 = vmatprep.subr.mxu0 0.0
      %1144 = vmatpush2.msra.mxu0 0.0
      %1145 = vmatprep.subr.mxu0 0.0
      %1146 = vmatpush2.msra.mxu0 0.0
      %1147 = vmatprep.subr.mxu0 0.0
      %1148 = vmatpush2.msra.mxu0 0.0
      %1149 = vmatprep.subr.mxu0 0.0
      %1150 = vmatpush2.msra.mxu0 0.0
      %1151 = vmatprep.subr.mxu0 0.0
      %1152 = vmatpush2.msra.mxu0 0.0
      %1153 = vmatprep.subr.mxu0 0.0
      %1154 = vmatpush2.msra.mxu0 0.0
      %1155 = vmatprep.subr.mxu0 0.0
      %1156 = vmatpush2.msra.mxu0 0.0
      %1157 = vmatprep.mubr.f32.mxu0 0.0
      %1158 = vmatmul.mubr.f32.gmra.mxu0 %v1026
      %v1159 = vpop.f32.mrf.mxu0
      %v1160 = vadd.f32 0.0, %v1159
      %v1161 = vpop.f32.mrf.mxu0
      %1162 = vmatprep.mubr.f32.mxu0 0.0
      %1163 = vmatmul.mubr.f32.gmra.mxu0 %v1028
      %v1164 = vpop.f32.mrf.mxu0
      %v1165 = vadd.f32 0.0, %v1164
      %v1166 = vpop.f32.mrf.mxu0
      %1167 = vmatprep.mubr.f32.mxu0 0.0
      %1168 = vmatmul.mubr.f32.gmra.mxu0 %v1030
      %v1169 = vpop.f32.mrf.mxu0
      %v1170 = vadd.f32 0.0, %v1169
      %v1171 = vpop.f32.mrf.mxu0
      %1172 = vmatprep.mubr.f32.mxu0 0.0
      %1173 = vmatmul.mubr.f32.gmra.mxu0 %v1032
      %v1174 = vpop.f32.mrf.mxu0
      %v1175 = vadd.f32 0.0, %v1174
      %v1176 = vpop.f32.mrf.mxu0
      %1177 = vmatprep.mubr.f32.mxu0 0.0
      %1178 = vmatmul.mubr.f32.gmra.mxu0 %v1034
      %v1179 = vpop.f32.mrf.mxu0
      %v1180 = vadd.f32 0.0, %v1179
      %v1181 = vpop.f32.mrf.mxu0
      %1182 = vmatprep.mubr.f32.mxu0 0.0
      %1183 = vmatmul.mubr.f32.gmra.mxu0 %v1036
      %v1184 = vpop.f32.mrf.mxu0
      %v1185 = vadd.f32 0.0, %v1184
      %v1186 = vpop.f32.mrf.mxu0
      %1187 = vmatprep.mubr.f32.mxu0 0.0
      %1188 = vmatmul.mubr.f32.gmra.mxu0 %v1038
      %v1189 = vpop.f32.mrf.mxu0
      %v1190 = vadd.f32 0.0, %v1189
      %v1191 = vpop.f32.mrf.mxu0
      %1192 = vmatprep.mubr.f32.mxu0 0.0
      %1193 = vmatmul.mubr.f32.gmra.mxu0 %v1040
      %v1194 = vpop.f32.mrf.mxu0
      %v1195 = vadd.f32 0.0, %v1194
      %v1196 = vpop.f32.mrf.mxu0
      %1197 = vmatprep.mubr.f32.mxu0 0.0
      %1198 = vmatmul.mubr.f32.gmra.mxu0 %v1042
      %v1199 = vpop.f32.mrf.mxu0
      %v1200 = vadd.f32 0.0, %v1199
      %v1201 = vpop.f32.mrf.mxu0
      %1202 = vmatprep.mubr.f32.mxu0 0.0
      %1203 = vmatmul.mubr.f32.gmra.mxu0 %v1044
      %v1204 = vpop.f32.mrf.mxu0
      %v1205 = vadd.f32 0.0, %v1204
      %v1206 = vpop.f32.mrf.mxu0
      %1207 = vmatprep.mubr.f32.mxu0 0.0
      %1208 = vmatmul.mubr.f32.gmra.mxu0 %v1046
      %v1209 = vpop.f32.mrf.mxu0
      %v1210 = vadd.f32 0.0, %v1209
      %v1211 = vpop.f32.mrf.mxu0
      %1212 = vmatprep.mubr.f32.mxu0 0.0
      %1213 = vmatmul.mubr.f32.gmra.mxu0 %v1048
      %v1214 = vpop.f32.mrf.mxu0
      %v1215 = vadd.f32 0.0, %v1214
      %v1216 = vpop.f32.mrf.mxu0
      %1217 = vmatprep.mubr.f32.mxu0 0.0
      %1218 = vmatmul.mubr.f32.gmra.mxu0 %v1050
      %v1219 = vpop.f32.mrf.mxu0
      %v1220 = vadd.f32 0.0, %v1219
      %v1221 = vpop.f32.mrf.mxu0
      %1222 = vmatprep.mubr.f32.mxu0 0.0
      %1223 = vmatmul.mubr.f32.gmra.mxu0 %v1052
      %v1224 = vpop.f32.mrf.mxu0
      %v1225 = vadd.f32 0.0, %v1224
      %v1226 = vpop.f32.mrf.mxu0
      %1227 = vmatprep.mubr.f32.mxu0 0.0
      %1228 = vmatmul.mubr.f32.gmra.mxu0 %v1054
      %v1229 = vpop.f32.mrf.mxu0
      %v1230 = vadd.f32 0.0, %v1229
      %v1231 = vpop.f32.mrf.mxu0
      %1232 = vmatprep.mubr.f32.mxu0 0.0
      %1233 = vmatmul.mubr.f32.gmra.mxu0 %v1056
      %v1234 = vpop.f32.mrf.mxu0
      %v1235 = vadd.f32 0.0, %v1234
      %v1236 = vpop.f32.mrf.mxu0
      %1237 = vmatprep.mubr.f32.mxu0 0.0
      %1238 = vmatmul.mubr.f32.gmra.mxu0 %v1058
      %v1239 = vpop.f32.mrf.mxu0
      %v1240 = vadd.f32 0.0, %v1239
      %v1241 = vpop.f32.mrf.mxu0
      %1242 = vmatprep.mubr.f32.mxu0 0.0
      %1243 = vmatmul.mubr.f32.gmra.mxu0 %v1060
      %v1244 = vpop.f32.mrf.mxu0
      %v1245 = vadd.f32 0.0, %v1244
      %v1246 = vpop.f32.mrf.mxu0
      %1247 = vmatprep.mubr.f32.mxu0 0.0
      %1248 = vmatmul.mubr.f32.gmra.mxu0 %v1062
      %v1249 = vpop.f32.mrf.mxu0
      %v1250 = vadd.f32 0.0, %v1249
      %v1251 = vpop.f32.mrf.mxu0
      %1252 = vmatprep.mubr.f32.mxu0 0.0
      %1253 = vmatmul.mubr.f32.gmra.mxu0 %v1064
      %v1254 = vpop.f32.mrf.mxu0
      %v1255 = vadd.f32 0.0, %v1254
      %v1256 = vpop.f32.mrf.mxu0
      %1257 = vmatprep.mubr.f32.mxu0 0.0
      %1258 = vmatmul.mubr.f32.gmra.mxu0 %v1066
      %v1259 = vpop.f32.mrf.mxu0
      %v1260 = vadd.f32 0.0, %v1259
      %v1261 = vpop.f32.mrf.mxu0
      %1262 = vmatprep.mubr.f32.mxu0 0.0
      %1263 = vmatmul.mubr.f32.gmra.mxu0 %v1068
      %v1264 = vpop.f32.mrf.mxu0
      %v1265 = vadd.f32 0.0, %v1264
      %v1266 = vpop.f32.mrf.mxu0
      %1267 = vmatprep.mubr.f32.mxu0 0.0
      %1268 = vmatmul.mubr.f32.gmra.mxu0 %v1070
      %v1269 = vpop.f32.mrf.mxu0
      %v1270 = vadd.f32 0.0, %v1269
      %v1271 = vpop.f32.mrf.mxu0
      %1272 = vmatprep.mubr.f32.mxu0 0.0
      %1273 = vmatmul.mubr.f32.gmra.mxu0 %v1072
      %v1274 = vpop.f32.mrf.mxu0
      %v1275 = vadd.f32 0.0, %v1274
      %v1276 = vpop.f32.mrf.mxu0
      %1277 = vmatprep.mubr.f32.mxu0 0.0
      %1278 = vmatmul.mubr.f32.gmra.mxu0 %v1074
      %v1279 = vpop.f32.mrf.mxu0
      %v1280 = vadd.f32 0.0, %v1279
      %v1281 = vpop.f32.mrf.mxu0
      %1282 = vmatprep.mubr.f32.mxu0 0.0
      %1283 = vmatmul.mubr.f32.gmra.mxu0 %v1076
      %v1284 = vpop.f32.mrf.mxu0
      %v1285 = vadd.f32 0.0, %v1284
      %v1286 = vpop.f32.mrf.mxu0
      %1287 = vmatprep.mubr.f32.mxu0 0.0
      %1288 = vmatmul.mubr.f32.gmra.mxu0 %v1078
      %v1289 = vpop.f32.mrf.mxu0
      %v1290 = vadd.f32 0.0, %v1289
      %v1291 = vpop.f32.mrf.mxu0
      %1292 = vmatprep.mubr.f32.mxu0 0.0
      %1293 = vmatmul.mubr.f32.gmra.mxu0 %v1080
      %v1294 = vpop.f32.mrf.mxu0
      %v1295 = vadd.f32 0.0, %v1294
      %v1296 = vpop.f32.mrf.mxu0
      %1297 = vmatprep.mubr.f32.mxu0 0.0
      %1298 = vmatmul.mubr.f32.gmra.mxu0 %v1082
      %v1299 = vpop.f32.mrf.mxu0
      %v1300 = vadd.f32 0.0, %v1299
      %v1301 = vpop.f32.mrf.mxu0
      %1302 = vmatprep.mubr.f32.mxu0 0.0
      %1303 = vmatmul.mubr.f32.gmra.mxu0 %v1084
      %v1304 = vpop.f32.mrf.mxu0
      %v1305 = vadd.f32 0.0, %v1304
      %v1306 = vpop.f32.mrf.mxu0
      %1307 = vmatprep.mubr.f32.mxu0 0.0
      %1308 = vmatmul.mubr.f32.gmra.mxu0 %v1086
      %v1309 = vpop.f32.mrf.mxu0
      %v1310 = vadd.f32 0.0, %v1309
      %v1311 = vpop.f32.mrf.mxu0
      %1312 = vmatprep.mubr.f32.mxu0 0.0
      %1313 = vmatmul.mubr.f32.gmra.mxu0 %v1088
      %v1314 = vpop.f32.mrf.mxu0
      %v1315 = vadd.f32 0.0, %v1314
      %v1316 = vpop.f32.mrf.mxu0
      %1317 = vdwg.mxu0
      %v1318 = vadd.f32 %v785, %v1160
      %v1319 = vadd.f32 %v790, %v1165
      %v1320 = vadd.f32 %v795, %v1170
      %v1321 = vadd.f32 %v800, %v1175
      %v1322 = vadd.f32 %v805, %v1180
      %v1323 = vadd.f32 %v810, %v1185
      %v1324 = vadd.f32 %v815, %v1190
      %v1325 = vadd.f32 %v820, %v1195
      %v1326 = vadd.f32 %v825, %v1200
      %v1327 = vadd.f32 %v830, %v1205
      %v1328 = vadd.f32 %v835, %v1210
      %v1329 = vadd.f32 %v840, %v1215
      %v1330 = vadd.f32 %v845, %v1220
      %v1331 = vadd.f32 %v850, %v1225
      %v1332 = vadd.f32 %v855, %v1230
      %v1333 = vadd.f32 %v860, %v1235
      %v1334 = vadd.f32 %v865, %v1240
      %v1335 = vadd.f32 %v870, %v1245
      %v1336 = vadd.f32 %v875, %v1250
      %v1337 = vadd.f32 %v880, %v1255
      %v1338 = vadd.f32 %v885, %v1260
      %v1339 = vadd.f32 %v890, %v1265
      %v1340 = vadd.f32 %v895, %v1270
      %v1341 = vadd.f32 %v900, %v1275
      %v1342 = vadd.f32 %v905, %v1280
      %v1343 = vadd.f32 %v910, %v1285
      %v1344 = vadd.f32 %v915, %v1290
      %v1345 = vadd.f32 %v920, %v1295
      %v1346 = vadd.f32 %v925, %v1300
      %v1347 = vadd.f32 %v930, %v1305
      %v1348 = vadd.f32 %v935, %v1310
      %v1349 = vadd.f32 %v940, %v1315
      %s1350 = scalar_lea.vmem %s1, 12
      %v1351 = vld [vmem:[%s1350] sm:$0xf]
      %v1353 = vsel %vm357, %v219, 0
      %v1356 = vsel %vm357, %v220, 0
      %v1359 = vsel %vm422, %v1351, 0
      %1361 = vmatprep.subr.mxu0 0.0
      %1362 = vmatpush1.msra.mxu0 0.0
      %1363 = vmatprep.subr.mxu0 0.0
      %1364 = vmatpush1.msra.mxu0 0.0
      %1365 = vmatprep.subr.mxu0 0.0
      %1366 = vmatpush1.msra.mxu0 0.0
      %1367 = vmatprep.subr.mxu0 0.0
      %1368 = vmatpush1.msra.mxu0 0.0
      %1369 = vmatprep.subr.mxu0 0.0
      %1370 = vmatpush1.msra.mxu0 0.0
      %1371 = vmatprep.subr.mxu0 0.0
      %1372 = vmatpush1.msra.mxu0 0.0
      %1373 = vmatprep.subr.mxu0 0.0
      %1374 = vmatpush1.msra.mxu0 0.0
      %1375 = vmatprep.subr.mxu0 0.0
      %1376 = vmatpush1.msra.mxu0 0.0
      %1377 = vmatprep.subr.mxu0 0.0
      %1378 = vmatpush1.msra.mxu0 0.0
      %1379 = vmatprep.subr.mxu0 0.0
      %1380 = vmatpush1.msra.mxu0 0.0
      %1381 = vmatprep.subr.mxu0 0.0
      %1382 = vmatpush1.msra.mxu0 0.0
      %1383 = vmatprep.subr.mxu0 0.0
      %1384 = vmatpush1.msra.mxu0 0.0
      %1385 = vmatprep.subr.mxu0 0.0
      %1386 = vmatpush1.msra.mxu0 0.0
      %1387 = vmatprep.subr.mxu0 0.0
      %1388 = vmatpush1.msra.mxu0 0.0
      %1389 = vmatprep.subr.mxu0 0.0
      %1390 = vmatpush1.msra.mxu0 0.0
      %1391 = vmatprep.subr.mxu0 0.0
      %1392 = vmatpush1.msra.mxu0 %v1359
      %1393 = vmatprep.subr.mxu0 0.0
      %1394 = vmatpush2.msra.mxu0 0.0
      %1395 = vmatprep.subr.mxu0 0.0
      %1396 = vmatpush2.msra.mxu0 0.0
      %1397 = vmatprep.subr.mxu0 0.0
      %1398 = vmatpush2.msra.mxu0 0.0
      %1399 = vmatprep.subr.mxu0 0.0
      %1400 = vmatpush2.msra.mxu0 0.0
      %1401 = vmatprep.subr.mxu0 0.0
      %1402 = vmatpush2.msra.mxu0 0.0
      %1403 = vmatprep.subr.mxu0 0.0
      %1404 = vmatpush2.msra.mxu0 0.0
      %1405 = vmatprep.subr.mxu0 0.0
      %1406 = vmatpush2.msra.mxu0 0.0
      %1407 = vmatprep.subr.mxu0 0.0
      %1408 = vmatpush2.msra.mxu0 0.0
      %1409 = vmatprep.subr.mxu0 0.0
      %1410 = vmatpush2.msra.mxu0 0.0
      %1411 = vmatprep.subr.mxu0 0.0
      %1412 = vmatpush2.msra.mxu0 0.0
      %1413 = vmatprep.subr.mxu0 0.0
      %1414 = vmatpush2.msra.mxu0 0.0
      %1415 = vmatprep.subr.mxu0 0.0
      %1416 = vmatpush2.msra.mxu0 0.0
      %1417 = vmatprep.subr.mxu0 0.0
      %1418 = vmatpush2.msra.mxu0 0.0
      %1419 = vmatprep.subr.mxu0 0.0
      %1420 = vmatpush2.msra.mxu0 0.0
      %1421 = vmatprep.subr.mxu0 0.0
      %1422 = vmatpush2.msra.mxu0 0.0
      %1423 = vmatprep.subr.mxu0 0.0
      %1424 = vmatpush2.msra.mxu0 0.0
      %1425 = vmatprep.mubr.f32.mxu0 0.0
      %1426 = vmatmul.mubr.f32.gmra.mxu0 %v655
      %v1427 = vpop.f32.mrf.mxu0
      %v1428 = vadd.f32 0.0, %v1427
      %v1429 = vpop.f32.mrf.mxu0
      %1430 = vmatprep.mubr.f32.mxu0 0.0
      %1431 = vmatmul.mubr.f32.gmra.mxu0 %v657
      %v1432 = vpop.f32.mrf.mxu0
      %v1433 = vadd.f32 0.0, %v1432
      %v1434 = vpop.f32.mrf.mxu0
      %1435 = vmatprep.mubr.f32.mxu0 0.0
      %1436 = vmatmul.mubr.f32.gmra.mxu0 %v659
      %v1437 = vpop.f32.mrf.mxu0
      %v1438 = vadd.f32 0.0, %v1437
      %v1439 = vpop.f32.mrf.mxu0
      %1440 = vmatprep.mubr.f32.mxu0 0.0
      %1441 = vmatmul.mubr.f32.gmra.mxu0 %v661
      %v1442 = vpop.f32.mrf.mxu0
      %v1443 = vadd.f32 0.0, %v1442
      %v1444 = vpop.f32.mrf.mxu0
      %1445 = vmatprep.mubr.f32.mxu0 0.0
      %1446 = vmatmul.mubr.f32.gmra.mxu0 %v663
      %v1447 = vpop.f32.mrf.mxu0
      %v1448 = vadd.f32 0.0, %v1447
      %v1449 = vpop.f32.mrf.mxu0
      %1450 = vmatprep.mubr.f32.mxu0 0.0
      %1451 = vmatmul.mubr.f32.gmra.mxu0 %v665
      %v1452 = vpop.f32.mrf.mxu0
      %v1453 = vadd.f32 0.0, %v1452
      %v1454 = vpop.f32.mrf.mxu0
      %1455 = vmatprep.mubr.f32.mxu0 0.0
      %1456 = vmatmul.mubr.f32.gmra.mxu0 %v667
      %v1457 = vpop.f32.mrf.mxu0
      %v1458 = vadd.f32 0.0, %v1457
      %v1459 = vpop.f32.mrf.mxu0
      %1460 = vmatprep.mubr.f32.mxu0 0.0
      %1461 = vmatmul.mubr.f32.gmra.mxu0 %v669
      %v1462 = vpop.f32.mrf.mxu0
      %v1463 = vadd.f32 0.0, %v1462
      %v1464 = vpop.f32.mrf.mxu0
      %1465 = vmatprep.mubr.f32.mxu0 0.0
      %1466 = vmatmul.mubr.f32.gmra.mxu0 %v671
      %v1467 = vpop.f32.mrf.mxu0
      %v1468 = vadd.f32 0.0, %v1467
      %v1469 = vpop.f32.mrf.mxu0
      %1470 = vmatprep.mubr.f32.mxu0 0.0
      %1471 = vmatmul.mubr.f32.gmra.mxu0 %v673
      %v1472 = vpop.f32.mrf.mxu0
      %v1473 = vadd.f32 0.0, %v1472
      %v1474 = vpop.f32.mrf.mxu0
      %1475 = vmatprep.mubr.f32.mxu0 0.0
      %1476 = vmatmul.mubr.f32.gmra.mxu0 %v675
      %v1477 = vpop.f32.mrf.mxu0
      %v1478 = vadd.f32 0.0, %v1477
      %v1479 = vpop.f32.mrf.mxu0
      %1480 = vmatprep.mubr.f32.mxu0 0.0
      %1481 = vmatmul.mubr.f32.gmra.mxu0 %v677
      %v1482 = vpop.f32.mrf.mxu0
      %v1483 = vadd.f32 0.0, %v1482
      %v1484 = vpop.f32.mrf.mxu0
      %1485 = vmatprep.mubr.f32.mxu0 0.0
      %1486 = vmatmul.mubr.f32.gmra.mxu0 %v679
      %v1487 = vpop.f32.mrf.mxu0
      %v1488 = vadd.f32 0.0, %v1487
      %v1489 = vpop.f32.mrf.mxu0
      %1490 = vmatprep.mubr.f32.mxu0 0.0
      %1491 = vmatmul.mubr.f32.gmra.mxu0 %v681
      %v1492 = vpop.f32.mrf.mxu0
      %v1493 = vadd.f32 0.0, %v1492
      %v1494 = vpop.f32.mrf.mxu0
      %1495 = vmatprep.mubr.f32.mxu0 0.0
      %1496 = vmatmul.mubr.f32.gmra.mxu0 %v683
      %v1497 = vpop.f32.mrf.mxu0
      %v1498 = vadd.f32 0.0, %v1497
      %v1499 = vpop.f32.mrf.mxu0
      %1500 = vmatprep.mubr.f32.mxu0 0.0
      %1501 = vmatmul.mubr.f32.gmra.mxu0 %v685
      %v1502 = vpop.f32.mrf.mxu0
      %v1503 = vadd.f32 0.0, %v1502
      %v1504 = vpop.f32.mrf.mxu0
      %1505 = vmatprep.mubr.f32.mxu0 0.0
      %1506 = vmatmul.mubr.f32.gmra.mxu0 %v687
      %v1507 = vpop.f32.mrf.mxu0
      %v1508 = vadd.f32 0.0, %v1507
      %v1509 = vpop.f32.mrf.mxu0
      %1510 = vmatprep.mubr.f32.mxu0 0.0
      %1511 = vmatmul.mubr.f32.gmra.mxu0 %v689
      %v1512 = vpop.f32.mrf.mxu0
      %v1513 = vadd.f32 0.0, %v1512
      %v1514 = vpop.f32.mrf.mxu0
      %1515 = vmatprep.mubr.f32.mxu0 0.0
      %1516 = vmatmul.mubr.f32.gmra.mxu0 %v691
      %v1517 = vpop.f32.mrf.mxu0
      %v1518 = vadd.f32 0.0, %v1517
      %v1519 = vpop.f32.mrf.mxu0
      %1520 = vmatprep.mubr.f32.mxu0 0.0
      %1521 = vmatmul.mubr.f32.gmra.mxu0 %v693
      %v1522 = vpop.f32.mrf.mxu0
      %v1523 = vadd.f32 0.0, %v1522
      %v1524 = vpop.f32.mrf.mxu0
      %1525 = vmatprep.mubr.f32.mxu0 0.0
      %1526 = vmatmul.mubr.f32.gmra.mxu0 %v695
      %v1527 = vpop.f32.mrf.mxu0
      %v1528 = vadd.f32 0.0, %v1527
      %v1529 = vpop.f32.mrf.mxu0
      %1530 = vmatprep.mubr.f32.mxu0 0.0
      %1531 = vmatmul.mubr.f32.gmra.mxu0 %v697
      %v1532 = vpop.f32.mrf.mxu0
      %v1533 = vadd.f32 0.0, %v1532
      %v1534 = vpop.f32.mrf.mxu0
      %1535 = vmatprep.mubr.f32.mxu0 0.0
      %1536 = vmatmul.mubr.f32.gmra.mxu0 %v699
      %v1537 = vpop.f32.mrf.mxu0
      %v1538 = vadd.f32 0.0, %v1537
      %v1539 = vpop.f32.mrf.mxu0
      %1540 = vmatprep.mubr.f32.mxu0 0.0
      %1541 = vmatmul.mubr.f32.gmra.mxu0 %v701
      %v1542 = vpop.f32.mrf.mxu0
      %v1543 = vadd.f32 0.0, %v1542
      %v1544 = vpop.f32.mrf.mxu0
      %1545 = vmatprep.mubr.f32.mxu0 0.0
      %1546 = vmatmul.mubr.f32.gmra.mxu0 %v703
      %v1547 = vpop.f32.mrf.mxu0
      %v1548 = vadd.f32 0.0, %v1547
      %v1549 = vpop.f32.mrf.mxu0
      %1550 = vmatprep.mubr.f32.mxu0 0.0
      %1551 = vmatmul.mubr.f32.gmra.mxu0 %v705
      %v1552 = vpop.f32.mrf.mxu0
      %v1553 = vadd.f32 0.0, %v1552
      %v1554 = vpop.f32.mrf.mxu0
      %1555 = vmatprep.mubr.f32.mxu0 0.0
      %1556 = vmatmul.mubr.f32.gmra.mxu0 %v707
      %v1557 = vpop.f32.mrf.mxu0
      %v1558 = vadd.f32 0.0, %v1557
      %v1559 = vpop.f32.mrf.mxu0
      %1560 = vmatprep.mubr.f32.mxu0 0.0
      %1561 = vmatmul.mubr.f32.gmra.mxu0 %v709
      %v1562 = vpop.f32.mrf.mxu0
      %v1563 = vadd.f32 0.0, %v1562
      %v1564 = vpop.f32.mrf.mxu0
      %1565 = vmatprep.mubr.f32.mxu0 0.0
      %1566 = vmatmul.mubr.f32.gmra.mxu0 %v711
      %v1567 = vpop.f32.mrf.mxu0
      %v1568 = vadd.f32 0.0, %v1567
      %v1569 = vpop.f32.mrf.mxu0
      %1570 = vmatprep.mubr.f32.mxu0 0.0
      %1571 = vmatmul.mubr.f32.gmra.mxu0 %v713
      %v1572 = vpop.f32.mrf.mxu0
      %v1573 = vadd.f32 0.0, %v1572
      %v1574 = vpop.f32.mrf.mxu0
      %1575 = vmatprep.mubr.f32.mxu0 0.0
      %1576 = vmatmul.mubr.f32.gmra.mxu0 %v1353
      %v1577 = vpop.f32.mrf.mxu0
      %v1578 = vadd.f32 0.0, %v1577
      %v1579 = vpop.f32.mrf.mxu0
      %1580 = vmatprep.mubr.f32.mxu0 0.0
      %1581 = vmatmul.mubr.f32.gmra.mxu0 %v1356
      %v1582 = vpop.f32.mrf.mxu0
      %v1583 = vadd.f32 0.0, %v1582
      %v1584 = vpop.f32.mrf.mxu0
      %1585 = vdwg.mxu0
      %v1586 = vadd.f32 %v1318, %v1428
      %v1587 = vadd.f32 %v1319, %v1433
      %v1588 = vadd.f32 %v1320, %v1438
      %v1589 = vadd.f32 %v1321, %v1443
      %v1590 = vadd.f32 %v1322, %v1448
      %v1591 = vadd.f32 %v1323, %v1453
      %v1592 = vadd.f32 %v1324, %v1458
      %v1593 = vadd.f32 %v1325, %v1463
      %v1594 = vadd.f32 %v1326, %v1468
      %v1595 = vadd.f32 %v1327, %v1473
      %v1596 = vadd.f32 %v1328, %v1478
      %v1597 = vadd.f32 %v1329, %v1483
      %v1598 = vadd.f32 %v1330, %v1488
      %v1599 = vadd.f32 %v1331, %v1493
      %v1600 = vadd.f32 %v1332, %v1498
      %v1601 = vadd.f32 %v1333, %v1503
      %v1602 = vadd.f32 %v1334, %v1508
      %v1603 = vadd.f32 %v1335, %v1513
      %v1604 = vadd.f32 %v1336, %v1518
      %v1605 = vadd.f32 %v1337, %v1523
      %v1606 = vadd.f32 %v1338, %v1528
      %v1607 = vadd.f32 %v1339, %v1533
      %v1608 = vadd.f32 %v1340, %v1538
      %v1609 = vadd.f32 %v1341, %v1543
      %v1610 = vadd.f32 %v1342, %v1548
      %v1611 = vadd.f32 %v1343, %v1553
      %v1612 = vadd.f32 %v1344, %v1558
      %v1613 = vadd.f32 %v1345, %v1563
      %v1614 = vadd.f32 %v1346, %v1568
      %v1615 = vadd.f32 %v1347, %v1573
      %v1616 = vadd.f32 %v1348, %v1578
      %v1617 = vadd.f32 %v1349, %v1583
      %v1619 = vrot.slane %v219, 1
      %v1620 = vrot.slane %v220, 1
      %v1621 = vsel %vm274, %v1619, %v1620
      %v1622 = vrot.slane %v221, 1
      %v1623 = vsel %vm274, %v1620, %v1622
      %s1624 = scalar_lea.vmem %s1, 16
      %v1625 = vld [vmem:[%s1624] sm:$0xf]
      %v1626 = vsel %vm357, %v1621, 0
      %v1628 = vsel %vm357, %v1623, 0
      %v1631 = vsel %vm422, %v1625, 0
      %1633 = vmatprep.subr.mxu0 0.0
      %1634 = vmatpush1.msra.mxu0 0.0
      %1635 = vmatprep.subr.mxu0 0.0
      %1636 = vmatpush1.msra.mxu0 0.0
      %1637 = vmatprep.subr.mxu0 0.0
      %1638 = vmatpush1.msra.mxu0 0.0
      %1639 = vmatprep.subr.mxu0 0.0
      %1640 = vmatpush1.msra.mxu0 0.0
      %1641 = vmatprep.subr.mxu0 0.0
      %1642 = vmatpush1.msra.mxu0 0.0
      %1643 = vmatprep.subr.mxu0 0.0
      %1644 = vmatpush1.msra.mxu0 0.0
      %1645 = vmatprep.subr.mxu0 0.0
      %1646 = vmatpush1.msra.mxu0 0.0
      %1647 = vmatprep.subr.mxu0 0.0
      %1648 = vmatpush1.msra.mxu0 0.0
      %1649 = vmatprep.subr.mxu0 0.0
      %1650 = vmatpush1.msra.mxu0 0.0
      %1651 = vmatprep.subr.mxu0 0.0
      %1652 = vmatpush1.msra.mxu0 0.0
      %1653 = vmatprep.subr.mxu0 0.0
      %1654 = vmatpush1.msra.mxu0 0.0
      %1655 = vmatprep.subr.mxu0 0.0
      %1656 = vmatpush1.msra.mxu0 0.0
      %1657 = vmatprep.subr.mxu0 0.0
      %1658 = vmatpush1.msra.mxu0 0.0
      %1659 = vmatprep.subr.mxu0 0.0
      %1660 = vmatpush1.msra.mxu0 0.0
      %1661 = vmatprep.subr.mxu0 0.0
      %1662 = vmatpush1.msra.mxu0 0.0
      %1663 = vmatprep.subr.mxu0 0.0
      %1664 = vmatpush1.msra.mxu0 %v1631
      %1665 = vmatprep.subr.mxu0 0.0
      %1666 = vmatpush2.msra.mxu0 0.0
      %1667 = vmatprep.subr.mxu0 0.0
      %1668 = vmatpush2.msra.mxu0 0.0
      %1669 = vmatprep.subr.mxu0 0.0
      %1670 = vmatpush2.msra.mxu0 0.0
      %1671 = vmatprep.subr.mxu0 0.0
      %1672 = vmatpush2.msra.mxu0 0.0
      %1673 = vmatprep.subr.mxu0 0.0
      %1674 = vmatpush2.msra.mxu0 0.0
      %1675 = vmatprep.subr.mxu0 0.0
      %1676 = vmatpush2.msra.mxu0 0.0
      %1677 = vmatprep.subr.mxu0 0.0
      %1678 = vmatpush2.msra.mxu0 0.0
      %1679 = vmatprep.subr.mxu0 0.0
      %1680 = vmatpush2.msra.mxu0 0.0
      %1681 = vmatprep.subr.mxu0 0.0
      %1682 = vmatpush2.msra.mxu0 0.0
      %1683 = vmatprep.subr.mxu0 0.0
      %1684 = vmatpush2.msra.mxu0 0.0
      %1685 = vmatprep.subr.mxu0 0.0
      %1686 = vmatpush2.msra.mxu0 0.0
      %1687 = vmatprep.subr.mxu0 0.0
      %1688 = vmatpush2.msra.mxu0 0.0
      %1689 = vmatprep.subr.mxu0 0.0
      %1690 = vmatpush2.msra.mxu0 0.0
      %1691 = vmatprep.subr.mxu0 0.0
      %1692 = vmatpush2.msra.mxu0 0.0
      %1693 = vmatprep.subr.mxu0 0.0
      %1694 = vmatpush2.msra.mxu0 0.0
      %1695 = vmatprep.subr.mxu0 0.0
      %1696 = vmatpush2.msra.mxu0 0.0
      %1697 = vmatprep.mubr.f32.mxu0 0.0
      %1698 = vmatmul.mubr.f32.gmra.mxu0 %v362
      %v1699 = vpop.f32.mrf.mxu0
      %v1700 = vadd.f32 0.0, %v1699
      %v1701 = vpop.f32.mrf.mxu0
      %1702 = vmatprep.mubr.f32.mxu0 0.0
      %1703 = vmatmul.mubr.f32.gmra.mxu0 %v364
      %v1704 = vpop.f32.mrf.mxu0
      %v1705 = vadd.f32 0.0, %v1704
      %v1706 = vpop.f32.mrf.mxu0
      %1707 = vmatprep.mubr.f32.mxu0 0.0
      %1708 = vmatmul.mubr.f32.gmra.mxu0 %v366
      %v1709 = vpop.f32.mrf.mxu0
      %v1710 = vadd.f32 0.0, %v1709
      %v1711 = vpop.f32.mrf.mxu0
      %1712 = vmatprep.mubr.f32.mxu0 0.0
      %1713 = vmatmul.mubr.f32.gmra.mxu0 %v368
      %v1714 = vpop.f32.mrf.mxu0
      %v1715 = vadd.f32 0.0, %v1714
      %v1716 = vpop.f32.mrf.mxu0
      %1717 = vmatprep.mubr.f32.mxu0 0.0
      %1718 = vmatmul.mubr.f32.gmra.mxu0 %v370
      %v1719 = vpop.f32.mrf.mxu0
      %v1720 = vadd.f32 0.0, %v1719
      %v1721 = vpop.f32.mrf.mxu0
      %1722 = vmatprep.mubr.f32.mxu0 0.0
      %1723 = vmatmul.mubr.f32.gmra.mxu0 %v372
      %v1724 = vpop.f32.mrf.mxu0
      %v1725 = vadd.f32 0.0, %v1724
      %v1726 = vpop.f32.mrf.mxu0
      %1727 = vmatprep.mubr.f32.mxu0 0.0
      %1728 = vmatmul.mubr.f32.gmra.mxu0 %v374
      %v1729 = vpop.f32.mrf.mxu0
      %v1730 = vadd.f32 0.0, %v1729
      %v1731 = vpop.f32.mrf.mxu0
      %1732 = vmatprep.mubr.f32.mxu0 0.0
      %1733 = vmatmul.mubr.f32.gmra.mxu0 %v376
      %v1734 = vpop.f32.mrf.mxu0
      %v1735 = vadd.f32 0.0, %v1734
      %v1736 = vpop.f32.mrf.mxu0
      %1737 = vmatprep.mubr.f32.mxu0 0.0
      %1738 = vmatmul.mubr.f32.gmra.mxu0 %v378
      %v1739 = vpop.f32.mrf.mxu0
      %v1740 = vadd.f32 0.0, %v1739
      %v1741 = vpop.f32.mrf.mxu0
      %1742 = vmatprep.mubr.f32.mxu0 0.0
      %1743 = vmatmul.mubr.f32.gmra.mxu0 %v380
      %v1744 = vpop.f32.mrf.mxu0
      %v1745 = vadd.f32 0.0, %v1744
      %v1746 = vpop.f32.mrf.mxu0
      %1747 = vmatprep.mubr.f32.mxu0 0.0
      %1748 = vmatmul.mubr.f32.gmra.mxu0 %v382
      %v1749 = vpop.f32.mrf.mxu0
      %v1750 = vadd.f32 0.0, %v1749
      %v1751 = vpop.f32.mrf.mxu0
      %1752 = vmatprep.mubr.f32.mxu0 0.0
      %1753 = vmatmul.mubr.f32.gmra.mxu0 %v384
      %v1754 = vpop.f32.mrf.mxu0
      %v1755 = vadd.f32 0.0, %v1754
      %v1756 = vpop.f32.mrf.mxu0
      %1757 = vmatprep.mubr.f32.mxu0 0.0
      %1758 = vmatmul.mubr.f32.gmra.mxu0 %v386
      %v1759 = vpop.f32.mrf.mxu0
      %v1760 = vadd.f32 0.0, %v1759
      %v1761 = vpop.f32.mrf.mxu0
      %1762 = vmatprep.mubr.f32.mxu0 0.0
      %1763 = vmatmul.mubr.f32.gmra.mxu0 %v388
      %v1764 = vpop.f32.mrf.mxu0
      %v1765 = vadd.f32 0.0, %v1764
      %v1766 = vpop.f32.mrf.mxu0
      %1767 = vmatprep.mubr.f32.mxu0 0.0
      %1768 = vmatmul.mubr.f32.gmra.mxu0 %v390
      %v1769 = vpop.f32.mrf.mxu0
      %v1770 = vadd.f32 0.0, %v1769
      %v1771 = vpop.f32.mrf.mxu0
      %1772 = vmatprep.mubr.f32.mxu0 0.0
      %1773 = vmatmul.mubr.f32.gmra.mxu0 %v392
      %v1774 = vpop.f32.mrf.mxu0
      %v1775 = vadd.f32 0.0, %v1774
      %v1776 = vpop.f32.mrf.mxu0
      %1777 = vmatprep.mubr.f32.mxu0 0.0
      %1778 = vmatmul.mubr.f32.gmra.mxu0 %v394
      %v1779 = vpop.f32.mrf.mxu0
      %v1780 = vadd.f32 0.0, %v1779
      %v1781 = vpop.f32.mrf.mxu0
      %1782 = vmatprep.mubr.f32.mxu0 0.0
      %1783 = vmatmul.mubr.f32.gmra.mxu0 %v396
      %v1784 = vpop.f32.mrf.mxu0
      %v1785 = vadd.f32 0.0, %v1784
      %v1786 = vpop.f32.mrf.mxu0
      %1787 = vmatprep.mubr.f32.mxu0 0.0
      %1788 = vmatmul.mubr.f32.gmra.mxu0 %v398
      %v1789 = vpop.f32.mrf.mxu0
      %v1790 = vadd.f32 0.0, %v1789
      %v1791 = vpop.f32.mrf.mxu0
      %1792 = vmatprep.mubr.f32.mxu0 0.0
      %1793 = vmatmul.mubr.f32.gmra.mxu0 %v400
      %v1794 = vpop.f32.mrf.mxu0
      %v1795 = vadd.f32 0.0, %v1794
      %v1796 = vpop.f32.mrf.mxu0
      %1797 = vmatprep.mubr.f32.mxu0 0.0
      %1798 = vmatmul.mubr.f32.gmra.mxu0 %v402
      %v1799 = vpop.f32.mrf.mxu0
      %v1800 = vadd.f32 0.0, %v1799
      %v1801 = vpop.f32.mrf.mxu0
      %1802 = vmatprep.mubr.f32.mxu0 0.0
      %1803 = vmatmul.mubr.f32.gmra.mxu0 %v404
      %v1804 = vpop.f32.mrf.mxu0
      %v1805 = vadd.f32 0.0, %v1804
      %v1806 = vpop.f32.mrf.mxu0
      %1807 = vmatprep.mubr.f32.mxu0 0.0
      %1808 = vmatmul.mubr.f32.gmra.mxu0 %v406
      %v1809 = vpop.f32.mrf.mxu0
      %v1810 = vadd.f32 0.0, %v1809
      %v1811 = vpop.f32.mrf.mxu0
      %1812 = vmatprep.mubr.f32.mxu0 0.0
      %1813 = vmatmul.mubr.f32.gmra.mxu0 %v408
      %v1814 = vpop.f32.mrf.mxu0
      %v1815 = vadd.f32 0.0, %v1814
      %v1816 = vpop.f32.mrf.mxu0
      %1817 = vmatprep.mubr.f32.mxu0 0.0
      %1818 = vmatmul.mubr.f32.gmra.mxu0 %v410
      %v1819 = vpop.f32.mrf.mxu0
      %v1820 = vadd.f32 0.0, %v1819
      %v1821 = vpop.f32.mrf.mxu0
      %1822 = vmatprep.mubr.f32.mxu0 0.0
      %1823 = vmatmul.mubr.f32.gmra.mxu0 %v412
      %v1824 = vpop.f32.mrf.mxu0
      %v1825 = vadd.f32 0.0, %v1824
      %v1826 = vpop.f32.mrf.mxu0
      %1827 = vmatprep.mubr.f32.mxu0 0.0
      %1828 = vmatmul.mubr.f32.gmra.mxu0 %v414
      %v1829 = vpop.f32.mrf.mxu0
      %v1830 = vadd.f32 0.0, %v1829
      %v1831 = vpop.f32.mrf.mxu0
      %1832 = vmatprep.mubr.f32.mxu0 0.0
      %1833 = vmatmul.mubr.f32.gmra.mxu0 %v416
      %v1834 = vpop.f32.mrf.mxu0
      %v1835 = vadd.f32 0.0, %v1834
      %v1836 = vpop.f32.mrf.mxu0
      %1837 = vmatprep.mubr.f32.mxu0 0.0
      %1838 = vmatmul.mubr.f32.gmra.mxu0 %v418
      %v1839 = vpop.f32.mrf.mxu0
      %v1840 = vadd.f32 0.0, %v1839
      %v1841 = vpop.f32.mrf.mxu0
      %1842 = vmatprep.mubr.f32.mxu0 0.0
      %1843 = vmatmul.mubr.f32.gmra.mxu0 %v420
      %v1844 = vpop.f32.mrf.mxu0
      %v1845 = vadd.f32 0.0, %v1844
      %v1846 = vpop.f32.mrf.mxu0
      %1847 = vmatprep.mubr.f32.mxu0 0.0
      %1848 = vmatmul.mubr.f32.gmra.mxu0 %v1626
      %v1849 = vpop.f32.mrf.mxu0
      %v1850 = vadd.f32 0.0, %v1849
      %v1851 = vpop.f32.mrf.mxu0
      %1852 = vmatprep.mubr.f32.mxu0 0.0
      %1853 = vmatmul.mubr.f32.gmra.mxu0 %v1628
      %v1854 = vpop.f32.mrf.mxu0
      %v1855 = vadd.f32 0.0, %v1854
      %v1856 = vpop.f32.mrf.mxu0
      %1857 = vdwg.mxu0
      %v1858 = vadd.f32 %v1586, %v1700
      %v1859 = vadd.f32 %v1587, %v1705
      %v1860 = vadd.f32 %v1588, %v1710
      %v1861 = vadd.f32 %v1589, %v1715
      %v1862 = vadd.f32 %v1590, %v1720
      %v1863 = vadd.f32 %v1591, %v1725
      %v1864 = vadd.f32 %v1592, %v1730
      %v1865 = vadd.f32 %v1593, %v1735
      %v1866 = vadd.f32 %v1594, %v1740
      %v1867 = vadd.f32 %v1595, %v1745
      %v1868 = vadd.f32 %v1596, %v1750
      %v1869 = vadd.f32 %v1597, %v1755
      %v1870 = vadd.f32 %v1598, %v1760
      %v1871 = vadd.f32 %v1599, %v1765
      %v1872 = vadd.f32 %v1600, %v1770
      %v1873 = vadd.f32 %v1601, %v1775
      %v1874 = vadd.f32 %v1602, %v1780
      %v1875 = vadd.f32 %v1603, %v1785
      %v1876 = vadd.f32 %v1604, %v1790
      %v1877 = vadd.f32 %v1605, %v1795
      %v1878 = vadd.f32 %v1606, %v1800
      %v1879 = vadd.f32 %v1607, %v1805
      %v1880 = vadd.f32 %v1608, %v1810
      %v1881 = vadd.f32 %v1609, %v1815
      %v1882 = vadd.f32 %v1610, %v1820
      %v1883 = vadd.f32 %v1611, %v1825
      %v1884 = vadd.f32 %v1612, %v1830
      %v1885 = vadd.f32 %v1613, %v1835
      %v1886 = vadd.f32 %v1614, %v1840
      %v1887 = vadd.f32 %v1615, %v1845
      %v1888 = vadd.f32 %v1616, %v1850
      %v1889 = vadd.f32 %v1617, %v1855
      %v1890 = vrot.slane %v219, 2
      %v1891 = vrot.slane %v220, 2
      %v1892 = vsel %vm943, %v1890, %v1891
      %v1893 = vrot.slane %v221, 2
      %v1894 = vsel %vm943, %v1891, %v1893
      %s1895 = scalar_lea.vmem %s1, 20
      %v1896 = vld [vmem:[%s1895] sm:$0xf]
      %v1897 = vsel %vm357, %v1892, 0
      %v1899 = vsel %vm357, %v1894, 0
      %v1902 = vsel %vm422, %v1896, 0
      %1904 = vmatprep.subr.mxu0 0.0
      %1905 = vmatpush1.msra.mxu0 0.0
      %1906 = vmatprep.subr.mxu0 0.0
      %1907 = vmatpush1.msra.mxu0 0.0
      %1908 = vmatprep.subr.mxu0 0.0
      %1909 = vmatpush1.msra.mxu0 0.0
      %1910 = vmatprep.subr.mxu0 0.0
      %1911 = vmatpush1.msra.mxu0 0.0
      %1912 = vmatprep.subr.mxu0 0.0
      %1913 = vmatpush1.msra.mxu0 0.0
      %1914 = vmatprep.subr.mxu0 0.0
      %1915 = vmatpush1.msra.mxu0 0.0
      %1916 = vmatprep.subr.mxu0 0.0
      %1917 = vmatpush1.msra.mxu0 0.0
      %1918 = vmatprep.subr.mxu0 0.0
      %1919 = vmatpush1.msra.mxu0 0.0
      %1920 = vmatprep.subr.mxu0 0.0
      %1921 = vmatpush1.msra.mxu0 0.0
      %1922 = vmatprep.subr.mxu0 0.0
      %1923 = vmatpush1.msra.mxu0 0.0
      %1924 = vmatprep.subr.mxu0 0.0
      %1925 = vmatpush1.msra.mxu0 0.0
      %1926 = vmatprep.subr.mxu0 0.0
      %1927 = vmatpush1.msra.mxu0 0.0
      %1928 = vmatprep.subr.mxu0 0.0
      %1929 = vmatpush1.msra.mxu0 0.0
      %1930 = vmatprep.subr.mxu0 0.0
      %1931 = vmatpush1.msra.mxu0 0.0
      %1932 = vmatprep.subr.mxu0 0.0
      %1933 = vmatpush1.msra.mxu0 0.0
      %1934 = vmatprep.subr.mxu0 0.0
      %1935 = vmatpush1.msra.mxu0 %v1902
      %1936 = vmatprep.subr.mxu0 0.0
      %1937 = vmatpush2.msra.mxu0 0.0
      %1938 = vmatprep.subr.mxu0 0.0
      %1939 = vmatpush2.msra.mxu0 0.0
      %1940 = vmatprep.subr.mxu0 0.0
      %1941 = vmatpush2.msra.mxu0 0.0
      %1942 = vmatprep.subr.mxu0 0.0
      %1943 = vmatpush2.msra.mxu0 0.0
      %1944 = vmatprep.subr.mxu0 0.0
      %1945 = vmatpush2.msra.mxu0 0.0
      %1946 = vmatprep.subr.mxu0 0.0
      %1947 = vmatpush2.msra.mxu0 0.0
      %1948 = vmatprep.subr.mxu0 0.0
      %1949 = vmatpush2.msra.mxu0 0.0
      %1950 = vmatprep.subr.mxu0 0.0
      %1951 = vmatpush2.msra.mxu0 0.0
      %1952 = vmatprep.subr.mxu0 0.0
      %1953 = vmatpush2.msra.mxu0 0.0
      %1954 = vmatprep.subr.mxu0 0.0
      %1955 = vmatpush2.msra.mxu0 0.0
      %1956 = vmatprep.subr.mxu0 0.0
      %1957 = vmatpush2.msra.mxu0 0.0
      %1958 = vmatprep.subr.mxu0 0.0
      %1959 = vmatpush2.msra.mxu0 0.0
      %1960 = vmatprep.subr.mxu0 0.0
      %1961 = vmatpush2.msra.mxu0 0.0
      %1962 = vmatprep.subr.mxu0 0.0
      %1963 = vmatpush2.msra.mxu0 0.0
      %1964 = vmatprep.subr.mxu0 0.0
      %1965 = vmatpush2.msra.mxu0 0.0
      %1966 = vmatprep.subr.mxu0 0.0
      %1967 = vmatpush2.msra.mxu0 0.0
      %1968 = vmatprep.mubr.f32.mxu0 0.0
      %1969 = vmatmul.mubr.f32.gmra.mxu0 %v1030
      %v1970 = vpop.f32.mrf.mxu0
      %v1971 = vadd.f32 0.0, %v1970
      %v1972 = vpop.f32.mrf.mxu0
      %1973 = vmatprep.mubr.f32.mxu0 0.0
      %1974 = vmatmul.mubr.f32.gmra.mxu0 %v1032
      %v1975 = vpop.f32.mrf.mxu0
      %v1976 = vadd.f32 0.0, %v1975
      %v1977 = vpop.f32.mrf.mxu0
      %1978 = vmatprep.mubr.f32.mxu0 0.0
      %1979 = vmatmul.mubr.f32.gmra.mxu0 %v1034
      %v1980 = vpop.f32.mrf.mxu0
      %v1981 = vadd.f32 0.0, %v1980
      %v1982 = vpop.f32.mrf.mxu0
      %1983 = vmatprep.mubr.f32.mxu0 0.0
      %1984 = vmatmul.mubr.f32.gmra.mxu0 %v1036
      %v1985 = vpop.f32.mrf.mxu0
      %v1986 = vadd.f32 0.0, %v1985
      %v1987 = vpop.f32.mrf.mxu0
      %1988 = vmatprep.mubr.f32.mxu0 0.0
      %1989 = vmatmul.mubr.f32.gmra.mxu0 %v1038
      %v1990 = vpop.f32.mrf.mxu0
      %v1991 = vadd.f32 0.0, %v1990
      %v1992 = vpop.f32.mrf.mxu0
      %1993 = vmatprep.mubr.f32.mxu0 0.0
      %1994 = vmatmul.mubr.f32.gmra.mxu0 %v1040
      %v1995 = vpop.f32.mrf.mxu0
      %v1996 = vadd.f32 0.0, %v1995
      %v1997 = vpop.f32.mrf.mxu0
      %1998 = vmatprep.mubr.f32.mxu0 0.0
      %1999 = vmatmul.mubr.f32.gmra.mxu0 %v1042
      %v2000 = vpop.f32.mrf.mxu0
      %v2001 = vadd.f32 0.0, %v2000
      %v2002 = vpop.f32.mrf.mxu0
      %2003 = vmatprep.mubr.f32.mxu0 0.0
      %2004 = vmatmul.mubr.f32.gmra.mxu0 %v1044
      %v2005 = vpop.f32.mrf.mxu0
      %v2006 = vadd.f32 0.0, %v2005
      %v2007 = vpop.f32.mrf.mxu0
      %2008 = vmatprep.mubr.f32.mxu0 0.0
      %2009 = vmatmul.mubr.f32.gmra.mxu0 %v1046
      %v2010 = vpop.f32.mrf.mxu0
      %v2011 = vadd.f32 0.0, %v2010
      %v2012 = vpop.f32.mrf.mxu0
      %2013 = vmatprep.mubr.f32.mxu0 0.0
      %2014 = vmatmul.mubr.f32.gmra.mxu0 %v1048
      %v2015 = vpop.f32.mrf.mxu0
      %v2016 = vadd.f32 0.0, %v2015
      %v2017 = vpop.f32.mrf.mxu0
      %2018 = vmatprep.mubr.f32.mxu0 0.0
      %2019 = vmatmul.mubr.f32.gmra.mxu0 %v1050
      %v2020 = vpop.f32.mrf.mxu0
      %v2021 = vadd.f32 0.0, %v2020
      %v2022 = vpop.f32.mrf.mxu0
      %2023 = vmatprep.mubr.f32.mxu0 0.0
      %2024 = vmatmul.mubr.f32.gmra.mxu0 %v1052
      %v2025 = vpop.f32.mrf.mxu0
      %v2026 = vadd.f32 0.0, %v2025
      %v2027 = vpop.f32.mrf.mxu0
      %2028 = vmatprep.mubr.f32.mxu0 0.0
      %2029 = vmatmul.mubr.f32.gmra.mxu0 %v1054
      %v2030 = vpop.f32.mrf.mxu0
      %v2031 = vadd.f32 0.0, %v2030
      %v2032 = vpop.f32.mrf.mxu0
      %2033 = vmatprep.mubr.f32.mxu0 0.0
      %2034 = vmatmul.mubr.f32.gmra.mxu0 %v1056
      %v2035 = vpop.f32.mrf.mxu0
      %v2036 = vadd.f32 0.0, %v2035
      %v2037 = vpop.f32.mrf.mxu0
      %2038 = vmatprep.mubr.f32.mxu0 0.0
      %2039 = vmatmul.mubr.f32.gmra.mxu0 %v1058
      %v2040 = vpop.f32.mrf.mxu0
      %v2041 = vadd.f32 0.0, %v2040
      %v2042 = vpop.f32.mrf.mxu0
      %2043 = vmatprep.mubr.f32.mxu0 0.0
      %2044 = vmatmul.mubr.f32.gmra.mxu0 %v1060
      %v2045 = vpop.f32.mrf.mxu0
      %v2046 = vadd.f32 0.0, %v2045
      %v2047 = vpop.f32.mrf.mxu0
      %2048 = vmatprep.mubr.f32.mxu0 0.0
      %2049 = vmatmul.mubr.f32.gmra.mxu0 %v1062
      %v2050 = vpop.f32.mrf.mxu0
      %v2051 = vadd.f32 0.0, %v2050
      %v2052 = vpop.f32.mrf.mxu0
      %2053 = vmatprep.mubr.f32.mxu0 0.0
      %2054 = vmatmul.mubr.f32.gmra.mxu0 %v1064
      %v2055 = vpop.f32.mrf.mxu0
      %v2056 = vadd.f32 0.0, %v2055
      %v2057 = vpop.f32.mrf.mxu0
      %2058 = vmatprep.mubr.f32.mxu0 0.0
      %2059 = vmatmul.mubr.f32.gmra.mxu0 %v1066
      %v2060 = vpop.f32.mrf.mxu0
      %v2061 = vadd.f32 0.0, %v2060
      %v2062 = vpop.f32.mrf.mxu0
      %2063 = vmatprep.mubr.f32.mxu0 0.0
      %2064 = vmatmul.mubr.f32.gmra.mxu0 %v1068
      %v2065 = vpop.f32.mrf.mxu0
      %v2066 = vadd.f32 0.0, %v2065
      %v2067 = vpop.f32.mrf.mxu0
      %2068 = vmatprep.mubr.f32.mxu0 0.0
      %2069 = vmatmul.mubr.f32.gmra.mxu0 %v1070
      %v2070 = vpop.f32.mrf.mxu0
      %v2071 = vadd.f32 0.0, %v2070
      %v2072 = vpop.f32.mrf.mxu0
      %2073 = vmatprep.mubr.f32.mxu0 0.0
      %2074 = vmatmul.mubr.f32.gmra.mxu0 %v1072
      %v2075 = vpop.f32.mrf.mxu0
      %v2076 = vadd.f32 0.0, %v2075
      %v2077 = vpop.f32.mrf.mxu0
      %2078 = vmatprep.mubr.f32.mxu0 0.0
      %2079 = vmatmul.mubr.f32.gmra.mxu0 %v1074
      %v2080 = vpop.f32.mrf.mxu0
      %v2081 = vadd.f32 0.0, %v2080
      %v2082 = vpop.f32.mrf.mxu0
      %2083 = vmatprep.mubr.f32.mxu0 0.0
      %2084 = vmatmul.mubr.f32.gmra.mxu0 %v1076
      %v2085 = vpop.f32.mrf.mxu0
      %v2086 = vadd.f32 0.0, %v2085
      %v2087 = vpop.f32.mrf.mxu0
      %2088 = vmatprep.mubr.f32.mxu0 0.0
      %2089 = vmatmul.mubr.f32.gmra.mxu0 %v1078
      %v2090 = vpop.f32.mrf.mxu0
      %v2091 = vadd.f32 0.0, %v2090
      %v2092 = vpop.f32.mrf.mxu0
      %2093 = vmatprep.mubr.f32.mxu0 0.0
      %2094 = vmatmul.mubr.f32.gmra.mxu0 %v1080
      %v2095 = vpop.f32.mrf.mxu0
      %v2096 = vadd.f32 0.0, %v2095
      %v2097 = vpop.f32.mrf.mxu0
      %2098 = vmatprep.mubr.f32.mxu0 0.0
      %2099 = vmatmul.mubr.f32.gmra.mxu0 %v1082
      %v2100 = vpop.f32.mrf.mxu0
      %v2101 = vadd.f32 0.0, %v2100
      %v2102 = vpop.f32.mrf.mxu0
      %2103 = vmatprep.mubr.f32.mxu0 0.0
      %2104 = vmatmul.mubr.f32.gmra.mxu0 %v1084
      %v2105 = vpop.f32.mrf.mxu0
      %v2106 = vadd.f32 0.0, %v2105
      %v2107 = vpop.f32.mrf.mxu0
      %2108 = vmatprep.mubr.f32.mxu0 0.0
      %2109 = vmatmul.mubr.f32.gmra.mxu0 %v1086
      %v2110 = vpop.f32.mrf.mxu0
      %v2111 = vadd.f32 0.0, %v2110
      %v2112 = vpop.f32.mrf.mxu0
      %2113 = vmatprep.mubr.f32.mxu0 0.0
      %2114 = vmatmul.mubr.f32.gmra.mxu0 %v1088
      %v2115 = vpop.f32.mrf.mxu0
      %v2116 = vadd.f32 0.0, %v2115
      %v2117 = vpop.f32.mrf.mxu0
      %2118 = vmatprep.mubr.f32.mxu0 0.0
      %2119 = vmatmul.mubr.f32.gmra.mxu0 %v1897
      %v2120 = vpop.f32.mrf.mxu0
      %v2121 = vadd.f32 0.0, %v2120
      %v2122 = vpop.f32.mrf.mxu0
      %2123 = vmatprep.mubr.f32.mxu0 0.0
      %2124 = vmatmul.mubr.f32.gmra.mxu0 %v1899
      %v2125 = vpop.f32.mrf.mxu0
      %v2126 = vadd.f32 0.0, %v2125
      %v2127 = vpop.f32.mrf.mxu0
      %2128 = vdwg.mxu0
      %v2129 = vadd.f32 %v1858, %v1971
      %v2130 = vadd.f32 %v1859, %v1976
      %v2131 = vadd.f32 %v1860, %v1981
      %v2132 = vadd.f32 %v1861, %v1986
      %v2133 = vadd.f32 %v1862, %v1991
      %v2134 = vadd.f32 %v1863, %v1996
      %v2135 = vadd.f32 %v1864, %v2001
      %v2136 = vadd.f32 %v1865, %v2006
      %v2137 = vadd.f32 %v1866, %v2011
      %v2138 = vadd.f32 %v1867, %v2016
      %v2139 = vadd.f32 %v1868, %v2021
      %v2140 = vadd.f32 %v1869, %v2026
      %v2141 = vadd.f32 %v1870, %v2031
      %v2142 = vadd.f32 %v1871, %v2036
      %v2143 = vadd.f32 %v1872, %v2041
      %v2144 = vadd.f32 %v1873, %v2046
      %v2145 = vadd.f32 %v1874, %v2051
      %v2146 = vadd.f32 %v1875, %v2056
      %v2147 = vadd.f32 %v1876, %v2061
      %v2148 = vadd.f32 %v1877, %v2066
      %v2149 = vadd.f32 %v1878, %v2071
      %v2150 = vadd.f32 %v1879, %v2076
      %v2151 = vadd.f32 %v1880, %v2081
      %v2152 = vadd.f32 %v1881, %v2086
      %v2153 = vadd.f32 %v1882, %v2091
      %v2154 = vadd.f32 %v1883, %v2096
      %v2155 = vadd.f32 %v1884, %v2101
      %v2156 = vadd.f32 %v1885, %v2106
      %v2157 = vadd.f32 %v1886, %v2111
      %v2158 = vadd.f32 %v1887, %v2116
      %v2159 = vadd.f32 %v1888, %v2121
      %v2160 = vadd.f32 %v1889, %v2126
      %s2161 = scalar_lea.vmem %s1, 24
      %v2162 = vld [vmem:[%s2161] sm:$0xf]
      %v2164 = vsel %vm357, %v222, 0
      %v2167 = vsel %vm357, %v223, 0
      %v2170 = vsel %vm422, %v2162, 0
      %2172 = vmatprep.subr.mxu0 0.0
      %2173 = vmatpush1.msra.mxu0 0.0
      %2174 = vmatprep.subr.mxu0 0.0
      %2175 = vmatpush1.msra.mxu0 0.0
      %2176 = vmatprep.subr.mxu0 0.0
      %2177 = vmatpush1.msra.mxu0 0.0
      %2178 = vmatprep.subr.mxu0 0.0
      %2179 = vmatpush1.msra.mxu0 0.0
      %2180 = vmatprep.subr.mxu0 0.0
      %2181 = vmatpush1.msra.mxu0 0.0
      %2182 = vmatprep.subr.mxu0 0.0
      %2183 = vmatpush1.msra.mxu0 0.0
      %2184 = vmatprep.subr.mxu0 0.0
      %2185 = vmatpush1.msra.mxu0 0.0
      %2186 = vmatprep.subr.mxu0 0.0
      %2187 = vmatpush1.msra.mxu0 0.0
      %2188 = vmatprep.subr.mxu0 0.0
      %2189 = vmatpush1.msra.mxu0 0.0
      %2190 = vmatprep.subr.mxu0 0.0
      %2191 = vmatpush1.msra.mxu0 0.0
      %2192 = vmatprep.subr.mxu0 0.0
      %2193 = vmatpush1.msra.mxu0 0.0
      %2194 = vmatprep.subr.mxu0 0.0
      %2195 = vmatpush1.msra.mxu0 0.0
      %2196 = vmatprep.subr.mxu0 0.0
      %2197 = vmatpush1.msra.mxu0 0.0
      %2198 = vmatprep.subr.mxu0 0.0
      %2199 = vmatpush1.msra.mxu0 0.0
      %2200 = vmatprep.subr.mxu0 0.0
      %2201 = vmatpush1.msra.mxu0 0.0
      %2202 = vmatprep.subr.mxu0 0.0
      %2203 = vmatpush1.msra.mxu0 %v2170
      %2204 = vmatprep.subr.mxu0 0.0
      %2205 = vmatpush2.msra.mxu0 0.0
      %2206 = vmatprep.subr.mxu0 0.0
      %2207 = vmatpush2.msra.mxu0 0.0
      %2208 = vmatprep.subr.mxu0 0.0
      %2209 = vmatpush2.msra.mxu0 0.0
      %2210 = vmatprep.subr.mxu0 0.0
      %2211 = vmatpush2.msra.mxu0 0.0
      %2212 = vmatprep.subr.mxu0 0.0
      %2213 = vmatpush2.msra.mxu0 0.0
      %2214 = vmatprep.subr.mxu0 0.0
      %2215 = vmatpush2.msra.mxu0 0.0
      %2216 = vmatprep.subr.mxu0 0.0
      %2217 = vmatpush2.msra.mxu0 0.0
      %2218 = vmatprep.subr.mxu0 0.0
      %2219 = vmatpush2.msra.mxu0 0.0
      %2220 = vmatprep.subr.mxu0 0.0
      %2221 = vmatpush2.msra.mxu0 0.0
      %2222 = vmatprep.subr.mxu0 0.0
      %2223 = vmatpush2.msra.mxu0 0.0
      %2224 = vmatprep.subr.mxu0 0.0
      %2225 = vmatpush2.msra.mxu0 0.0
      %2226 = vmatprep.subr.mxu0 0.0
      %2227 = vmatpush2.msra.mxu0 0.0
      %2228 = vmatprep.subr.mxu0 0.0
      %2229 = vmatpush2.msra.mxu0 0.0
      %2230 = vmatprep.subr.mxu0 0.0
      %2231 = vmatpush2.msra.mxu0 0.0
      %2232 = vmatprep.subr.mxu0 0.0
      %2233 = vmatpush2.msra.mxu0 0.0
      %2234 = vmatprep.subr.mxu0 0.0
      %2235 = vmatpush2.msra.mxu0 0.0
      %2236 = vmatprep.mubr.f32.mxu0 0.0
      %2237 = vmatmul.mubr.f32.gmra.mxu0 %v659
      %v2238 = vpop.f32.mrf.mxu0
      %v2239 = vadd.f32 0.0, %v2238
      %v2240 = vpop.f32.mrf.mxu0
      %2241 = vmatprep.mubr.f32.mxu0 0.0
      %2242 = vmatmul.mubr.f32.gmra.mxu0 %v661
      %v2243 = vpop.f32.mrf.mxu0
      %v2244 = vadd.f32 0.0, %v2243
      %v2245 = vpop.f32.mrf.mxu0
      %2246 = vmatprep.mubr.f32.mxu0 0.0
      %2247 = vmatmul.mubr.f32.gmra.mxu0 %v663
      %v2248 = vpop.f32.mrf.mxu0
      %v2249 = vadd.f32 0.0, %v2248
      %v2250 = vpop.f32.mrf.mxu0
      %2251 = vmatprep.mubr.f32.mxu0 0.0
      %2252 = vmatmul.mubr.f32.gmra.mxu0 %v665
      %v2253 = vpop.f32.mrf.mxu0
      %v2254 = vadd.f32 0.0, %v2253
      %v2255 = vpop.f32.mrf.mxu0
      %2256 = vmatprep.mubr.f32.mxu0 0.0
      %2257 = vmatmul.mubr.f32.gmra.mxu0 %v667
      %v2258 = vpop.f32.mrf.mxu0
      %v2259 = vadd.f32 0.0, %v2258
      %v2260 = vpop.f32.mrf.mxu0
      %2261 = vmatprep.mubr.f32.mxu0 0.0
      %2262 = vmatmul.mubr.f32.gmra.mxu0 %v669
      %v2263 = vpop.f32.mrf.mxu0
      %v2264 = vadd.f32 0.0, %v2263
      %v2265 = vpop.f32.mrf.mxu0
      %2266 = vmatprep.mubr.f32.mxu0 0.0
      %2267 = vmatmul.mubr.f32.gmra.mxu0 %v671
      %v2268 = vpop.f32.mrf.mxu0
      %v2269 = vadd.f32 0.0, %v2268
      %v2270 = vpop.f32.mrf.mxu0
      %2271 = vmatprep.mubr.f32.mxu0 0.0
      %2272 = vmatmul.mubr.f32.gmra.mxu0 %v673
      %v2273 = vpop.f32.mrf.mxu0
      %v2274 = vadd.f32 0.0, %v2273
      %v2275 = vpop.f32.mrf.mxu0
      %2276 = vmatprep.mubr.f32.mxu0 0.0
      %2277 = vmatmul.mubr.f32.gmra.mxu0 %v675
      %v2278 = vpop.f32.mrf.mxu0
      %v2279 = vadd.f32 0.0, %v2278
      %v2280 = vpop.f32.mrf.mxu0
      %2281 = vmatprep.mubr.f32.mxu0 0.0
      %2282 = vmatmul.mubr.f32.gmra.mxu0 %v677
      %v2283 = vpop.f32.mrf.mxu0
      %v2284 = vadd.f32 0.0, %v2283
      %v2285 = vpop.f32.mrf.mxu0
      %2286 = vmatprep.mubr.f32.mxu0 0.0
      %2287 = vmatmul.mubr.f32.gmra.mxu0 %v679
      %v2288 = vpop.f32.mrf.mxu0
      %v2289 = vadd.f32 0.0, %v2288
      %v2290 = vpop.f32.mrf.mxu0
      %2291 = vmatprep.mubr.f32.mxu0 0.0
      %2292 = vmatmul.mubr.f32.gmra.mxu0 %v681
      %v2293 = vpop.f32.mrf.mxu0
      %v2294 = vadd.f32 0.0, %v2293
      %v2295 = vpop.f32.mrf.mxu0
      %2296 = vmatprep.mubr.f32.mxu0 0.0
      %2297 = vmatmul.mubr.f32.gmra.mxu0 %v683
      %v2298 = vpop.f32.mrf.mxu0
      %v2299 = vadd.f32 0.0, %v2298
      %v2300 = vpop.f32.mrf.mxu0
      %2301 = vmatprep.mubr.f32.mxu0 0.0
      %2302 = vmatmul.mubr.f32.gmra.mxu0 %v685
      %v2303 = vpop.f32.mrf.mxu0
      %v2304 = vadd.f32 0.0, %v2303
      %v2305 = vpop.f32.mrf.mxu0
      %2306 = vmatprep.mubr.f32.mxu0 0.0
      %2307 = vmatmul.mubr.f32.gmra.mxu0 %v687
      %v2308 = vpop.f32.mrf.mxu0
      %v2309 = vadd.f32 0.0, %v2308
      %v2310 = vpop.f32.mrf.mxu0
      %2311 = vmatprep.mubr.f32.mxu0 0.0
      %2312 = vmatmul.mubr.f32.gmra.mxu0 %v689
      %v2313 = vpop.f32.mrf.mxu0
      %v2314 = vadd.f32 0.0, %v2313
      %v2315 = vpop.f32.mrf.mxu0
      %2316 = vmatprep.mubr.f32.mxu0 0.0
      %2317 = vmatmul.mubr.f32.gmra.mxu0 %v691
      %v2318 = vpop.f32.mrf.mxu0
      %v2319 = vadd.f32 0.0, %v2318
      %v2320 = vpop.f32.mrf.mxu0
      %2321 = vmatprep.mubr.f32.mxu0 0.0
      %2322 = vmatmul.mubr.f32.gmra.mxu0 %v693
      %v2323 = vpop.f32.mrf.mxu0
      %v2324 = vadd.f32 0.0, %v2323
      %v2325 = vpop.f32.mrf.mxu0
      %2326 = vmatprep.mubr.f32.mxu0 0.0
      %2327 = vmatmul.mubr.f32.gmra.mxu0 %v695
      %v2328 = vpop.f32.mrf.mxu0
      %v2329 = vadd.f32 0.0, %v2328
      %v2330 = vpop.f32.mrf.mxu0
      %2331 = vmatprep.mubr.f32.mxu0 0.0
      %2332 = vmatmul.mubr.f32.gmra.mxu0 %v697
      %v2333 = vpop.f32.mrf.mxu0
      %v2334 = vadd.f32 0.0, %v2333
      %v2335 = vpop.f32.mrf.mxu0
      %2336 = vmatprep.mubr.f32.mxu0 0.0
      %2337 = vmatmul.mubr.f32.gmra.mxu0 %v699
      %v2338 = vpop.f32.mrf.mxu0
      %v2339 = vadd.f32 0.0, %v2338
      %v2340 = vpop.f32.mrf.mxu0
      %2341 = vmatprep.mubr.f32.mxu0 0.0
      %2342 = vmatmul.mubr.f32.gmra.mxu0 %v701
      %v2343 = vpop.f32.mrf.mxu0
      %v2344 = vadd.f32 0.0, %v2343
      %v2345 = vpop.f32.mrf.mxu0
      %2346 = vmatprep.mubr.f32.mxu0 0.0
      %2347 = vmatmul.mubr.f32.gmra.mxu0 %v703
      %v2348 = vpop.f32.mrf.mxu0
      %v2349 = vadd.f32 0.0, %v2348
      %v2350 = vpop.f32.mrf.mxu0
      %2351 = vmatprep.mubr.f32.mxu0 0.0
      %2352 = vmatmul.mubr.f32.gmra.mxu0 %v705
      %v2353 = vpop.f32.mrf.mxu0
      %v2354 = vadd.f32 0.0, %v2353
      %v2355 = vpop.f32.mrf.mxu0
      %2356 = vmatprep.mubr.f32.mxu0 0.0
      %2357 = vmatmul.mubr.f32.gmra.mxu0 %v707
      %v2358 = vpop.f32.mrf.mxu0
      %v2359 = vadd.f32 0.0, %v2358
      %v2360 = vpop.f32.mrf.mxu0
      %2361 = vmatprep.mubr.f32.mxu0 0.0
      %2362 = vmatmul.mubr.f32.gmra.mxu0 %v709
      %v2363 = vpop.f32.mrf.mxu0
      %v2364 = vadd.f32 0.0, %v2363
      %v2365 = vpop.f32.mrf.mxu0
      %2366 = vmatprep.mubr.f32.mxu0 0.0
      %2367 = vmatmul.mubr.f32.gmra.mxu0 %v711
      %v2368 = vpop.f32.mrf.mxu0
      %v2369 = vadd.f32 0.0, %v2368
      %v2370 = vpop.f32.mrf.mxu0
      %2371 = vmatprep.mubr.f32.mxu0 0.0
      %2372 = vmatmul.mubr.f32.gmra.mxu0 %v713
      %v2373 = vpop.f32.mrf.mxu0
      %v2374 = vadd.f32 0.0, %v2373
      %v2375 = vpop.f32.mrf.mxu0
      %2376 = vmatprep.mubr.f32.mxu0 0.0
      %2377 = vmatmul.mubr.f32.gmra.mxu0 %v1353
      %v2378 = vpop.f32.mrf.mxu0
      %v2379 = vadd.f32 0.0, %v2378
      %v2380 = vpop.f32.mrf.mxu0
      %2381 = vmatprep.mubr.f32.mxu0 0.0
      %2382 = vmatmul.mubr.f32.gmra.mxu0 %v1356
      %v2383 = vpop.f32.mrf.mxu0
      %v2384 = vadd.f32 0.0, %v2383
      %v2385 = vpop.f32.mrf.mxu0
      %2386 = vmatprep.mubr.f32.mxu0 0.0
      %2387 = vmatmul.mubr.f32.gmra.mxu0 %v2164
      %v2388 = vpop.f32.mrf.mxu0
      %v2389 = vadd.f32 0.0, %v2388
      %v2390 = vpop.f32.mrf.mxu0
      %2391 = vmatprep.mubr.f32.mxu0 0.0
      %2392 = vmatmul.mubr.f32.gmra.mxu0 %v2167
      %v2393 = vpop.f32.mrf.mxu0
      %v2394 = vadd.f32 0.0, %v2393
      %v2395 = vpop.f32.mrf.mxu0
      %2396 = vdwg.mxu0
      %v2397 = vadd.f32 %v2129, %v2239
      %v2398 = vadd.f32 %v2130, %v2244
      %v2399 = vadd.f32 %v2131, %v2249
      %v2400 = vadd.f32 %v2132, %v2254
      %v2401 = vadd.f32 %v2133, %v2259
      %v2402 = vadd.f32 %v2134, %v2264
      %v2403 = vadd.f32 %v2135, %v2269
      %v2404 = vadd.f32 %v2136, %v2274
      %v2405 = vadd.f32 %v2137, %v2279
      %v2406 = vadd.f32 %v2138, %v2284
      %v2407 = vadd.f32 %v2139, %v2289
      %v2408 = vadd.f32 %v2140, %v2294
      %v2409 = vadd.f32 %v2141, %v2299
      %v2410 = vadd.f32 %v2142, %v2304
      %v2411 = vadd.f32 %v2143, %v2309
      %v2412 = vadd.f32 %v2144, %v2314
      %v2413 = vadd.f32 %v2145, %v2319
      %v2414 = vadd.f32 %v2146, %v2324
      %v2415 = vadd.f32 %v2147, %v2329
      %v2416 = vadd.f32 %v2148, %v2334
      %v2417 = vadd.f32 %v2149, %v2339
      %v2418 = vadd.f32 %v2150, %v2344
      %v2419 = vadd.f32 %v2151, %v2349
      %v2420 = vadd.f32 %v2152, %v2354
      %v2421 = vadd.f32 %v2153, %v2359
      %v2422 = vadd.f32 %v2154, %v2364
      %v2423 = vadd.f32 %v2155, %v2369
      %v2424 = vadd.f32 %v2156, %v2374
      %v2425 = vadd.f32 %v2157, %v2379
      %v2426 = vadd.f32 %v2158, %v2384
      %v2427 = vadd.f32 %v2159, %v2389
      %v2428 = vadd.f32 %v2160, %v2394
      %v2430 = vrot.slane %v222, 1
      %v2431 = vrot.slane %v223, 1
      %v2432 = vsel %vm274, %v2430, %v2431
      %v2433 = vrot.slane %v224, 1
      %v2434 = vsel %vm274, %v2431, %v2433
      %s2435 = scalar_lea.vmem %s1, 28
      %v2436 = vld [vmem:[%s2435] sm:$0xf]
      %v2437 = vsel %vm357, %v2432, 0
      %v2439 = vsel %vm357, %v2434, 0
      %v2442 = vsel %vm422, %v2436, 0
      %2444 = vmatprep.subr.mxu0 0.0
      %2445 = vmatpush1.msra.mxu0 0.0
      %2446 = vmatprep.subr.mxu0 0.0
      %2447 = vmatpush1.msra.mxu0 0.0
      %2448 = vmatprep.subr.mxu0 0.0
      %2449 = vmatpush1.msra.mxu0 0.0
      %2450 = vmatprep.subr.mxu0 0.0
      %2451 = vmatpush1.msra.mxu0 0.0
      %2452 = vmatprep.subr.mxu0 0.0
      %2453 = vmatpush1.msra.mxu0 0.0
      %2454 = vmatprep.subr.mxu0 0.0
      %2455 = vmatpush1.msra.mxu0 0.0
      %2456 = vmatprep.subr.mxu0 0.0
      %2457 = vmatpush1.msra.mxu0 0.0
      %2458 = vmatprep.subr.mxu0 0.0
      %2459 = vmatpush1.msra.mxu0 0.0
      %2460 = vmatprep.subr.mxu0 0.0
      %2461 = vmatpush1.msra.mxu0 0.0
      %2462 = vmatprep.subr.mxu0 0.0
      %2463 = vmatpush1.msra.mxu0 0.0
      %2464 = vmatprep.subr.mxu0 0.0
      %2465 = vmatpush1.msra.mxu0 0.0
      %2466 = vmatprep.subr.mxu0 0.0
      %2467 = vmatpush1.msra.mxu0 0.0
      %2468 = vmatprep.subr.mxu0 0.0
      %2469 = vmatpush1.msra.mxu0 0.0
      %2470 = vmatprep.subr.mxu0 0.0
      %2471 = vmatpush1.msra.mxu0 0.0
      %2472 = vmatprep.subr.mxu0 0.0
      %2473 = vmatpush1.msra.mxu0 0.0
      %2474 = vmatprep.subr.mxu0 0.0
      %2475 = vmatpush1.msra.mxu0 %v2442
      %2476 = vmatprep.subr.mxu0 0.0
      %2477 = vmatpush2.msra.mxu0 0.0
      %2478 = vmatprep.subr.mxu0 0.0
      %2479 = vmatpush2.msra.mxu0 0.0
      %2480 = vmatprep.subr.mxu0 0.0
      %2481 = vmatpush2.msra.mxu0 0.0
      %2482 = vmatprep.subr.mxu0 0.0
      %2483 = vmatpush2.msra.mxu0 0.0
      %2484 = vmatprep.subr.mxu0 0.0
      %2485 = vmatpush2.msra.mxu0 0.0
      %2486 = vmatprep.subr.mxu0 0.0
      %2487 = vmatpush2.msra.mxu0 0.0
      %2488 = vmatprep.subr.mxu0 0.0
      %2489 = vmatpush2.msra.mxu0 0.0
      %2490 = vmatprep.subr.mxu0 0.0
      %2491 = vmatpush2.msra.mxu0 0.0
      %2492 = vmatprep.subr.mxu0 0.0
      %2493 = vmatpush2.msra.mxu0 0.0
      %2494 = vmatprep.subr.mxu0 0.0
      %2495 = vmatpush2.msra.mxu0 0.0
      %2496 = vmatprep.subr.mxu0 0.0
      %2497 = vmatpush2.msra.mxu0 0.0
      %2498 = vmatprep.subr.mxu0 0.0
      %2499 = vmatpush2.msra.mxu0 0.0
      %2500 = vmatprep.subr.mxu0 0.0
      %2501 = vmatpush2.msra.mxu0 0.0
      %2502 = vmatprep.subr.mxu0 0.0
      %2503 = vmatpush2.msra.mxu0 0.0
      %2504 = vmatprep.subr.mxu0 0.0
      %2505 = vmatpush2.msra.mxu0 0.0
      %2506 = vmatprep.subr.mxu0 0.0
      %2507 = vmatpush2.msra.mxu0 0.0
      %2508 = vmatprep.mubr.f32.mxu0 0.0
      %2509 = vmatmul.mubr.f32.gmra.mxu0 %v366
      %v2510 = vpop.f32.mrf.mxu0
      %v2511 = vadd.f32 0.0, %v2510
      %v2512 = vpop.f32.mrf.mxu0
      %2513 = vmatprep.mubr.f32.mxu0 0.0
      %2514 = vmatmul.mubr.f32.gmra.mxu0 %v368
      %v2515 = vpop.f32.mrf.mxu0
      %v2516 = vadd.f32 0.0, %v2515
      %v2517 = vpop.f32.mrf.mxu0
      %2518 = vmatprep.mubr.f32.mxu0 0.0
      %2519 = vmatmul.mubr.f32.gmra.mxu0 %v370
      %v2520 = vpop.f32.mrf.mxu0
      %v2521 = vadd.f32 0.0, %v2520
      %v2522 = vpop.f32.mrf.mxu0
      %2523 = vmatprep.mubr.f32.mxu0 0.0
      %2524 = vmatmul.mubr.f32.gmra.mxu0 %v372
      %v2525 = vpop.f32.mrf.mxu0
      %v2526 = vadd.f32 0.0, %v2525
      %v2527 = vpop.f32.mrf.mxu0
      %2528 = vmatprep.mubr.f32.mxu0 0.0
      %2529 = vmatmul.mubr.f32.gmra.mxu0 %v374
      %v2530 = vpop.f32.mrf.mxu0
      %v2531 = vadd.f32 0.0, %v2530
      %v2532 = vpop.f32.mrf.mxu0
      %2533 = vmatprep.mubr.f32.mxu0 0.0
      %2534 = vmatmul.mubr.f32.gmra.mxu0 %v376
      %v2535 = vpop.f32.mrf.mxu0
      %v2536 = vadd.f32 0.0, %v2535
      %v2537 = vpop.f32.mrf.mxu0
      %2538 = vmatprep.mubr.f32.mxu0 0.0
      %2539 = vmatmul.mubr.f32.gmra.mxu0 %v378
      %v2540 = vpop.f32.mrf.mxu0
      %v2541 = vadd.f32 0.0, %v2540
      %v2542 = vpop.f32.mrf.mxu0
      %2543 = vmatprep.mubr.f32.mxu0 0.0
      %2544 = vmatmul.mubr.f32.gmra.mxu0 %v380
      %v2545 = vpop.f32.mrf.mxu0
      %v2546 = vadd.f32 0.0, %v2545
      %v2547 = vpop.f32.mrf.mxu0
      %2548 = vmatprep.mubr.f32.mxu0 0.0
      %2549 = vmatmul.mubr.f32.gmra.mxu0 %v382
      %v2550 = vpop.f32.mrf.mxu0
      %v2551 = vadd.f32 0.0, %v2550
      %v2552 = vpop.f32.mrf.mxu0
      %2553 = vmatprep.mubr.f32.mxu0 0.0
      %2554 = vmatmul.mubr.f32.gmra.mxu0 %v384
      %v2555 = vpop.f32.mrf.mxu0
      %v2556 = vadd.f32 0.0, %v2555
      %v2557 = vpop.f32.mrf.mxu0
      %2558 = vmatprep.mubr.f32.mxu0 0.0
      %2559 = vmatmul.mubr.f32.gmra.mxu0 %v386
      %v2560 = vpop.f32.mrf.mxu0
      %v2561 = vadd.f32 0.0, %v2560
      %v2562 = vpop.f32.mrf.mxu0
      %2563 = vmatprep.mubr.f32.mxu0 0.0
      %2564 = vmatmul.mubr.f32.gmra.mxu0 %v388
      %v2565 = vpop.f32.mrf.mxu0
      %v2566 = vadd.f32 0.0, %v2565
      %v2567 = vpop.f32.mrf.mxu0
      %2568 = vmatprep.mubr.f32.mxu0 0.0
      %2569 = vmatmul.mubr.f32.gmra.mxu0 %v390
      %v2570 = vpop.f32.mrf.mxu0
      %v2571 = vadd.f32 0.0, %v2570
      %v2572 = vpop.f32.mrf.mxu0
      %2573 = vmatprep.mubr.f32.mxu0 0.0
      %2574 = vmatmul.mubr.f32.gmra.mxu0 %v392
      %v2575 = vpop.f32.mrf.mxu0
      %v2576 = vadd.f32 0.0, %v2575
      %v2577 = vpop.f32.mrf.mxu0
      %2578 = vmatprep.mubr.f32.mxu0 0.0
      %2579 = vmatmul.mubr.f32.gmra.mxu0 %v394
      %v2580 = vpop.f32.mrf.mxu0
      %v2581 = vadd.f32 0.0, %v2580
      %v2582 = vpop.f32.mrf.mxu0
      %2583 = vmatprep.mubr.f32.mxu0 0.0
      %2584 = vmatmul.mubr.f32.gmra.mxu0 %v396
      %v2585 = vpop.f32.mrf.mxu0
      %v2586 = vadd.f32 0.0, %v2585
      %v2587 = vpop.f32.mrf.mxu0
      %2588 = vmatprep.mubr.f32.mxu0 0.0
      %2589 = vmatmul.mubr.f32.gmra.mxu0 %v398
      %v2590 = vpop.f32.mrf.mxu0
      %v2591 = vadd.f32 0.0, %v2590
      %v2592 = vpop.f32.mrf.mxu0
      %2593 = vmatprep.mubr.f32.mxu0 0.0
      %2594 = vmatmul.mubr.f32.gmra.mxu0 %v400
      %v2595 = vpop.f32.mrf.mxu0
      %v2596 = vadd.f32 0.0, %v2595
      %v2597 = vpop.f32.mrf.mxu0
      %2598 = vmatprep.mubr.f32.mxu0 0.0
      %2599 = vmatmul.mubr.f32.gmra.mxu0 %v402
      %v2600 = vpop.f32.mrf.mxu0
      %v2601 = vadd.f32 0.0, %v2600
      %v2602 = vpop.f32.mrf.mxu0
      %2603 = vmatprep.mubr.f32.mxu0 0.0
      %2604 = vmatmul.mubr.f32.gmra.mxu0 %v404
      %v2605 = vpop.f32.mrf.mxu0
      %v2606 = vadd.f32 0.0, %v2605
      %v2607 = vpop.f32.mrf.mxu0
      %2608 = vmatprep.mubr.f32.mxu0 0.0
      %2609 = vmatmul.mubr.f32.gmra.mxu0 %v406
      %v2610 = vpop.f32.mrf.mxu0
      %v2611 = vadd.f32 0.0, %v2610
      %v2612 = vpop.f32.mrf.mxu0
      %2613 = vmatprep.mubr.f32.mxu0 0.0
      %2614 = vmatmul.mubr.f32.gmra.mxu0 %v408
      %v2615 = vpop.f32.mrf.mxu0
      %v2616 = vadd.f32 0.0, %v2615
      %v2617 = vpop.f32.mrf.mxu0
      %2618 = vmatprep.mubr.f32.mxu0 0.0
      %2619 = vmatmul.mubr.f32.gmra.mxu0 %v410
      %v2620 = vpop.f32.mrf.mxu0
      %v2621 = vadd.f32 0.0, %v2620
      %v2622 = vpop.f32.mrf.mxu0
      %2623 = vmatprep.mubr.f32.mxu0 0.0
      %2624 = vmatmul.mubr.f32.gmra.mxu0 %v412
      %v2625 = vpop.f32.mrf.mxu0
      %v2626 = vadd.f32 0.0, %v2625
      %v2627 = vpop.f32.mrf.mxu0
      %2628 = vmatprep.mubr.f32.mxu0 0.0
      %2629 = vmatmul.mubr.f32.gmra.mxu0 %v414
      %v2630 = vpop.f32.mrf.mxu0
      %v2631 = vadd.f32 0.0, %v2630
      %v2632 = vpop.f32.mrf.mxu0
      %2633 = vmatprep.mubr.f32.mxu0 0.0
      %2634 = vmatmul.mubr.f32.gmra.mxu0 %v416
      %v2635 = vpop.f32.mrf.mxu0
      %v2636 = vadd.f32 0.0, %v2635
      %v2637 = vpop.f32.mrf.mxu0
      %2638 = vmatprep.mubr.f32.mxu0 0.0
      %2639 = vmatmul.mubr.f32.gmra.mxu0 %v418
      %v2640 = vpop.f32.mrf.mxu0
      %v2641 = vadd.f32 0.0, %v2640
      %v2642 = vpop.f32.mrf.mxu0
      %2643 = vmatprep.mubr.f32.mxu0 0.0
      %2644 = vmatmul.mubr.f32.gmra.mxu0 %v420
      %v2645 = vpop.f32.mrf.mxu0
      %v2646 = vadd.f32 0.0, %v2645
      %v2647 = vpop.f32.mrf.mxu0
      %2648 = vmatprep.mubr.f32.mxu0 0.0
      %2649 = vmatmul.mubr.f32.gmra.mxu0 %v1626
      %v2650 = vpop.f32.mrf.mxu0
      %v2651 = vadd.f32 0.0, %v2650
      %v2652 = vpop.f32.mrf.mxu0
      %2653 = vmatprep.mubr.f32.mxu0 0.0
      %2654 = vmatmul.mubr.f32.gmra.mxu0 %v1628
      %v2655 = vpop.f32.mrf.mxu0
      %v2656 = vadd.f32 0.0, %v2655
      %v2657 = vpop.f32.mrf.mxu0
      %2658 = vmatprep.mubr.f32.mxu0 0.0
      %2659 = vmatmul.mubr.f32.gmra.mxu0 %v2437
      %v2660 = vpop.f32.mrf.mxu0
      %v2661 = vadd.f32 0.0, %v2660
      %v2662 = vpop.f32.mrf.mxu0
      %2663 = vmatprep.mubr.f32.mxu0 0.0
      %2664 = vmatmul.mubr.f32.gmra.mxu0 %v2439
      %v2665 = vpop.f32.mrf.mxu0
      %v2666 = vadd.f32 0.0, %v2665
      %v2667 = vpop.f32.mrf.mxu0
      %2668 = vdwg.mxu0
      %v2669 = vadd.f32 %v2397, %v2511
      %v2670 = vadd.f32 %v2398, %v2516
      %v2671 = vadd.f32 %v2399, %v2521
      %v2672 = vadd.f32 %v2400, %v2526
      %v2673 = vadd.f32 %v2401, %v2531
      %v2674 = vadd.f32 %v2402, %v2536
      %v2675 = vadd.f32 %v2403, %v2541
      %v2676 = vadd.f32 %v2404, %v2546
      %v2677 = vadd.f32 %v2405, %v2551
      %v2678 = vadd.f32 %v2406, %v2556
      %v2679 = vadd.f32 %v2407, %v2561
      %v2680 = vadd.f32 %v2408, %v2566
      %v2681 = vadd.f32 %v2409, %v2571
      %v2682 = vadd.f32 %v2410, %v2576
      %v2683 = vadd.f32 %v2411, %v2581
      %v2684 = vadd.f32 %v2412, %v2586
      %v2685 = vadd.f32 %v2413, %v2591
      %v2686 = vadd.f32 %v2414, %v2596
      %v2687 = vadd.f32 %v2415, %v2601
      %v2688 = vadd.f32 %v2416, %v2606
      %v2689 = vadd.f32 %v2417, %v2611
      %v2690 = vadd.f32 %v2418, %v2616
      %v2691 = vadd.f32 %v2419, %v2621
      %v2692 = vadd.f32 %v2420, %v2626
      %v2693 = vadd.f32 %v2421, %v2631
      %v2694 = vadd.f32 %v2422, %v2636
      %v2695 = vadd.f32 %v2423, %v2641
      %v2696 = vadd.f32 %v2424, %v2646
      %v2697 = vadd.f32 %v2425, %v2651
      %v2698 = vadd.f32 %v2426, %v2656
      %v2699 = vadd.f32 %v2427, %v2661
      %v2700 = vadd.f32 %v2428, %v2666
      %v2701 = vrot.slane %v222, 2
      %v2702 = vrot.slane %v223, 2
      %v2703 = vsel %vm943, %v2701, %v2702
      %v2704 = vrot.slane %v224, 2
      %v2705 = vsel %vm943, %v2702, %v2704
      %s2706 = scalar_lea.vmem %s1, 32
      %v2707 = vld [vmem:[%s2706] sm:$0xf]
      %v2708 = vsel %vm357, %v2703, 0
      %v2710 = vsel %vm357, %v2705, 0
      %v2713 = vsel %vm422, %v2707, 0
      %2715 = vmatprep.subr.mxu0 0.0
      %2716 = vmatpush1.msra.mxu0 0.0
      %2717 = vmatprep.subr.mxu0 0.0
      %2718 = vmatpush1.msra.mxu0 0.0
      %2719 = vmatprep.subr.mxu0 0.0
      %2720 = vmatpush1.msra.mxu0 0.0
      %2721 = vmatprep.subr.mxu0 0.0
      %2722 = vmatpush1.msra.mxu0 0.0
      %2723 = vmatprep.subr.mxu0 0.0
      %2724 = vmatpush1.msra.mxu0 0.0
      %2725 = vmatprep.subr.mxu0 0.0
      %2726 = vmatpush1.msra.mxu0 0.0
      %2727 = vmatprep.subr.mxu0 0.0
      %2728 = vmatpush1.msra.mxu0 0.0
      %2729 = vmatprep.subr.mxu0 0.0
      %2730 = vmatpush1.msra.mxu0 0.0
      %2731 = vmatprep.subr.mxu0 0.0
      %2732 = vmatpush1.msra.mxu0 0.0
      %2733 = vmatprep.subr.mxu0 0.0
      %2734 = vmatpush1.msra.mxu0 0.0
      %2735 = vmatprep.subr.mxu0 0.0
      %2736 = vmatpush1.msra.mxu0 0.0
      %2737 = vmatprep.subr.mxu0 0.0
      %2738 = vmatpush1.msra.mxu0 0.0
      %2739 = vmatprep.subr.mxu0 0.0
      %2740 = vmatpush1.msra.mxu0 0.0
      %2741 = vmatprep.subr.mxu0 0.0
      %2742 = vmatpush1.msra.mxu0 0.0
      %2743 = vmatprep.subr.mxu0 0.0
      %2744 = vmatpush1.msra.mxu0 0.0
      %2745 = vmatprep.subr.mxu0 0.0
      %2746 = vmatpush1.msra.mxu0 %v2713
      %2747 = vmatprep.subr.mxu0 0.0
      %2748 = vmatpush2.msra.mxu0 0.0
      %2749 = vmatprep.subr.mxu0 0.0
      %2750 = vmatpush2.msra.mxu0 0.0
      %2751 = vmatprep.subr.mxu0 0.0
      %2752 = vmatpush2.msra.mxu0 0.0
      %2753 = vmatprep.subr.mxu0 0.0
      %2754 = vmatpush2.msra.mxu0 0.0
      %2755 = vmatprep.subr.mxu0 0.0
      %2756 = vmatpush2.msra.mxu0 0.0
      %2757 = vmatprep.subr.mxu0 0.0
      %2758 = vmatpush2.msra.mxu0 0.0
      %2759 = vmatprep.subr.mxu0 0.0
      %2760 = vmatpush2.msra.mxu0 0.0
      %2761 = vmatprep.subr.mxu0 0.0
      %2762 = vmatpush2.msra.mxu0 0.0
      %2763 = vmatprep.subr.mxu0 0.0
      %2764 = vmatpush2.msra.mxu0 0.0
      %2765 = vmatprep.subr.mxu0 0.0
      %2766 = vmatpush2.msra.mxu0 0.0
      %2767 = vmatprep.subr.mxu0 0.0
      %2768 = vmatpush2.msra.mxu0 0.0
      %2769 = vmatprep.subr.mxu0 0.0
      %2770 = vmatpush2.msra.mxu0 0.0
      %2771 = vmatprep.subr.mxu0 0.0
      %2772 = vmatpush2.msra.mxu0 0.0
      %2773 = vmatprep.subr.mxu0 0.0
      %2774 = vmatpush2.msra.mxu0 0.0
      %2775 = vmatprep.subr.mxu0 0.0
      %2776 = vmatpush2.msra.mxu0 0.0
      %2777 = vmatprep.subr.mxu0 0.0
      %2778 = vmatpush2.msra.mxu0 0.0
      %2779 = vmatprep.mubr.f32.mxu0 0.0
      %2780 = vmatmul.mubr.f32.gmra.mxu0 %v1034
      %v2781 = vpop.f32.mrf.mxu0
      %v2782 = vadd.f32 0.0, %v2781
      %v2783 = vpop.f32.mrf.mxu0
      %2784 = vmatprep.mubr.f32.mxu0 0.0
      %2785 = vmatmul.mubr.f32.gmra.mxu0 %v1036
      %v2786 = vpop.f32.mrf.mxu0
      %v2787 = vadd.f32 0.0, %v2786
      %v2788 = vpop.f32.mrf.mxu0
      %2789 = vmatprep.mubr.f32.mxu0 0.0
      %2790 = vmatmul.mubr.f32.gmra.mxu0 %v1038
      %v2791 = vpop.f32.mrf.mxu0
      %v2792 = vadd.f32 0.0, %v2791
      %v2793 = vpop.f32.mrf.mxu0
      %2794 = vmatprep.mubr.f32.mxu0 0.0
      %2795 = vmatmul.mubr.f32.gmra.mxu0 %v1040
      %v2796 = vpop.f32.mrf.mxu0
      %v2797 = vadd.f32 0.0, %v2796
      %v2798 = vpop.f32.mrf.mxu0
      %2799 = vmatprep.mubr.f32.mxu0 0.0
      %2800 = vmatmul.mubr.f32.gmra.mxu0 %v1042
      %v2801 = vpop.f32.mrf.mxu0
      %v2802 = vadd.f32 0.0, %v2801
      %v2803 = vpop.f32.mrf.mxu0
      %2804 = vmatprep.mubr.f32.mxu0 0.0
      %2805 = vmatmul.mubr.f32.gmra.mxu0 %v1044
      %v2806 = vpop.f32.mrf.mxu0
      %v2807 = vadd.f32 0.0, %v2806
      %v2808 = vpop.f32.mrf.mxu0
      %2809 = vmatprep.mubr.f32.mxu0 0.0
      %2810 = vmatmul.mubr.f32.gmra.mxu0 %v1046
      %v2811 = vpop.f32.mrf.mxu0
      %v2812 = vadd.f32 0.0, %v2811
      %v2813 = vpop.f32.mrf.mxu0
      %2814 = vmatprep.mubr.f32.mxu0 0.0
      %2815 = vmatmul.mubr.f32.gmra.mxu0 %v1048
      %v2816 = vpop.f32.mrf.mxu0
      %v2817 = vadd.f32 0.0, %v2816
      %v2818 = vpop.f32.mrf.mxu0
      %2819 = vmatprep.mubr.f32.mxu0 0.0
      %2820 = vmatmul.mubr.f32.gmra.mxu0 %v1050
      %v2821 = vpop.f32.mrf.mxu0
      %v2822 = vadd.f32 0.0, %v2821
      %v2823 = vpop.f32.mrf.mxu0
      %2824 = vmatprep.mubr.f32.mxu0 0.0
      %2825 = vmatmul.mubr.f32.gmra.mxu0 %v1052
      %v2826 = vpop.f32.mrf.mxu0
      %v2827 = vadd.f32 0.0, %v2826
      %v2828 = vpop.f32.mrf.mxu0
      %2829 = vmatprep.mubr.f32.mxu0 0.0
      %2830 = vmatmul.mubr.f32.gmra.mxu0 %v1054
      %v2831 = vpop.f32.mrf.mxu0
      %v2832 = vadd.f32 0.0, %v2831
      %v2833 = vpop.f32.mrf.mxu0
      %2834 = vmatprep.mubr.f32.mxu0 0.0
      %2835 = vmatmul.mubr.f32.gmra.mxu0 %v1056
      %v2836 = vpop.f32.mrf.mxu0
      %v2837 = vadd.f32 0.0, %v2836
      %v2838 = vpop.f32.mrf.mxu0
      %2839 = vmatprep.mubr.f32.mxu0 0.0
      %2840 = vmatmul.mubr.f32.gmra.mxu0 %v1058
      %v2841 = vpop.f32.mrf.mxu0
      %v2842 = vadd.f32 0.0, %v2841
      %v2843 = vpop.f32.mrf.mxu0
      %2844 = vmatprep.mubr.f32.mxu0 0.0
      %2845 = vmatmul.mubr.f32.gmra.mxu0 %v1060
      %v2846 = vpop.f32.mrf.mxu0
      %v2847 = vadd.f32 0.0, %v2846
      %v2848 = vpop.f32.mrf.mxu0
      %2849 = vmatprep.mubr.f32.mxu0 0.0
      %2850 = vmatmul.mubr.f32.gmra.mxu0 %v1062
      %v2851 = vpop.f32.mrf.mxu0
      %v2852 = vadd.f32 0.0, %v2851
      %v2853 = vpop.f32.mrf.mxu0
      %2854 = vmatprep.mubr.f32.mxu0 0.0
      %2855 = vmatmul.mubr.f32.gmra.mxu0 %v1064
      %v2856 = vpop.f32.mrf.mxu0
      %v2857 = vadd.f32 0.0, %v2856
      %v2858 = vpop.f32.mrf.mxu0
      %2859 = vmatprep.mubr.f32.mxu0 0.0
      %2860 = vmatmul.mubr.f32.gmra.mxu0 %v1066
      %v2861 = vpop.f32.mrf.mxu0
      %v2862 = vadd.f32 0.0, %v2861
      %v2863 = vpop.f32.mrf.mxu0
      %2864 = vmatprep.mubr.f32.mxu0 0.0
      %2865 = vmatmul.mubr.f32.gmra.mxu0 %v1068
      %v2866 = vpop.f32.mrf.mxu0
      %v2867 = vadd.f32 0.0, %v2866
      %v2868 = vpop.f32.mrf.mxu0
      %2869 = vmatprep.mubr.f32.mxu0 0.0
      %2870 = vmatmul.mubr.f32.gmra.mxu0 %v1070
      %v2871 = vpop.f32.mrf.mxu0
      %v2872 = vadd.f32 0.0, %v2871
      %v2873 = vpop.f32.mrf.mxu0
      %2874 = vmatprep.mubr.f32.mxu0 0.0
      %2875 = vmatmul.mubr.f32.gmra.mxu0 %v1072
      %v2876 = vpop.f32.mrf.mxu0
      %v2877 = vadd.f32 0.0, %v2876
      %v2878 = vpop.f32.mrf.mxu0
      %2879 = vmatprep.mubr.f32.mxu0 0.0
      %2880 = vmatmul.mubr.f32.gmra.mxu0 %v1074
      %v2881 = vpop.f32.mrf.mxu0
      %v2882 = vadd.f32 0.0, %v2881
      %v2883 = vpop.f32.mrf.mxu0
      %2884 = vmatprep.mubr.f32.mxu0 0.0
      %2885 = vmatmul.mubr.f32.gmra.mxu0 %v1076
      %v2886 = vpop.f32.mrf.mxu0
      %v2887 = vadd.f32 0.0, %v2886
      %v2888 = vpop.f32.mrf.mxu0
      %2889 = vmatprep.mubr.f32.mxu0 0.0
      %2890 = vmatmul.mubr.f32.gmra.mxu0 %v1078
      %v2891 = vpop.f32.mrf.mxu0
      %v2892 = vadd.f32 0.0, %v2891
      %v2893 = vpop.f32.mrf.mxu0
      %2894 = vmatprep.mubr.f32.mxu0 0.0
      %2895 = vmatmul.mubr.f32.gmra.mxu0 %v1080
      %v2896 = vpop.f32.mrf.mxu0
      %v2897 = vadd.f32 0.0, %v2896
      %v2898 = vpop.f32.mrf.mxu0
      %2899 = vmatprep.mubr.f32.mxu0 0.0
      %2900 = vmatmul.mubr.f32.gmra.mxu0 %v1082
      %v2901 = vpop.f32.mrf.mxu0
      %v2902 = vadd.f32 0.0, %v2901
      %v2903 = vpop.f32.mrf.mxu0
      %2904 = vmatprep.mubr.f32.mxu0 0.0
      %2905 = vmatmul.mubr.f32.gmra.mxu0 %v1084
      %v2906 = vpop.f32.mrf.mxu0
      %v2907 = vadd.f32 0.0, %v2906
      %v2908 = vpop.f32.mrf.mxu0
      %2909 = vmatprep.mubr.f32.mxu0 0.0
      %2910 = vmatmul.mubr.f32.gmra.mxu0 %v1086
      %v2911 = vpop.f32.mrf.mxu0
      %v2912 = vadd.f32 0.0, %v2911
      %v2913 = vpop.f32.mrf.mxu0
      %2914 = vmatprep.mubr.f32.mxu0 0.0
      %2915 = vmatmul.mubr.f32.gmra.mxu0 %v1088
      %v2916 = vpop.f32.mrf.mxu0
      %v2917 = vadd.f32 0.0, %v2916
      %v2918 = vpop.f32.mrf.mxu0
      %2919 = vmatprep.mubr.f32.mxu0 0.0
      %2920 = vmatmul.mubr.f32.gmra.mxu0 %v1897
      %v2921 = vpop.f32.mrf.mxu0
      %v2922 = vadd.f32 0.0, %v2921
      %v2923 = vpop.f32.mrf.mxu0
      %2924 = vmatprep.mubr.f32.mxu0 0.0
      %2925 = vmatmul.mubr.f32.gmra.mxu0 %v1899
      %v2926 = vpop.f32.mrf.mxu0
      %v2927 = vadd.f32 0.0, %v2926
      %v2928 = vpop.f32.mrf.mxu0
      %2929 = vmatprep.mubr.f32.mxu0 0.0
      %2930 = vmatmul.mubr.f32.gmra.mxu0 %v2708
      %v2931 = vpop.f32.mrf.mxu0
      %v2932 = vadd.f32 0.0, %v2931
      %v2933 = vpop.f32.mrf.mxu0
      %2934 = vmatprep.mubr.f32.mxu0 0.0
      %2935 = vmatmul.mubr.f32.gmra.mxu0 %v2710
      %v2936 = vpop.f32.mrf.mxu0
      %v2937 = vadd.f32 0.0, %v2936
      %v2938 = vpop.f32.mrf.mxu0
      %2939 = vdwg.mxu0
      %v2940 = vadd.f32 %v2669, %v2782
      %v2941 = vadd.f32 %v2670, %v2787
      %v2942 = vadd.f32 %v2671, %v2792
      %v2943 = vadd.f32 %v2672, %v2797
      %v2944 = vadd.f32 %v2673, %v2802
      %v2945 = vadd.f32 %v2674, %v2807
      %v2946 = vadd.f32 %v2675, %v2812
      %v2947 = vadd.f32 %v2676, %v2817
      %v2948 = vadd.f32 %v2677, %v2822
      %v2949 = vadd.f32 %v2678, %v2827
      %v2950 = vadd.f32 %v2679, %v2832
      %v2951 = vadd.f32 %v2680, %v2837
      %v2952 = vadd.f32 %v2681, %v2842
      %v2953 = vadd.f32 %v2682, %v2847
      %v2954 = vadd.f32 %v2683, %v2852
      %v2955 = vadd.f32 %v2684, %v2857
      %v2956 = vadd.f32 %v2685, %v2862
      %v2957 = vadd.f32 %v2686, %v2867
      %v2958 = vadd.f32 %v2687, %v2872
      %v2959 = vadd.f32 %v2688, %v2877
      %v2960 = vadd.f32 %v2689, %v2882
      %v2961 = vadd.f32 %v2690, %v2887
      %v2962 = vadd.f32 %v2691, %v2892
      %v2963 = vadd.f32 %v2692, %v2897
      %v2964 = vadd.f32 %v2693, %v2902
      %v2965 = vadd.f32 %v2694, %v2907
      %v2966 = vadd.f32 %v2695, %v2912
      %v2967 = vadd.f32 %v2696, %v2917
      %v2968 = vadd.f32 %v2697, %v2922
      %v2969 = vadd.f32 %v2698, %v2927
      %v2970 = vadd.f32 %v2699, %v2932
      %v2971 = vadd.f32 %v2700, %v2937
      %v2972 = vld [vmem:[%s2] sm:$0x1]
      %v2974 = vlaneseq
      %v2975 = vshrl.u32 %v2974, 7
      %v2976 = vsub.s32 0, %v2975
      %v2977 = vrot.slane %v2972, %v2976
      %v2979 = vadd.f32 %v2940, %v2977
      %v2980 = vadd.f32 %v2941, %v2977
      %v2981 = vadd.f32 %v2942, %v2977
      %v2982 = vadd.f32 %v2943, %v2977
      %v2983 = vadd.f32 %v2944, %v2977
      %v2984 = vadd.f32 %v2945, %v2977
      %v2985 = vadd.f32 %v2946, %v2977
      %v2986 = vadd.f32 %v2947, %v2977
      %v2987 = vadd.f32 %v2948, %v2977
      %v2988 = vadd.f32 %v2949, %v2977
      %v2989 = vadd.f32 %v2950, %v2977
      %v2990 = vadd.f32 %v2951, %v2977
      %v2991 = vadd.f32 %v2952, %v2977
      %v2992 = vadd.f32 %v2953, %v2977
      %v2993 = vadd.f32 %v2954, %v2977
      %v2994 = vadd.f32 %v2955, %v2977
      %v2995 = vadd.f32 %v2956, %v2977
      %v2996 = vadd.f32 %v2957, %v2977
      %v2997 = vadd.f32 %v2958, %v2977
      %v2998 = vadd.f32 %v2959, %v2977
      %v2999 = vadd.f32 %v2960, %v2977
      %v3000 = vadd.f32 %v2961, %v2977
      %v3001 = vadd.f32 %v2962, %v2977
      %v3002 = vadd.f32 %v2963, %v2977
      %v3003 = vadd.f32 %v2964, %v2977
      %v3004 = vadd.f32 %v2965, %v2977
      %v3005 = vadd.f32 %v2966, %v2977
      %v3006 = vadd.f32 %v2967, %v2977
      %v3007 = vadd.f32 %v2968, %v2977
      %v3008 = vadd.f32 %v2969, %v2977
      %v3009 = vadd.f32 %v2970, %v2977
      %v3010 = vadd.f32 %v2971, %v2977
      %3011 = vst.msk [vmem:[%s170] sm:$0xff] %vm357, %v2979
      %3012 = vst.msk [vmem:[%s170 + $0x8] sm:$0xff] %vm357, %v2980
      %3013 = vst.msk [vmem:[%s170 + $0x10] sm:$0xff] %vm357, %v2981
      %3014 = vst.msk [vmem:[%s170 + $0x18] sm:$0xff] %vm357, %v2982
      %3015 = vst.msk [vmem:[%s170 + $0x20] sm:$0xff] %vm357, %v2983
      %3016 = vst.msk [vmem:[%s170 + $0x28] sm:$0xff] %vm357, %v2984
      %3017 = vst.msk [vmem:[%s170 + $0x30] sm:$0xff] %vm357, %v2985
      %3018 = vst.msk [vmem:[%s170 + $0x38] sm:$0xff] %vm357, %v2986
      %3019 = vst.msk [vmem:[%s170 + $0x40] sm:$0xff] %vm357, %v2987
      %3020 = vst.msk [vmem:[%s170 + $0x48] sm:$0xff] %vm357, %v2988
      %3021 = vst.msk [vmem:[%s170 + $0x50] sm:$0xff] %vm357, %v2989
      %3022 = vst.msk [vmem:[%s170 + $0x58] sm:$0xff] %vm357, %v2990
      %3023 = vst.msk [vmem:[%s170 + $0x60] sm:$0xff] %vm357, %v2991
      %3024 = vst.msk [vmem:[%s170 + $0x68] sm:$0xff] %vm357, %v2992
      %3025 = vst.msk [vmem:[%s170 + $0x70] sm:$0xff] %vm357, %v2993
      %3026 = vst.msk [vmem:[%s170 + $0x78] sm:$0xff] %vm357, %v2994
      %3027 = vst.msk [vmem:[%s170 + $0x80] sm:$0xff] %vm357, %v2995
      %3028 = vst.msk [vmem:[%s170 + $0x88] sm:$0xff] %vm357, %v2996
      %3029 = vst.msk [vmem:[%s170 + $0x90] sm:$0xff] %vm357, %v2997
      %3030 = vst.msk [vmem:[%s170 + $0x98] sm:$0xff] %vm357, %v2998
      %3031 = vst.msk [vmem:[%s170 + $0xa0] sm:$0xff] %vm357, %v2999
      %3032 = vst.msk [vmem:[%s170 + $0xa8] sm:$0xff] %vm357, %v3000
      %3033 = vst.msk [vmem:[%s170 + $0xb0] sm:$0xff] %vm357, %v3001
      %3034 = vst.msk [vmem:[%s170 + $0xb8] sm:$0xff] %vm357, %v3002
      %3035 = vst.msk [vmem:[%s170 + $0xc0] sm:$0xff] %vm357, %v3003
      %3036 = vst.msk [vmem:[%s170 + $0xc8] sm:$0xff] %vm357, %v3004
      %3037 = vst.msk [vmem:[%s170 + $0xd0] sm:$0xff] %vm357, %v3005
      %3038 = vst.msk [vmem:[%s170 + $0xd8] sm:$0xff] %vm357, %v3006
      %3039 = vst.msk [vmem:[%s170 + $0xe0] sm:$0xff] %vm357, %v3007
      %3040 = vst.msk [vmem:[%s170 + $0xe8] sm:$0xff] %vm357, %v3008
      %3041 = vst.msk [vmem:[%s170 + $0xf0] sm:$0xff] %vm357, %v3009
      %3042 = vst.msk [vmem:[%s170 + $0xf8] sm:$0xff] %vm357, %v3010
      %p3043 = scmp.lt.s32.totalorder %s14, 1
      %s3044 = scalar_select %p3043, %s14, 1
      %s3045 = smul.addr %s3044, 32
      %s3046 = smul.addr %s3045, 8
      %s3047 = scalar_lea.vmem %s3, %s3046
      // Predicated region
      $region33: #{recurrent_residual_block.10} parent=31 // pred_check
        %p3048 = pneg %p100
      $region34: #{recurrent_residual_block.10} parent=31 // pred_check_branch
        %3050 = sbr.rel (%p3048) target = $region36
      $region35: #{recurrent_residual_block.10} parent=31 // pred_region
        _
      $region36: #{recurrent_residual_block.10} parent=31 // pred_fallthru
        _
    $region32: #{recurrent_residual_block.10} parent=5 // pred_fallthru
      _
    %p3051 = scmp.le.s32.totalorder 2, %s9
    // Predicated region
    $region37: #{recurrent_residual_block.10} parent=5 // pred_check
      %p3052 = pneg %p3051
    $region38: #{recurrent_residual_block.10} parent=5 // pred_check_branch
      %3054 = sbr.rel (%p3052) target = $region40
    $region39: #{recurrent_residual_block.10} parent=5 // pred_region
      %s3055 = ssub.s32 %s9, 2
      // Predicated region
      $region41: #{recurrent_residual_block.10} parent=39 // pred_check
        %p3056 = pneg %p106
      $region42: #{recurrent_residual_block.10} parent=39 // pred_check_branch
        %3058 = sbr.rel (%p3056) target = $region44
      $region43: #{recurrent_residual_block.10} parent=39 // pred_region
        %p3059 = scmp.lt.s32.totalorder %s15, 1
        %s3060 = scalar_select %p3059, %s15, 1
        %s3061 = smul.addr %s3060, 32
        %s3062 = smul.addr %s3061, 8
        %s3063 = scalar_lea.vmem %s3, %s3062
      $region44: #{recurrent_residual_block.10} parent=39 // pred_fallthru
        _
    $region40: #{recurrent_residual_block.10} parent=5 // pred_fallthru
      _
  $region6: #{recurrent_residual_block.10} parent=0 // loop_footer
    %s13 = sadd.s32 1, %s9
  $region7: #{recurrent_residual_block.10} parent=0 // loop_footer_branch
    %8 = sbr.rel target = $region3
  $region8: #{recurrent_residual_block.10} parent=0 // loop_exit
    _

// kernel: recurrent_residual_block.16
$region0: #{recurrent_residual_block.16}
  #allocation0 [shape = 'u32[]', space=smem, size = 0x4, offset = 0x4, fixed_abs, tag = 'smem constant byte address 0x4 - core index']
  #allocation1 [shape = 'u32[144,128]{1,0:T(1,128)}', space=vmem, size = 0x12000, scoped, tag = 'internal scratch']
  %s0 = inlined_call_operand.vmem [shape: f32[512,4], index: 0, kind: input, shape index: {}]
  %s1 = inlined_call_operand.vmem [shape: f32[4,12], index: 1, kind: input, shape index: {}]
  %s2 = inlined_call_operand.vmem [shape: f32[1,12], index: 2, kind: input, shape index: {}]
  %s3 = inlined_call_operand.vmem [shape: f32[2,512,6], index: 3, kind: output, shape index: {}]
  %s4 = sld [smem:[#allocation0]]
  $region22: #{recurrent_residual_block.16} parent=0
    _
  %s6 = ssub.s32 1, %s4
  %s7 = scalar_select 0, %s6, %s4
  // Predicated region
  $region2: #{recurrent_residual_block.16} parent=0 // pred_check
    _
  $region3: #{recurrent_residual_block.16} parent=0 // pred_check_branch
    %9 = sbr.rel (0) target = $region5
  $region4: #{recurrent_residual_block.16} parent=0 // pred_region
    _
  $region5: #{recurrent_residual_block.16} parent=0 // pred_fallthru
    _
  // Predicated region
  $region6: #{recurrent_residual_block.16} parent=0 // pred_check
    _
  $region7: #{recurrent_residual_block.16} parent=0 // pred_check_branch
    %11 = sbr.rel (0) target = $region9
  $region8: #{recurrent_residual_block.16} parent=0 // pred_region
    _
  $region9: #{recurrent_residual_block.16} parent=0 // pred_fallthru
    _
  // Predicated region
  $region10: #{recurrent_residual_block.16} parent=0 // pred_check
    _
  $region11: #{recurrent_residual_block.16} parent=0 // pred_check_branch
    %13 = sbr.rel (0) target = $region13
  $region12: #{recurrent_residual_block.16} parent=0 // pred_region
    _
  $region13: #{recurrent_residual_block.16} parent=0 // pred_fallthru
    _
  %v14 = vld [vmem:[%s0] sm:$0xff]
  %v15 = vld [vmem:[%s0 + $0x8] sm:$0xff]
  %v16 = vld [vmem:[%s0 + $0x10] sm:$0xff]
  %v17 = vld [vmem:[%s0 + $0x18] sm:$0xff]
  %v18 = vld [vmem:[%s0 + $0x20] sm:$0xff]
  %v19 = vld [vmem:[%s0 + $0x28] sm:$0xff]
  %v20 = vld [vmem:[%s0 + $0x30] sm:$0xff]
  %v21 = vld [vmem:[%s0 + $0x38] sm:$0xff]
  %v22 = vld [vmem:[%s0 + $0x40] sm:$0xff]
  %v23 = vld [vmem:[%s0 + $0x48] sm:$0xff]
  %v24 = vld [vmem:[%s0 + $0x50] sm:$0xff]
  %v25 = vld [vmem:[%s0 + $0x58] sm:$0xff]
  %v26 = vld [vmem:[%s0 + $0x60] sm:$0xff]
  %v27 = vld [vmem:[%s0 + $0x68] sm:$0xff]
  %v28 = vld [vmem:[%s0 + $0x70] sm:$0xff]
  %v29 = vld [vmem:[%s0 + $0x78] sm:$0xff]
  %v30 = vld [vmem:[%s0 + $0x80] sm:$0xff]
  %v31 = vld [vmem:[%s0 + $0x88] sm:$0xff]
  %v32 = vld [vmem:[%s0 + $0x90] sm:$0xff]
  %v33 = vld [vmem:[%s0 + $0x98] sm:$0xff]
  %v34 = vld [vmem:[%s0 + $0xa0] sm:$0xff]
  %v35 = vld [vmem:[%s0 + $0xa8] sm:$0xff]
  %v36 = vld [vmem:[%s0 + $0xb0] sm:$0xff]
  %v37 = vld [vmem:[%s0 + $0xb8] sm:$0xff]
  %v38 = vld [vmem:[%s0 + $0xc0] sm:$0xff]
  %v39 = vld [vmem:[%s0 + $0xc8] sm:$0xff]
  %v40 = vld [vmem:[%s0 + $0xd0] sm:$0xff]
  %v41 = vld [vmem:[%s0 + $0xd8] sm:$0xff]
  %v42 = vld [vmem:[%s0 + $0xe0] sm:$0xff]
  %v43 = vld [vmem:[%s0 + $0xe8] sm:$0xff]
  %v44 = vld [vmem:[%s0 + $0xf0] sm:$0xff]
  %v45 = vld [vmem:[%s0 + $0xf8] sm:$0xff]
  %v46 = vld [vmem:[%s0 + $0x100] sm:$0xff]
  %v47 = vld [vmem:[%s0 + $0x108] sm:$0xff]
  %v48 = vld [vmem:[%s0 + $0x110] sm:$0xff]
  %v49 = vld [vmem:[%s0 + $0x118] sm:$0xff]
  %v50 = vld [vmem:[%s0 + $0x120] sm:$0xff]
  %v51 = vld [vmem:[%s0 + $0x128] sm:$0xff]
  %v52 = vld [vmem:[%s0 + $0x130] sm:$0xff]
  %v53 = vld [vmem:[%s0 + $0x138] sm:$0xff]
  %v54 = vld [vmem:[%s0 + $0x140] sm:$0xff]
  %v55 = vld [vmem:[%s0 + $0x148] sm:$0xff]
  %v56 = vld [vmem:[%s0 + $0x150] sm:$0xff]
  %v57 = vld [vmem:[%s0 + $0x158] sm:$0xff]
  %v58 = vld [vmem:[%s0 + $0x160] sm:$0xff]
  %v59 = vld [vmem:[%s0 + $0x168] sm:$0xff]
  %v60 = vld [vmem:[%s0 + $0x170] sm:$0xff]
  %v61 = vld [vmem:[%s0 + $0x178] sm:$0xff]
  %v62 = vld [vmem:[%s0 + $0x180] sm:$0xff]
  %v63 = vld [vmem:[%s0 + $0x188] sm:$0xff]
  %v64 = vld [vmem:[%s0 + $0x190] sm:$0xff]
  %v65 = vld [vmem:[%s0 + $0x198] sm:$0xff]
  %v66 = vld [vmem:[%s0 + $0x1a0] sm:$0xff]
  %v67 = vld [vmem:[%s0 + $0x1a8] sm:$0xff]
  %v68 = vld [vmem:[%s0 + $0x1b0] sm:$0xff]
  %v69 = vld [vmem:[%s0 + $0x1b8] sm:$0xff]
  %v70 = vld [vmem:[%s0 + $0x1c0] sm:$0xff]
  %v71 = vld [vmem:[%s0 + $0x1c8] sm:$0xff]
  %v72 = vld [vmem:[%s0 + $0x1d0] sm:$0xff]
  %v73 = vld [vmem:[%s0 + $0x1d8] sm:$0xff]
  %v74 = vld [vmem:[%s0 + $0x1e0] sm:$0xff]
  %v75 = vld [vmem:[%s0 + $0x1e8] sm:$0xff]
  %v76 = vld [vmem:[%s0 + $0x1f0] sm:$0xff]
  %v77 = vld [vmem:[%s0 + $0x1f8] sm:$0xff]
  %v78 = vld [vmem:[%s1] sm:$0xf]
  %v79 = vld [vmem:[%s2] sm:$0x1]
  %v81 = vlaneseq
  %v82 = vshrl.u32 %v81, 7
  %v83 = vsub.s32 0, %v82
  %v84 = vrot.slane %v79, %v83
  %vm86 = vcmask 31744
  %v88 = vsel %vm86, %v14, 0
  %v91 = vsel %vm86, %v15, 0
  %v94 = vsel %vm86, %v16, 0
  %v97 = vsel %vm86, %v17, 0
  %v100 = vsel %vm86, %v18, 0
  %v103 = vsel %vm86, %v19, 0
  %v106 = vsel %vm86, %v20, 0
  %v109 = vsel %vm86, %v21, 0
  %v112 = vsel %vm86, %v22, 0
  %v115 = vsel %vm86, %v23, 0
  %v118 = vsel %vm86, %v24, 0
  %v121 = vsel %vm86, %v25, 0
  %v124 = vsel %vm86, %v26, 0
  %v127 = vsel %vm86, %v27, 0
  %v130 = vsel %vm86, %v28, 0
  %v133 = vsel %vm86, %v29, 0
  %v136 = vsel %vm86, %v30, 0
  %v139 = vsel %vm86, %v31, 0
  %v142 = vsel %vm86, %v32, 0
  %v145 = vsel %vm86, %v33, 0
  %v148 = vsel %vm86, %v34, 0
  %v151 = vsel %vm86, %v35, 0
  %v154 = vsel %vm86, %v36, 0
  %v157 = vsel %vm86, %v37, 0
  %v160 = vsel %vm86, %v38, 0
  %v163 = vsel %vm86, %v39, 0
  %v166 = vsel %vm86, %v40, 0
  %v169 = vsel %vm86, %v41, 0
  %v172 = vsel %vm86, %v42, 0
  %v175 = vsel %vm86, %v43, 0
  %v178 = vsel %vm86, %v44, 0
  %v181 = vsel %vm86, %v45, 0
  %v184 = vsel %vm86, %v46, 0
  %v187 = vsel %vm86, %v47, 0
  %v190 = vsel %vm86, %v48, 0
  %v193 = vsel %vm86, %v49, 0
  %v196 = vsel %vm86, %v50, 0
  %v199 = vsel %vm86, %v51, 0
  %v202 = vsel %vm86, %v52, 0
  %v205 = vsel %vm86, %v53, 0
  %v208 = vsel %vm86, %v54, 0
  %v211 = vsel %vm86, %v55, 0
  %v214 = vsel %vm86, %v56, 0
  %v217 = vsel %vm86, %v57, 0
  %v220 = vsel %vm86, %v58, 0
  %v223 = vsel %vm86, %v59, 0
  %v226 = vsel %vm86, %v60, 0
  %v229 = vsel %vm86, %v61, 0
  %v232 = vsel %vm86, %v62, 0
  %v235 = vsel %vm86, %v63, 0
  %v238 = vsel %vm86, %v64, 0
  %v241 = vsel %vm86, %v65, 0
  %v244 = vsel %vm86, %v66, 0
  %v247 = vsel %vm86, %v67, 0
  %v250 = vsel %vm86, %v68, 0
  %v253 = vsel %vm86, %v69, 0
  %v256 = vsel %vm86, %v70, 0
  %v259 = vsel %vm86, %v71, 0
  %v262 = vsel %vm86, %v72, 0
  %v265 = vsel %vm86, %v73, 0
  %v268 = vsel %vm86, %v74, 0
  %v271 = vsel %vm86, %v75, 0
  %v274 = vsel %vm86, %v76, 0
  %v277 = vsel %vm86, %v77, 0
  %vm279 = vcmask 1043456
  %v281 = vsel %vm279, %v78, 0
  %283 = vmatprep.subr.mxu0 0.0
  %284 = vmatpush1.msra.mxu0 0.0
  %285 = vmatprep.subr.mxu0 0.0
  %286 = vmatpush1.msra.mxu0 0.0
  %287 = vmatprep.subr.mxu0 0.0
  %288 = vmatpush1.msra.mxu0 0.0
  %289 = vmatprep.subr.mxu0 0.0
  %290 = vmatpush1.msra.mxu0 0.0
  %291 = vmatprep.subr.mxu0 0.0
  %292 = vmatpush1.msra.mxu0 0.0
  %293 = vmatprep.subr.mxu0 0.0
  %294 = vmatpush1.msra.mxu0 0.0
  %295 = vmatprep.subr.mxu0 0.0
  %296 = vmatpush1.msra.mxu0 0.0
  %297 = vmatprep.subr.mxu0 0.0
  %298 = vmatpush1.msra.mxu0 0.0
  %299 = vmatprep.subr.mxu0 0.0
  %300 = vmatpush1.msra.mxu0 0.0
  %301 = vmatprep.subr.mxu0 0.0
  %302 = vmatpush1.msra.mxu0 0.0
  %303 = vmatprep.subr.mxu0 0.0
  %304 = vmatpush1.msra.mxu0 0.0
  %305 = vmatprep.subr.mxu0 0.0
  %306 = vmatpush1.msra.mxu0 0.0
  %307 = vmatprep.subr.mxu0 0.0
  %308 = vmatpush1.msra.mxu0 0.0
  %309 = vmatprep.subr.mxu0 0.0
  %310 = vmatpush1.msra.mxu0 0.0
  %311 = vmatprep.subr.mxu0 0.0
  %312 = vmatpush1.msra.mxu0 0.0
  %313 = vmatprep.subr.mxu0 0.0
  %314 = vmatpush1.msra.mxu0 %v281
  %315 = vmatprep.subr.mxu0 0.0
  %316 = vmatpush2.msra.mxu0 0.0
  %317 = vmatprep.subr.mxu0 0.0
  %318 = vmatpush2.msra.mxu0 0.0
  %319 = vmatprep.subr.mxu0 0.0
  %320 = vmatpush2.msra.mxu0 0.0
  %321 = vmatprep.subr.mxu0 0.0
  %322 = vmatpush2.msra.mxu0 0.0
  %323 = vmatprep.subr.mxu0 0.0
  %324 = vmatpush2.msra.mxu0 0.0
  %325 = vmatprep.subr.mxu0 0.0
  %326 = vmatpush2.msra.mxu0 0.0
  %327 = vmatprep.subr.mxu0 0.0
  %328 = vmatpush2.msra.mxu0 0.0
  %329 = vmatprep.subr.mxu0 0.0
  %330 = vmatpush2.msra.mxu0 0.0
  %331 = vmatprep.subr.mxu0 0.0
  %332 = vmatpush2.msra.mxu0 0.0
  %333 = vmatprep.subr.mxu0 0.0
  %334 = vmatpush2.msra.mxu0 0.0
  %335 = vmatprep.subr.mxu0 0.0
  %336 = vmatpush2.msra.mxu0 0.0
  %337 = vmatprep.subr.mxu0 0.0
  %338 = vmatpush2.msra.mxu0 0.0
  %339 = vmatprep.subr.mxu0 0.0
  %340 = vmatpush2.msra.mxu0 0.0
  %341 = vmatprep.subr.mxu0 0.0
  %342 = vmatpush2.msra.mxu0 0.0
  %343 = vmatprep.subr.mxu0 0.0
  %344 = vmatpush2.msra.mxu0 0.0
  %345 = vmatprep.subr.mxu0 0.0
  %346 = vmatpush2.msra.mxu0 0.0
  %347 = vmatprep.mubr.f32.mxu0 0.0
  %348 = vmatmul.mubr.f32.gmra.mxu0 %v88
  %v349 = vpop.f32.mrf.mxu0
  %v350 = vadd.f32 %v84, %v349
  %v351 = vpop.f32.mrf.mxu0
  %352 = vmatprep.mubr.f32.mxu0 0.0
  %353 = vmatmul.mubr.f32.gmra.mxu0 %v91
  %v354 = vpop.f32.mrf.mxu0
  %v355 = vadd.f32 %v84, %v354
  %v356 = vpop.f32.mrf.mxu0
  %357 = vmatprep.mubr.f32.mxu0 0.0
  %358 = vmatmul.mubr.f32.gmra.mxu0 %v94
  %v359 = vpop.f32.mrf.mxu0
  %v360 = vadd.f32 %v84, %v359
  %v361 = vpop.f32.mrf.mxu0
  %362 = vmatprep.mubr.f32.mxu0 0.0
  %363 = vmatmul.mubr.f32.gmra.mxu0 %v97
  %v364 = vpop.f32.mrf.mxu0
  %v365 = vadd.f32 %v84, %v364
  %v366 = vpop.f32.mrf.mxu0
  %367 = vmatprep.mubr.f32.mxu0 0.0
  %368 = vmatmul.mubr.f32.gmra.mxu0 %v100
  %v369 = vpop.f32.mrf.mxu0
  %v370 = vadd.f32 %v84, %v369
  %v371 = vpop.f32.mrf.mxu0
  %372 = vmatprep.mubr.f32.mxu0 0.0
  %373 = vmatmul.mubr.f32.gmra.mxu0 %v103
  %v374 = vpop.f32.mrf.mxu0
  %v375 = vadd.f32 %v84, %v374
  %v376 = vpop.f32.mrf.mxu0
  %377 = vmatprep.mubr.f32.mxu0 0.0
  %378 = vmatmul.mubr.f32.gmra.mxu0 %v106
  %v379 = vpop.f32.mrf.mxu0
  %v380 = vadd.f32 %v84, %v379
  %v381 = vpop.f32.mrf.mxu0
  %382 = vmatprep.mubr.f32.mxu0 0.0
  %383 = vmatmul.mubr.f32.gmra.mxu0 %v109
  %v384 = vpop.f32.mrf.mxu0
  %v385 = vadd.f32 %v84, %v384
  %v386 = vpop.f32.mrf.mxu0
  %387 = vmatprep.mubr.f32.mxu0 0.0
  %388 = vmatmul.mubr.f32.gmra.mxu0 %v112
  %v389 = vpop.f32.mrf.mxu0
  %v390 = vadd.f32 %v84, %v389
  %v391 = vpop.f32.mrf.mxu0
  %392 = vmatprep.mubr.f32.mxu0 0.0
  %393 = vmatmul.mubr.f32.gmra.mxu0 %v115
  %v394 = vpop.f32.mrf.mxu0
  %v395 = vadd.f32 %v84, %v394
  %v396 = vpop.f32.mrf.mxu0
  %397 = vmatprep.mubr.f32.mxu0 0.0
  %398 = vmatmul.mubr.f32.gmra.mxu0 %v118
  %v399 = vpop.f32.mrf.mxu0
  %v400 = vadd.f32 %v84, %v399
  %v401 = vpop.f32.mrf.mxu0
  %402 = vmatprep.mubr.f32.mxu0 0.0
  %403 = vmatmul.mubr.f32.gmra.mxu0 %v121
  %v404 = vpop.f32.mrf.mxu0
  %v405 = vadd.f32 %v84, %v404
  %v406 = vpop.f32.mrf.mxu0
  %407 = vmatprep.mubr.f32.mxu0 0.0
  %408 = vmatmul.mubr.f32.gmra.mxu0 %v124
  %v409 = vpop.f32.mrf.mxu0
  %v410 = vadd.f32 %v84, %v409
  %v411 = vpop.f32.mrf.mxu0
  %412 = vmatprep.mubr.f32.mxu0 0.0
  %413 = vmatmul.mubr.f32.gmra.mxu0 %v127
  %v414 = vpop.f32.mrf.mxu0
  %v415 = vadd.f32 %v84, %v414
  %v416 = vpop.f32.mrf.mxu0
  %417 = vmatprep.mubr.f32.mxu0 0.0
  %418 = vmatmul.mubr.f32.gmra.mxu0 %v130
  %v419 = vpop.f32.mrf.mxu0
  %v420 = vadd.f32 %v84, %v419
  %v421 = vpop.f32.mrf.mxu0
  %422 = vmatprep.mubr.f32.mxu0 0.0
  %423 = vmatmul.mubr.f32.gmra.mxu0 %v133
  %v424 = vpop.f32.mrf.mxu0
  %v425 = vadd.f32 %v84, %v424
  %v426 = vpop.f32.mrf.mxu0
  %427 = vmatprep.mubr.f32.mxu0 0.0
  %428 = vmatmul.mubr.f32.gmra.mxu0 %v136
  %v429 = vpop.f32.mrf.mxu0
  %v430 = vadd.f32 %v84, %v429
  %v431 = vpop.f32.mrf.mxu0
  %432 = vmatprep.mubr.f32.mxu0 0.0
  %433 = vmatmul.mubr.f32.gmra.mxu0 %v139
  %v434 = vpop.f32.mrf.mxu0
  %v435 = vadd.f32 %v84, %v434
  %v436 = vpop.f32.mrf.mxu0
  %437 = vmatprep.mubr.f32.mxu0 0.0
  %438 = vmatmul.mubr.f32.gmra.mxu0 %v142
  %v439 = vpop.f32.mrf.mxu0
  %v440 = vadd.f32 %v84, %v439
  %v441 = vpop.f32.mrf.mxu0
  %442 = vmatprep.mubr.f32.mxu0 0.0
  %443 = vmatmul.mubr.f32.gmra.mxu0 %v145
  %v444 = vpop.f32.mrf.mxu0
  %v445 = vadd.f32 %v84, %v444
  %v446 = vpop.f32.mrf.mxu0
  %447 = vmatprep.mubr.f32.mxu0 0.0
  %448 = vmatmul.mubr.f32.gmra.mxu0 %v148
  %v449 = vpop.f32.mrf.mxu0
  %v450 = vadd.f32 %v84, %v449
  %v451 = vpop.f32.mrf.mxu0
  %452 = vmatprep.mubr.f32.mxu0 0.0
  %453 = vmatmul.mubr.f32.gmra.mxu0 %v151
  %v454 = vpop.f32.mrf.mxu0
  %v455 = vadd.f32 %v84, %v454
  %v456 = vpop.f32.mrf.mxu0
  %457 = vmatprep.mubr.f32.mxu0 0.0
  %458 = vmatmul.mubr.f32.gmra.mxu0 %v154
  %v459 = vpop.f32.mrf.mxu0
  %v460 = vadd.f32 %v84, %v459
  %v461 = vpop.f32.mrf.mxu0
  %462 = vmatprep.mubr.f32.mxu0 0.0
  %463 = vmatmul.mubr.f32.gmra.mxu0 %v157
  %v464 = vpop.f32.mrf.mxu0
  %v465 = vadd.f32 %v84, %v464
  %v466 = vpop.f32.mrf.mxu0
  %467 = vmatprep.mubr.f32.mxu0 0.0
  %468 = vmatmul.mubr.f32.gmra.mxu0 %v160
  %v469 = vpop.f32.mrf.mxu0
  %v470 = vadd.f32 %v84, %v469
  %v471 = vpop.f32.mrf.mxu0
  %472 = vmatprep.mubr.f32.mxu0 0.0
  %473 = vmatmul.mubr.f32.gmra.mxu0 %v163
  %v474 = vpop.f32.mrf.mxu0
  %v475 = vadd.f32 %v84, %v474
  %v476 = vpop.f32.mrf.mxu0
  %477 = vmatprep.mubr.f32.mxu0 0.0
  %478 = vmatmul.mubr.f32.gmra.mxu0 %v166
  %v479 = vpop.f32.mrf.mxu0
  %v480 = vadd.f32 %v84, %v479
  %v481 = vpop.f32.mrf.mxu0
  %482 = vmatprep.mubr.f32.mxu0 0.0
  %483 = vmatmul.mubr.f32.gmra.mxu0 %v169
  %v484 = vpop.f32.mrf.mxu0
  %v485 = vadd.f32 %v84, %v484
  %v486 = vpop.f32.mrf.mxu0
  %487 = vmatprep.mubr.f32.mxu0 0.0
  %488 = vmatmul.mubr.f32.gmra.mxu0 %v172
  %v489 = vpop.f32.mrf.mxu0
  %v490 = vadd.f32 %v84, %v489
  %v491 = vpop.f32.mrf.mxu0
  %492 = vmatprep.mubr.f32.mxu0 0.0
  %493 = vmatmul.mubr.f32.gmra.mxu0 %v175
  %v494 = vpop.f32.mrf.mxu0
  %v495 = vadd.f32 %v84, %v494
  %v496 = vpop.f32.mrf.mxu0
  %497 = vmatprep.mubr.f32.mxu0 0.0
  %498 = vmatmul.mubr.f32.gmra.mxu0 %v178
  %v499 = vpop.f32.mrf.mxu0
  %v500 = vadd.f32 %v84, %v499
  %v501 = vpop.f32.mrf.mxu0
  %502 = vmatprep.mubr.f32.mxu0 0.0
  %503 = vmatmul.mubr.f32.gmra.mxu0 %v181
  %v504 = vpop.f32.mrf.mxu0
  %v505 = vadd.f32 %v84, %v504
  %v506 = vpop.f32.mrf.mxu0
  %507 = vmatprep.mubr.f32.mxu0 0.0
  %508 = vmatmul.mubr.f32.gmra.mxu0 %v184
  %v509 = vpop.f32.mrf.mxu0
  %v510 = vadd.f32 %v84, %v509
  %v511 = vpop.f32.mrf.mxu0
  %512 = vmatprep.mubr.f32.mxu0 0.0
  %513 = vmatmul.mubr.f32.gmra.mxu0 %v187
  %v514 = vpop.f32.mrf.mxu0
  %v515 = vadd.f32 %v84, %v514
  %v516 = vpop.f32.mrf.mxu0
  %517 = vmatprep.mubr.f32.mxu0 0.0
  %518 = vmatmul.mubr.f32.gmra.mxu0 %v190
  %v519 = vpop.f32.mrf.mxu0
  %v520 = vadd.f32 %v84, %v519
  %v521 = vpop.f32.mrf.mxu0
  %522 = vmatprep.mubr.f32.mxu0 0.0
  %523 = vmatmul.mubr.f32.gmra.mxu0 %v193
  %v524 = vpop.f32.mrf.mxu0
  %v525 = vadd.f32 %v84, %v524
  %v526 = vpop.f32.mrf.mxu0
  %527 = vmatprep.mubr.f32.mxu0 0.0
  %528 = vmatmul.mubr.f32.gmra.mxu0 %v196
  %v529 = vpop.f32.mrf.mxu0
  %v530 = vadd.f32 %v84, %v529
  %v531 = vpop.f32.mrf.mxu0
  %532 = vmatprep.mubr.f32.mxu0 0.0
  %533 = vmatmul.mubr.f32.gmra.mxu0 %v199
  %v534 = vpop.f32.mrf.mxu0
  %v535 = vadd.f32 %v84, %v534
  %v536 = vpop.f32.mrf.mxu0
  %537 = vmatprep.mubr.f32.mxu0 0.0
  %538 = vmatmul.mubr.f32.gmra.mxu0 %v202
  %v539 = vpop.f32.mrf.mxu0
  %v540 = vadd.f32 %v84, %v539
  %v541 = vpop.f32.mrf.mxu0
  %542 = vmatprep.mubr.f32.mxu0 0.0
  %543 = vmatmul.mubr.f32.gmra.mxu0 %v205
  %v544 = vpop.f32.mrf.mxu0
  %v545 = vadd.f32 %v84, %v544
  %v546 = vpop.f32.mrf.mxu0
  %547 = vmatprep.mubr.f32.mxu0 0.0
  %548 = vmatmul.mubr.f32.gmra.mxu0 %v208
  %v549 = vpop.f32.mrf.mxu0
  %v550 = vadd.f32 %v84, %v549
  %v551 = vpop.f32.mrf.mxu0
  %552 = vmatprep.mubr.f32.mxu0 0.0
  %553 = vmatmul.mubr.f32.gmra.mxu0 %v211
  %v554 = vpop.f32.mrf.mxu0
  %v555 = vadd.f32 %v84, %v554
  %v556 = vpop.f32.mrf.mxu0
  %557 = vmatprep.mubr.f32.mxu0 0.0
  %558 = vmatmul.mubr.f32.gmra.mxu0 %v214
  %v559 = vpop.f32.mrf.mxu0
  %v560 = vadd.f32 %v84, %v559
  %v561 = vpop.f32.mrf.mxu0
  %562 = vmatprep.mubr.f32.mxu0 0.0
  %563 = vmatmul.mubr.f32.gmra.mxu0 %v217
  %v564 = vpop.f32.mrf.mxu0
  %v565 = vadd.f32 %v84, %v564
  %v566 = vpop.f32.mrf.mxu0
  %567 = vmatprep.mubr.f32.mxu0 0.0
  %568 = vmatmul.mubr.f32.gmra.mxu0 %v220
  %v569 = vpop.f32.mrf.mxu0
  %v570 = vadd.f32 %v84, %v569
  %v571 = vpop.f32.mrf.mxu0
  %572 = vmatprep.mubr.f32.mxu0 0.0
  %573 = vmatmul.mubr.f32.gmra.mxu0 %v223
  %v574 = vpop.f32.mrf.mxu0
  %v575 = vadd.f32 %v84, %v574
  %v576 = vpop.f32.mrf.mxu0
  %577 = vmatprep.mubr.f32.mxu0 0.0
  %578 = vmatmul.mubr.f32.gmra.mxu0 %v226
  %v579 = vpop.f32.mrf.mxu0
  %v580 = vadd.f32 %v84, %v579
  %v581 = vpop.f32.mrf.mxu0
  %582 = vmatprep.mubr.f32.mxu0 0.0
  %583 = vmatmul.mubr.f32.gmra.mxu0 %v229
  %v584 = vpop.f32.mrf.mxu0
  %v585 = vadd.f32 %v84, %v584
  %v586 = vpop.f32.mrf.mxu0
  %587 = vmatprep.mubr.f32.mxu0 0.0
  %588 = vmatmul.mubr.f32.gmra.mxu0 %v232
  %v589 = vpop.f32.mrf.mxu0
  %v590 = vadd.f32 %v84, %v589
  %v591 = vpop.f32.mrf.mxu0
  %592 = vmatprep.mubr.f32.mxu0 0.0
  %593 = vmatmul.mubr.f32.gmra.mxu0 %v235
  %v594 = vpop.f32.mrf.mxu0
  %v595 = vadd.f32 %v84, %v594
  %v596 = vpop.f32.mrf.mxu0
  %597 = vmatprep.mubr.f32.mxu0 0.0
  %598 = vmatmul.mubr.f32.gmra.mxu0 %v238
  %v599 = vpop.f32.mrf.mxu0
  %v600 = vadd.f32 %v84, %v599
  %v601 = vpop.f32.mrf.mxu0
  %602 = vmatprep.mubr.f32.mxu0 0.0
  %603 = vmatmul.mubr.f32.gmra.mxu0 %v241
  %v604 = vpop.f32.mrf.mxu0
  %v605 = vadd.f32 %v84, %v604
  %v606 = vpop.f32.mrf.mxu0
  %607 = vmatprep.mubr.f32.mxu0 0.0
  %608 = vmatmul.mubr.f32.gmra.mxu0 %v244
  %v609 = vpop.f32.mrf.mxu0
  %v610 = vadd.f32 %v84, %v609
  %v611 = vpop.f32.mrf.mxu0
  %612 = vmatprep.mubr.f32.mxu0 0.0
  %613 = vmatmul.mubr.f32.gmra.mxu0 %v247
  %v614 = vpop.f32.mrf.mxu0
  %v615 = vadd.f32 %v84, %v614
  %v616 = vpop.f32.mrf.mxu0
  %617 = vmatprep.mubr.f32.mxu0 0.0
  %618 = vmatmul.mubr.f32.gmra.mxu0 %v250
  %v619 = vpop.f32.mrf.mxu0
  %v620 = vadd.f32 %v84, %v619
  %v621 = vpop.f32.mrf.mxu0
  %622 = vmatprep.mubr.f32.mxu0 0.0
  %623 = vmatmul.mubr.f32.gmra.mxu0 %v253
  %v624 = vpop.f32.mrf.mxu0
  %v625 = vadd.f32 %v84, %v624
  %v626 = vpop.f32.mrf.mxu0
  %627 = vmatprep.mubr.f32.mxu0 0.0
  %628 = vmatmul.mubr.f32.gmra.mxu0 %v256
  %v629 = vpop.f32.mrf.mxu0
  %v630 = vadd.f32 %v84, %v629
  %v631 = vpop.f32.mrf.mxu0
  %632 = vmatprep.mubr.f32.mxu0 0.0
  %633 = vmatmul.mubr.f32.gmra.mxu0 %v259
  %v634 = vpop.f32.mrf.mxu0
  %v635 = vadd.f32 %v84, %v634
  %v636 = vpop.f32.mrf.mxu0
  %637 = vmatprep.mubr.f32.mxu0 0.0
  %638 = vmatmul.mubr.f32.gmra.mxu0 %v262
  %v639 = vpop.f32.mrf.mxu0
  %v640 = vadd.f32 %v84, %v639
  %v641 = vpop.f32.mrf.mxu0
  %642 = vmatprep.mubr.f32.mxu0 0.0
  %643 = vmatmul.mubr.f32.gmra.mxu0 %v265
  %v644 = vpop.f32.mrf.mxu0
  %v645 = vadd.f32 %v84, %v644
  %v646 = vpop.f32.mrf.mxu0
  %647 = vmatprep.mubr.f32.mxu0 0.0
  %648 = vmatmul.mubr.f32.gmra.mxu0 %v268
  %v649 = vpop.f32.mrf.mxu0
  %v650 = vadd.f32 %v84, %v649
  %v651 = vpop.f32.mrf.mxu0
  %652 = vmatprep.mubr.f32.mxu0 0.0
  %653 = vmatmul.mubr.f32.gmra.mxu0 %v271
  %v654 = vpop.f32.mrf.mxu0
  %v655 = vadd.f32 %v84, %v654
  %v656 = vpop.f32.mrf.mxu0
  %657 = vmatprep.mubr.f32.mxu0 0.0
  %658 = vmatmul.mubr.f32.gmra.mxu0 %v274
  %v659 = vpop.f32.mrf.mxu0
  %v660 = vadd.f32 %v84, %v659
  %v661 = vpop.f32.mrf.mxu0
  %662 = vmatprep.mubr.f32.mxu0 0.0
  %663 = vmatmul.mubr.f32.gmra.mxu0 %v277
  %v664 = vpop.f32.mrf.mxu0
  %v665 = vadd.f32 %v84, %v664
  %v666 = vpop.f32.mrf.mxu0
  %667 = vdwg.mxu0
  %vm668 = vcmask 48128
  %669 = vst.msk [vmem:[%s3] sm:$0xff] %vm668, %v350
  %670 = vst.msk [vmem:[%s3 + $0x8] sm:$0xff] %vm668, %v355
  %671 = vst.msk [vmem:[%s3 + $0x10] sm:$0xff] %vm668, %v360
  %672 = vst.msk [vmem:[%s3 + $0x18] sm:$0xff] %vm668, %v365
  %673 = vst.msk [vmem:[%s3 + $0x20] sm:$0xff] %vm668, %v370
  %674 = vst.msk [vmem:[%s3 + $0x28] sm:$0xff] %vm668, %v375
  %675 = vst.msk [vmem:[%s3 + $0x30] sm:$0xff] %vm668, %v380
  %676 = vst.msk [vmem:[%s3 + $0x38] sm:$0xff] %vm668, %v385
  %677 = vst.msk [vmem:[%s3 + $0x40] sm:$0xff] %vm668, %v390
  %678 = vst.msk [vmem:[%s3 + $0x48] sm:$0xff] %vm668, %v395
  %679 = vst.msk [vmem:[%s3 + $0x50] sm:$0xff] %vm668, %v400
  %680 = vst.msk [vmem:[%s3 + $0x58] sm:$0xff] %vm668, %v405
  %681 = vst.msk [vmem:[%s3 + $0x60] sm:$0xff] %vm668, %v410
  %682 = vst.msk [vmem:[%s3 + $0x68] sm:$0xff] %vm668, %v415
  %683 = vst.msk [vmem:[%s3 + $0x70] sm:$0xff] %vm668, %v420
  %684 = vst.msk [vmem:[%s3 + $0x78] sm:$0xff] %vm668, %v425
  %685 = vst.msk [vmem:[%s3 + $0x80] sm:$0xff] %vm668, %v430
  %686 = vst.msk [vmem:[%s3 + $0x88] sm:$0xff] %vm668, %v435
  %687 = vst.msk [vmem:[%s3 + $0x90] sm:$0xff] %vm668, %v440
  %688 = vst.msk [vmem:[%s3 + $0x98] sm:$0xff] %vm668, %v445
  %689 = vst.msk [vmem:[%s3 + $0xa0] sm:$0xff] %vm668, %v450
  %690 = vst.msk [vmem:[%s3 + $0xa8] sm:$0xff] %vm668, %v455
  %691 = vst.msk [vmem:[%s3 + $0xb0] sm:$0xff] %vm668, %v460
  %692 = vst.msk [vmem:[%s3 + $0xb8] sm:$0xff] %vm668, %v465
  %693 = vst.msk [vmem:[%s3 + $0xc0] sm:$0xff] %vm668, %v470
  %694 = vst.msk [vmem:[%s3 + $0xc8] sm:$0xff] %vm668, %v475
  %695 = vst.msk [vmem:[%s3 + $0xd0] sm:$0xff] %vm668, %v480
  %696 = vst.msk [vmem:[%s3 + $0xd8] sm:$0xff] %vm668, %v485
  %697 = vst.msk [vmem:[%s3 + $0xe0] sm:$0xff] %vm668, %v490
  %698 = vst.msk [vmem:[%s3 + $0xe8] sm:$0xff] %vm668, %v495
  %699 = vst.msk [vmem:[%s3 + $0xf0] sm:$0xff] %vm668, %v500
  %700 = vst.msk [vmem:[%s3 + $0xf8] sm:$0xff] %vm668, %v505
  %701 = vst.msk [vmem:[%s3 + $0x100] sm:$0xff] %vm668, %v510
  %702 = vst.msk [vmem:[%s3 + $0x108] sm:$0xff] %vm668, %v515
  %703 = vst.msk [vmem:[%s3 + $0x110] sm:$0xff] %vm668, %v520
  %704 = vst.msk [vmem:[%s3 + $0x118] sm:$0xff] %vm668, %v525
  %705 = vst.msk [vmem:[%s3 + $0x120] sm:$0xff] %vm668, %v530
  %706 = vst.msk [vmem:[%s3 + $0x128] sm:$0xff] %vm668, %v535
  %707 = vst.msk [vmem:[%s3 + $0x130] sm:$0xff] %vm668, %v540
  %708 = vst.msk [vmem:[%s3 + $0x138] sm:$0xff] %vm668, %v545
  %709 = vst.msk [vmem:[%s3 + $0x140] sm:$0xff] %vm668, %v550
  %710 = vst.msk [vmem:[%s3 + $0x148] sm:$0xff] %vm668, %v555
  %711 = vst.msk [vmem:[%s3 + $0x150] sm:$0xff] %vm668, %v560
  %712 = vst.msk [vmem:[%s3 + $0x158] sm:$0xff] %vm668, %v565
  %713 = vst.msk [vmem:[%s3 + $0x160] sm:$0xff] %vm668, %v570
  %714 = vst.msk [vmem:[%s3 + $0x168] sm:$0xff] %vm668, %v575
  %715 = vst.msk [vmem:[%s3 + $0x170] sm:$0xff] %vm668, %v580
  %716 = vst.msk [vmem:[%s3 + $0x178] sm:$0xff] %vm668, %v585
  %717 = vst.msk [vmem:[%s3 + $0x180] sm:$0xff] %vm668, %v590
  %718 = vst.msk [vmem:[%s3 + $0x188] sm:$0xff] %vm668, %v595
  %719 = vst.msk [vmem:[%s3 + $0x190] sm:$0xff] %vm668, %v600
  %720 = vst.msk [vmem:[%s3 + $0x198] sm:$0xff] %vm668, %v605
  %721 = vst.msk [vmem:[%s3 + $0x1a0] sm:$0xff] %vm668, %v610
  %722 = vst.msk [vmem:[%s3 + $0x1a8] sm:$0xff] %vm668, %v615
  %723 = vst.msk [vmem:[%s3 + $0x1b0] sm:$0xff] %vm668, %v620
  %724 = vst.msk [vmem:[%s3 + $0x1b8] sm:$0xff] %vm668, %v625
  %725 = vst.msk [vmem:[%s3 + $0x1c0] sm:$0xff] %vm668, %v630
  %726 = vst.msk [vmem:[%s3 + $0x1c8] sm:$0xff] %vm668, %v635
  %727 = vst.msk [vmem:[%s3 + $0x1d0] sm:$0xff] %vm668, %v640
  %728 = vst.msk [vmem:[%s3 + $0x1d8] sm:$0xff] %vm668, %v645
  %729 = vst.msk [vmem:[%s3 + $0x1e0] sm:$0xff] %vm668, %v650
  %730 = vst.msk [vmem:[%s3 + $0x1e8] sm:$0xff] %vm668, %v655
  %731 = vst.msk [vmem:[%s3 + $0x1f0] sm:$0xff] %vm668, %v660
  %732 = vst.msk [vmem:[%s3 + $0x1f8] sm:$0xff] %vm668, %v665
  %797 = vrot.lane.b32.xlu0 %v350, 122
  %v798 = vpop.permute.xlu0 %797
  %799 = vrot.lane.b32.xlu0 %v355, 122
  %v800 = vpop.permute.xlu0 %799
  %801 = vrot.lane.b32.xlu0 %v360, 122
  %v802 = vpop.permute.xlu0 %801
  %803 = vrot.lane.b32.xlu0 %v365, 122
  %v804 = vpop.permute.xlu0 %803
  %805 = vrot.lane.b32.xlu0 %v370, 122
  %v806 = vpop.permute.xlu0 %805
  %807 = vrot.lane.b32.xlu0 %v375, 122
  %v808 = vpop.permute.xlu0 %807
  %809 = vrot.lane.b32.xlu0 %v380, 122
  %v810 = vpop.permute.xlu0 %809
  %811 = vrot.lane.b32.xlu0 %v385, 122
  %v812 = vpop.permute.xlu0 %811
  %813 = vrot.lane.b32.xlu0 %v390, 122
  %v814 = vpop.permute.xlu0 %813
  %815 = vrot.lane.b32.xlu0 %v395, 122
  %v816 = vpop.permute.xlu0 %815
  %817 = vrot.lane.b32.xlu0 %v400, 122
  %v818 = vpop.permute.xlu0 %817
  %819 = vrot.lane.b32.xlu0 %v405, 122
  %v820 = vpop.permute.xlu0 %819
  %821 = vrot.lane.b32.xlu0 %v410, 122
  %v822 = vpop.permute.xlu0 %821
  %823 = vrot.lane.b32.xlu0 %v415, 122
  %v824 = vpop.permute.xlu0 %823
  %825 = vrot.lane.b32.xlu0 %v420, 122
  %v826 = vpop.permute.xlu0 %825
  %827 = vrot.lane.b32.xlu0 %v425, 122
  %v828 = vpop.permute.xlu0 %827
  %829 = vrot.lane.b32.xlu0 %v430, 122
  %v830 = vpop.permute.xlu0 %829
  %831 = vrot.lane.b32.xlu0 %v435, 122
  %v832 = vpop.permute.xlu0 %831
  %833 = vrot.lane.b32.xlu0 %v440, 122
  %v834 = vpop.permute.xlu0 %833
  %835 = vrot.lane.b32.xlu0 %v445, 122
  %v836 = vpop.permute.xlu0 %835
  %837 = vrot.lane.b32.xlu0 %v450, 122
  %v838 = vpop.permute.xlu0 %837
  %839 = vrot.lane.b32.xlu0 %v455, 122
  %v840 = vpop.permute.xlu0 %839
  %841 = vrot.lane.b32.xlu0 %v460, 122
  %v842 = vpop.permute.xlu0 %841
  %843 = vrot.lane.b32.xlu0 %v465, 122
  %v844 = vpop.permute.xlu0 %843
  %845 = vrot.lane.b32.xlu0 %v470, 122
  %v846 = vpop.permute.xlu0 %845
  %847 = vrot.lane.b32.xlu0 %v475, 122
  %v848 = vpop.permute.xlu0 %847
  %849 = vrot.lane.b32.xlu0 %v480, 122
  %v850 = vpop.permute.xlu0 %849
  %851 = vrot.lane.b32.xlu0 %v485, 122
  %v852 = vpop.permute.xlu0 %851
  %853 = vrot.lane.b32.xlu0 %v490, 122
  %v854 = vpop.permute.xlu0 %853
  %855 = vrot.lane.b32.xlu0 %v495, 122
  %v856 = vpop.permute.xlu0 %855
  %857 = vrot.lane.b32.xlu0 %v500, 122
  %v858 = vpop.permute.xlu0 %857
  %859 = vrot.lane.b32.xlu0 %v505, 122
  %v860 = vpop.permute.xlu0 %859
  %861 = vrot.lane.b32.xlu0 %v510, 122
  %v862 = vpop.permute.xlu0 %861
  %863 = vrot.lane.b32.xlu0 %v515, 122
  %v864 = vpop.permute.xlu0 %863
  %865 = vrot.lane.b32.xlu0 %v520, 122
  %v866 = vpop.permute.xlu0 %865
  %867 = vrot.lane.b32.xlu0 %v525, 122
  %v868 = vpop.permute.xlu0 %867
  %869 = vrot.lane.b32.xlu0 %v530, 122
  %v870 = vpop.permute.xlu0 %869
  %871 = vrot.lane.b32.xlu0 %v535, 122
  %v872 = vpop.permute.xlu0 %871
  %873 = vrot.lane.b32.xlu0 %v540, 122
  %v874 = vpop.permute.xlu0 %873
  %875 = vrot.lane.b32.xlu0 %v545, 122
  %v876 = vpop.permute.xlu0 %875
  %877 = vrot.lane.b32.xlu0 %v550, 122
  %v878 = vpop.permute.xlu0 %877
  %879 = vrot.lane.b32.xlu0 %v555, 122
  %v880 = vpop.permute.xlu0 %879
  %881 = vrot.lane.b32.xlu0 %v560, 122
  %v882 = vpop.permute.xlu0 %881
  %883 = vrot.lane.b32.xlu0 %v565, 122
  %v884 = vpop.permute.xlu0 %883
  %885 = vrot.lane.b32.xlu0 %v570, 122
  %v886 = vpop.permute.xlu0 %885
  %887 = vrot.lane.b32.xlu0 %v575, 122
  %v888 = vpop.permute.xlu0 %887
  %889 = vrot.lane.b32.xlu0 %v580, 122
  %v890 = vpop.permute.xlu0 %889
  %891 = vrot.lane.b32.xlu0 %v585, 122
  %v892 = vpop.permute.xlu0 %891
  %893 = vrot.lane.b32.xlu0 %v590, 122
  %v894 = vpop.permute.xlu0 %893
  %895 = vrot.lane.b32.xlu0 %v595, 122
  %v896 = vpop.permute.xlu0 %895
  %897 = vrot.lane.b32.xlu0 %v600, 122
  %v898 = vpop.permute.xlu0 %897
  %899 = vrot.lane.b32.xlu0 %v605, 122
  %v900 = vpop.permute.xlu0 %899
  %901 = vrot.lane.b32.xlu0 %v610, 122
  %v902 = vpop.permute.xlu0 %901
  %903 = vrot.lane.b32.xlu0 %v615, 122
  %v904 = vpop.permute.xlu0 %903
  %905 = vrot.lane.b32.xlu0 %v620, 122
  %v906 = vpop.permute.xlu0 %905
  %907 = vrot.lane.b32.xlu0 %v625, 122
  %v908 = vpop.permute.xlu0 %907
  %909 = vrot.lane.b32.xlu0 %v630, 122
  %v910 = vpop.permute.xlu0 %909
  %911 = vrot.lane.b32.xlu0 %v635, 122
  %v912 = vpop.permute.xlu0 %911
  %913 = vrot.lane.b32.xlu0 %v640, 122
  %v914 = vpop.permute.xlu0 %913
  %915 = vrot.lane.b32.xlu0 %v645, 122
  %v916 = vpop.permute.xlu0 %915
  %917 = vrot.lane.b32.xlu0 %v650, 122
  %v918 = vpop.permute.xlu0 %917
  %919 = vrot.lane.b32.xlu0 %v655, 122
  %v920 = vpop.permute.xlu0 %919
  %921 = vrot.lane.b32.xlu0 %v660, 122
  %v922 = vpop.permute.xlu0 %921
  %923 = vrot.lane.b32.xlu0 %v665, 122
  %v924 = vpop.permute.xlu0 %923
  %s989 = scalar_lea.vmem %s3, 512
  %990 = vst.msk [vmem:[%s989] sm:$0xff] %vm668, %v798
  %991 = vst.msk [vmem:[%s989 + $0x8] sm:$0xff] %vm668, %v800
  %992 = vst.msk [vmem:[%s989 + $0x10] sm:$0xff] %vm668, %v802
  %993 = vst.msk [vmem:[%s989 + $0x18] sm:$0xff] %vm668, %v804
  %994 = vst.msk [vmem:[%s989 + $0x20] sm:$0xff] %vm668, %v806
  %995 = vst.msk [vmem:[%s989 + $0x28] sm:$0xff] %vm668, %v808
  %996 = vst.msk [vmem:[%s989 + $0x30] sm:$0xff] %vm668, %v810
  %997 = vst.msk [vmem:[%s989 + $0x38] sm:$0xff] %vm668, %v812
  %998 = vst.msk [vmem:[%s989 + $0x40] sm:$0xff] %vm668, %v814
  %999 = vst.msk [vmem:[%s989 + $0x48] sm:$0xff] %vm668, %v816
  %1000 = vst.msk [vmem:[%s989 + $0x50] sm:$0xff] %vm668, %v818
  %1001 = vst.msk [vmem:[%s989 + $0x58] sm:$0xff] %vm668, %v820
  %1002 = vst.msk [vmem:[%s989 + $0x60] sm:$0xff] %vm668, %v822
  %1003 = vst.msk [vmem:[%s989 + $0x68] sm:$0xff] %vm668, %v824
  %1004 = vst.msk [vmem:[%s989 + $0x70] sm:$0xff] %vm668, %v826
  %1005 = vst.msk [vmem:[%s989 + $0x78] sm:$0xff] %vm668, %v828
  %1006 = vst.msk [vmem:[%s989 + $0x80] sm:$0xff] %vm668, %v830
  %1007 = vst.msk [vmem:[%s989 + $0x88] sm:$0xff] %vm668, %v832
  %1008 = vst.msk [vmem:[%s989 + $0x90] sm:$0xff] %vm668, %v834
  %1009 = vst.msk [vmem:[%s989 + $0x98] sm:$0xff] %vm668, %v836
  %1010 = vst.msk [vmem:[%s989 + $0xa0] sm:$0xff] %vm668, %v838
  %1011 = vst.msk [vmem:[%s989 + $0xa8] sm:$0xff] %vm668, %v840
  %1012 = vst.msk [vmem:[%s989 + $0xb0] sm:$0xff] %vm668, %v842
  %1013 = vst.msk [vmem:[%s989 + $0xb8] sm:$0xff] %vm668, %v844
  %1014 = vst.msk [vmem:[%s989 + $0xc0] sm:$0xff] %vm668, %v846
  %1015 = vst.msk [vmem:[%s989 + $0xc8] sm:$0xff] %vm668, %v848
  %1016 = vst.msk [vmem:[%s989 + $0xd0] sm:$0xff] %vm668, %v850
  %1017 = vst.msk [vmem:[%s989 + $0xd8] sm:$0xff] %vm668, %v852
  %1018 = vst.msk [vmem:[%s989 + $0xe0] sm:$0xff] %vm668, %v854
  %1019 = vst.msk [vmem:[%s989 + $0xe8] sm:$0xff] %vm668, %v856
  %1020 = vst.msk [vmem:[%s989 + $0xf0] sm:$0xff] %vm668, %v858
  %1021 = vst.msk [vmem:[%s989 + $0xf8] sm:$0xff] %vm668, %v860
  %1022 = vst.msk [vmem:[%s989 + $0x100] sm:$0xff] %vm668, %v862
  %1023 = vst.msk [vmem:[%s989 + $0x108] sm:$0xff] %vm668, %v864
  %1024 = vst.msk [vmem:[%s989 + $0x110] sm:$0xff] %vm668, %v866
  %1025 = vst.msk [vmem:[%s989 + $0x118] sm:$0xff] %vm668, %v868
  %1026 = vst.msk [vmem:[%s989 + $0x120] sm:$0xff] %vm668, %v870
  %1027 = vst.msk [vmem:[%s989 + $0x128] sm:$0xff] %vm668, %v872
  %1028 = vst.msk [vmem:[%s989 + $0x130] sm:$0xff] %vm668, %v874
  %1029 = vst.msk [vmem:[%s989 + $0x138] sm:$0xff] %vm668, %v876
  %1030 = vst.msk [vmem:[%s989 + $0x140] sm:$0xff] %vm668, %v878
  %1031 = vst.msk [vmem:[%s989 + $0x148] sm:$0xff] %vm668, %v880
  %1032 = vst.msk [vmem:[%s989 + $0x150] sm:$0xff] %vm668, %v882
  %1033 = vst.msk [vmem:[%s989 + $0x158] sm:$0xff] %vm668, %v884
  %1034 = vst.msk [vmem:[%s989 + $0x160] sm:$0xff] %vm668, %v886
  %1035 = vst.msk [vmem:[%s989 + $0x168] sm:$0xff] %vm668, %v888
  %1036 = vst.msk [vmem:[%s989 + $0x170] sm:$0xff] %vm668, %v890
  %1037 = vst.msk [vmem:[%s989 + $0x178] sm:$0xff] %vm668, %v892
  %1038 = vst.msk [vmem:[%s989 + $0x180] sm:$0xff] %vm668, %v894
  %1039 = vst.msk [vmem:[%s989 + $0x188] sm:$0xff] %vm668, %v896
  %1040 = vst.msk [vmem:[%s989 + $0x190] sm:$0xff] %vm668, %v898
  %1041 = vst.msk [vmem:[%s989 + $0x198] sm:$0xff] %vm668, %v900
  %1042 = vst.msk [vmem:[%s989 + $0x1a0] sm:$0xff] %vm668, %v902
  %1043 = vst.msk [vmem:[%s989 + $0x1a8] sm:$0xff] %vm668, %v904
  %1044 = vst.msk [vmem:[%s989 + $0x1b0] sm:$0xff] %vm668, %v906
  %1045 = vst.msk [vmem:[%s989 + $0x1b8] sm:$0xff] %vm668, %v908
  %1046 = vst.msk [vmem:[%s989 + $0x1c0] sm:$0xff] %vm668, %v910
  %1047 = vst.msk [vmem:[%s989 + $0x1c8] sm:$0xff] %vm668, %v912
  %1048 = vst.msk [vmem:[%s989 + $0x1d0] sm:$0xff] %vm668, %v914
  %1049 = vst.msk [vmem:[%s989 + $0x1d8] sm:$0xff] %vm668, %v916
  %1050 = vst.msk [vmem:[%s989 + $0x1e0] sm:$0xff] %vm668, %v918
  %1051 = vst.msk [vmem:[%s989 + $0x1e8] sm:$0xff] %vm668, %v920
  %1052 = vst.msk [vmem:[%s989 + $0x1f0] sm:$0xff] %vm668, %v922
  %1053 = vst.msk [vmem:[%s989 + $0x1f8] sm:$0xff] %vm668, %v924
  // Predicated region
  $region14: #{recurrent_residual_block.16} parent=0 // pred_check
    _
  $region15: #{recurrent_residual_block.16} parent=0 // pred_check_branch
    %1055 = sbr.rel (0) target = $region17
  $region16: #{recurrent_residual_block.16} parent=0 // pred_region
    _
  $region17: #{recurrent_residual_block.16} parent=0 // pred_fallthru
    _
  // Predicated region
  $region18: #{recurrent_residual_block.16} parent=0 // pred_check
    _
  $region19: #{recurrent_residual_block.16} parent=0 // pred_check_branch
    %1057 = sbr.rel (0) target = $region21
  $region20: #{recurrent_residual_block.16} parent=0 // pred_region
    _
  $region21: #{recurrent_residual_block.16} parent=0 // pred_fallthru
    _

// kernel: recurrent_residual_block.17
$region0: #{recurrent_residual_block.17}
  #allocation0 [shape = 'u32[]', space=smem, size = 0x4, offset = 0x4, fixed_abs, tag = 'smem constant byte address 0x4 - core index']
  #allocation1 [shape = 'u32[144,128]{1,0:T(1,128)}', space=vmem, size = 0x12000, scoped, tag = 'internal scratch']
  #allocation2 [shape = 'f32[32,2]{1,0:T(8,128)}', space=vmem, size = 0x4000, scoped, tag = 'scratch operand']
  %s0 = inlined_call_operand.vmem [shape: f32[2,2,16,16,6], index: 0, kind: input, shape index: {}]
  %s1 = inlined_call_operand.vmem [shape: f32[2,2,6], index: 1, kind: input, shape index: {}]
  %s2 = inlined_call_operand.vmem [shape: f32[2,1,6], index: 2, kind: input, shape index: {}]
  %s3 = inlined_call_operand.vmem [shape: f32[2,2,16,16,2], index: 3, kind: output, shape index: {}]
  %s4 = sld [smem:[#allocation0]]
  $region121: #{recurrent_residual_block.17} parent=0
    _
  %s6 = ssub.s32 1, %s4
  %s7 = scalar_select 0, %s6, %s4
  $region1: #{recurrent_residual_block.17} parent=0
    #allocation3 [shape = 'u8[32768]{0}', space=vmem, size = 0x8000, scoped, tag = 'input window, operand 0']
    #allocation4 [shape = 'u8[32768]{0}', space=vmem, size = 0x8000, scoped, tag = 'output window, operand 0']
    loop: start=0, step=1, limit=34
    $region2: #{recurrent_residual_block.17} parent=1 // loop_pre_header
      _
    $region3: #{recurrent_residual_block.17} parent=1 // loop_header
      %s9 = sphi 0, %s13
      %p10 = scmp.ge.s32.totalorder %s9, 34
      %s16 = sphi 0, %s28
      %s17 = sphi 0, %s24
      %s18 = sphi 0, %s16
      %s19 = sphi 0, %s17
      %s20 = sphi 0, %s18
      %s21 = sphi 0, %s19
      %s43 = sphi 0, %s45
      %s46 = sphi 0, %s43
      %s47 = sphi 0, %s46
      %s63 = sphi 0, %s47
      %s69 = sphi 0, %s71
      %s72 = sphi 0, %s69
      %s73 = sphi 0, %s72
      %s89 = sphi 0, %s73
      %s95 = sphi 0, %s97
      %s98 = sphi 0, %s95
      %s99 = sphi 0, %s98
      %s115 = sphi 0, %s99
      %s133 = sphi 0, %s135
      %s136 = sphi 0, %s133
      %s137 = sphi 0, %s136
      %s153 = sphi 0, %s137
    $region4: #{recurrent_residual_block.17} parent=1 // loop_header_branch
      %12 = sbr.rel (%p10) target = $region8
    $region5: #{recurrent_residual_block.17} parent=1 // loop_body
      %s14 = ssub.s32 %s9, 1
      %s15 = ssub.s32 %s9, 2
      %s22 = sadd.s32 1, %s17
      %p23 = scmp.ge.s32.totalorder %s22, 16
      %s24 = scalar_select %p23, 0, %s22
      %s25 = sadd.s32 1, %s16
      %s26 = scalar_select %p23, %s25, %s16
      %p27 = scmp.ge.s32.totalorder %s26, 2
      %s28 = scalar_select %p27, 0, %s26
      %s29 = smul.u32 %s16, 2
      %s30 = ssub.s32 1, %s29
      %s31 = smul.u32 %s17, %s30
      %s32 = smul.u32 %s16, 15
      %s33 = sadd.s32 %s31, %s32
      %s34 = smul.u32 %s28, 2
      %s35 = ssub.s32 1, %s34
      %s36 = smul.u32 %s24, %s35
      %s37 = smul.u32 %s28, 15
      %s38 = sadd.s32 %s36, %s37
      %s39 = ssub.s32 %s16, %s28
      %s40 = ssub.s32 %s33, %s38
      %s41 = sor.u32 %s39, %s40
      %p42 = scmp.eq.s32.totalorder %s41, 0
      %s44 = sadd.s32 %s43, 1
      %s45 = scalar_select %p42, %s43, %s44
      %p48 = pneg %p42
      %p49 = scmp.eq.s32.totalorder %s9, 31
      %p50 = por %p48, %p49
      %p51 = scmp.ne.s32.totalorder %s43, %s46
      %p52 = scmp.eq.s32.totalorder %s9, 0
      %p53 = por %p51, %p52
      %p54 = scmp.ne.s32.totalorder %s43, %s46
      %p55 = scmp.eq.s32.totalorder %s14, 31
      %p56 = por %p54, %p55
      %p57 = scmp.ne.s32.totalorder %s46, %s47
      %p58 = scmp.eq.s32.totalorder %s14, 0
      %p59 = por %p57, %p58
      %p60 = scmp.ne.s32.totalorder %s46, %s47
      %p61 = scmp.eq.s32.totalorder %s15, 31
      %p62 = por %p60, %p61
      %p64 = scmp.ne.s32.totalorder %s47, %s63
      %p65 = scmp.eq.s32.totalorder %s15, 0
      %p66 = por %p64, %p65
      %s67 = ssub.s32 %s16, %s28
      %p68 = scmp.eq.s32.totalorder %s67, 0
      %s70 = sadd.s32 %s69, 1
      %s71 = scalar_select %p68, %s69, %s70
      %p74 = pneg %p68
      %p75 = scmp.eq.s32.totalorder %s9, 31
      %p76 = por %p74, %p75
      %p77 = scmp.ne.s32.totalorder %s69, %s72
      %p78 = scmp.eq.s32.totalorder %s9, 0
      %p79 = por %p77, %p78
      %p80 = scmp.ne.s32.totalorder %s69, %s72
      %p81 = scmp.eq.s32.totalorder %s14, 31
      %p82 = por %p80, %p81
      %p83 = scmp.ne.s32.totalorder %s72, %s73
      %p84 = scmp.eq.s32.totalorder %s14, 0
      %p85 = por %p83, %p84
      %p86 = scmp.ne.s32.totalorder %s72, %s73
      %p87 = scmp.eq.s32.totalorder %s15, 31
      %p88 = por %p86, %p87
      %p90 = scmp.ne.s32.totalorder %s73, %s89
      %p91 = scmp.eq.s32.totalorder %s15, 0
      %p92 = por %p90, %p91
      %s93 = ssub.s32 %s16, %s28
      %p94 = scmp.eq.s32.totalorder %s93, 0
      %s96 = sadd.s32 %s95, 1
      %s97 = scalar_select %p94, %s95, %s96
      %p100 = pneg %p94
      %p101 = scmp.eq.s32.totalorder %s9, 31
      %p102 = por %p100, %p101
      %p103 = scmp.ne.s32.totalorder %s95, %s98
      %p104 = scmp.eq.s32.totalorder %s9, 0
      %p105 = por %p103, %p104
      %p106 = scmp.ne.s32.totalorder %s95, %s98
      %p107 = scmp.eq.s32.totalorder %s14, 31
      %p108 = por %p106, %p107
      %p109 = scmp.ne.s32.totalorder %s98, %s99
      %p110 = scmp.eq.s32.totalorder %s14, 0
      %p111 = por %p109, %p110
      %p112 = scmp.ne.s32.totalorder %s98, %s99
      %p113 = scmp.eq.s32.totalorder %s15, 31
      %p114 = por %p112, %p113
      %p116 = scmp.ne.s32.totalorder %s99, %s115
      %p117 = scmp.eq.s32.totalorder %s15, 0
      %p118 = por %p116, %p117
      %s119 = smul.u32 %s16, 2
      %s120 = ssub.s32 1, %s119
      %s121 = smul.u32 %s17, %s120
      %s122 = smul.u32 %s16, 15
      %s123 = sadd.s32 %s121, %s122
      %s124 = smul.u32 %s28, 2
      %s125 = ssub.s32 1, %s124
      %s126 = smul.u32 %s24, %s125
      %s127 = smul.u32 %s28, 15
      %s128 = sadd.s32 %s126, %s127
      %s129 = ssub.s32 %s16, %s28
      %s130 = ssub.s32 %s123, %s128
      %s131 = sor.u32 %s129, %s130
      %p132 = scmp.eq.s32.totalorder %s131, 0
      %s134 = sadd.s32 %s133, 1
      %s135 = scalar_select %p132, %s133, %s134
      %p138 = pneg %p132
      %p139 = scmp.eq.s32.totalorder %s9, 31
      %p140 = por %p138, %p139
      %p141 = scmp.ne.s32.totalorder %s133, %s136
      %p142 = scmp.eq.s32.totalorder %s9, 0
      %p143 = por %p141, %p142
      %p144 = scmp.ne.s32.totalorder %s133, %s136
      %p145 = scmp.eq.s32.totalorder %s14, 31
      %p146 = por %p144, %p145
      %p147 = scmp.ne.s32.totalorder %s136, %s137
      %p148 = scmp.eq.s32.totalorder %s14, 0
      %p149 = por %p147, %p148
      %p150 = scmp.ne.s32.totalorder %s136, %s137
      %p151 = scmp.eq.s32.totalorder %s15, 31
      %p152 = por %p150, %p151
      %p154 = scmp.ne.s32.totalorder %s137, %s153
      %p155 = scmp.eq.s32.totalorder %s15, 0
      %p156 = por %p154, %p155
      %p157 = scmp.le.s32.totalorder 1, %s9
      %p158 = scmp.lt.s32.totalorder %s9, 33
      %p159 = pnand %p157, %p158
      %p160 = pneg %p159
      // Predicated region
      $region9: #{recurrent_residual_block.17} parent=5 // pred_check
        _
      $region10: #{recurrent_residual_block.17} parent=5 // pred_check_branch
        %162 = sbr.rel (%p159) target = $region12
      $region11: #{recurrent_residual_block.17} parent=5 // pred_region
        %s163 = ssub.s32 %s9, 1
      $region12: #{recurrent_residual_block.17} parent=5 // pred_fallthru
        _
      %p164 = scmp.lt.s32.totalorder %s9, 32
      // Predicated region
      $region13: #{recurrent_residual_block.17} parent=5 // pred_check
        %p165 = pneg %p164
      $region14: #{recurrent_residual_block.17} parent=5 // pred_check_branch
        %167 = sbr.rel (%p165) target = $region16
      $region15: #{recurrent_residual_block.17} parent=5 // pred_region
        // Predicated region
        $region17: #{recurrent_residual_block.17} parent=15 // pred_check
          %p168 = pneg %p53
        $region18: #{recurrent_residual_block.17} parent=15 // pred_check_branch
          %170 = sbr.rel (%p168) target = $region20
        $region19: #{recurrent_residual_block.17} parent=15 // pred_region
          %s171 = sand.u32 %s43, 1
          %s172 = sand.u32 %s43, 1
          %s173 = smul.addr %s172, 32
          %s174 = scalar_lea.vmem [#allocation3], %s173
          %s175 = smul.u32 %s16, 2
          %s176 = ssub.s32 1, %s175
          %s177 = smul.u32 %s17, %s176
          %s178 = smul.u32 %s16, 15
          %s179 = sadd.s32 %s177, %s178
          %s180 = smul.addr %s179, 2
          %s181 = smul.addr %s16, 64
          %s182 = sadd.s32 %s180, %s181
          %s183 = smul.addr %s182, 8
          %s184 = scalar_lea.vmem %s0, %s183
          // Predicated region
          $region21: #{recurrent_residual_block.17} parent=19 // pred_check
            _
          $region22: #{recurrent_residual_block.17} parent=19 // pred_check_branch
            %186 = sbr.rel (0) target = $region24
          $region23: #{recurrent_residual_block.17} parent=19 // pred_region
            // Predicated region
            $region25: #{recurrent_residual_block.17} parent=23 // pred_check
              _
            $region26: #{recurrent_residual_block.17} parent=23 // pred_check_branch
              %188 = sbr.rel (0) target = $region28
            $region27: #{recurrent_residual_block.17} parent=23 // pred_region
              // Predicated region
              $region40: #{recurrent_residual_block.17} parent=27 // pred_check
                _
              $region41: #{recurrent_residual_block.17} parent=27 // pred_check_branch
                %210 = sbr.rel (0) target = $region43
              $region42: #{recurrent_residual_block.17} parent=27 // pred_region
                loop: start=0, step=1, limit=1
                $region44: #{recurrent_residual_block.17} parent=42 // loop_pre_header
                  _
                $region45: #{recurrent_residual_block.17} parent=42 // loop_header
                  %s212 = sphi 0, %s216
                  %p213 = scmp.ge.s32.totalorder %s212, 1
                  %s217 = sphi %s184, %s184
                  %s218 = sphi %s174, %s174
                $region46: #{recurrent_residual_block.17} parent=42 // loop_header_branch
                  %215 = sbr.rel (%p213) target = $region50
                $region47: #{recurrent_residual_block.17} parent=42 // loop_body
                  %v219 = vld [vmem:[%s217] sm:$0xff]
                  %220 = vst [vmem:[%s218] sm:$0xff] %v219
                  %v221 = vld [vmem:[%s217 + $0x8] sm:$0xff]
                  %222 = vst [vmem:[%s218 + $0x8] sm:$0xff] %v221
                  %v223 = vld [vmem:[%s217 + $0x100] sm:$0xff]
                  %224 = vst [vmem:[%s218 + $0x10] sm:$0xff] %v223
                  %v225 = vld [vmem:[%s217 + $0x108] sm:$0xff]
                  %226 = vst [vmem:[%s218 + $0x18] sm:$0xff] %v225
                $region48: #{recurrent_residual_block.17} parent=42 // loop_footer
                  %s216 = sadd.s32 1, %s212
                $region49: #{recurrent_residual_block.17} parent=42 // loop_footer_branch
                  %211 = sbr.rel target = $region45
                $region50: #{recurrent_residual_block.17} parent=42 // loop_exit
                  _
              $region43: #{recurrent_residual_block.17} parent=27 // pred_fallthru
                _
              // Predicated region
              $region51: #{recurrent_residual_block.17} parent=27 // pred_check
                _
              $region52: #{recurrent_residual_block.17} parent=27 // pred_check_branch
                %228 = sbr.rel target = $region54
              $region53: #{recurrent_residual_block.17} parent=27 // pred_region
                _
              $region54: #{recurrent_residual_block.17} parent=27 // pred_fallthru
                _
            $region28: #{recurrent_residual_block.17} parent=23 // pred_fallthru
              _
            // Predicated region
            $region29: #{recurrent_residual_block.17} parent=23 // pred_check
              _
            $region30: #{recurrent_residual_block.17} parent=23 // pred_check_branch
              %190 = sbr.rel target = $region32
            $region31: #{recurrent_residual_block.17} parent=23 // pred_region
              %s192 = ssub.s32 256, 1
              loop: start=0, step=1, limit=1
              $region33: #{recurrent_residual_block.17} parent=31 // loop_pre_header
                _
              $region34: #{recurrent_residual_block.17} parent=31 // loop_header
                %s194 = sphi 0, %s198
                %p195 = scmp.ge.s32.totalorder %s194, 1
                %s199 = sphi %s184, %s184
                %s200 = sphi %s174, %s174
              $region35: #{recurrent_residual_block.17} parent=31 // loop_header_branch
                %197 = sbr.rel (%p195) target = $region39
              $region36: #{recurrent_residual_block.17} parent=31 // loop_body
                %v201 = vld [vmem:[%s199] sm:%s192]
                %202 = vst [vmem:[%s200] sm:%s192] %v201
                %v203 = vld [vmem:[%s199 + $0x8] sm:%s192]
                %204 = vst [vmem:[%s200 + $0x8] sm:%s192] %v203
                %v205 = vld [vmem:[%s199 + $0x100] sm:%s192]
                %206 = vst [vmem:[%s200 + $0x10] sm:%s192] %v205
                %v207 = vld [vmem:[%s199 + $0x108] sm:%s192]
                %208 = vst [vmem:[%s200 + $0x18] sm:%s192] %v207
              $region37: #{recurrent_residual_block.17} parent=31 // loop_footer
                %s198 = sadd.s32 1, %s194
              $region38: #{recurrent_residual_block.17} parent=31 // loop_footer_branch
                %193 = sbr.rel target = $region34
              $region39: #{recurrent_residual_block.17} parent=31 // loop_exit
                _
            $region32: #{recurrent_residual_block.17} parent=23 // pred_fallthru
              _
          $region24: #{recurrent_residual_block.17} parent=19 // pred_fallthru
            _
          %229 = vnop
        $region20: #{recurrent_residual_block.17} parent=15 // pred_fallthru
          _
        // Predicated region
        $region55: #{recurrent_residual_block.17} parent=15 // pred_check
          %p230 = pneg %p79
        $region56: #{recurrent_residual_block.17} parent=15 // pred_check_branch
          %232 = sbr.rel (%p230) target = $region58
        $region57: #{recurrent_residual_block.17} parent=15 // pred_region
          %p233 = scmp.lt.s32.totalorder %s16, 1
          %s234 = scalar_select %p233, %s16, 1
          %s235 = smul.addr %s234, 2
          %s236 = scalar_lea.vmem %s1, %s235
        $region58: #{recurrent_residual_block.17} parent=15 // pred_fallthru
          _
        // Predicated region
        $region59: #{recurrent_residual_block.17} parent=15 // pred_check
          %p237 = pneg %p105
        $region60: #{recurrent_residual_block.17} parent=15 // pred_check_branch
          %239 = sbr.rel (%p237) target = $region62
        $region61: #{recurrent_residual_block.17} parent=15 // pred_region
          %p240 = scmp.lt.s32.totalorder %s16, 1
          %s241 = scalar_select %p240, %s16, 1
          %s242 = scalar_lea.vmem %s2, %s241
        $region62: #{recurrent_residual_block.17} parent=15 // pred_fallthru
          _
      $region16: #{recurrent_residual_block.17} parent=5 // pred_fallthru
        _
      %p243 = scmp.le.s32.totalorder 1, %s9
      %p244 = scmp.lt.s32.totalorder %s9, 33
      %p245 = pnand %p243, %p244
      %p246 = pneg %p245
      // Predicated region
      $region63: #{recurrent_residual_block.17} parent=5 // pred_check
        _
      $region64: #{recurrent_residual_block.17} parent=5 // pred_check_branch
        %248 = sbr.rel (%p245) target = $region66
      $region65: #{recurrent_residual_block.17} parent=5 // pred_region
        %s249 = ssub.s32 %s9, 1
        %s250 = sand.u32 %s46, 1
        %s251 = sand.u32 %s46, 1
        %s252 = smul.addr %s251, 32
        %s253 = scalar_lea.vmem [#allocation3], %s252
        // Predicated region
        $region67: #{recurrent_residual_block.17} parent=65 // pred_check
          %p254 = pneg %p59
        $region68: #{recurrent_residual_block.17} parent=65 // pred_check_branch
          %256 = sbr.rel (%p254) target = $region70
        $region69: #{recurrent_residual_block.17} parent=65 // pred_region
          _
        $region70: #{recurrent_residual_block.17} parent=65 // pred_fallthru
          _
        %s257 = sand.u32 %s46, 1
        %s258 = sand.u32 %s46, 1
        %s259 = smul.addr %s258, 32
        %s260 = scalar_lea.vmem [#allocation3], %s259
        %p261 = pneg %p59
        %p262 = pneg %p56
        %p263 = scmp.lt.s32.totalorder %s18, 1
        %s264 = scalar_select %p263, %s18, 1
        %s265 = smul.addr %s264, 2
        %s266 = scalar_lea.vmem %s1, %s265
        %p267 = pneg %p85
        %p268 = pneg %p82
        %p269 = scmp.lt.s32.totalorder %s18, 1
        %s270 = scalar_select %p269, %s18, 1
        %s271 = scalar_lea.vmem %s2, %s270
        %p272 = pneg %p111
        %p273 = pneg %p108
        %p274 = pneg %p149
        %p275 = pneg %p146
        %s276 = sand.u32 %s136, 1
        %s277 = sand.u32 %s136, 1
        %s278 = smul.addr %s277, 32
        %s279 = scalar_lea.vmem [#allocation4], %s278
        %s280 = smul.u32 %s18, 2
        %s281 = ssub.s32 1, %s280
        %s282 = smul.u32 %s19, %s281
        %s283 = smul.u32 %s18, 15
        %s284 = sadd.s32 %s282, %s283
        %p285 = scmp.lt.s32.totalorder %s18, 1
        %s286 = scalar_select %p285, %s18, 1
        %s287 = smul.addr %s286, 2
        %s288 = scalar_lea.vmem %s1, %s287
        %p289 = scmp.lt.s32.totalorder %s18, 1
        %s290 = scalar_select %p289, %s18, 1
        %s291 = scalar_lea.vmem %s2, %s290
        %s292 = smul.u32 %s18, 2
        %s293 = ssub.s32 1, %s292
        %s294 = smul.u32 %s19, %s293
        %s295 = smul.u32 %s18, 15
        %s296 = sadd.s32 %s294, %s295
        %p297 = scmp.eq.s32.totalorder %s19, 0
        // Predicated region
        $region71: #{recurrent_residual_block.17} parent=65 // pred_check
          %p298 = pneg %p297
        $region72: #{recurrent_residual_block.17} parent=65 // pred_check_branch
          %300 = sbr.rel (%p298) target = $region74
        $region73: #{recurrent_residual_block.17} parent=65 // pred_region
          %vm301 = vcmask 15360
          %302 = vst.msk [vmem:[#allocation2] sm:$0xff] %vm301, 0.0
          %303 = vst.msk [vmem:[#allocation2 + $0x8] sm:$0xff] %vm301, 0.0
          %304 = vst.msk [vmem:[#allocation2 + $0x10] sm:$0xff] %vm301, 0.0
          %305 = vst.msk [vmem:[#allocation2 + $0x18] sm:$0xff] %vm301, 0.0
        $region74: #{recurrent_residual_block.17} parent=65 // pred_fallthru
          _
        %v306 = vld [vmem:[%s253] sm:$0xff]
        %v307 = vld [vmem:[%s253 + $0x8] sm:$0xff]
        %v308 = vld [vmem:[%s253 + $0x10] sm:$0xff]
        %v309 = vld [vmem:[%s253 + $0x18] sm:$0xff]
        %v310 = vld [vmem:[#allocation2] sm:$0xff]
        %v311 = vld [vmem:[#allocation2 + $0x8] sm:$0xff]
        %v312 = vld [vmem:[#allocation2 + $0x10] sm:$0xff]
        %v313 = vld [vmem:[#allocation2 + $0x18] sm:$0xff]
        %v314 = vld [vmem:[%s288] sm:$0x3]
        %v315 = vld [vmem:[%s291] sm:$0x1]
        %v317 = vlaneseq
        %v318 = vshrl.u32 %v317, 7
        %v319 = vsub.s32 0, %v318
        %v320 = vrot.slane %v315, %v319
        %vm322 = vcmask 15360
        %v324 = vsel %vm322, %v310, 0
        %v327 = vsel %vm322, %v311, 0
        %v330 = vsel %vm322, %v312, 0
        %v333 = vsel %vm322, %v313, 0
        %vm335 = vcmask 1041408
        %v337 = vsel %vm335, %v314, 0
        %339 = vmatprep.subr.mxu0 0.0
        %340 = vmatpush1.msra.mxu0 0.0
        %341 = vmatprep.subr.mxu0 0.0
        %342 = vmatpush1.msra.mxu0 0.0
        %343 = vmatprep.subr.mxu0 0.0
        %344 = vmatpush1.msra.mxu0 0.0
        %345 = vmatprep.subr.mxu0 0.0
        %346 = vmatpush1.msra.mxu0 0.0
        %347 = vmatprep.subr.mxu0 0.0
        %348 = vmatpush1.msra.mxu0 0.0
        %349 = vmatprep.subr.mxu0 0.0
        %350 = vmatpush1.msra.mxu0 0.0
        %351 = vmatprep.subr.mxu0 0.0
        %352 = vmatpush1.msra.mxu0 0.0
        %353 = vmatprep.subr.mxu0 0.0
        %354 = vmatpush1.msra.mxu0 0.0
        %355 = vmatprep.subr.mxu0 0.0
        %356 = vmatpush1.msra.mxu0 0.0
        %357 = vmatprep.subr.mxu0 0.0
        %358 = vmatpush1.msra.mxu0 0.0
        %359 = vmatprep.subr.mxu0 0.0
        %360 = vmatpush1.msra.mxu0 0.0
        %361 = vmatprep.subr.mxu0 0.0
        %362 = vmatpush1.msra.mxu0 0.0
        %363 = vmatprep.subr.mxu0 0.0
        %364 = vmatpush1.msra.mxu0 0.0
        %365 = vmatprep.subr.mxu0 0.0
        %366 = vmatpush1.msra.mxu0 0.0
        %367 = vmatprep.subr.mxu0 0.0
        %368 = vmatpush1.msra.mxu0 0.0
        %369 = vmatprep.subr.mxu0 0.0
        %370 = vmatpush1.msra.mxu0 %v337
        %371 = vmatprep.subr.mxu0 0.0
        %372 = vmatpush2.msra.mxu0 0.0
        %373 = vmatprep.subr.mxu0 0.0
        %374 = vmatpush2.msra.mxu0 0.0
        %375 = vmatprep.subr.mxu0 0.0
        %376 = vmatpush2.msra.mxu0 0.0
        %377 = vmatprep.subr.mxu0 0.0
        %378 = vmatpush2.msra.mxu0 0.0
        %379 = vmatprep.subr.mxu0 0.0
        %380 = vmatpush2.msra.mxu0 0.0
        %381 = vmatprep.subr.mxu0 0.0
        %382 = vmatpush2.msra.mxu0 0.0
        %383 = vmatprep.subr.mxu0 0.0
        %384 = vmatpush2.msra.mxu0 0.0
        %385 = vmatprep.subr.mxu0 0.0
        %386 = vmatpush2.msra.mxu0 0.0
        %387 = vmatprep.subr.mxu0 0.0
        %388 = vmatpush2.msra.mxu0 0.0
        %389 = vmatprep.subr.mxu0 0.0
        %390 = vmatpush2.msra.mxu0 0.0
        %391 = vmatprep.subr.mxu0 0.0
        %392 = vmatpush2.msra.mxu0 0.0
        %393 = vmatprep.subr.mxu0 0.0
        %394 = vmatpush2.msra.mxu0 0.0
        %395 = vmatprep.subr.mxu0 0.0
        %396 = vmatpush2.msra.mxu0 0.0
        %397 = vmatprep.subr.mxu0 0.0
        %398 = vmatpush2.msra.mxu0 0.0
        %399 = vmatprep.subr.mxu0 0.0
        %400 = vmatpush2.msra.mxu0 0.0
        %401 = vmatprep.subr.mxu0 0.0
        %402 = vmatpush2.msra.mxu0 0.0
        %403 = vmatprep.mubr.f32.mxu0 0.0
        %404 = vmatmul.mubr.f32.gmra.mxu0 %v324
        %v405 = vpop.f32.mrf.mxu0
        %v406 = vadd.f32 %v320, %v405
        %v407 = vpop.f32.mrf.mxu0
        %408 = vmatprep.mubr.f32.mxu0 0.0
        %409 = vmatmul.mubr.f32.gmra.mxu0 %v327
        %v410 = vpop.f32.mrf.mxu0
        %v411 = vadd.f32 %v320, %v410
        %v412 = vpop.f32.mrf.mxu0
        %413 = vmatprep.mubr.f32.mxu0 0.0
        %414 = vmatmul.mubr.f32.gmra.mxu0 %v330
        %v415 = vpop.f32.mrf.mxu0
        %v416 = vadd.f32 %v320, %v415
        %v417 = vpop.f32.mrf.mxu0
        %418 = vmatprep.mubr.f32.mxu0 0.0
        %419 = vmatmul.mubr.f32.gmra.mxu0 %v333
        %v420 = vpop.f32.mrf.mxu0
        %v421 = vadd.f32 %v320, %v420
        %v422 = vpop.f32.mrf.mxu0
        %423 = vdwg.mxu0
        %v424 = vadd.f32 %v306, %v406
        %v425 = vadd.f32 %v307, %v411
        %v426 = vadd.f32 %v308, %v416
        %v427 = vadd.f32 %v309, %v421
        %v428 = vxor.u32 %v424, 2147483648
        %v429 = vxor.u32 %v425, 2147483648
        %v430 = vxor.u32 %v426, 2147483648
        %v431 = vxor.u32 %v427, 2147483648
        %v432 = vmul.f32 %v428, 1.442695
        %v433 = vpow.pop %v432
        %v434 = vmul.f32 %v429, 1.442695
        %v435 = vpow.pop %v434
        %v436 = vmul.f32 %v430, 1.442695
        %v437 = vpow.pop %v436
        %v438 = vmul.f32 %v431, 1.442695
        %v439 = vpow.pop %v438
        %v440 = vadd.f32 %v433, 1.0
        %v441 = vadd.f32 %v435, 1.0
        %v442 = vadd.f32 %v437, 1.0
        %v443 = vadd.f32 %v439, 1.0
        %v444 = vrcp.pop %v440
        %v445 = vmul.f32 1.0, %v444
        %v446 = vrcp.pop %v441
        %v447 = vmul.f32 1.0, %v446
        %v448 = vrcp.pop %v442
        %v449 = vmul.f32 1.0, %v448
        %v450 = vrcp.pop %v443
        %v451 = vmul.f32 1.0, %v450
        %456 = vrot.lane.b32.xlu0 %v406, 124
        %v457 = vpop.permute.xlu0 %456
        %458 = vrot.lane.b32.xlu0 %v411, 124
        %v459 = vpop.permute.xlu0 %458
        %460 = vrot.lane.b32.xlu0 %v416, 124
        %v461 = vpop.permute.xlu0 %460
        %462 = vrot.lane.b32.xlu0 %v421, 124
        %v463 = vpop.permute.xlu0 %462
        %v468 = vmul.f32 %v445, %v457
        %v469 = vmul.f32 %v447, %v459
        %v470 = vmul.f32 %v449, %v461
        %v471 = vmul.f32 %v451, %v463
        %476 = vrot.lane.b32.xlu0 %v468, 4
        %v477 = vpop.permute.xlu0 %476
        %478 = vrot.lane.b32.xlu0 %v469, 4
        %v479 = vpop.permute.xlu0 %478
        %480 = vrot.lane.b32.xlu0 %v470, 4
        %v481 = vpop.permute.xlu0 %480
        %482 = vrot.lane.b32.xlu0 %v471, 4
        %v483 = vpop.permute.xlu0 %482
        %v488 = vadd.f32 %v306, %v477
        %v489 = vadd.f32 %v307, %v479
        %v490 = vadd.f32 %v308, %v481
        %v491 = vadd.f32 %v309, %v483
        %v492 = vtanh.pop %v488
        %v493 = vtanh.pop %v489
        %v494 = vtanh.pop %v490
        %v495 = vtanh.pop %v491
        %v496 = vsub.f32 1.0, %v445
        %v497 = vsub.f32 1.0, %v447
        %v498 = vsub.f32 1.0, %v449
        %v499 = vsub.f32 1.0, %v451
        %504 = vrot.lane.b32.xlu0 %v492, 126
        %v505 = vpop.permute.xlu0 %504
        %506 = vrot.lane.b32.xlu0 %v493, 126
        %v507 = vpop.permute.xlu0 %506
        %508 = vrot.lane.b32.xlu0 %v494, 126
        %v509 = vpop.permute.xlu0 %508
        %510 = vrot.lane.b32.xlu0 %v495, 126
        %v511 = vpop.permute.xlu0 %510
        %v516 = vmul.f32 %v496, %v505
        %v517 = vmul.f32 %v497, %v507
        %v518 = vmul.f32 %v498, %v509
        %v519 = vmul.f32 %v499, %v511
        %520 = vrot.lane.b32.xlu0 %v310, 2
        %v521 = vpop.permute.xlu0 %520
        %522 = vrot.lane.b32.xlu0 %v311, 2
        %v523 = vpop.permute.xlu0 %522
        %524 = vrot.lane.b32.xlu0 %v312, 2
        %v525 = vpop.permute.xlu0 %524
        %526 = vrot.lane.b32.xlu0 %v313, 2
        %v527 = vpop.permute.xlu0 %526
        %v532 = vmul.f32 %v445, %v521
        %v533 = vmul.f32 %v447, %v523
        %v534 = vmul.f32 %v449, %v525
        %v535 = vmul.f32 %v451, %v527
        %v536 = vadd.f32 %v516, %v532
        %v537 = vadd.f32 %v517, %v533
        %v538 = vadd.f32 %v518, %v534
        %v539 = vadd.f32 %v519, %v535
        %544 = vrot.lane.b32.xlu0 %v536, 126
        %v545 = vpop.permute.xlu0 %544
        %546 = vrot.lane.b32.xlu0 %v537, 126
        %v547 = vpop.permute.xlu0 %546
        %548 = vrot.lane.b32.xlu0 %v538, 126
        %v549 = vpop.permute.xlu0 %548
        %550 = vrot.lane.b32.xlu0 %v539, 126
        %v551 = vpop.permute.xlu0 %550
        %556 = vst.msk [vmem:[#allocation2] sm:$0xff] %vm322, %v545
        %557 = vst.msk [vmem:[#allocation2 + $0x8] sm:$0xff] %vm322, %v547
        %558 = vst.msk [vmem:[#allocation2 + $0x10] sm:$0xff] %vm322, %v549
        %559 = vst.msk [vmem:[#allocation2 + $0x18] sm:$0xff] %vm322, %v551
        %560 = vst.msk [vmem:[%s279] sm:$0xff] %vm322, %v545
        %561 = vst.msk [vmem:[%s279 + $0x8] sm:$0xff] %vm322, %v547
        %562 = vst.msk [vmem:[%s279 + $0x10] sm:$0xff] %vm322, %v549
        %563 = vst.msk [vmem:[%s279 + $0x18] sm:$0xff] %vm322, %v551
        %s564 = sand.u32 %s136, 1
        %s565 = sand.u32 %s136, 1
        %s566 = smul.addr %s565, 32
        %s567 = scalar_lea.vmem [#allocation4], %s566
        // Predicated region
        $region75: #{recurrent_residual_block.17} parent=65 // pred_check
          %p568 = pneg %p146
        $region76: #{recurrent_residual_block.17} parent=65 // pred_check_branch
          %570 = sbr.rel (%p568) target = $region78
        $region77: #{recurrent_residual_block.17} parent=65 // pred_region
          %s571 = smul.u32 %s18, 2
          %s572 = ssub.s32 1, %s571
          %s573 = smul.u32 %s19, %s572
          %s574 = smul.u32 %s18, 15
          %s575 = sadd.s32 %s573, %s574
          %s576 = smul.addr %s575, 2
          %s577 = smul.addr %s18, 64
          %s578 = sadd.s32 %s576, %s577
          %s579 = smul.addr %s578, 8
          %s580 = scalar_lea.vmem %s3, %s579
          // Predicated region
          $region79: #{recurrent_residual_block.17} parent=77 // pred_check
            _
          $region80: #{recurrent_residual_block.17} parent=77 // pred_check_branch
            %582 = sbr.rel (0) target = $region82
          $region81: #{recurrent_residual_block.17} parent=77 // pred_region
            // Predicated region
            $region83: #{recurrent_residual_block.17} parent=81 // pred_check
              _
            $region84: #{recurrent_residual_block.17} parent=81 // pred_check_branch
              %584 = sbr.rel (0) target = $region86
            $region85: #{recurrent_residual_block.17} parent=81 // pred_region
              // Predicated region
              $region98: #{recurrent_residual_block.17} parent=85 // pred_check
                _
              $region99: #{recurrent_residual_block.17} parent=85 // pred_check_branch
                %606 = sbr.rel (0) target = $region101
              $region100: #{recurrent_residual_block.17} parent=85 // pred_region
                loop: start=0, step=1, limit=1
                $region102: #{recurrent_residual_block.17} parent=100 // loop_pre_header
                  _
                $region103: #{recurrent_residual_block.17} parent=100 // loop_header
                  %s608 = sphi 0, %s612
                  %p609 = scmp.ge.s32.totalorder %s608, 1
                  %s613 = sphi %s567, %s567
                  %s614 = sphi %s580, %s580
                $region104: #{recurrent_residual_block.17} parent=100 // loop_header_branch
                  %611 = sbr.rel (%p609) target = $region108
                $region105: #{recurrent_residual_block.17} parent=100 // loop_body
                  %v615 = vld [vmem:[%s613] sm:$0xff]
                  %616 = vst [vmem:[%s614] sm:$0xff] %v615
                  %v617 = vld [vmem:[%s613 + $0x8] sm:$0xff]
                  %618 = vst [vmem:[%s614 + $0x8] sm:$0xff] %v617
                  %v619 = vld [vmem:[%s613 + $0x10] sm:$0xff]
                  %620 = vst [vmem:[%s614 + $0x100] sm:$0xff] %v619
                  %v621 = vld [vmem:[%s613 + $0x18] sm:$0xff]
                  %622 = vst [vmem:[%s614 + $0x108] sm:$0xff] %v621
                $region106: #{recurrent_residual_block.17} parent=100 // loop_footer
                  %s612 = sadd.s32 1, %s608
                $region107: #{recurrent_residual_block.17} parent=100 // loop_footer_branch
                  %607 = sbr.rel target = $region103
                $region108: #{recurrent_residual_block.17} parent=100 // loop_exit
                  _
              $region101: #{recurrent_residual_block.17} parent=85 // pred_fallthru
                _
              // Predicated region
              $region109: #{recurrent_residual_block.17} parent=85 // pred_check
                _
              $region110: #{recurrent_residual_block.17} parent=85 // pred_check_branch
                %624 = sbr.rel target = $region112
              $region111: #{recurrent_residual_block.17} parent=85 // pred_region
                _
              $region112: #{recurrent_residual_block.17} parent=85 // pred_fallthru
                _
            $region86: #{recurrent_residual_block.17} parent=81 // pred_fallthru
              _
            // Predicated region
            $region87: #{recurrent_residual_block.17} parent=81 // pred_check
              _
            $region88: #{recurrent_residual_block.17} parent=81 // pred_check_branch
              %586 = sbr.rel target = $region90
            $region89: #{recurrent_residual_block.17} parent=81 // pred_region
              %s588 = ssub.s32 256, 1
              loop: start=0, step=1, limit=1
              $region91: #{recurrent_residual_block.17} parent=89 // loop_pre_header
                _
              $region92: #{recurrent_residual_block.17} parent=89 // loop_header
                %s590 = sphi 0, %s594
                %p591 = scmp.ge.s32.totalorder %s590, 1
                %s595 = sphi %s567, %s567
                %s596 = sphi %s580, %s580
              $region93: #{recurrent_residual_block.17} parent=89 // loop_header_branch
                %593 = sbr.rel (%p591) target = $region97
              $region94: #{recurrent_residual_block.17} parent=89 // loop_body
                %v597 = vld [vmem:[%s595] sm:%s588]
                %598 = vst [vmem:[%s596] sm:%s588] %v597
                %v599 = vld [vmem:[%s595 + $0x8] sm:%s588]
                %600 = vst [vmem:[%s596 + $0x8] sm:%s588] %v599
                %v601 = vld [vmem:[%s595 + $0x10] sm:%s588]
                %602 = vst [vmem:[%s596 + $0x100] sm:%s588] %v601
                %v603 = vld [vmem:[%s595 + $0x18] sm:%s588]
                %604 = vst [vmem:[%s596 + $0x108] sm:%s588] %v603
              $region95: #{recurrent_residual_block.17} parent=89 // loop_footer
                %s594 = sadd.s32 1, %s590
              $region96: #{recurrent_residual_block.17} parent=89 // loop_footer_branch
                %589 = sbr.rel target = $region92
              $region97: #{recurrent_residual_block.17} parent=89 // loop_exit
                _
            $region90: #{recurrent_residual_block.17} parent=81 // pred_fallthru
              _
          $region82: #{recurrent_residual_block.17} parent=77 // pred_fallthru
            _
          %625 = vnop
        $region78: #{recurrent_residual_block.17} parent=65 // pred_fallthru
          _
      $region66: #{recurrent_residual_block.17} parent=5 // pred_fallthru
        _
      %p626 = scmp.le.s32.totalorder 2, %s9
      // Predicated region
      $region113: #{recurrent_residual_block.17} parent=5 // pred_check
        %p627 = pneg %p626
      $region114: #{recurrent_residual_block.17} parent=5 // pred_check_branch
        %629 = sbr.rel (%p627) target = $region116
      $region115: #{recurrent_residual_block.17} parent=5 // pred_region
        %s630 = ssub.s32 %s9, 2
        // Predicated region
        $region117: #{recurrent_residual_block.17} parent=115 // pred_check
          %p631 = pneg %p152
        $region118: #{recurrent_residual_block.17} parent=115 // pred_check_branch
          %633 = sbr.rel (%p631) target = $region120
        $region119: #{recurrent_residual_block.17} parent=115 // pred_region
          %s634 = sand.u32 %s137, 1
          %s635 = sand.u32 %s137, 1
          %s636 = smul.addr %s635, 32
          %s637 = scalar_lea.vmem [#allocation4], %s636
        $region120: #{recurrent_residual_block.17} parent=115 // pred_fallthru
          _
      $region116: #{recurrent_residual_block.17} parent=5 // pred_fallthru
        _
    $region6: #{recurrent_residual_block.17} parent=1 // loop_footer
      %s13 = sadd.s32 1, %s9
    $region7: #{recurrent_residual_block.17} parent=1 // loop_footer_branch
      %8 = sbr.rel target = $region3
    $region8: #{recurrent_residual_block.17} parent=1 // loop_exit
      _

// kernel: recurrent_residual_block.19
$region0: #{recurrent_residual_block.19}
  #allocation0 [shape = 'u32[]', space=smem, size = 0x4, offset = 0x4, fixed_abs, tag = 'smem constant byte address 0x4 - core index']
  #allocation1 [shape = 'u32[144,128]{1,0:T(1,128)}', space=vmem, size = 0x12000, scoped, tag = 'internal scratch']
  #allocation2 [shape = 'f32[32,2]{1,0:T(8,128)}', space=vmem, size = 0x4000, scoped, tag = 'scratch operand']
  %s0 = inlined_call_operand.vmem [shape: f32[2,32,16,1,6], index: 0, kind: input, shape index: {}]
  %s1 = inlined_call_operand.vmem [shape: f32[2,2,6], index: 1, kind: input, shape index: {}]
  %s2 = inlined_call_operand.vmem [shape: f32[2,1,6], index: 2, kind: input, shape index: {}]
  %s3 = inlined_call_operand.vmem [shape: f32[2,32,16,1,2], index: 3, kind: output, shape index: {}]
  %s4 = sld [smem:[#allocation0]]
  $region127: #{recurrent_residual_block.19} parent=0
    _
  %s6 = ssub.s32 1, %s4
  %s7 = scalar_select 0, %s6, %s4
  $region1: #{recurrent_residual_block.19} parent=0
    #allocation3 [shape = 'u8[32768]{0}', space=vmem, size = 0x8000, scoped, tag = 'input window, operand 0']
    #allocation4 [shape = 'u8[32768]{0}', space=vmem, size = 0x8000, scoped, tag = 'output window, operand 0']
    loop: start=0, step=1, limit=34
    $region2: #{recurrent_residual_block.19} parent=1 // loop_pre_header
      _
    $region3: #{recurrent_residual_block.19} parent=1 // loop_header
      %s9 = sphi 0, %s13
      %p10 = scmp.ge.s32.totalorder %s9, 34
      %s16 = sphi 0, %s28
      %s17 = sphi 0, %s24
      %s18 = sphi 0, %s16
      %s19 = sphi 0, %s17
      %s20 = sphi 0, %s18
      %s21 = sphi 0, %s19
      %s43 = sphi 0, %s45
      %s46 = sphi 0, %s43
      %s47 = sphi 0, %s46
      %s63 = sphi 0, %s47
      %s69 = sphi 0, %s71
      %s72 = sphi 0, %s69
      %s73 = sphi 0, %s72
      %s89 = sphi 0, %s73
      %s95 = sphi 0, %s97
      %s98 = sphi 0, %s95
      %s99 = sphi 0, %s98
      %s115 = sphi 0, %s99
      %s133 = sphi 0, %s135
      %s136 = sphi 0, %s133
      %s137 = sphi 0, %s136
      %s153 = sphi 0, %s137
    $region4: #{recurrent_residual_block.19} parent=1 // loop_header_branch
      %12 = sbr.rel (%p10) target = $region8
    $region5: #{recurrent_residual_block.19} parent=1 // loop_body
      %s14 = ssub.s32 %s9, 1
      %s15 = ssub.s32 %s9, 2
      %s22 = sadd.s32 1, %s17
      %p23 = scmp.ge.s32.totalorder %s22, 16
      %s24 = scalar_select %p23, 0, %s22
      %s25 = sadd.s32 1, %s16
      %s26 = scalar_select %p23, %s25, %s16
      %p27 = scmp.ge.s32.totalorder %s26, 2
      %s28 = scalar_select %p27, 0, %s26
      %s29 = smul.u32 %s16, 2
      %s30 = ssub.s32 1, %s29
      %s31 = smul.u32 %s17, %s30
      %s32 = smul.u32 %s16, 15
      %s33 = sadd.s32 %s31, %s32
      %s34 = smul.u32 %s28, 2
      %s35 = ssub.s32 1, %s34
      %s36 = smul.u32 %s24, %s35
      %s37 = smul.u32 %s28, 15
      %s38 = sadd.s32 %s36, %s37
      %s39 = ssub.s32 %s16, %s28
      %s40 = ssub.s32 %s33, %s38
      %s41 = sor.u32 %s39, %s40
      %p42 = scmp.eq.s32.totalorder %s41, 0
      %s44 = sadd.s32 %s43, 1
      %s45 = scalar_select %p42, %s43, %s44
      %p48 = pneg %p42
      %p49 = scmp.eq.s32.totalorder %s9, 31
      %p50 = por %p48, %p49
      %p51 = scmp.ne.s32.totalorder %s43, %s46
      %p52 = scmp.eq.s32.totalorder %s9, 0
      %p53 = por %p51, %p52
      %p54 = scmp.ne.s32.totalorder %s43, %s46
      %p55 = scmp.eq.s32.totalorder %s14, 31
      %p56 = por %p54, %p55
      %p57 = scmp.ne.s32.totalorder %s46, %s47
      %p58 = scmp.eq.s32.totalorder %s14, 0
      %p59 = por %p57, %p58
      %p60 = scmp.ne.s32.totalorder %s46, %s47
      %p61 = scmp.eq.s32.totalorder %s15, 31
      %p62 = por %p60, %p61
      %p64 = scmp.ne.s32.totalorder %s47, %s63
      %p65 = scmp.eq.s32.totalorder %s15, 0
      %p66 = por %p64, %p65
      %s67 = ssub.s32 %s16, %s28
      %p68 = scmp.eq.s32.totalorder %s67, 0
      %s70 = sadd.s32 %s69, 1
      %s71 = scalar_select %p68, %s69, %s70
      %p74 = pneg %p68
      %p75 = scmp.eq.s32.totalorder %s9, 31
      %p76 = por %p74, %p75
      %p77 = scmp.ne.s32.totalorder %s69, %s72
      %p78 = scmp.eq.s32.totalorder %s9, 0
      %p79 = por %p77, %p78
      %p80 = scmp.ne.s32.totalorder %s69, %s72
      %p81 = scmp.eq.s32.totalorder %s14, 31
      %p82 = por %p80, %p81
      %p83 = scmp.ne.s32.totalorder %s72, %s73
      %p84 = scmp.eq.s32.totalorder %s14, 0
      %p85 = por %p83, %p84
      %p86 = scmp.ne.s32.totalorder %s72, %s73
      %p87 = scmp.eq.s32.totalorder %s15, 31
      %p88 = por %p86, %p87
      %p90 = scmp.ne.s32.totalorder %s73, %s89
      %p91 = scmp.eq.s32.totalorder %s15, 0
      %p92 = por %p90, %p91
      %s93 = ssub.s32 %s16, %s28
      %p94 = scmp.eq.s32.totalorder %s93, 0
      %s96 = sadd.s32 %s95, 1
      %s97 = scalar_select %p94, %s95, %s96
      %p100 = pneg %p94
      %p101 = scmp.eq.s32.totalorder %s9, 31
      %p102 = por %p100, %p101
      %p103 = scmp.ne.s32.totalorder %s95, %s98
      %p104 = scmp.eq.s32.totalorder %s9, 0
      %p105 = por %p103, %p104
      %p106 = scmp.ne.s32.totalorder %s95, %s98
      %p107 = scmp.eq.s32.totalorder %s14, 31
      %p108 = por %p106, %p107
      %p109 = scmp.ne.s32.totalorder %s98, %s99
      %p110 = scmp.eq.s32.totalorder %s14, 0
      %p111 = por %p109, %p110
      %p112 = scmp.ne.s32.totalorder %s98, %s99
      %p113 = scmp.eq.s32.totalorder %s15, 31
      %p114 = por %p112, %p113
      %p116 = scmp.ne.s32.totalorder %s99, %s115
      %p117 = scmp.eq.s32.totalorder %s15, 0
      %p118 = por %p116, %p117
      %s119 = smul.u32 %s16, 2
      %s120 = ssub.s32 1, %s119
      %s121 = smul.u32 %s17, %s120
      %s122 = smul.u32 %s16, 15
      %s123 = sadd.s32 %s121, %s122
      %s124 = smul.u32 %s28, 2
      %s125 = ssub.s32 1, %s124
      %s126 = smul.u32 %s24, %s125
      %s127 = smul.u32 %s28, 15
      %s128 = sadd.s32 %s126, %s127
      %s129 = ssub.s32 %s16, %s28
      %s130 = ssub.s32 %s123, %s128
      %s131 = sor.u32 %s129, %s130
      %p132 = scmp.eq.s32.totalorder %s131, 0
      %s134 = sadd.s32 %s133, 1
      %s135 = scalar_select %p132, %s133, %s134
      %p138 = pneg %p132
      %p139 = scmp.eq.s32.totalorder %s9, 31
      %p140 = por %p138, %p139
      %p141 = scmp.ne.s32.totalorder %s133, %s136
      %p142 = scmp.eq.s32.totalorder %s9, 0
      %p143 = por %p141, %p142
      %p144 = scmp.ne.s32.totalorder %s133, %s136
      %p145 = scmp.eq.s32.totalorder %s14, 31
      %p146 = por %p144, %p145
      %p147 = scmp.ne.s32.totalorder %s136, %s137
      %p148 = scmp.eq.s32.totalorder %s14, 0
      %p149 = por %p147, %p148
      %p150 = scmp.ne.s32.totalorder %s136, %s137
      %p151 = scmp.eq.s32.totalorder %s15, 31
      %p152 = por %p150, %p151
      %p154 = scmp.ne.s32.totalorder %s137, %s153
      %p155 = scmp.eq.s32.totalorder %s15, 0
      %p156 = por %p154, %p155
      %p157 = scmp.le.s32.totalorder 1, %s9
      %p158 = scmp.lt.s32.totalorder %s9, 33
      %p159 = pnand %p157, %p158
      %p160 = pneg %p159
      // Predicated region
      $region9: #{recurrent_residual_block.19} parent=5 // pred_check
        _
      $region10: #{recurrent_residual_block.19} parent=5 // pred_check_branch
        %162 = sbr.rel (%p159) target = $region12
      $region11: #{recurrent_residual_block.19} parent=5 // pred_region
        %s163 = ssub.s32 %s9, 1
      $region12: #{recurrent_residual_block.19} parent=5 // pred_fallthru
        _
      %p164 = scmp.lt.s32.totalorder %s9, 32
      // Predicated region
      $region13: #{recurrent_residual_block.19} parent=5 // pred_check
        %p165 = pneg %p164
      $region14: #{recurrent_residual_block.19} parent=5 // pred_check_branch
        %167 = sbr.rel (%p165) target = $region16
      $region15: #{recurrent_residual_block.19} parent=5 // pred_region
        // Predicated region
        $region17: #{recurrent_residual_block.19} parent=15 // pred_check
          %p168 = pneg %p53
        $region18: #{recurrent_residual_block.19} parent=15 // pred_check_branch
          %170 = sbr.rel (%p168) target = $region20
        $region19: #{recurrent_residual_block.19} parent=15 // pred_region
          %s171 = sand.u32 %s43, 1
          %s172 = sand.u32 %s43, 1
          %s173 = smul.addr %s172, 32
          %s174 = scalar_lea.vmem [#allocation3], %s173
          %s175 = smul.u32 %s16, 2
          %s176 = ssub.s32 1, %s175
          %s177 = smul.u32 %s17, %s176
          %s178 = smul.u32 %s16, 15
          %s179 = sadd.s32 %s177, %s178
          %s180 = smul.addr %s16, 512
          %s181 = sadd.s32 %s179, %s180
          %s182 = scalar_lea.vmem %s0, %s181
          // Predicated region
          $region21: #{recurrent_residual_block.19} parent=19 // pred_check
            _
          $region22: #{recurrent_residual_block.19} parent=19 // pred_check_branch
            %184 = sbr.rel (0) target = $region24
          $region23: #{recurrent_residual_block.19} parent=19 // pred_region
            // Predicated region
            $region25: #{recurrent_residual_block.19} parent=23 // pred_check
              _
            $region26: #{recurrent_residual_block.19} parent=23 // pred_check_branch
              %186 = sbr.rel target = $region28
            $region27: #{recurrent_residual_block.19} parent=23 // pred_region
              // Predicated region
              $region40: #{recurrent_residual_block.19} parent=27 // pred_check
                _
              $region41: #{recurrent_residual_block.19} parent=27 // pred_check_branch
                %264 = sbr.rel (0) target = $region43
              $region42: #{recurrent_residual_block.19} parent=27 // pred_region
                loop: start=0, step=1, limit=1
                $region44: #{recurrent_residual_block.19} parent=42 // loop_pre_header
                  _
                $region45: #{recurrent_residual_block.19} parent=42 // loop_header
                  %s266 = sphi 0, %s270
                  %p267 = scmp.ge.s32.totalorder %s266, 1
                  %s271 = sphi %s182, %s182
                  %s272 = sphi %s174, %s174
                $region46: #{recurrent_residual_block.19} parent=42 // loop_header_branch
                  %269 = sbr.rel (%p267) target = $region50
                $region47: #{recurrent_residual_block.19} parent=42 // loop_body
                  _
                $region48: #{recurrent_residual_block.19} parent=42 // loop_footer
                  %s270 = sadd.s32 1, %s266
                $region49: #{recurrent_residual_block.19} parent=42 // loop_footer_branch
                  %265 = sbr.rel target = $region45
                $region50: #{recurrent_residual_block.19} parent=42 // loop_exit
                  _
                %s274 = ssub.s32 2, 1
                loop: start=0, step=1, limit=1
                $region51: #{recurrent_residual_block.19} parent=42 // loop_pre_header
                  _
                $region52: #{recurrent_residual_block.19} parent=42 // loop_header
                  %s276 = sphi 0, %s280
                  %p277 = scmp.ge.s32.totalorder %s276, 1
                  %s281 = sphi %s182, %s182
                  %s282 = sphi %s174, %s174
                $region53: #{recurrent_residual_block.19} parent=42 // loop_header_branch
                  %279 = sbr.rel (%p277) target = $region57
                $region54: #{recurrent_residual_block.19} parent=42 // loop_body
                  %v283 = vld [vmem:[%s281] sm:%s274]
                  %284 = vst [vmem:[%s282] sm:%s274] %v283
                  %v285 = vld [vmem:[%s281 + $0x10] sm:%s274]
                  %286 = vst [vmem:[%s282 + $0x1] sm:%s274] %v285
                  %v287 = vld [vmem:[%s281 + $0x20] sm:%s274]
                  %288 = vst [vmem:[%s282 + $0x2] sm:%s274] %v287
                  %v289 = vld [vmem:[%s281 + $0x30] sm:%s274]
                  %290 = vst [vmem:[%s282 + $0x3] sm:%s274] %v289
                  %v291 = vld [vmem:[%s281 + $0x40] sm:%s274]
                  %292 = vst [vmem:[%s282 + $0x4] sm:%s274] %v291
                  %v293 = vld [vmem:[%s281 + $0x50] sm:%s274]
                  %294 = vst [vmem:[%s282 + $0x5] sm:%s274] %v293
                  %v295 = vld [vmem:[%s281 + $0x60] sm:%s274]
                  %296 = vst [vmem:[%s282 + $0x6] sm:%s274] %v295
                  %v297 = vld [vmem:[%s281 + $0x70] sm:%s274]
                  %298 = vst [vmem:[%s282 + $0x7] sm:%s274] %v297
                  %v299 = vld [vmem:[%s281 + $0x80] sm:%s274]
                  %300 = vst [vmem:[%s282 + $0x8] sm:%s274] %v299
                  %v301 = vld [vmem:[%s281 + $0x90] sm:%s274]
                  %302 = vst [vmem:[%s282 + $0x9] sm:%s274] %v301
                  %v303 = vld [vmem:[%s281 + $0xa0] sm:%s274]
                  %304 = vst [vmem:[%s282 + $0xa] sm:%s274] %v303
                  %v305 = vld [vmem:[%s281 + $0xb0] sm:%s274]
                  %306 = vst [vmem:[%s282 + $0xb] sm:%s274] %v305
                  %v307 = vld [vmem:[%s281 + $0xc0] sm:%s274]
                  %308 = vst [vmem:[%s282 + $0xc] sm:%s274] %v307
                  %v309 = vld [vmem:[%s281 + $0xd0] sm:%s274]
                  %310 = vst [vmem:[%s282 + $0xd] sm:%s274] %v309
                  %v311 = vld [vmem:[%s281 + $0xe0] sm:%s274]
                  %312 = vst [vmem:[%s282 + $0xe] sm:%s274] %v311
                  %v313 = vld [vmem:[%s281 + $0xf0] sm:%s274]
                  %314 = vst [vmem:[%s282 + $0xf] sm:%s274] %v313
                  %v315 = vld [vmem:[%s281 + $0x100] sm:%s274]
                  %316 = vst [vmem:[%s282 + $0x10] sm:%s274] %v315
                  %v317 = vld [vmem:[%s281 + $0x110] sm:%s274]
                  %318 = vst [vmem:[%s282 + $0x11] sm:%s274] %v317
                  %v319 = vld [vmem:[%s281 + $0x120] sm:%s274]
                  %320 = vst [vmem:[%s282 + $0x12] sm:%s274] %v319
                  %v321 = vld [vmem:[%s281 + $0x130] sm:%s274]
                  %322 = vst [vmem:[%s282 + $0x13] sm:%s274] %v321
                  %v323 = vld [vmem:[%s281 + $0x140] sm:%s274]
                  %324 = vst [vmem:[%s282 + $0x14] sm:%s274] %v323
                  %v325 = vld [vmem:[%s281 + $0x150] sm:%s274]
                  %326 = vst [vmem:[%s282 + $0x15] sm:%s274] %v325
                  %v327 = vld [vmem:[%s281 + $0x160] sm:%s274]
                  %328 = vst [vmem:[%s282 + $0x16] sm:%s274] %v327
                  %v329 = vld [vmem:[%s281 + $0x170] sm:%s274]
                  %330 = vst [vmem:[%s282 + $0x17] sm:%s274] %v329
                  %v331 = vld [vmem:[%s281 + $0x180] sm:%s274]
                  %332 = vst [vmem:[%s282 + $0x18] sm:%s274] %v331
                  %v333 = vld [vmem:[%s281 + $0x190] sm:%s274]
                  %334 = vst [vmem:[%s282 + $0x19] sm:%s274] %v333
                  %v335 = vld [vmem:[%s281 + $0x1a0] sm:%s274]
                  %336 = vst [vmem:[%s282 + $0x1a] sm:%s274] %v335
                  %v337 = vld [vmem:[%s281 + $0x1b0] sm:%s274]
                  %338 = vst [vmem:[%s282 + $0x1b] sm:%s274] %v337
                  %v339 = vld [vmem:[%s281 + $0x1c0] sm:%s274]
                  %340 = vst [vmem:[%s282 + $0x1c] sm:%s274] %v339
                  %v341 = vld [vmem:[%s281 + $0x1d0] sm:%s274]
                  %342 = vst [vmem:[%s282 + $0x1d] sm:%s274] %v341
                  %v343 = vld [vmem:[%s281 + $0x1e0] sm:%s274]
                  %344 = vst [vmem:[%s282 + $0x1e] sm:%s274] %v343
                  %v345 = vld [vmem:[%s281 + $0x1f0] sm:%s274]
                  %346 = vst [vmem:[%s282 + $0x1f] sm:%s274] %v345
                $region55: #{recurrent_residual_block.19} parent=42 // loop_footer
                  %s280 = sadd.s32 1, %s276
                $region56: #{recurrent_residual_block.19} parent=42 // loop_footer_branch
                  %275 = sbr.rel target = $region52
                $region57: #{recurrent_residual_block.19} parent=42 // loop_exit
                  _
              $region43: #{recurrent_residual_block.19} parent=27 // pred_fallthru
                _
            $region28: #{recurrent_residual_block.19} parent=23 // pred_fallthru
              _
            // Predicated region
            $region29: #{recurrent_residual_block.19} parent=23 // pred_check
              _
            $region30: #{recurrent_residual_block.19} parent=23 // pred_check_branch
              %188 = sbr.rel (0) target = $region32
            $region31: #{recurrent_residual_block.19} parent=23 // pred_region
              %s190 = ssub.s32 2, 1
              loop: start=0, step=1, limit=1
              $region33: #{recurrent_residual_block.19} parent=31 // loop_pre_header
                _
              $region34: #{recurrent_residual_block.19} parent=31 // loop_header
                %s192 = sphi 0, %s196
                %p193 = scmp.ge.s32.totalorder %s192, 1
                %s197 = sphi %s182, %s182
                %s198 = sphi %s174, %s174
              $region35: #{recurrent_residual_block.19} parent=31 // loop_header_branch
                %195 = sbr.rel (%p193) target = $region39
              $region36: #{recurrent_residual_block.19} parent=31 // loop_body
                %v199 = vld [vmem:[%s197] sm:%s190]
                %200 = vst [vmem:[%s198] sm:%s190] %v199
                %v201 = vld [vmem:[%s197 + $0x10] sm:%s190]
                %202 = vst [vmem:[%s198 + $0x1] sm:%s190] %v201
                %v203 = vld [vmem:[%s197 + $0x20] sm:%s190]
                %204 = vst [vmem:[%s198 + $0x2] sm:%s190] %v203
                %v205 = vld [vmem:[%s197 + $0x30] sm:%s190]
                %206 = vst [vmem:[%s198 + $0x3] sm:%s190] %v205
                %v207 = vld [vmem:[%s197 + $0x40] sm:%s190]
                %208 = vst [vmem:[%s198 + $0x4] sm:%s190] %v207
                %v209 = vld [vmem:[%s197 + $0x50] sm:%s190]
                %210 = vst [vmem:[%s198 + $0x5] sm:%s190] %v209
                %v211 = vld [vmem:[%s197 + $0x60] sm:%s190]
                %212 = vst [vmem:[%s198 + $0x6] sm:%s190] %v211
                %v213 = vld [vmem:[%s197 + $0x70] sm:%s190]
                %214 = vst [vmem:[%s198 + $0x7] sm:%s190] %v213
                %v215 = vld [vmem:[%s197 + $0x80] sm:%s190]
                %216 = vst [vmem:[%s198 + $0x8] sm:%s190] %v215
                %v217 = vld [vmem:[%s197 + $0x90] sm:%s190]
                %218 = vst [vmem:[%s198 + $0x9] sm:%s190] %v217
                %v219 = vld [vmem:[%s197 + $0xa0] sm:%s190]
                %220 = vst [vmem:[%s198 + $0xa] sm:%s190] %v219
                %v221 = vld [vmem:[%s197 + $0xb0] sm:%s190]
                %222 = vst [vmem:[%s198 + $0xb] sm:%s190] %v221
                %v223 = vld [vmem:[%s197 + $0xc0] sm:%s190]
                %224 = vst [vmem:[%s198 + $0xc] sm:%s190] %v223
                %v225 = vld [vmem:[%s197 + $0xd0] sm:%s190]
                %226 = vst [vmem:[%s198 + $0xd] sm:%s190] %v225
                %v227 = vld [vmem:[%s197 + $0xe0] sm:%s190]
                %228 = vst [vmem:[%s198 + $0xe] sm:%s190] %v227
                %v229 = vld [vmem:[%s197 + $0xf0] sm:%s190]
                %230 = vst [vmem:[%s198 + $0xf] sm:%s190] %v229
                %v231 = vld [vmem:[%s197 + $0x100] sm:%s190]
                %232 = vst [vmem:[%s198 + $0x10] sm:%s190] %v231
                %v233 = vld [vmem:[%s197 + $0x110] sm:%s190]
                %234 = vst [vmem:[%s198 + $0x11] sm:%s190] %v233
                %v235 = vld [vmem:[%s197 + $0x120] sm:%s190]
                %236 = vst [vmem:[%s198 + $0x12] sm:%s190] %v235
                %v237 = vld [vmem:[%s197 + $0x130] sm:%s190]
                %238 = vst [vmem:[%s198 + $0x13] sm:%s190] %v237
                %v239 = vld [vmem:[%s197 + $0x140] sm:%s190]
                %240 = vst [vmem:[%s198 + $0x14] sm:%s190] %v239
                %v241 = vld [vmem:[%s197 + $0x150] sm:%s190]
                %242 = vst [vmem:[%s198 + $0x15] sm:%s190] %v241
                %v243 = vld [vmem:[%s197 + $0x160] sm:%s190]
                %244 = vst [vmem:[%s198 + $0x16] sm:%s190] %v243
                %v245 = vld [vmem:[%s197 + $0x170] sm:%s190]
                %246 = vst [vmem:[%s198 + $0x17] sm:%s190] %v245
                %v247 = vld [vmem:[%s197 + $0x180] sm:%s190]
                %248 = vst [vmem:[%s198 + $0x18] sm:%s190] %v247
                %v249 = vld [vmem:[%s197 + $0x190] sm:%s190]
                %250 = vst [vmem:[%s198 + $0x19] sm:%s190] %v249
                %v251 = vld [vmem:[%s197 + $0x1a0] sm:%s190]
                %252 = vst [vmem:[%s198 + $0x1a] sm:%s190] %v251
                %v253 = vld [vmem:[%s197 + $0x1b0] sm:%s190]
                %254 = vst [vmem:[%s198 + $0x1b] sm:%s190] %v253
                %v255 = vld [vmem:[%s197 + $0x1c0] sm:%s190]
                %256 = vst [vmem:[%s198 + $0x1c] sm:%s190] %v255
                %v257 = vld [vmem:[%s197 + $0x1d0] sm:%s190]
                %258 = vst [vmem:[%s198 + $0x1d] sm:%s190] %v257
                %v259 = vld [vmem:[%s197 + $0x1e0] sm:%s190]
                %260 = vst [vmem:[%s198 + $0x1e] sm:%s190] %v259
                %v261 = vld [vmem:[%s197 + $0x1f0] sm:%s190]
                %262 = vst [vmem:[%s198 + $0x1f] sm:%s190] %v261
              $region37: #{recurrent_residual_block.19} parent=31 // loop_footer
                %s196 = sadd.s32 1, %s192
              $region38: #{recurrent_residual_block.19} parent=31 // loop_footer_branch
                %191 = sbr.rel target = $region34
              $region39: #{recurrent_residual_block.19} parent=31 // loop_exit
                _
            $region32: #{recurrent_residual_block.19} parent=23 // pred_fallthru
              _
          $region24: #{recurrent_residual_block.19} parent=19 // pred_fallthru
            _
          %347 = vnop
        $region20: #{recurrent_residual_block.19} parent=15 // pred_fallthru
          _
        // Predicated region
        $region58: #{recurrent_residual_block.19} parent=15 // pred_check
          %p348 = pneg %p79
        $region59: #{recurrent_residual_block.19} parent=15 // pred_check_branch
          %350 = sbr.rel (%p348) target = $region61
        $region60: #{recurrent_residual_block.19} parent=15 // pred_region
          %p351 = scmp.lt.s32.totalorder %s16, 1
          %s352 = scalar_select %p351, %s16, 1
          %s353 = smul.addr %s352, 2
          %s354 = scalar_lea.vmem %s1, %s353
        $region61: #{recurrent_residual_block.19} parent=15 // pred_fallthru
          _
        // Predicated region
        $region62: #{recurrent_residual_block.19} parent=15 // pred_check
          %p355 = pneg %p105
        $region63: #{recurrent_residual_block.19} parent=15 // pred_check_branch
          %357 = sbr.rel (%p355) target = $region65
        $region64: #{recurrent_residual_block.19} parent=15 // pred_region
          %p358 = scmp.lt.s32.totalorder %s16, 1
          %s359 = scalar_select %p358, %s16, 1
          %s360 = scalar_lea.vmem %s2, %s359
        $region65: #{recurrent_residual_block.19} parent=15 // pred_fallthru
          _
      $region16: #{recurrent_residual_block.19} parent=5 // pred_fallthru
        _
      %p361 = scmp.le.s32.totalorder 1, %s9
      %p362 = scmp.lt.s32.totalorder %s9, 33
      %p363 = pnand %p361, %p362
      %p364 = pneg %p363
      // Predicated region
      $region66: #{recurrent_residual_block.19} parent=5 // pred_check
        _
      $region67: #{recurrent_residual_block.19} parent=5 // pred_check_branch
        %366 = sbr.rel (%p363) target = $region69
      $region68: #{recurrent_residual_block.19} parent=5 // pred_region
        %s367 = ssub.s32 %s9, 1
        %s368 = sand.u32 %s46, 1
        %s369 = sand.u32 %s46, 1
        %s370 = smul.addr %s369, 32
        %s371 = scalar_lea.vmem [#allocation3], %s370
        // Predicated region
        $region70: #{recurrent_residual_block.19} parent=68 // pred_check
          %p372 = pneg %p59
        $region71: #{recurrent_residual_block.19} parent=68 // pred_check_branch
          %374 = sbr.rel (%p372) target = $region73
        $region72: #{recurrent_residual_block.19} parent=68 // pred_region
          _
        $region73: #{recurrent_residual_block.19} parent=68 // pred_fallthru
          _
        %s375 = sand.u32 %s46, 1
        %s376 = sand.u32 %s46, 1
        %s377 = smul.addr %s376, 32
        %s378 = scalar_lea.vmem [#allocation3], %s377
        %p379 = pneg %p59
        %p380 = pneg %p56
        %p381 = scmp.lt.s32.totalorder %s18, 1
        %s382 = scalar_select %p381, %s18, 1
        %s383 = smul.addr %s382, 2
        %s384 = scalar_lea.vmem %s1, %s383
        %p385 = pneg %p85
        %p386 = pneg %p82
        %p387 = scmp.lt.s32.totalorder %s18, 1
        %s388 = scalar_select %p387, %s18, 1
        %s389 = scalar_lea.vmem %s2, %s388
        %p390 = pneg %p111
        %p391 = pneg %p108
        %p392 = pneg %p149
        %p393 = pneg %p146
        %s394 = sand.u32 %s136, 1
        %s395 = sand.u32 %s136, 1
        %s396 = smul.addr %s395, 32
        %s397 = scalar_lea.vmem [#allocation4], %s396
        %s398 = smul.u32 %s18, 2
        %s399 = ssub.s32 1, %s398
        %s400 = smul.u32 %s19, %s399
        %s401 = smul.u32 %s18, 15
        %s402 = sadd.s32 %s400, %s401
        %p403 = scmp.lt.s32.totalorder %s18, 1
        %s404 = scalar_select %p403, %s18, 1
        %s405 = smul.addr %s404, 2
        %s406 = scalar_lea.vmem %s1, %s405
        %p407 = scmp.lt.s32.totalorder %s18, 1
        %s408 = scalar_select %p407, %s18, 1
        %s409 = scalar_lea.vmem %s2, %s408
        %s410 = smul.u32 %s18, 2
        %s411 = ssub.s32 1, %s410
        %s412 = smul.u32 %s19, %s411
        %s413 = smul.u32 %s18, 15
        %s414 = sadd.s32 %s412, %s413
        %p415 = scmp.eq.s32.totalorder %s19, 0
        // Predicated region
        $region74: #{recurrent_residual_block.19} parent=68 // pred_check
          %p416 = pneg %p415
        $region75: #{recurrent_residual_block.19} parent=68 // pred_check_branch
          %418 = sbr.rel (%p416) target = $region77
        $region76: #{recurrent_residual_block.19} parent=68 // pred_region
          %vm419 = vcmask 15360
          %420 = vst.msk [vmem:[#allocation2] sm:$0xff] %vm419, 0.0
          %421 = vst.msk [vmem:[#allocation2 + $0x8] sm:$0xff] %vm419, 0.0
          %422 = vst.msk [vmem:[#allocation2 + $0x10] sm:$0xff] %vm419, 0.0
          %423 = vst.msk [vmem:[#allocation2 + $0x18] sm:$0xff] %vm419, 0.0
        $region77: #{recurrent_residual_block.19} parent=68 // pred_fallthru
          _
        %v424 = vld [vmem:[%s371] sm:$0x1]
        %v425 = vld [vmem:[%s371 + $0x1] sm:$0x1]
        %v426 = vld [vmem:[%s371 + $0x2] sm:$0x1]
        %v427 = vld [vmem:[%s371 + $0x3] sm:$0x1]
        %v428 = vld [vmem:[%s371 + $0x4] sm:$0x1]
        %v429 = vld [vmem:[%s371 + $0x5] sm:$0x1]
        %v430 = vld [vmem:[%s371 + $0x6] sm:$0x1]
        %v431 = vld [vmem:[%s371 + $0x7] sm:$0x1]
        %v432 = vld [vmem:[%s371 + $0x8] sm:$0x1]
        %v433 = vld [vmem:[%s371 + $0x9] sm:$0x1]
        %v434 = vld [vmem:[%s371 + $0xa] sm:$0x1]
        %v435 = vld [vmem:[%s371 + $0xb] sm:$0x1]
        %v436 = vld [vmem:[%s371 + $0xc] sm:$0x1]
        %v437 = vld [vmem:[%s371 + $0xd] sm:$0x1]
        %v438 = vld [vmem:[%s371 + $0xe] sm:$0x1]
        %v439 = vld [vmem:[%s371 + $0xf] sm:$0x1]
        %v440 = vld [vmem:[%s371 + $0x10] sm:$0x1]
        %v441 = vld [vmem:[%s371 + $0x11] sm:$0x1]
        %v442 = vld [vmem:[%s371 + $0x12] sm:$0x1]
        %v443 = vld [vmem:[%s371 + $0x13] sm:$0x1]
        %v444 = vld [vmem:[%s371 + $0x14] sm:$0x1]
        %v445 = vld [vmem:[%s371 + $0x15] sm:$0x1]
        %v446 = vld [vmem:[%s371 + $0x16] sm:$0x1]
        %v447 = vld [vmem:[%s371 + $0x17] sm:$0x1]
        %v448 = vld [vmem:[%s371 + $0x18] sm:$0x1]
        %v449 = vld [vmem:[%s371 + $0x19] sm:$0x1]
        %v450 = vld [vmem:[%s371 + $0x1a] sm:$0x1]
        %v451 = vld [vmem:[%s371 + $0x1b] sm:$0x1]
        %v452 = vld [vmem:[%s371 + $0x1c] sm:$0x1]
        %v453 = vld [vmem:[%s371 + $0x1d] sm:$0x1]
        %v454 = vld [vmem:[%s371 + $0x1e] sm:$0x1]
        %v455 = vld [vmem:[%s371 + $0x1f] sm:$0x1]
        %v456 = vld [vmem:[#allocation2] sm:$0xff]
        %v457 = vld [vmem:[#allocation2 + $0x8] sm:$0xff]
        %v458 = vld [vmem:[#allocation2 + $0x10] sm:$0xff]
        %v459 = vld [vmem:[#allocation2 + $0x18] sm:$0xff]
        %v460 = vld [vmem:[%s406] sm:$0x3]
        %v461 = vld [vmem:[%s409] sm:$0x1]
        %v463 = vlaneseq
        %v464 = vshrl.u32 %v463, 7
        %v465 = vsub.s32 0, %v464
        %v466 = vrot.slane %v461, %v465
        %vm468 = vcmask 15360
        %v470 = vsel %vm468, %v456, 0
        %v473 = vsel %vm468, %v457, 0
        %v476 = vsel %vm468, %v458, 0
        %v479 = vsel %vm468, %v459, 0
        %vm481 = vcmask 1041408
        %v483 = vsel %vm481, %v460, 0
        %485 = vmatprep.subr.mxu0 0.0
        %486 = vmatpush1.msra.mxu0 0.0
        %487 = vmatprep.subr.mxu0 0.0
        %488 = vmatpush1.msra.mxu0 0.0
        %489 = vmatprep.subr.mxu0 0.0
        %490 = vmatpush1.msra.mxu0 0.0
        %491 = vmatprep.subr.mxu0 0.0
        %492 = vmatpush1.msra.mxu0 0.0
        %493 = vmatprep.subr.mxu0 0.0
        %494 = vmatpush1.msra.mxu0 0.0
        %495 = vmatprep.subr.mxu0 0.0
        %496 = vmatpush1.msra.mxu0 0.0
        %497 = vmatprep.subr.mxu0 0.0
        %498 = vmatpush1.msra.mxu0 0.0
        %499 = vmatprep.subr.mxu0 0.0
        %500 = vmatpush1.msra.mxu0 0.0
        %501 = vmatprep.subr.mxu0 0.0
        %502 = vmatpush1.msra.mxu0 0.0
        %503 = vmatprep.subr.mxu0 0.0
        %504 = vmatpush1.msra.mxu0 0.0
        %505 = vmatprep.subr.mxu0 0.0
        %506 = vmatpush1.msra.mxu0 0.0
        %507 = vmatprep.subr.mxu0 0.0
        %508 = vmatpush1.msra.mxu0 0.0
        %509 = vmatprep.subr.mxu0 0.0
        %510 = vmatpush1.msra.mxu0 0.0
        %511 = vmatprep.subr.mxu0 0.0
        %512 = vmatpush1.msra.mxu0 0.0
        %513 = vmatprep.subr.mxu0 0.0
        %514 = vmatpush1.msra.mxu0 0.0
        %515 = vmatprep.subr.mxu0 0.0
        %516 = vmatpush1.msra.mxu0 %v483
        %517 = vmatprep.subr.mxu0 0.0
        %518 = vmatpush2.msra.mxu0 0.0
        %519 = vmatprep.subr.mxu0 0.0
        %520 = vmatpush2.msra.mxu0 0.0
        %521 = vmatprep.subr.mxu0 0.0
        %522 = vmatpush2.msra.mxu0 0.0
        %523 = vmatprep.subr.mxu0 0.0
        %524 = vmatpush2.msra.mxu0 0.0
        %525 = vmatprep.subr.mxu0 0.0
        %526 = vmatpush2.msra.mxu0 0.0
        %527 = vmatprep.subr.mxu0 0.0
        %528 = vmatpush2.msra.mxu0 0.0
        %529 = vmatprep.subr.mxu0 0.0
        %530 = vmatpush2.msra.mxu0 0.0
        %531 = vmatprep.subr.mxu0 0.0
        %532 = vmatpush2.msra.mxu0 0.0
        %533 = vmatprep.subr.mxu0 0.0
        %534 = vmatpush2.msra.mxu0 0.0
        %535 = vmatprep.subr.mxu0 0.0
        %536 = vmatpush2.msra.mxu0 0.0
        %537 = vmatprep.subr.mxu0 0.0
        %538 = vmatpush2.msra.mxu0 0.0
        %539 = vmatprep.subr.mxu0 0.0
        %540 = vmatpush2.msra.mxu0 0.0
        %541 = vmatprep.subr.mxu0 0.0
        %542 = vmatpush2.msra.mxu0 0.0
        %543 = vmatprep.subr.mxu0 0.0
        %544 = vmatpush2.msra.mxu0 0.0
        %545 = vmatprep.subr.mxu0 0.0
        %546 = vmatpush2.msra.mxu0 0.0
        %547 = vmatprep.subr.mxu0 0.0
        %548 = vmatpush2.msra.mxu0 0.0
        %549 = vmatprep.mubr.f32.mxu0 0.0
        %550 = vmatmul.mubr.f32.gmra.mxu0 %v470
        %v551 = vpop.f32.mrf.mxu0
        %v552 = vadd.f32 %v466, %v551
        %v553 = vpop.f32.mrf.mxu0
        %554 = vmatprep.mubr.f32.mxu0 0.0
        %555 = vmatmul.mubr.f32.gmra.mxu0 %v473
        %v556 = vpop.f32.mrf.mxu0
        %v557 = vadd.f32 %v466, %v556
        %v558 = vpop.f32.mrf.mxu0
        %559 = vmatprep.mubr.f32.mxu0 0.0
        %560 = vmatmul.mubr.f32.gmra.mxu0 %v476
        %v561 = vpop.f32.mrf.mxu0
        %v562 = vadd.f32 %v466, %v561
        %v563 = vpop.f32.mrf.mxu0
        %564 = vmatprep.mubr.f32.mxu0 0.0
        %565 = vmatmul.mubr.f32.gmra.mxu0 %v479
        %v566 = vpop.f32.mrf.mxu0
        %v567 = vadd.f32 %v466, %v566
        %v568 = vpop.f32.mrf.mxu0
        %569 = vdwg.mxu0
        %v574 = vcombine.high %v552, %v552
        %v576 = vunpack.c.l.s4 1966171168
        %v577 = vunpack.c.0.s8 %v576
        %v578 = vlaneseq
        %v579 = vshrl.u32 %v578, 7
        %v580 = vsub.s32 %v577, %v579
        %v581 = vrot.slane %v552, %v580
        %v583 = vunpack.c.l.s4 1966171168
        %v584 = vunpack.c.0.s8 %v583
        %v585 = vlaneseq
        %v586 = vshrl.u32 %v585, 7
        %v587 = vsub.s32 %v584, %v586
        %v588 = vrot.slane %v574, %v587
        %v589 = vcombine.high %v581, %v581
        %v590 = vcombine.high %v588, %v588
        %v592 = vunpack.c.l.s4 1966171168
        %v593 = vunpack.c.0.s8 %v592
        %v594 = vlaneseq
        %v595 = vshrl.u32 %v594, 7
        %v596 = vsub.s32 %v593, %v595
        %v597 = vrot.slane %v581, %v596
        %v599 = vunpack.c.l.s4 1966171168
        %v600 = vunpack.c.0.s8 %v599
        %v601 = vlaneseq
        %v602 = vshrl.u32 %v601, 7
        %v603 = vsub.s32 %v600, %v602
        %v604 = vrot.slane %v588, %v603
        %v606 = vunpack.c.l.s4 1966171168
        %v607 = vunpack.c.0.s8 %v606
        %v608 = vlaneseq
        %v609 = vshrl.u32 %v608, 7
        %v610 = vsub.s32 %v607, %v609
        %v611 = vrot.slane %v589, %v610
        %v613 = vunpack.c.l.s4 1966171168
        %v614 = vunpack.c.0.s8 %v613
        %v615 = vlaneseq
        %v616 = vshrl.u32 %v615, 7
        %v617 = vsub.s32 %v614, %v616
        %v618 = vrot.slane %v590, %v617
        %v619 = vcombine.high %v597, %v597
        %v620 = vcombine.high %v604, %v604
        %v621 = vcombine.high %v611, %v611
        %v622 = vcombine.high %v618, %v618
        %v623 = vcombine.high %v557, %v557
        %v625 = vunpack.c.l.s4 1966171168
        %v626 = vunpack.c.0.s8 %v625
        %v627 = vlaneseq
        %v628 = vshrl.u32 %v627, 7
        %v629 = vsub.s32 %v626, %v628
        %v630 = vrot.slane %v557, %v629
        %v632 = vunpack.c.l.s4 1966171168
        %v633 = vunpack.c.0.s8 %v632
        %v634 = vlaneseq
        %v635 = vshrl.u32 %v634, 7
        %v636 = vsub.s32 %v633, %v635
        %v637 = vrot.slane %v623, %v636
        %v638 = vcombine.high %v630, %v630
        %v639 = vcombine.high %v637, %v637
        %v641 = vunpack.c.l.s4 1966171168
        %v642 = vunpack.c.0.s8 %v641
        %v643 = vlaneseq
        %v644 = vshrl.u32 %v643, 7
        %v645 = vsub.s32 %v642, %v644
        %v646 = vrot.slane %v630, %v645
        %v648 = vunpack.c.l.s4 1966171168
        %v649 = vunpack.c.0.s8 %v648
        %v650 = vlaneseq
        %v651 = vshrl.u32 %v650, 7
        %v652 = vsub.s32 %v649, %v651
        %v653 = vrot.slane %v637, %v652
        %v655 = vunpack.c.l.s4 1966171168
        %v656 = vunpack.c.0.s8 %v655
        %v657 = vlaneseq
        %v658 = vshrl.u32 %v657, 7
        %v659 = vsub.s32 %v656, %v658
        %v660 = vrot.slane %v638, %v659
        %v662 = vunpack.c.l.s4 1966171168
        %v663 = vunpack.c.0.s8 %v662
        %v664 = vlaneseq
        %v665 = vshrl.u32 %v664, 7
        %v666 = vsub.s32 %v663, %v665
        %v667 = vrot.slane %v639, %v666
        %v668 = vcombine.high %v646, %v646
        %v669 = vcombine.high %v653, %v653
        %v670 = vcombine.high %v660, %v660
        %v671 = vcombine.high %v667, %v667
        %v672 = vcombine.high %v562, %v562
        %v674 = vunpack.c.l.s4 1966171168
        %v675 = vunpack.c.0.s8 %v674
        %v676 = vlaneseq
        %v677 = vshrl.u32 %v676, 7
        %v678 = vsub.s32 %v675, %v677
        %v679 = vrot.slane %v562, %v678
        %v681 = vunpack.c.l.s4 1966171168
        %v682 = vunpack.c.0.s8 %v681
        %v683 = vlaneseq
        %v684 = vshrl.u32 %v683, 7
        %v685 = vsub.s32 %v682, %v684
        %v686 = vrot.slane %v672, %v685
        %v687 = vcombine.high %v679, %v679
        %v688 = vcombine.high %v686, %v686
        %v690 = vunpack.c.l.s4 1966171168
        %v691 = vunpack.c.0.s8 %v690
        %v692 = vlaneseq
        %v693 = vshrl.u32 %v692, 7
        %v694 = vsub.s32 %v691, %v693
        %v695 = vrot.slane %v679, %v694
        %v697 = vunpack.c.l.s4 1966171168
        %v698 = vunpack.c.0.s8 %v697
        %v699 = vlaneseq
        %v700 = vshrl.u32 %v699, 7
        %v701 = vsub.s32 %v698, %v700
        %v702 = vrot.slane %v686, %v701
        %v704 = vunpack.c.l.s4 1966171168
        %v705 = vunpack.c.0.s8 %v704
        %v706 = vlaneseq
        %v707 = vshrl.u32 %v706, 7
        %v708 = vsub.s32 %v705, %v707
        %v709 = vrot.slane %v687, %v708
        %v711 = vunpack.c.l.s4 1966171168
        %v712 = vunpack.c.0.s8 %v711
        %v713 = vlaneseq
        %v714 = vshrl.u32 %v713, 7
        %v715 = vsub.s32 %v712, %v714
        %v716 = vrot.slane %v688, %v715
        %v717 = vcombine.high %v695, %v695
        %v718 = vcombine.high %v702, %v702
        %v719 = vcombine.high %v709, %v709
        %v720 = vcombine.high %v716, %v716
        %v721 = vcombine.high %v567, %v567
        %v723 = vunpack.c.l.s4 1966171168
        %v724 = vunpack.c.0.s8 %v723
        %v725 = vlaneseq
        %v726 = vshrl.u32 %v725, 7
        %v727 = vsub.s32 %v724, %v726
        %v728 = vrot.slane %v567, %v727
        %v730 = vunpack.c.l.s4 1966171168
        %v731 = vunpack.c.0.s8 %v730
        %v732 = vlaneseq
        %v733 = vshrl.u32 %v732, 7
        %v734 = vsub.s32 %v731, %v733
        %v735 = vrot.slane %v721, %v734
        %v736 = vcombine.high %v728, %v728
        %v737 = vcombine.high %v735, %v735
        %v739 = vunpack.c.l.s4 1966171168
        %v740 = vunpack.c.0.s8 %v739
        %v741 = vlaneseq
        %v742 = vshrl.u32 %v741, 7
        %v743 = vsub.s32 %v740, %v742
        %v744 = vrot.slane %v728, %v743
        %v746 = vunpack.c.l.s4 1966171168
        %v747 = vunpack.c.0.s8 %v746
        %v748 = vlaneseq
        %v749 = vshrl.u32 %v748, 7
        %v750 = vsub.s32 %v747, %v749
        %v751 = vrot.slane %v735, %v750
        %v753 = vunpack.c.l.s4 1966171168
        %v754 = vunpack.c.0.s8 %v753
        %v755 = vlaneseq
        %v756 = vshrl.u32 %v755, 7
        %v757 = vsub.s32 %v754, %v756
        %v758 = vrot.slane %v736, %v757
        %v760 = vunpack.c.l.s4 1966171168
        %v761 = vunpack.c.0.s8 %v760
        %v762 = vlaneseq
        %v763 = vshrl.u32 %v762, 7
        %v764 = vsub.s32 %v761, %v763
        %v765 = vrot.slane %v737, %v764
        %v766 = vcombine.high %v744, %v744
        %v767 = vcombine.high %v751, %v751
        %v768 = vcombine.high %v758, %v758
        %v769 = vcombine.high %v765, %v765
        %v802 = vadd.f32 %v424, %v597
        %v803 = vadd.f32 %v425, %v611
        %v804 = vadd.f32 %v426, %v619
        %v805 = vadd.f32 %v427, %v621
        %v806 = vadd.f32 %v428, %v604
        %v807 = vadd.f32 %v429, %v618
        %v808 = vadd.f32 %v430, %v620
        %v809 = vadd.f32 %v431, %v622
        %v810 = vadd.f32 %v432, %v646
        %v811 = vadd.f32 %v433, %v660
        %v812 = vadd.f32 %v434, %v668
        %v813 = vadd.f32 %v435, %v670
        %v814 = vadd.f32 %v436, %v653
        %v815 = vadd.f32 %v437, %v667
        %v816 = vadd.f32 %v438, %v669
        %v817 = vadd.f32 %v439, %v671
        %v818 = vadd.f32 %v440, %v695
        %v819 = vadd.f32 %v441, %v709
        %v820 = vadd.f32 %v442, %v717
        %v821 = vadd.f32 %v443, %v719
        %v822 = vadd.f32 %v444, %v702
        %v823 = vadd.f32 %v445, %v716
        %v824 = vadd.f32 %v446, %v718
        %v825 = vadd.f32 %v447, %v720
        %v826 = vadd.f32 %v448, %v744
        %v827 = vadd.f32 %v449, %v758
        %v828 = vadd.f32 %v450, %v766
        %v829 = vadd.f32 %v451, %v768
        %v830 = vadd.f32 %v452, %v751
        %v831 = vadd.f32 %v453, %v765
        %v832 = vadd.f32 %v454, %v767
        %v833 = vadd.f32 %v455, %v769
        %v834 = vxor.u32 %v802, 2147483648
        %v835 = vxor.u32 %v803, 2147483648
        %v836 = vxor.u32 %v804, 2147483648
        %v837 = vxor.u32 %v805, 2147483648
        %v838 = vxor.u32 %v806, 2147483648
        %v839 = vxor.u32 %v807, 2147483648
        %v840 = vxor.u32 %v808, 2147483648
        %v841 = vxor.u32 %v809, 2147483648
        %v842 = vxor.u32 %v810, 2147483648
        %v843 = vxor.u32 %v811, 2147483648
        %v844 = vxor.u32 %v812, 2147483648
        %v845 = vxor.u32 %v813, 2147483648
        %v846 = vxor.u32 %v814, 2147483648
        %v847 = vxor.u32 %v815, 2147483648
        %v848 = vxor.u32 %v816, 2147483648
        %v849 = vxor.u32 %v817, 2147483648
        %v850 = vxor.u32 %v818, 2147483648
        %v851 = vxor.u32 %v819, 2147483648
        %v852 = vxor.u32 %v820, 2147483648
        %v853 = vxor.u32 %v821, 2147483648
        %v854 = vxor.u32 %v822, 2147483648
        %v855 = vxor.u32 %v823, 2147483648
        %v856 = vxor.u32 %v824, 2147483648
        %v857 = vxor.u32 %v825, 2147483648
        %v858 = vxor.u32 %v826, 2147483648
        %v859 = vxor.u32 %v827, 2147483648
        %v860 = vxor.u32 %v828, 2147483648
        %v861 = vxor.u32 %v829, 2147483648
        %v862 = vxor.u32 %v830, 2147483648
        %v863 = vxor.u32 %v831, 2147483648
        %v864 = vxor.u32 %v832, 2147483648
        %v865 = vxor.u32 %v833, 2147483648
        %v866 = vmul.f32 %v834, 1.442695
        %v867 = vpow.pop %v866
        %v868 = vmul.f32 %v835, 1.442695
        %v869 = vpow.pop %v868
        %v870 = vmul.f32 %v836, 1.442695
        %v871 = vpow.pop %v870
        %v872 = vmul.f32 %v837, 1.442695
        %v873 = vpow.pop %v872
        %v874 = vmul.f32 %v838, 1.442695
        %v875 = vpow.pop %v874
        %v876 = vmul.f32 %v839, 1.442695
        %v877 = vpow.pop %v876
        %v878 = vmul.f32 %v840, 1.442695
        %v879 = vpow.pop %v878
        %v880 = vmul.f32 %v841, 1.442695
        %v881 = vpow.pop %v880
        %v882 = vmul.f32 %v842, 1.442695
        %v883 = vpow.pop %v882
        %v884 = vmul.f32 %v843, 1.442695
        %v885 = vpow.pop %v884
        %v886 = vmul.f32 %v844, 1.442695
        %v887 = vpow.pop %v886
        %v888 = vmul.f32 %v845, 1.442695
        %v889 = vpow.pop %v888
        %v890 = vmul.f32 %v846, 1.442695
        %v891 = vpow.pop %v890
        %v892 = vmul.f32 %v847, 1.442695
        %v893 = vpow.pop %v892
        %v894 = vmul.f32 %v848, 1.442695
        %v895 = vpow.pop %v894
        %v896 = vmul.f32 %v849, 1.442695
        %v897 = vpow.pop %v896
        %v898 = vmul.f32 %v850, 1.442695
        %v899 = vpow.pop %v898
        %v900 = vmul.f32 %v851, 1.442695
        %v901 = vpow.pop %v900
        %v902 = vmul.f32 %v852, 1.442695
        %v903 = vpow.pop %v902
        %v904 = vmul.f32 %v853, 1.442695
        %v905 = vpow.pop %v904
        %v906 = vmul.f32 %v854, 1.442695
        %v907 = vpow.pop %v906
        %v908 = vmul.f32 %v855, 1.442695
        %v909 = vpow.pop %v908
        %v910 = vmul.f32 %v856, 1.442695
        %v911 = vpow.pop %v910
        %v912 = vmul.f32 %v857, 1.442695
        %v913 = vpow.pop %v912
        %v914 = vmul.f32 %v858, 1.442695
        %v915 = vpow.pop %v914
        %v916 = vmul.f32 %v859, 1.442695
        %v917 = vpow.pop %v916
        %v918 = vmul.f32 %v860, 1.442695
        %v919 = vpow.pop %v918
        %v920 = vmul.f32 %v861, 1.442695
        %v921 = vpow.pop %v920
        %v922 = vmul.f32 %v862, 1.442695
        %v923 = vpow.pop %v922
        %v924 = vmul.f32 %v863, 1.442695
        %v925 = vpow.pop %v924
        %v926 = vmul.f32 %v864, 1.442695
        %v927 = vpow.pop %v926
        %v928 = vmul.f32 %v865, 1.442695
        %v929 = vpow.pop %v928
        %v930 = vadd.f32 %v867, 1.0
        %v931 = vadd.f32 %v869, 1.0
        %v932 = vadd.f32 %v871, 1.0
        %v933 = vadd.f32 %v873, 1.0
        %v934 = vadd.f32 %v875, 1.0
        %v935 = vadd.f32 %v877, 1.0
        %v936 = vadd.f32 %v879, 1.0
        %v937 = vadd.f32 %v881, 1.0
        %v938 = vadd.f32 %v883, 1.0
        %v939 = vadd.f32 %v885, 1.0
        %v940 = vadd.f32 %v887, 1.0
        %v941 = vadd.f32 %v889, 1.0
        %v942 = vadd.f32 %v891, 1.0
        %v943 = vadd.f32 %v893, 1.0
        %v944 = vadd.f32 %v895, 1.0
        %v945 = vadd.f32 %v897, 1.0
        %v946 = vadd.f32 %v899, 1.0
        %v947 = vadd.f32 %v901, 1.0
        %v948 = vadd.f32 %v903, 1.0
        %v949 = vadd.f32 %v905, 1.0
        %v950 = vadd.f32 %v907, 1.0
        %v951 = vadd.f32 %v909, 1.0
        %v952 = vadd.f32 %v911, 1.0
        %v953 = vadd.f32 %v913, 1.0
        %v954 = vadd.f32 %v915, 1.0
        %v955 = vadd.f32 %v917, 1.0
        %v956 = vadd.f32 %v919, 1.0
        %v957 = vadd.f32 %v921, 1.0
        %v958 = vadd.f32 %v923, 1.0
        %v959 = vadd.f32 %v925, 1.0
        %v960 = vadd.f32 %v927, 1.0
        %v961 = vadd.f32 %v929, 1.0
        %v962 = vrcp.pop %v930
        %v963 = vmul.f32 1.0, %v962
        %v964 = vrcp.pop %v931
        %v965 = vmul.f32 1.0, %v964
        %v966 = vrcp.pop %v932
        %v967 = vmul.f32 1.0, %v966
        %v968 = vrcp.pop %v933
        %v969 = vmul.f32 1.0, %v968
        %v970 = vrcp.pop %v934
        %v971 = vmul.f32 1.0, %v970
        %v972 = vrcp.pop %v935
        %v973 = vmul.f32 1.0, %v972
        %v974 = vrcp.pop %v936
        %v975 = vmul.f32 1.0, %v974
        %v976 = vrcp.pop %v937
        %v977 = vmul.f32 1.0, %v976
        %v978 = vrcp.pop %v938
        %v979 = vmul.f32 1.0, %v978
        %v980 = vrcp.pop %v939
        %v981 = vmul.f32 1.0, %v980
        %v982 = vrcp.pop %v940
        %v983 = vmul.f32 1.0, %v982
        %v984 = vrcp.pop %v941
        %v985 = vmul.f32 1.0, %v984
        %v986 = vrcp.pop %v942
        %v987 = vmul.f32 1.0, %v986
        %v988 = vrcp.pop %v943
        %v989 = vmul.f32 1.0, %v988
        %v990 = vrcp.pop %v944
        %v991 = vmul.f32 1.0, %v990
        %v992 = vrcp.pop %v945
        %v993 = vmul.f32 1.0, %v992
        %v994 = vrcp.pop %v946
        %v995 = vmul.f32 1.0, %v994
        %v996 = vrcp.pop %v947
        %v997 = vmul.f32 1.0, %v996
        %v998 = vrcp.pop %v948
        %v999 = vmul.f32 1.0, %v998
        %v1000 = vrcp.pop %v949
        %v1001 = vmul.f32 1.0, %v1000
        %v1002 = vrcp.pop %v950
        %v1003 = vmul.f32 1.0, %v1002
        %v1004 = vrcp.pop %v951
        %v1005 = vmul.f32 1.0, %v1004
        %v1006 = vrcp.pop %v952
        %v1007 = vmul.f32 1.0, %v1006
        %v1008 = vrcp.pop %v953
        %v1009 = vmul.f32 1.0, %v1008
        %v1010 = vrcp.pop %v954
        %v1011 = vmul.f32 1.0, %v1010
        %v1012 = vrcp.pop %v955
        %v1013 = vmul.f32 1.0, %v1012
        %v1014 = vrcp.pop %v956
        %v1015 = vmul.f32 1.0, %v1014
        %v1016 = vrcp.pop %v957
        %v1017 = vmul.f32 1.0, %v1016
        %v1018 = vrcp.pop %v958
        %v1019 = vmul.f32 1.0, %v1018
        %v1020 = vrcp.pop %v959
        %v1021 = vmul.f32 1.0, %v1020
        %v1022 = vrcp.pop %v960
        %v1023 = vmul.f32 1.0, %v1022
        %v1024 = vrcp.pop %v961
        %v1025 = vmul.f32 1.0, %v1024
        %1026 = vrot.lane.b32.xlu0 %v597, 124
        %v1027 = vpop.permute.xlu0 %1026
        %1028 = vrot.lane.b32.xlu0 %v611, 124
        %v1029 = vpop.permute.xlu0 %1028
        %1030 = vrot.lane.b32.xlu0 %v619, 124
        %v1031 = vpop.permute.xlu0 %1030
        %1032 = vrot.lane.b32.xlu0 %v621, 124
        %v1033 = vpop.permute.xlu0 %1032
        %1034 = vrot.lane.b32.xlu0 %v604, 124
        %v1035 = vpop.permute.xlu0 %1034
        %1036 = vrot.lane.b32.xlu0 %v618, 124
        %v1037 = vpop.permute.xlu0 %1036
        %1038 = vrot.lane.b32.xlu0 %v620, 124
        %v1039 = vpop.permute.xlu0 %1038
        %1040 = vrot.lane.b32.xlu0 %v622, 124
        %v1041 = vpop.permute.xlu0 %1040
        %1042 = vrot.lane.b32.xlu0 %v646, 124
        %v1043 = vpop.permute.xlu0 %1042
        %1044 = vrot.lane.b32.xlu0 %v660, 124
        %v1045 = vpop.permute.xlu0 %1044
        %1046 = vrot.lane.b32.xlu0 %v668, 124
        %v1047 = vpop.permute.xlu0 %1046
        %1048 = vrot.lane.b32.xlu0 %v670, 124
        %v1049 = vpop.permute.xlu0 %1048
        %1050 = vrot.lane.b32.xlu0 %v653, 124
        %v1051 = vpop.permute.xlu0 %1050
        %1052 = vrot.lane.b32.xlu0 %v667, 124
        %v1053 = vpop.permute.xlu0 %1052
        %1054 = vrot.lane.b32.xlu0 %v669, 124
        %v1055 = vpop.permute.xlu0 %1054
        %1056 = vrot.lane.b32.xlu0 %v671, 124
        %v1057 = vpop.permute.xlu0 %1056
        %1058 = vrot.lane.b32.xlu0 %v695, 124
        %v1059 = vpop.permute.xlu0 %1058
        %1060 = vrot.lane.b32.xlu0 %v709, 124
        %v1061 = vpop.permute.xlu0 %1060
        %1062 = vrot.lane.b32.xlu0 %v717, 124
        %v1063 = vpop.permute.xlu0 %1062
        %1064 = vrot.lane.b32.xlu0 %v719, 124
        %v1065 = vpop.permute.xlu0 %1064
        %1066 = vrot.lane.b32.xlu0 %v702, 124
        %v1067 = vpop.permute.xlu0 %1066
        %1068 = vrot.lane.b32.xlu0 %v716, 124
        %v1069 = vpop.permute.xlu0 %1068
        %1070 = vrot.lane.b32.xlu0 %v718, 124
        %v1071 = vpop.permute.xlu0 %1070
        %1072 = vrot.lane.b32.xlu0 %v720, 124
        %v1073 = vpop.permute.xlu0 %1072
        %1074 = vrot.lane.b32.xlu0 %v744, 124
        %v1075 = vpop.permute.xlu0 %1074
        %1076 = vrot.lane.b32.xlu0 %v758, 124
        %v1077 = vpop.permute.xlu0 %1076
        %1078 = vrot.lane.b32.xlu0 %v766, 124
        %v1079 = vpop.permute.xlu0 %1078
        %1080 = vrot.lane.b32.xlu0 %v768, 124
        %v1081 = vpop.permute.xlu0 %1080
        %1082 = vrot.lane.b32.xlu0 %v751, 124
        %v1083 = vpop.permute.xlu0 %1082
        %1084 = vrot.lane.b32.xlu0 %v765, 124
        %v1085 = vpop.permute.xlu0 %1084
        %1086 = vrot.lane.b32.xlu0 %v767, 124
        %v1087 = vpop.permute.xlu0 %1086
        %1088 = vrot.lane.b32.xlu0 %v769, 124
        %v1089 = vpop.permute.xlu0 %1088
        %v1122 = vmul.f32 %v963, %v1027
        %v1123 = vmul.f32 %v965, %v1029
        %v1124 = vmul.f32 %v967, %v1031
        %v1125 = vmul.f32 %v969, %v1033
        %v1126 = vmul.f32 %v971, %v1035
        %v1127 = vmul.f32 %v973, %v1037
        %v1128 = vmul.f32 %v975, %v1039
        %v1129 = vmul.f32 %v977, %v1041
        %v1130 = vmul.f32 %v979, %v1043
        %v1131 = vmul.f32 %v981, %v1045
        %v1132 = vmul.f32 %v983, %v1047
        %v1133 = vmul.f32 %v985, %v1049
        %v1134 = vmul.f32 %v987, %v1051
        %v1135 = vmul.f32 %v989, %v1053
        %v1136 = vmul.f32 %v991, %v1055
        %v1137 = vmul.f32 %v993, %v1057
        %v1138 = vmul.f32 %v995, %v1059
        %v1139 = vmul.f32 %v997, %v1061
        %v1140 = vmul.f32 %v999, %v1063
        %v1141 = vmul.f32 %v1001, %v1065
        %v1142 = vmul.f32 %v1003, %v1067
        %v1143 = vmul.f32 %v1005, %v1069
        %v1144 = vmul.f32 %v1007, %v1071
        %v1145 = vmul.f32 %v1009, %v1073
        %v1146 = vmul.f32 %v1011, %v1075
        %v1147 = vmul.f32 %v1013, %v1077
        %v1148 = vmul.f32 %v1015, %v1079
        %v1149 = vmul.f32 %v1017, %v1081
        %v1150 = vmul.f32 %v1019, %v1083
        %v1151 = vmul.f32 %v1021, %v1085
        %v1152 = vmul.f32 %v1023, %v1087
        %v1153 = vmul.f32 %v1025, %v1089
        %1186 = vrot.lane.b32.xlu0 %v1122, 4
        %v1187 = vpop.permute.xlu0 %1186
        %1188 = vrot.lane.b32.xlu0 %v1123, 4
        %v1189 = vpop.permute.xlu0 %1188
        %1190 = vrot.lane.b32.xlu0 %v1124, 4
        %v1191 = vpop.permute.xlu0 %1190
        %1192 = vrot.lane.b32.xlu0 %v1125, 4
        %v1193 = vpop.permute.xlu0 %1192
        %1194 = vrot.lane.b32.xlu0 %v1126, 4
        %v1195 = vpop.permute.xlu0 %1194
        %1196 = vrot.lane.b32.xlu0 %v1127, 4
        %v1197 = vpop.permute.xlu0 %1196
        %1198 = vrot.lane.b32.xlu0 %v1128, 4
        %v1199 = vpop.permute.xlu0 %1198
        %1200 = vrot.lane.b32.xlu0 %v1129, 4
        %v1201 = vpop.permute.xlu0 %1200
        %1202 = vrot.lane.b32.xlu0 %v1130, 4
        %v1203 = vpop.permute.xlu0 %1202
        %1204 = vrot.lane.b32.xlu0 %v1131, 4
        %v1205 = vpop.permute.xlu0 %1204
        %1206 = vrot.lane.b32.xlu0 %v1132, 4
        %v1207 = vpop.permute.xlu0 %1206
        %1208 = vrot.lane.b32.xlu0 %v1133, 4
        %v1209 = vpop.permute.xlu0 %1208
        %1210 = vrot.lane.b32.xlu0 %v1134, 4
        %v1211 = vpop.permute.xlu0 %1210
        %1212 = vrot.lane.b32.xlu0 %v1135, 4
        %v1213 = vpop.permute.xlu0 %1212
        %1214 = vrot.lane.b32.xlu0 %v1136, 4
        %v1215 = vpop.permute.xlu0 %1214
        %1216 = vrot.lane.b32.xlu0 %v1137, 4
        %v1217 = vpop.permute.xlu0 %1216
        %1218 = vrot.lane.b32.xlu0 %v1138, 4
        %v1219 = vpop.permute.xlu0 %1218
        %1220 = vrot.lane.b32.xlu0 %v1139, 4
        %v1221 = vpop.permute.xlu0 %1220
        %1222 = vrot.lane.b32.xlu0 %v1140, 4
        %v1223 = vpop.permute.xlu0 %1222
        %1224 = vrot.lane.b32.xlu0 %v1141, 4
        %v1225 = vpop.permute.xlu0 %1224
        %1226 = vrot.lane.b32.xlu0 %v1142, 4
        %v1227 = vpop.permute.xlu0 %1226
        %1228 = vrot.lane.b32.xlu0 %v1143, 4
        %v1229 = vpop.permute.xlu0 %1228
        %1230 = vrot.lane.b32.xlu0 %v1144, 4
        %v1231 = vpop.permute.xlu0 %1230
        %1232 = vrot.lane.b32.xlu0 %v1145, 4
        %v1233 = vpop.permute.xlu0 %1232
        %1234 = vrot.lane.b32.xlu0 %v1146, 4
        %v1235 = vpop.permute.xlu0 %1234
        %1236 = vrot.lane.b32.xlu0 %v1147, 4
        %v1237 = vpop.permute.xlu0 %1236
        %1238 = vrot.lane.b32.xlu0 %v1148, 4
        %v1239 = vpop.permute.xlu0 %1238
        %1240 = vrot.lane.b32.xlu0 %v1149, 4
        %v1241 = vpop.permute.xlu0 %1240
        %1242 = vrot.lane.b32.xlu0 %v1150, 4
        %v1243 = vpop.permute.xlu0 %1242
        %1244 = vrot.lane.b32.xlu0 %v1151, 4
        %v1245 = vpop.permute.xlu0 %1244
        %1246 = vrot.lane.b32.xlu0 %v1152, 4
        %v1247 = vpop.permute.xlu0 %1246
        %1248 = vrot.lane.b32.xlu0 %v1153, 4
        %v1249 = vpop.permute.xlu0 %1248
        %v1282 = vadd.f32 %v424, %v1187
        %v1283 = vadd.f32 %v425, %v1189
        %v1284 = vadd.f32 %v426, %v1191
        %v1285 = vadd.f32 %v427, %v1193
        %v1286 = vadd.f32 %v428, %v1195
        %v1287 = vadd.f32 %v429, %v1197
        %v1288 = vadd.f32 %v430, %v1199
        %v1289 = vadd.f32 %v431, %v1201
        %v1290 = vadd.f32 %v432, %v1203
        %v1291 = vadd.f32 %v433, %v1205
        %v1292 = vadd.f32 %v434, %v1207
        %v1293 = vadd.f32 %v435, %v1209
        %v1294 = vadd.f32 %v436, %v1211
        %v1295 = vadd.f32 %v437, %v1213
        %v1296 = vadd.f32 %v438, %v1215
        %v1297 = vadd.f32 %v439, %v1217
        %v1298 = vadd.f32 %v440, %v1219
        %v1299 = vadd.f32 %v441, %v1221
        %v1300 = vadd.f32 %v442, %v1223
        %v1301 = vadd.f32 %v443, %v1225
        %v1302 = vadd.f32 %v444, %v1227
        %v1303 = vadd.f32 %v445, %v1229
        %v1304 = vadd.f32 %v446, %v1231
        %v1305 = vadd.f32 %v447, %v1233
        %v1306 = vadd.f32 %v448, %v1235
        %v1307 = vadd.f32 %v449, %v1237
        %v1308 = vadd.f32 %v450, %v1239
        %v1309 = vadd.f32 %v451, %v1241
        %v1310 = vadd.f32 %v452, %v1243
        %v1311 = vadd.f32 %v453, %v1245
        %v1312 = vadd.f32 %v454, %v1247
        %v1313 = vadd.f32 %v455, %v1249
        %v1314 = vtanh.pop %v1282
        %v1315 = vtanh.pop %v1283
        %v1316 = vtanh.pop %v1284
        %v1317 = vtanh.pop %v1285
        %v1318 = vtanh.pop %v1286
        %v1319 = vtanh.pop %v1287
        %v1320 = vtanh.pop %v1288
        %v1321 = vtanh.pop %v1289
        %v1322 = vtanh.pop %v1290
        %v1323 = vtanh.pop %v1291
        %v1324 = vtanh.pop %v1292
        %v1325 = vtanh.pop %v1293
        %v1326 = vtanh.pop %v1294
        %v1327 = vtanh.pop %v1295
        %v1328 = vtanh.pop %v1296
        %v1329 = vtanh.pop %v1297
        %v1330 = vtanh.pop %v1298
        %v1331 = vtanh.pop %v1299
        %v1332 = vtanh.pop %v1300
        %v1333 = vtanh.pop %v1301
        %v1334 = vtanh.pop %v1302
        %v1335 = vtanh.pop %v1303
        %v1336 = vtanh.pop %v1304
        %v1337 = vtanh.pop %v1305
        %v1338 = vtanh.pop %v1306
        %v1339 = vtanh.pop %v1307
        %v1340 = vtanh.pop %v1308
        %v1341 = vtanh.pop %v1309
        %v1342 = vtanh.pop %v1310
        %v1343 = vtanh.pop %v1311
        %v1344 = vtanh.pop %v1312
        %v1345 = vtanh.pop %v1313
        %v1346 = vsub.f32 1.0, %v963
        %v1347 = vsub.f32 1.0, %v965
        %v1348 = vsub.f32 1.0, %v967
        %v1349 = vsub.f32 1.0, %v969
        %v1350 = vsub.f32 1.0, %v971
        %v1351 = vsub.f32 1.0, %v973
        %v1352 = vsub.f32 1.0, %v975
        %v1353 = vsub.f32 1.0, %v977
        %v1354 = vsub.f32 1.0, %v979
        %v1355 = vsub.f32 1.0, %v981
        %v1356 = vsub.f32 1.0, %v983
        %v1357 = vsub.f32 1.0, %v985
        %v1358 = vsub.f32 1.0, %v987
        %v1359 = vsub.f32 1.0, %v989
        %v1360 = vsub.f32 1.0, %v991
        %v1361 = vsub.f32 1.0, %v993
        %v1362 = vsub.f32 1.0, %v995
        %v1363 = vsub.f32 1.0, %v997
        %v1364 = vsub.f32 1.0, %v999
        %v1365 = vsub.f32 1.0, %v1001
        %v1366 = vsub.f32 1.0, %v1003
        %v1367 = vsub.f32 1.0, %v1005
        %v1368 = vsub.f32 1.0, %v1007
        %v1369 = vsub.f32 1.0, %v1009
        %v1370 = vsub.f32 1.0, %v1011
        %v1371 = vsub.f32 1.0, %v1013
        %v1372 = vsub.f32 1.0, %v1015
        %v1373 = vsub.f32 1.0, %v1017
        %v1374 = vsub.f32 1.0, %v1019
        %v1375 = vsub.f32 1.0, %v1021
        %v1376 = vsub.f32 1.0, %v1023
        %v1377 = vsub.f32 1.0, %v1025
        %1410 = vrot.lane.b32.xlu0 %v1314, 126
        %v1411 = vpop.permute.xlu0 %1410
        %1412 = vrot.lane.b32.xlu0 %v1315, 126
        %v1413 = vpop.permute.xlu0 %1412
        %1414 = vrot.lane.b32.xlu0 %v1316, 126
        %v1415 = vpop.permute.xlu0 %1414
        %1416 = vrot.lane.b32.xlu0 %v1317, 126
        %v1417 = vpop.permute.xlu0 %1416
        %1418 = vrot.lane.b32.xlu0 %v1318, 126
        %v1419 = vpop.permute.xlu0 %1418
        %1420 = vrot.lane.b32.xlu0 %v1319, 126
        %v1421 = vpop.permute.xlu0 %1420
        %1422 = vrot.lane.b32.xlu0 %v1320, 126
        %v1423 = vpop.permute.xlu0 %1422
        %1424 = vrot.lane.b32.xlu0 %v1321, 126
        %v1425 = vpop.permute.xlu0 %1424
        %1426 = vrot.lane.b32.xlu0 %v1322, 126
        %v1427 = vpop.permute.xlu0 %1426
        %1428 = vrot.lane.b32.xlu0 %v1323, 126
        %v1429 = vpop.permute.xlu0 %1428
        %1430 = vrot.lane.b32.xlu0 %v1324, 126
        %v1431 = vpop.permute.xlu0 %1430
        %1432 = vrot.lane.b32.xlu0 %v1325, 126
        %v1433 = vpop.permute.xlu0 %1432
        %1434 = vrot.lane.b32.xlu0 %v1326, 126
        %v1435 = vpop.permute.xlu0 %1434
        %1436 = vrot.lane.b32.xlu0 %v1327, 126
        %v1437 = vpop.permute.xlu0 %1436
        %1438 = vrot.lane.b32.xlu0 %v1328, 126
        %v1439 = vpop.permute.xlu0 %1438
        %1440 = vrot.lane.b32.xlu0 %v1329, 126
        %v1441 = vpop.permute.xlu0 %1440
        %1442 = vrot.lane.b32.xlu0 %v1330, 126
        %v1443 = vpop.permute.xlu0 %1442
        %1444 = vrot.lane.b32.xlu0 %v1331, 126
        %v1445 = vpop.permute.xlu0 %1444
        %1446 = vrot.lane.b32.xlu0 %v1332, 126
        %v1447 = vpop.permute.xlu0 %1446
        %1448 = vrot.lane.b32.xlu0 %v1333, 126
        %v1449 = vpop.permute.xlu0 %1448
        %1450 = vrot.lane.b32.xlu0 %v1334, 126
        %v1451 = vpop.permute.xlu0 %1450
        %1452 = vrot.lane.b32.xlu0 %v1335, 126
        %v1453 = vpop.permute.xlu0 %1452
        %1454 = vrot.lane.b32.xlu0 %v1336, 126
        %v1455 = vpop.permute.xlu0 %1454
        %1456 = vrot.lane.b32.xlu0 %v1337, 126
        %v1457 = vpop.permute.xlu0 %1456
        %1458 = vrot.lane.b32.xlu0 %v1338, 126
        %v1459 = vpop.permute.xlu0 %1458
        %1460 = vrot.lane.b32.xlu0 %v1339, 126
        %v1461 = vpop.permute.xlu0 %1460
        %1462 = vrot.lane.b32.xlu0 %v1340, 126
        %v1463 = vpop.permute.xlu0 %1462
        %1464 = vrot.lane.b32.xlu0 %v1341, 126
        %v1465 = vpop.permute.xlu0 %1464
        %1466 = vrot.lane.b32.xlu0 %v1342, 126
        %v1467 = vpop.permute.xlu0 %1466
        %1468 = vrot.lane.b32.xlu0 %v1343, 126
        %v1469 = vpop.permute.xlu0 %1468
        %1470 = vrot.lane.b32.xlu0 %v1344, 126
        %v1471 = vpop.permute.xlu0 %1470
        %1472 = vrot.lane.b32.xlu0 %v1345, 126
        %v1473 = vpop.permute.xlu0 %1472
        %v1506 = vmul.f32 %v1346, %v1411
        %v1507 = vmul.f32 %v1347, %v1413
        %v1508 = vmul.f32 %v1348, %v1415
        %v1509 = vmul.f32 %v1349, %v1417
        %v1510 = vmul.f32 %v1350, %v1419
        %v1511 = vmul.f32 %v1351, %v1421
        %v1512 = vmul.f32 %v1352, %v1423
        %v1513 = vmul.f32 %v1353, %v1425
        %v1514 = vmul.f32 %v1354, %v1427
        %v1515 = vmul.f32 %v1355, %v1429
        %v1516 = vmul.f32 %v1356, %v1431
        %v1517 = vmul.f32 %v1357, %v1433
        %v1518 = vmul.f32 %v1358, %v1435
        %v1519 = vmul.f32 %v1359, %v1437
        %v1520 = vmul.f32 %v1360, %v1439
        %v1521 = vmul.f32 %v1361, %v1441
        %v1522 = vmul.f32 %v1362, %v1443
        %v1523 = vmul.f32 %v1363, %v1445
        %v1524 = vmul.f32 %v1364, %v1447
        %v1525 = vmul.f32 %v1365, %v1449
        %v1526 = vmul.f32 %v1366, %v1451
        %v1527 = vmul.f32 %v1367, %v1453
        %v1528 = vmul.f32 %v1368, %v1455
        %v1529 = vmul.f32 %v1369, %v1457
        %v1530 = vmul.f32 %v1370, %v1459
        %v1531 = vmul.f32 %v1371, %v1461
        %v1532 = vmul.f32 %v1372, %v1463
        %v1533 = vmul.f32 %v1373, %v1465
        %v1534 = vmul.f32 %v1374, %v1467
        %v1535 = vmul.f32 %v1375, %v1469
        %v1536 = vmul.f32 %v1376, %v1471
        %v1537 = vmul.f32 %v1377, %v1473
        %v1538 = vcombine.high %v456, %v456
        %v1540 = vunpack.c.l.s4 1966171168
        %v1541 = vunpack.c.0.s8 %v1540
        %v1542 = vlaneseq
        %v1543 = vshrl.u32 %v1542, 7
        %v1544 = vsub.s32 %v1541, %v1543
        %v1545 = vrot.slane %v456, %v1544
        %v1547 = vunpack.c.l.s4 1966171168
        %v1548 = vunpack.c.0.s8 %v1547
        %v1549 = vlaneseq
        %v1550 = vshrl.u32 %v1549, 7
        %v1551 = vsub.s32 %v1548, %v1550
        %v1552 = vrot.slane %v1538, %v1551
        %v1553 = vcombine.high %v1545, %v1545
        %v1554 = vcombine.high %v1552, %v1552
        %v1556 = vunpack.c.l.s4 1966171168
        %v1557 = vunpack.c.0.s8 %v1556
        %v1558 = vlaneseq
        %v1559 = vshrl.u32 %v1558, 7
        %v1560 = vsub.s32 %v1557, %v1559
        %v1561 = vrot.slane %v1545, %v1560
        %v1563 = vunpack.c.l.s4 1966171168
        %v1564 = vunpack.c.0.s8 %v1563
        %v1565 = vlaneseq
        %v1566 = vshrl.u32 %v1565, 7
        %v1567 = vsub.s32 %v1564, %v1566
        %v1568 = vrot.slane %v1552, %v1567
        %v1570 = vunpack.c.l.s4 1966171168
        %v1571 = vunpack.c.0.s8 %v1570
        %v1572 = vlaneseq
        %v1573 = vshrl.u32 %v1572, 7
        %v1574 = vsub.s32 %v1571, %v1573
        %v1575 = vrot.slane %v1553, %v1574
        %v1577 = vunpack.c.l.s4 1966171168
        %v1578 = vunpack.c.0.s8 %v1577
        %v1579 = vlaneseq
        %v1580 = vshrl.u32 %v1579, 7
        %v1581 = vsub.s32 %v1578, %v1580
        %v1582 = vrot.slane %v1554, %v1581
        %v1583 = vcombine.high %v1561, %v1561
        %v1584 = vcombine.high %v1568, %v1568
        %v1585 = vcombine.high %v1575, %v1575
        %v1586 = vcombine.high %v1582, %v1582
        %v1587 = vcombine.high %v457, %v457
        %v1589 = vunpack.c.l.s4 1966171168
        %v1590 = vunpack.c.0.s8 %v1589
        %v1591 = vlaneseq
        %v1592 = vshrl.u32 %v1591, 7
        %v1593 = vsub.s32 %v1590, %v1592
        %v1594 = vrot.slane %v457, %v1593
        %v1596 = vunpack.c.l.s4 1966171168
        %v1597 = vunpack.c.0.s8 %v1596
        %v1598 = vlaneseq
        %v1599 = vshrl.u32 %v1598, 7
        %v1600 = vsub.s32 %v1597, %v1599
        %v1601 = vrot.slane %v1587, %v1600
        %v1602 = vcombine.high %v1594, %v1594
        %v1603 = vcombine.high %v1601, %v1601
        %v1605 = vunpack.c.l.s4 1966171168
        %v1606 = vunpack.c.0.s8 %v1605
        %v1607 = vlaneseq
        %v1608 = vshrl.u32 %v1607, 7
        %v1609 = vsub.s32 %v1606, %v1608
        %v1610 = vrot.slane %v1594, %v1609
        %v1612 = vunpack.c.l.s4 1966171168
        %v1613 = vunpack.c.0.s8 %v1612
        %v1614 = vlaneseq
        %v1615 = vshrl.u32 %v1614, 7
        %v1616 = vsub.s32 %v1613, %v1615
        %v1617 = vrot.slane %v1601, %v1616
        %v1619 = vunpack.c.l.s4 1966171168
        %v1620 = vunpack.c.0.s8 %v1619
        %v1621 = vlaneseq
        %v1622 = vshrl.u32 %v1621, 7
        %v1623 = vsub.s32 %v1620, %v1622
        %v1624 = vrot.slane %v1602, %v1623
        %v1626 = vunpack.c.l.s4 1966171168
        %v1627 = vunpack.c.0.s8 %v1626
        %v1628 = vlaneseq
        %v1629 = vshrl.u32 %v1628, 7
        %v1630 = vsub.s32 %v1627, %v1629
        %v1631 = vrot.slane %v1603, %v1630
        %v1632 = vcombine.high %v1610, %v1610
        %v1633 = vcombine.high %v1617, %v1617
        %v1634 = vcombine.high %v1624, %v1624
        %v1635 = vcombine.high %v1631, %v1631
        %v1636 = vcombine.high %v458, %v458
        %v1638 = vunpack.c.l.s4 1966171168
        %v1639 = vunpack.c.0.s8 %v1638
        %v1640 = vlaneseq
        %v1641 = vshrl.u32 %v1640, 7
        %v1642 = vsub.s32 %v1639, %v1641
        %v1643 = vrot.slane %v458, %v1642
        %v1645 = vunpack.c.l.s4 1966171168
        %v1646 = vunpack.c.0.s8 %v1645
        %v1647 = vlaneseq
        %v1648 = vshrl.u32 %v1647, 7
        %v1649 = vsub.s32 %v1646, %v1648
        %v1650 = vrot.slane %v1636, %v1649
        %v1651 = vcombine.high %v1643, %v1643
        %v1652 = vcombine.high %v1650, %v1650
        %v1654 = vunpack.c.l.s4 1966171168
        %v1655 = vunpack.c.0.s8 %v1654
        %v1656 = vlaneseq
        %v1657 = vshrl.u32 %v1656, 7
        %v1658 = vsub.s32 %v1655, %v1657
        %v1659 = vrot.slane %v1643, %v1658
        %v1661 = vunpack.c.l.s4 1966171168
        %v1662 = vunpack.c.0.s8 %v1661
        %v1663 = vlaneseq
        %v1664 = vshrl.u32 %v1663, 7
        %v1665 = vsub.s32 %v1662, %v1664
        %v1666 = vrot.slane %v1650, %v1665
        %v1668 = vunpack.c.l.s4 1966171168
        %v1669 = vunpack.c.0.s8 %v1668
        %v1670 = vlaneseq
        %v1671 = vshrl.u32 %v1670, 7
        %v1672 = vsub.s32 %v1669, %v1671
        %v1673 = vrot.slane %v1651, %v1672
        %v1675 = vunpack.c.l.s4 1966171168
        %v1676 = vunpack.c.0.s8 %v1675
        %v1677 = vlaneseq
        %v1678 = vshrl.u32 %v1677, 7
        %v1679 = vsub.s32 %v1676, %v1678
        %v1680 = vrot.slane %v1652, %v1679
        %v1681 = vcombine.high %v1659, %v1659
        %v1682 = vcombine.high %v1666, %v1666
        %v1683 = vcombine.high %v1673, %v1673
        %v1684 = vcombine.high %v1680, %v1680
        %v1685 = vcombine.high %v459, %v459
        %v1687 = vunpack.c.l.s4 1966171168
        %v1688 = vunpack.c.0.s8 %v1687
        %v1689 = vlaneseq
        %v1690 = vshrl.u32 %v1689, 7
        %v1691 = vsub.s32 %v1688, %v1690
        %v1692 = vrot.slane %v459, %v1691
        %v1694 = vunpack.c.l.s4 1966171168
        %v1695 = vunpack.c.0.s8 %v1694
        %v1696 = vlaneseq
        %v1697 = vshrl.u32 %v1696, 7
        %v1698 = vsub.s32 %v1695, %v1697
        %v1699 = vrot.slane %v1685, %v1698
        %v1700 = vcombine.high %v1692, %v1692
        %v1701 = vcombine.high %v1699, %v1699
        %v1703 = vunpack.c.l.s4 1966171168
        %v1704 = vunpack.c.0.s8 %v1703
        %v1705 = vlaneseq
        %v1706 = vshrl.u32 %v1705, 7
        %v1707 = vsub.s32 %v1704, %v1706
        %v1708 = vrot.slane %v1692, %v1707
        %v1710 = vunpack.c.l.s4 1966171168
        %v1711 = vunpack.c.0.s8 %v1710
        %v1712 = vlaneseq
        %v1713 = vshrl.u32 %v1712, 7
        %v1714 = vsub.s32 %v1711, %v1713
        %v1715 = vrot.slane %v1699, %v1714
        %v1717 = vunpack.c.l.s4 1966171168
        %v1718 = vunpack.c.0.s8 %v1717
        %v1719 = vlaneseq
        %v1720 = vshrl.u32 %v1719, 7
        %v1721 = vsub.s32 %v1718, %v1720
        %v1722 = vrot.slane %v1700, %v1721
        %v1724 = vunpack.c.l.s4 1966171168
        %v1725 = vunpack.c.0.s8 %v1724
        %v1726 = vlaneseq
        %v1727 = vshrl.u32 %v1726, 7
        %v1728 = vsub.s32 %v1725, %v1727
        %v1729 = vrot.slane %v1701, %v1728
        %v1730 = vcombine.high %v1708, %v1708
        %v1731 = vcombine.high %v1715, %v1715
        %v1732 = vcombine.high %v1722, %v1722
        %v1733 = vcombine.high %v1729, %v1729
        %1734 = vrot.lane.b32.xlu0 %v1561, 2
        %v1735 = vpop.permute.xlu0 %1734
        %1736 = vrot.lane.b32.xlu0 %v1575, 2
        %v1737 = vpop.permute.xlu0 %1736
        %1738 = vrot.lane.b32.xlu0 %v1583, 2
        %v1739 = vpop.permute.xlu0 %1738
        %1740 = vrot.lane.b32.xlu0 %v1585, 2
        %v1741 = vpop.permute.xlu0 %1740
        %1742 = vrot.lane.b32.xlu0 %v1568, 2
        %v1743 = vpop.permute.xlu0 %1742
        %1744 = vrot.lane.b32.xlu0 %v1582, 2
        %v1745 = vpop.permute.xlu0 %1744
        %1746 = vrot.lane.b32.xlu0 %v1584, 2
        %v1747 = vpop.permute.xlu0 %1746
        %1748 = vrot.lane.b32.xlu0 %v1586, 2
        %v1749 = vpop.permute.xlu0 %1748
        %1750 = vrot.lane.b32.xlu0 %v1610, 2
        %v1751 = vpop.permute.xlu0 %1750
        %1752 = vrot.lane.b32.xlu0 %v1624, 2
        %v1753 = vpop.permute.xlu0 %1752
        %1754 = vrot.lane.b32.xlu0 %v1632, 2
        %v1755 = vpop.permute.xlu0 %1754
        %1756 = vrot.lane.b32.xlu0 %v1634, 2
        %v1757 = vpop.permute.xlu0 %1756
        %1758 = vrot.lane.b32.xlu0 %v1617, 2
        %v1759 = vpop.permute.xlu0 %1758
        %1760 = vrot.lane.b32.xlu0 %v1631, 2
        %v1761 = vpop.permute.xlu0 %1760
        %1762 = vrot.lane.b32.xlu0 %v1633, 2
        %v1763 = vpop.permute.xlu0 %1762
        %1764 = vrot.lane.b32.xlu0 %v1635, 2
        %v1765 = vpop.permute.xlu0 %1764
        %1766 = vrot.lane.b32.xlu0 %v1659, 2
        %v1767 = vpop.permute.xlu0 %1766
        %1768 = vrot.lane.b32.xlu0 %v1673, 2
        %v1769 = vpop.permute.xlu0 %1768
        %1770 = vrot.lane.b32.xlu0 %v1681, 2
        %v1771 = vpop.permute.xlu0 %1770
        %1772 = vrot.lane.b32.xlu0 %v1683, 2
        %v1773 = vpop.permute.xlu0 %1772
        %1774 = vrot.lane.b32.xlu0 %v1666, 2
        %v1775 = vpop.permute.xlu0 %1774
        %1776 = vrot.lane.b32.xlu0 %v1680, 2
        %v1777 = vpop.permute.xlu0 %1776
        %1778 = vrot.lane.b32.xlu0 %v1682, 2
        %v1779 = vpop.permute.xlu0 %1778
        %1780 = vrot.lane.b32.xlu0 %v1684, 2
        %v1781 = vpop.permute.xlu0 %1780
        %1782 = vrot.lane.b32.xlu0 %v1708, 2
        %v1783 = vpop.permute.xlu0 %1782
        %1784 = vrot.lane.b32.xlu0 %v1722, 2
        %v1785 = vpop.permute.xlu0 %1784
        %1786 = vrot.lane.b32.xlu0 %v1730, 2
        %v1787 = vpop.permute.xlu0 %1786
        %1788 = vrot.lane.b32.xlu0 %v1732, 2
        %v1789 = vpop.permute.xlu0 %1788
        %1790 = vrot.lane.b32.xlu0 %v1715, 2
        %v1791 = vpop.permute.xlu0 %1790
        %1792 = vrot.lane.b32.xlu0 %v1729, 2
        %v1793 = vpop.permute.xlu0 %1792
        %1794 = vrot.lane.b32.xlu0 %v1731, 2
        %v1795 = vpop.permute.xlu0 %1794
        %1796 = vrot.lane.b32.xlu0 %v1733, 2
        %v1797 = vpop.permute.xlu0 %1796
        %v1830 = vmul.f32 %v963, %v1735
        %v1831 = vmul.f32 %v965, %v1737
        %v1832 = vmul.f32 %v967, %v1739
        %v1833 = vmul.f32 %v969, %v1741
        %v1834 = vmul.f32 %v971, %v1743
        %v1835 = vmul.f32 %v973, %v1745
        %v1836 = vmul.f32 %v975, %v1747
        %v1837 = vmul.f32 %v977, %v1749
        %v1838 = vmul.f32 %v979, %v1751
        %v1839 = vmul.f32 %v981, %v1753
        %v1840 = vmul.f32 %v983, %v1755
        %v1841 = vmul.f32 %v985, %v1757
        %v1842 = vmul.f32 %v987, %v1759
        %v1843 = vmul.f32 %v989, %v1761
        %v1844 = vmul.f32 %v991, %v1763
        %v1845 = vmul.f32 %v993, %v1765
        %v1846 = vmul.f32 %v995, %v1767
        %v1847 = vmul.f32 %v997, %v1769
        %v1848 = vmul.f32 %v999, %v1771
        %v1849 = vmul.f32 %v1001, %v1773
        %v1850 = vmul.f32 %v1003, %v1775
        %v1851 = vmul.f32 %v1005, %v1777
        %v1852 = vmul.f32 %v1007, %v1779
        %v1853 = vmul.f32 %v1009, %v1781
        %v1854 = vmul.f32 %v1011, %v1783
        %v1855 = vmul.f32 %v1013, %v1785
        %v1856 = vmul.f32 %v1015, %v1787
        %v1857 = vmul.f32 %v1017, %v1789
        %v1858 = vmul.f32 %v1019, %v1791
        %v1859 = vmul.f32 %v1021, %v1793
        %v1860 = vmul.f32 %v1023, %v1795
        %v1861 = vmul.f32 %v1025, %v1797
        %v1862 = vadd.f32 %v1506, %v1830
        %v1863 = vadd.f32 %v1507, %v1831
        %v1864 = vadd.f32 %v1508, %v1832
        %v1865 = vadd.f32 %v1509, %v1833
        %v1866 = vadd.f32 %v1510, %v1834
        %v1867 = vadd.f32 %v1511, %v1835
        %v1868 = vadd.f32 %v1512, %v1836
        %v1869 = vadd.f32 %v1513, %v1837
        %v1870 = vadd.f32 %v1514, %v1838
        %v1871 = vadd.f32 %v1515, %v1839
        %v1872 = vadd.f32 %v1516, %v1840
        %v1873 = vadd.f32 %v1517, %v1841
        %v1874 = vadd.f32 %v1518, %v1842
        %v1875 = vadd.f32 %v1519, %v1843
        %v1876 = vadd.f32 %v1520, %v1844
        %v1877 = vadd.f32 %v1521, %v1845
        %v1878 = vadd.f32 %v1522, %v1846
        %v1879 = vadd.f32 %v1523, %v1847
        %v1880 = vadd.f32 %v1524, %v1848
        %v1881 = vadd.f32 %v1525, %v1849
        %v1882 = vadd.f32 %v1526, %v1850
        %v1883 = vadd.f32 %v1527, %v1851
        %v1884 = vadd.f32 %v1528, %v1852
        %v1885 = vadd.f32 %v1529, %v1853
        %v1886 = vadd.f32 %v1530, %v1854
        %v1887 = vadd.f32 %v1531, %v1855
        %v1888 = vadd.f32 %v1532, %v1856
        %v1889 = vadd.f32 %v1533, %v1857
        %v1890 = vadd.f32 %v1534, %v1858
        %v1891 = vadd.f32 %v1535, %v1859
        %v1892 = vadd.f32 %v1536, %v1860
        %v1893 = vadd.f32 %v1537, %v1861
        %v1926 = vcombine.low %v1862, %v1863
        %v1927 = vcombine.low %v1864, %v1865
        %v1928 = vcombine.low %v1866, %v1867
        %v1929 = vcombine.low %v1868, %v1869
        %v1931 = vunpack.c.l.s4 1966171168
        %v1932 = vunpack.c.0.s8 %v1931
        %v1933 = vlaneseq
        %v1934 = vshrl.u32 %v1933, 7
        %v1935 = vsub.s32 %v1932, %v1934
        %v1936 = vrot.slane %v1926, %v1935
        %v1938 = vunpack.c.l.s4 1966171168
        %v1939 = vunpack.c.0.s8 %v1938
        %v1940 = vlaneseq
        %v1941 = vshrl.u32 %v1940, 7
        %v1942 = vsub.s32 %v1939, %v1941
        %v1943 = vrot.slane %v1927, %v1942
        %v1945 = vunpack.c.l.s4 1966171168
        %v1946 = vunpack.c.0.s8 %v1945
        %v1947 = vlaneseq
        %v1948 = vshrl.u32 %v1947, 7
        %v1949 = vsub.s32 %v1946, %v1948
        %v1950 = vrot.slane %v1928, %v1949
        %v1952 = vunpack.c.l.s4 1966171168
        %v1953 = vunpack.c.0.s8 %v1952
        %v1954 = vlaneseq
        %v1955 = vshrl.u32 %v1954, 7
        %v1956 = vsub.s32 %v1953, %v1955
        %v1957 = vrot.slane %v1929, %v1956
        %v1958 = vcombine.low %v1936, %v1943
        %v1959 = vcombine.low %v1950, %v1957
        %v1961 = vunpack.c.l.s4 1966171168
        %v1962 = vunpack.c.0.s8 %v1961
        %v1963 = vlaneseq
        %v1964 = vshrl.u32 %v1963, 7
        %v1965 = vsub.s32 %v1962, %v1964
        %v1966 = vrot.slane %v1958, %v1965
        %v1968 = vunpack.c.l.s4 1966171168
        %v1969 = vunpack.c.0.s8 %v1968
        %v1970 = vlaneseq
        %v1971 = vshrl.u32 %v1970, 7
        %v1972 = vsub.s32 %v1969, %v1971
        %v1973 = vrot.slane %v1959, %v1972
        %v1974 = vcombine.low %v1966, %v1973
        %v1975 = vcombine.low %v1870, %v1871
        %v1976 = vcombine.low %v1872, %v1873
        %v1977 = vcombine.low %v1874, %v1875
        %v1978 = vcombine.low %v1876, %v1877
        %v1980 = vunpack.c.l.s4 1966171168
        %v1981 = vunpack.c.0.s8 %v1980
        %v1982 = vlaneseq
        %v1983 = vshrl.u32 %v1982, 7
        %v1984 = vsub.s32 %v1981, %v1983
        %v1985 = vrot.slane %v1975, %v1984
        %v1987 = vunpack.c.l.s4 1966171168
        %v1988 = vunpack.c.0.s8 %v1987
        %v1989 = vlaneseq
        %v1990 = vshrl.u32 %v1989, 7
        %v1991 = vsub.s32 %v1988, %v1990
        %v1992 = vrot.slane %v1976, %v1991
        %v1994 = vunpack.c.l.s4 1966171168
        %v1995 = vunpack.c.0.s8 %v1994
        %v1996 = vlaneseq
        %v1997 = vshrl.u32 %v1996, 7
        %v1998 = vsub.s32 %v1995, %v1997
        %v1999 = vrot.slane %v1977, %v1998
        %v2001 = vunpack.c.l.s4 1966171168
        %v2002 = vunpack.c.0.s8 %v2001
        %v2003 = vlaneseq
        %v2004 = vshrl.u32 %v2003, 7
        %v2005 = vsub.s32 %v2002, %v2004
        %v2006 = vrot.slane %v1978, %v2005
        %v2007 = vcombine.low %v1985, %v1992
        %v2008 = vcombine.low %v1999, %v2006
        %v2010 = vunpack.c.l.s4 1966171168
        %v2011 = vunpack.c.0.s8 %v2010
        %v2012 = vlaneseq
        %v2013 = vshrl.u32 %v2012, 7
        %v2014 = vsub.s32 %v2011, %v2013
        %v2015 = vrot.slane %v2007, %v2014
        %v2017 = vunpack.c.l.s4 1966171168
        %v2018 = vunpack.c.0.s8 %v2017
        %v2019 = vlaneseq
        %v2020 = vshrl.u32 %v2019, 7
        %v2021 = vsub.s32 %v2018, %v2020
        %v2022 = vrot.slane %v2008, %v2021
        %v2023 = vcombine.low %v2015, %v2022
        %v2024 = vcombine.low %v1878, %v1879
        %v2025 = vcombine.low %v1880, %v1881
        %v2026 = vcombine.low %v1882, %v1883
        %v2027 = vcombine.low %v1884, %v1885
        %v2029 = vunpack.c.l.s4 1966171168
        %v2030 = vunpack.c.0.s8 %v2029
        %v2031 = vlaneseq
        %v2032 = vshrl.u32 %v2031, 7
        %v2033 = vsub.s32 %v2030, %v2032
        %v2034 = vrot.slane %v2024, %v2033
        %v2036 = vunpack.c.l.s4 1966171168
        %v2037 = vunpack.c.0.s8 %v2036
        %v2038 = vlaneseq
        %v2039 = vshrl.u32 %v2038, 7
        %v2040 = vsub.s32 %v2037, %v2039
        %v2041 = vrot.slane %v2025, %v2040
        %v2043 = vunpack.c.l.s4 1966171168
        %v2044 = vunpack.c.0.s8 %v2043
        %v2045 = vlaneseq
        %v2046 = vshrl.u32 %v2045, 7
        %v2047 = vsub.s32 %v2044, %v2046
        %v2048 = vrot.slane %v2026, %v2047
        %v2050 = vunpack.c.l.s4 1966171168
        %v2051 = vunpack.c.0.s8 %v2050
        %v2052 = vlaneseq
        %v2053 = vshrl.u32 %v2052, 7
        %v2054 = vsub.s32 %v2051, %v2053
        %v2055 = vrot.slane %v2027, %v2054
        %v2056 = vcombine.low %v2034, %v2041
        %v2057 = vcombine.low %v2048, %v2055
        %v2059 = vunpack.c.l.s4 1966171168
        %v2060 = vunpack.c.0.s8 %v2059
        %v2061 = vlaneseq
        %v2062 = vshrl.u32 %v2061, 7
        %v2063 = vsub.s32 %v2060, %v2062
        %v2064 = vrot.slane %v2056, %v2063
        %v2066 = vunpack.c.l.s4 1966171168
        %v2067 = vunpack.c.0.s8 %v2066
        %v2068 = vlaneseq
        %v2069 = vshrl.u32 %v2068, 7
        %v2070 = vsub.s32 %v2067, %v2069
        %v2071 = vrot.slane %v2057, %v2070
        %v2072 = vcombine.low %v2064, %v2071
        %v2073 = vcombine.low %v1886, %v1887
        %v2074 = vcombine.low %v1888, %v1889
        %v2075 = vcombine.low %v1890, %v1891
        %v2076 = vcombine.low %v1892, %v1893
        %v2078 = vunpack.c.l.s4 1966171168
        %v2079 = vunpack.c.0.s8 %v2078
        %v2080 = vlaneseq
        %v2081 = vshrl.u32 %v2080, 7
        %v2082 = vsub.s32 %v2079, %v2081
        %v2083 = vrot.slane %v2073, %v2082
        %v2085 = vunpack.c.l.s4 1966171168
        %v2086 = vunpack.c.0.s8 %v2085
        %v2087 = vlaneseq
        %v2088 = vshrl.u32 %v2087, 7
        %v2089 = vsub.s32 %v2086, %v2088
        %v2090 = vrot.slane %v2074, %v2089
        %v2092 = vunpack.c.l.s4 1966171168
        %v2093 = vunpack.c.0.s8 %v2092
        %v2094 = vlaneseq
        %v2095 = vshrl.u32 %v2094, 7
        %v2096 = vsub.s32 %v2093, %v2095
        %v2097 = vrot.slane %v2075, %v2096
        %v2099 = vunpack.c.l.s4 1966171168
        %v2100 = vunpack.c.0.s8 %v2099
        %v2101 = vlaneseq
        %v2102 = vshrl.u32 %v2101, 7
        %v2103 = vsub.s32 %v2100, %v2102
        %v2104 = vrot.slane %v2076, %v2103
        %v2105 = vcombine.low %v2083, %v2090
        %v2106 = vcombine.low %v2097, %v2104
        %v2108 = vunpack.c.l.s4 1966171168
        %v2109 = vunpack.c.0.s8 %v2108
        %v2110 = vlaneseq
        %v2111 = vshrl.u32 %v2110, 7
        %v2112 = vsub.s32 %v2109, %v2111
        %v2113 = vrot.slane %v2105, %v2112
        %v2115 = vunpack.c.l.s4 1966171168
        %v2116 = vunpack.c.0.s8 %v2115
        %v2117 = vlaneseq
        %v2118 = vshrl.u32 %v2117, 7
        %v2119 = vsub.s32 %v2116, %v2118
        %v2120 = vrot.slane %v2106, %v2119
        %v2121 = vcombine.low %v2113, %v2120
        %2122 = vrot.lane.b32.xlu0 %v1974, 126
        %v2123 = vpop.permute.xlu0 %2122
        %2124 = vrot.lane.b32.xlu0 %v2023, 126
        %v2125 = vpop.permute.xlu0 %2124
        %2126 = vrot.lane.b32.xlu0 %v2072, 126
        %v2127 = vpop.permute.xlu0 %2126
        %2128 = vrot.lane.b32.xlu0 %v2121, 126
        %v2129 = vpop.permute.xlu0 %2128
        %2134 = vst.msk [vmem:[#allocation2] sm:$0xff] %vm468, %v2123
        %2135 = vst.msk [vmem:[#allocation2 + $0x8] sm:$0xff] %vm468, %v2125
        %2136 = vst.msk [vmem:[#allocation2 + $0x10] sm:$0xff] %vm468, %v2127
        %2137 = vst.msk [vmem:[#allocation2 + $0x18] sm:$0xff] %vm468, %v2129
        %v2138 = vlaneseq
        %v2139 = vshrl.u32 %v2138, 7
        %v2140 = vsub.s32 0, %v2139
        %v2141 = vrot.slane %v1862, %v2140
        %v2142 = vlaneseq
        %v2143 = vshrl.u32 %v2142, 7
        %v2144 = vsub.s32 0, %v2143
        %v2145 = vrot.slane %v1863, %v2144
        %v2146 = vlaneseq
        %v2147 = vshrl.u32 %v2146, 7
        %v2148 = vsub.s32 0, %v2147
        %v2149 = vrot.slane %v1864, %v2148
        %v2150 = vlaneseq
        %v2151 = vshrl.u32 %v2150, 7
        %v2152 = vsub.s32 0, %v2151
        %v2153 = vrot.slane %v1865, %v2152
        %v2154 = vlaneseq
        %v2155 = vshrl.u32 %v2154, 7
        %v2156 = vsub.s32 0, %v2155
        %v2157 = vrot.slane %v1866, %v2156
        %v2158 = vlaneseq
        %v2159 = vshrl.u32 %v2158, 7
        %v2160 = vsub.s32 0, %v2159
        %v2161 = vrot.slane %v1867, %v2160
        %v2162 = vlaneseq
        %v2163 = vshrl.u32 %v2162, 7
        %v2164 = vsub.s32 0, %v2163
        %v2165 = vrot.slane %v1868, %v2164
        %v2166 = vlaneseq
        %v2167 = vshrl.u32 %v2166, 7
        %v2168 = vsub.s32 0, %v2167
        %v2169 = vrot.slane %v1869, %v2168
        %v2170 = vlaneseq
        %v2171 = vshrl.u32 %v2170, 7
        %v2172 = vsub.s32 0, %v2171
        %v2173 = vrot.slane %v1870, %v2172
        %v2174 = vlaneseq
        %v2175 = vshrl.u32 %v2174, 7
        %v2176 = vsub.s32 0, %v2175
        %v2177 = vrot.slane %v1871, %v2176
        %v2178 = vlaneseq
        %v2179 = vshrl.u32 %v2178, 7
        %v2180 = vsub.s32 0, %v2179
        %v2181 = vrot.slane %v1872, %v2180
        %v2182 = vlaneseq
        %v2183 = vshrl.u32 %v2182, 7
        %v2184 = vsub.s32 0, %v2183
        %v2185 = vrot.slane %v1873, %v2184
        %v2186 = vlaneseq
        %v2187 = vshrl.u32 %v2186, 7
        %v2188 = vsub.s32 0, %v2187
        %v2189 = vrot.slane %v1874, %v2188
        %v2190 = vlaneseq
        %v2191 = vshrl.u32 %v2190, 7
        %v2192 = vsub.s32 0, %v2191
        %v2193 = vrot.slane %v1875, %v2192
        %v2194 = vlaneseq
        %v2195 = vshrl.u32 %v2194, 7
        %v2196 = vsub.s32 0, %v2195
        %v2197 = vrot.slane %v1876, %v2196
        %v2198 = vlaneseq
        %v2199 = vshrl.u32 %v2198, 7
        %v2200 = vsub.s32 0, %v2199
        %v2201 = vrot.slane %v1877, %v2200
        %v2202 = vlaneseq
        %v2203 = vshrl.u32 %v2202, 7
        %v2204 = vsub.s32 0, %v2203
        %v2205 = vrot.slane %v1878, %v2204
        %v2206 = vlaneseq
        %v2207 = vshrl.u32 %v2206, 7
        %v2208 = vsub.s32 0, %v2207
        %v2209 = vrot.slane %v1879, %v2208
        %v2210 = vlaneseq
        %v2211 = vshrl.u32 %v2210, 7
        %v2212 = vsub.s32 0, %v2211
        %v2213 = vrot.slane %v1880, %v2212
        %v2214 = vlaneseq
        %v2215 = vshrl.u32 %v2214, 7
        %v2216 = vsub.s32 0, %v2215
        %v2217 = vrot.slane %v1881, %v2216
        %v2218 = vlaneseq
        %v2219 = vshrl.u32 %v2218, 7
        %v2220 = vsub.s32 0, %v2219
        %v2221 = vrot.slane %v1882, %v2220
        %v2222 = vlaneseq
        %v2223 = vshrl.u32 %v2222, 7
        %v2224 = vsub.s32 0, %v2223
        %v2225 = vrot.slane %v1883, %v2224
        %v2226 = vlaneseq
        %v2227 = vshrl.u32 %v2226, 7
        %v2228 = vsub.s32 0, %v2227
        %v2229 = vrot.slane %v1884, %v2228
        %v2230 = vlaneseq
        %v2231 = vshrl.u32 %v2230, 7
        %v2232 = vsub.s32 0, %v2231
        %v2233 = vrot.slane %v1885, %v2232
        %v2234 = vlaneseq
        %v2235 = vshrl.u32 %v2234, 7
        %v2236 = vsub.s32 0, %v2235
        %v2237 = vrot.slane %v1886, %v2236
        %v2238 = vlaneseq
        %v2239 = vshrl.u32 %v2238, 7
        %v2240 = vsub.s32 0, %v2239
        %v2241 = vrot.slane %v1887, %v2240
        %v2242 = vlaneseq
        %v2243 = vshrl.u32 %v2242, 7
        %v2244 = vsub.s32 0, %v2243
        %v2245 = vrot.slane %v1888, %v2244
        %v2246 = vlaneseq
        %v2247 = vshrl.u32 %v2246, 7
        %v2248 = vsub.s32 0, %v2247
        %v2249 = vrot.slane %v1889, %v2248
        %v2250 = vlaneseq
        %v2251 = vshrl.u32 %v2250, 7
        %v2252 = vsub.s32 0, %v2251
        %v2253 = vrot.slane %v1890, %v2252
        %v2254 = vlaneseq
        %v2255 = vshrl.u32 %v2254, 7
        %v2256 = vsub.s32 0, %v2255
        %v2257 = vrot.slane %v1891, %v2256
        %v2258 = vlaneseq
        %v2259 = vshrl.u32 %v2258, 7
        %v2260 = vsub.s32 0, %v2259
        %v2261 = vrot.slane %v1892, %v2260
        %v2262 = vlaneseq
        %v2263 = vshrl.u32 %v2262, 7
        %v2264 = vsub.s32 0, %v2263
        %v2265 = vrot.slane %v1893, %v2264
        %2266 = vrot.lane.b32.xlu0 %v2141, 126
        %v2267 = vpop.permute.xlu0 %2266
        %2268 = vrot.lane.b32.xlu0 %v2145, 126
        %v2269 = vpop.permute.xlu0 %2268
        %2270 = vrot.lane.b32.xlu0 %v2149, 126
        %v2271 = vpop.permute.xlu0 %2270
        %2272 = vrot.lane.b32.xlu0 %v2153, 126
        %v2273 = vpop.permute.xlu0 %2272
        %2274 = vrot.lane.b32.xlu0 %v2157, 126
        %v2275 = vpop.permute.xlu0 %2274
        %2276 = vrot.lane.b32.xlu0 %v2161, 126
        %v2277 = vpop.permute.xlu0 %2276
        %2278 = vrot.lane.b32.xlu0 %v2165, 126
        %v2279 = vpop.permute.xlu0 %2278
        %2280 = vrot.lane.b32.xlu0 %v2169, 126
        %v2281 = vpop.permute.xlu0 %2280
        %2282 = vrot.lane.b32.xlu0 %v2173, 126
        %v2283 = vpop.permute.xlu0 %2282
        %2284 = vrot.lane.b32.xlu0 %v2177, 126
        %v2285 = vpop.permute.xlu0 %2284
        %2286 = vrot.lane.b32.xlu0 %v2181, 126
        %v2287 = vpop.permute.xlu0 %2286
        %2288 = vrot.lane.b32.xlu0 %v2185, 126
        %v2289 = vpop.permute.xlu0 %2288
        %2290 = vrot.lane.b32.xlu0 %v2189, 126
        %v2291 = vpop.permute.xlu0 %2290
        %2292 = vrot.lane.b32.xlu0 %v2193, 126
        %v2293 = vpop.permute.xlu0 %2292
        %2294 = vrot.lane.b32.xlu0 %v2197, 126
        %v2295 = vpop.permute.xlu0 %2294
        %2296 = vrot.lane.b32.xlu0 %v2201, 126
        %v2297 = vpop.permute.xlu0 %2296
        %2298 = vrot.lane.b32.xlu0 %v2205, 126
        %v2299 = vpop.permute.xlu0 %2298
        %2300 = vrot.lane.b32.xlu0 %v2209, 126
        %v2301 = vpop.permute.xlu0 %2300
        %2302 = vrot.lane.b32.xlu0 %v2213, 126
        %v2303 = vpop.permute.xlu0 %2302
        %2304 = vrot.lane.b32.xlu0 %v2217, 126
        %v2305 = vpop.permute.xlu0 %2304
        %2306 = vrot.lane.b32.xlu0 %v2221, 126
        %v2307 = vpop.permute.xlu0 %2306
        %2308 = vrot.lane.b32.xlu0 %v2225, 126
        %v2309 = vpop.permute.xlu0 %2308
        %2310 = vrot.lane.b32.xlu0 %v2229, 126
        %v2311 = vpop.permute.xlu0 %2310
        %2312 = vrot.lane.b32.xlu0 %v2233, 126
        %v2313 = vpop.permute.xlu0 %2312
        %2314 = vrot.lane.b32.xlu0 %v2237, 126
        %v2315 = vpop.permute.xlu0 %2314
        %2316 = vrot.lane.b32.xlu0 %v2241, 126
        %v2317 = vpop.permute.xlu0 %2316
        %2318 = vrot.lane.b32.xlu0 %v2245, 126
        %v2319 = vpop.permute.xlu0 %2318
        %2320 = vrot.lane.b32.xlu0 %v2249, 126
        %v2321 = vpop.permute.xlu0 %2320
        %2322 = vrot.lane.b32.xlu0 %v2253, 126
        %v2323 = vpop.permute.xlu0 %2322
        %2324 = vrot.lane.b32.xlu0 %v2257, 126
        %v2325 = vpop.permute.xlu0 %2324
        %2326 = vrot.lane.b32.xlu0 %v2261, 126
        %v2327 = vpop.permute.xlu0 %2326
        %2328 = vrot.lane.b32.xlu0 %v2265, 126
        %v2329 = vpop.permute.xlu0 %2328
        %vm2362 = vcmask 8192
        %2363 = vst.msk [vmem:[%s397] sm:$0x1] %vm2362, %v2267
        %2364 = vst.msk [vmem:[%s397 + $0x1] sm:$0x1] %vm2362, %v2269
        %2365 = vst.msk [vmem:[%s397 + $0x2] sm:$0x1] %vm2362, %v2271
        %2366 = vst.msk [vmem:[%s397 + $0x3] sm:$0x1] %vm2362, %v2273
        %2367 = vst.msk [vmem:[%s397 + $0x4] sm:$0x1] %vm2362, %v2275
        %2368 = vst.msk [vmem:[%s397 + $0x5] sm:$0x1] %vm2362, %v2277
        %2369 = vst.msk [vmem:[%s397 + $0x6] sm:$0x1] %vm2362, %v2279
        %2370 = vst.msk [vmem:[%s397 + $0x7] sm:$0x1] %vm2362, %v2281
        %2371 = vst.msk [vmem:[%s397 + $0x8] sm:$0x1] %vm2362, %v2283
        %2372 = vst.msk [vmem:[%s397 + $0x9] sm:$0x1] %vm2362, %v2285
        %2373 = vst.msk [vmem:[%s397 + $0xa] sm:$0x1] %vm2362, %v2287
        %2374 = vst.msk [vmem:[%s397 + $0xb] sm:$0x1] %vm2362, %v2289
        %2375 = vst.msk [vmem:[%s397 + $0xc] sm:$0x1] %vm2362, %v2291
        %2376 = vst.msk [vmem:[%s397 + $0xd] sm:$0x1] %vm2362, %v2293
        %2377 = vst.msk [vmem:[%s397 + $0xe] sm:$0x1] %vm2362, %v2295
        %2378 = vst.msk [vmem:[%s397 + $0xf] sm:$0x1] %vm2362, %v2297
        %2379 = vst.msk [vmem:[%s397 + $0x10] sm:$0x1] %vm2362, %v2299
        %2380 = vst.msk [vmem:[%s397 + $0x11] sm:$0x1] %vm2362, %v2301
        %2381 = vst.msk [vmem:[%s397 + $0x12] sm:$0x1] %vm2362, %v2303
        %2382 = vst.msk [vmem:[%s397 + $0x13] sm:$0x1] %vm2362, %v2305
        %2383 = vst.msk [vmem:[%s397 + $0x14] sm:$0x1] %vm2362, %v2307
        %2384 = vst.msk [vmem:[%s397 + $0x15] sm:$0x1] %vm2362, %v2309
        %2385 = vst.msk [vmem:[%s397 + $0x16] sm:$0x1] %vm2362, %v2311
        %2386 = vst.msk [vmem:[%s397 + $0x17] sm:$0x1] %vm2362, %v2313
        %2387 = vst.msk [vmem:[%s397 + $0x18] sm:$0x1] %vm2362, %v2315
        %2388 = vst.msk [vmem:[%s397 + $0x19] sm:$0x1] %vm2362, %v2317
        %2389 = vst.msk [vmem:[%s397 + $0x1a] sm:$0x1] %vm2362, %v2319
        %2390 = vst.msk [vmem:[%s397 + $0x1b] sm:$0x1] %vm2362, %v2321
        %2391 = vst.msk [vmem:[%s397 + $0x1c] sm:$0x1] %vm2362, %v2323
        %2392 = vst.msk [vmem:[%s397 + $0x1d] sm:$0x1] %vm2362, %v2325
        %2393 = vst.msk [vmem:[%s397 + $0x1e] sm:$0x1] %vm2362, %v2327
        %2394 = vst.msk [vmem:[%s397 + $0x1f] sm:$0x1] %vm2362, %v2329
        %s2395 = sand.u32 %s136, 1
        %s2396 = sand.u32 %s136, 1
        %s2397 = smul.addr %s2396, 32
        %s2398 = scalar_lea.vmem [#allocation4], %s2397
        // Predicated region
        $region78: #{recurrent_residual_block.19} parent=68 // pred_check
          %p2399 = pneg %p146
        $region79: #{recurrent_residual_block.19} parent=68 // pred_check_branch
          %2401 = sbr.rel (%p2399) target = $region81
        $region80: #{recurrent_residual_block.19} parent=68 // pred_region
          %s2402 = smul.u32 %s18, 2
          %s2403 = ssub.s32 1, %s2402
          %s2404 = smul.u32 %s19, %s2403
          %s2405 = smul.u32 %s18, 15
          %s2406 = sadd.s32 %s2404, %s2405
          %s2407 = smul.addr %s18, 512
          %s2408 = sadd.s32 %s2406, %s2407
          %s2409 = scalar_lea.vmem %s3, %s2408
          // Predicated region
          $region82: #{recurrent_residual_block.19} parent=80 // pred_check
            _
          $region83: #{recurrent_residual_block.19} parent=80 // pred_check_branch
            %2411 = sbr.rel (0) target = $region85
          $region84: #{recurrent_residual_block.19} parent=80 // pred_region
            // Predicated region
            $region86: #{recurrent_residual_block.19} parent=84 // pred_check
              _
            $region87: #{recurrent_residual_block.19} parent=84 // pred_check_branch
              %2413 = sbr.rel target = $region89
            $region88: #{recurrent_residual_block.19} parent=84 // pred_region
              // Predicated region
              $region101: #{recurrent_residual_block.19} parent=88 // pred_check
                _
              $region102: #{recurrent_residual_block.19} parent=88 // pred_check_branch
                %2491 = sbr.rel (0) target = $region104
              $region103: #{recurrent_residual_block.19} parent=88 // pred_region
                loop: start=0, step=1, limit=1
                $region105: #{recurrent_residual_block.19} parent=103 // loop_pre_header
                  _
                $region106: #{recurrent_residual_block.19} parent=103 // loop_header
                  %s2493 = sphi 0, %s2497
                  %p2494 = scmp.ge.s32.totalorder %s2493, 1
                  %s2498 = sphi %s2398, %s2398
                  %s2499 = sphi %s2409, %s2409
                $region107: #{recurrent_residual_block.19} parent=103 // loop_header_branch
                  %2496 = sbr.rel (%p2494) target = $region111
                $region108: #{recurrent_residual_block.19} parent=103 // loop_body
                  _
                $region109: #{recurrent_residual_block.19} parent=103 // loop_footer
                  %s2497 = sadd.s32 1, %s2493
                $region110: #{recurrent_residual_block.19} parent=103 // loop_footer_branch
                  %2492 = sbr.rel target = $region106
                $region111: #{recurrent_residual_block.19} parent=103 // loop_exit
                  _
                %s2501 = ssub.s32 2, 1
                loop: start=0, step=1, limit=1
                $region112: #{recurrent_residual_block.19} parent=103 // loop_pre_header
                  _
                $region113: #{recurrent_residual_block.19} parent=103 // loop_header
                  %s2503 = sphi 0, %s2507
                  %p2504 = scmp.ge.s32.totalorder %s2503, 1
                  %s2508 = sphi %s2398, %s2398
                  %s2509 = sphi %s2409, %s2409
                $region114: #{recurrent_residual_block.19} parent=103 // loop_header_branch
                  %2506 = sbr.rel (%p2504) target = $region118
                $region115: #{recurrent_residual_block.19} parent=103 // loop_body
                  %v2510 = vld [vmem:[%s2508] sm:%s2501]
                  %2511 = vst [vmem:[%s2509] sm:%s2501] %v2510
                  %v2512 = vld [vmem:[%s2508 + $0x1] sm:%s2501]
                  %2513 = vst [vmem:[%s2509 + $0x10] sm:%s2501] %v2512
                  %v2514 = vld [vmem:[%s2508 + $0x2] sm:%s2501]
                  %2515 = vst [vmem:[%s2509 + $0x20] sm:%s2501] %v2514
                  %v2516 = vld [vmem:[%s2508 + $0x3] sm:%s2501]
                  %2517 = vst [vmem:[%s2509 + $0x30] sm:%s2501] %v2516
                  %v2518 = vld [vmem:[%s2508 + $0x4] sm:%s2501]
                  %2519 = vst [vmem:[%s2509 + $0x40] sm:%s2501] %v2518
                  %v2520 = vld [vmem:[%s2508 + $0x5] sm:%s2501]
                  %2521 = vst [vmem:[%s2509 + $0x50] sm:%s2501] %v2520
                  %v2522 = vld [vmem:[%s2508 + $0x6] sm:%s2501]
                  %2523 = vst [vmem:[%s2509 + $0x60] sm:%s2501] %v2522
                  %v2524 = vld [vmem:[%s2508 + $0x7] sm:%s2501]
                  %2525 = vst [vmem:[%s2509 + $0x70] sm:%s2501] %v2524
                  %v2526 = vld [vmem:[%s2508 + $0x8] sm:%s2501]
                  %2527 = vst [vmem:[%s2509 + $0x80] sm:%s2501] %v2526
                  %v2528 = vld [vmem:[%s2508 + $0x9] sm:%s2501]
                  %2529 = vst [vmem:[%s2509 + $0x90] sm:%s2501] %v2528
                  %v2530 = vld [vmem:[%s2508 + $0xa] sm:%s2501]
                  %2531 = vst [vmem:[%s2509 + $0xa0] sm:%s2501] %v2530
                  %v2532 = vld [vmem:[%s2508 + $0xb] sm:%s2501]
                  %2533 = vst [vmem:[%s2509 + $0xb0] sm:%s2501] %v2532
                  %v2534 = vld [vmem:[%s2508 + $0xc] sm:%s2501]
                  %2535 = vst [vmem:[%s2509 + $0xc0] sm:%s2501] %v2534
                  %v2536 = vld [vmem:[%s2508 + $0xd] sm:%s2501]
                  %2537 = vst [vmem:[%s2509 + $0xd0] sm:%s2501] %v2536
                  %v2538 = vld [vmem:[%s2508 + $0xe] sm:%s2501]
                  %2539 = vst [vmem:[%s2509 + $0xe0] sm:%s2501] %v2538
                  %v2540 = vld [vmem:[%s2508 + $0xf] sm:%s2501]
                  %2541 = vst [vmem:[%s2509 + $0xf0] sm:%s2501] %v2540
                  %v2542 = vld [vmem:[%s2508 + $0x10] sm:%s2501]
                  %2543 = vst [vmem:[%s2509 + $0x100] sm:%s2501] %v2542
                  %v2544 = vld [vmem:[%s2508 + $0x11] sm:%s2501]
                  %2545 = vst [vmem:[%s2509 + $0x110] sm:%s2501] %v2544
                  %v2546 = vld [vmem:[%s2508 + $0x12] sm:%s2501]
                  %2547 = vst [vmem:[%s2509 + $0x120] sm:%s2501] %v2546
                  %v2548 = vld [vmem:[%s2508 + $0x13] sm:%s2501]
                  %2549 = vst [vmem:[%s2509 + $0x130] sm:%s2501] %v2548
                  %v2550 = vld [vmem:[%s2508 + $0x14] sm:%s2501]
                  %2551 = vst [vmem:[%s2509 + $0x140] sm:%s2501] %v2550
                  %v2552 = vld [vmem:[%s2508 + $0x15] sm:%s2501]
                  %2553 = vst [vmem:[%s2509 + $0x150] sm:%s2501] %v2552
                  %v2554 = vld [vmem:[%s2508 + $0x16] sm:%s2501]
                  %2555 = vst [vmem:[%s2509 + $0x160] sm:%s2501] %v2554
                  %v2556 = vld [vmem:[%s2508 + $0x17] sm:%s2501]
                  %2557 = vst [vmem:[%s2509 + $0x170] sm:%s2501] %v2556
                  %v2558 = vld [vmem:[%s2508 + $0x18] sm:%s2501]
                  %2559 = vst [vmem:[%s2509 + $0x180] sm:%s2501] %v2558
                  %v2560 = vld [vmem:[%s2508 + $0x19] sm:%s2501]
                  %2561 = vst [vmem:[%s2509 + $0x190] sm:%s2501] %v2560
                  %v2562 = vld [vmem:[%s2508 + $0x1a] sm:%s2501]
                  %2563 = vst [vmem:[%s2509 + $0x1a0] sm:%s2501] %v2562
                  %v2564 = vld [vmem:[%s2508 + $0x1b] sm:%s2501]
                  %2565 = vst [vmem:[%s2509 + $0x1b0] sm:%s2501] %v2564
                  %v2566 = vld [vmem:[%s2508 + $0x1c] sm:%s2501]
                  %2567 = vst [vmem:[%s2509 + $0x1c0] sm:%s2501] %v2566
                  %v2568 = vld [vmem:[%s2508 + $0x1d] sm:%s2501]
                  %2569 = vst [vmem:[%s2509 + $0x1d0] sm:%s2501] %v2568
                  %v2570 = vld [vmem:[%s2508 + $0x1e] sm:%s2501]
                  %2571 = vst [vmem:[%s2509 + $0x1e0] sm:%s2501] %v2570
                  %v2572 = vld [vmem:[%s2508 + $0x1f] sm:%s2501]
                  %2573 = vst [vmem:[%s2509 + $0x1f0] sm:%s2501] %v2572
                $region116: #{recurrent_residual_block.19} parent=103 // loop_footer
                  %s2507 = sadd.s32 1, %s2503
                $region117: #{recurrent_residual_block.19} parent=103 // loop_footer_branch
                  %2502 = sbr.rel target = $region113
                $region118: #{recurrent_residual_block.19} parent=103 // loop_exit
                  _
              $region104: #{recurrent_residual_block.19} parent=88 // pred_fallthru
                _
            $region89: #{recurrent_residual_block.19} parent=84 // pred_fallthru
              _
            // Predicated region
            $region90: #{recurrent_residual_block.19} parent=84 // pred_check
              _
            $region91: #{recurrent_residual_block.19} parent=84 // pred_check_branch
              %2415 = sbr.rel (0) target = $region93
            $region92: #{recurrent_residual_block.19} parent=84 // pred_region
              %s2417 = ssub.s32 2, 1
              loop: start=0, step=1, limit=1
              $region94: #{recurrent_residual_block.19} parent=92 // loop_pre_header
                _
              $region95: #{recurrent_residual_block.19} parent=92 // loop_header
                %s2419 = sphi 0, %s2423
                %p2420 = scmp.ge.s32.totalorder %s2419, 1
                %s2424 = sphi %s2398, %s2398
                %s2425 = sphi %s2409, %s2409
              $region96: #{recurrent_residual_block.19} parent=92 // loop_header_branch
                %2422 = sbr.rel (%p2420) target = $region100
              $region97: #{recurrent_residual_block.19} parent=92 // loop_body
                %v2426 = vld [vmem:[%s2424] sm:%s2417]
                %2427 = vst [vmem:[%s2425] sm:%s2417] %v2426
                %v2428 = vld [vmem:[%s2424 + $0x1] sm:%s2417]
                %2429 = vst [vmem:[%s2425 + $0x10] sm:%s2417] %v2428
                %v2430 = vld [vmem:[%s2424 + $0x2] sm:%s2417]
                %2431 = vst [vmem:[%s2425 + $0x20] sm:%s2417] %v2430
                %v2432 = vld [vmem:[%s2424 + $0x3] sm:%s2417]
                %2433 = vst [vmem:[%s2425 + $0x30] sm:%s2417] %v2432
                %v2434 = vld [vmem:[%s2424 + $0x4] sm:%s2417]
                %2435 = vst [vmem:[%s2425 + $0x40] sm:%s2417] %v2434
                %v2436 = vld [vmem:[%s2424 + $0x5] sm:%s2417]
                %2437 = vst [vmem:[%s2425 + $0x50] sm:%s2417] %v2436
                %v2438 = vld [vmem:[%s2424 + $0x6] sm:%s2417]
                %2439 = vst [vmem:[%s2425 + $0x60] sm:%s2417] %v2438
                %v2440 = vld [vmem:[%s2424 + $0x7] sm:%s2417]
                %2441 = vst [vmem:[%s2425 + $0x70] sm:%s2417] %v2440
                %v2442 = vld [vmem:[%s2424 + $0x8] sm:%s2417]
                %2443 = vst [vmem:[%s2425 + $0x80] sm:%s2417] %v2442
                %v2444 = vld [vmem:[%s2424 + $0x9] sm:%s2417]
                %2445 = vst [vmem:[%s2425 + $0x90] sm:%s2417] %v2444
                %v2446 = vld [vmem:[%s2424 + $0xa] sm:%s2417]
                %2447 = vst [vmem:[%s2425 + $0xa0] sm:%s2417] %v2446
                %v2448 = vld [vmem:[%s2424 + $0xb] sm:%s2417]
                %2449 = vst [vmem:[%s2425 + $0xb0] sm:%s2417] %v2448
                %v2450 = vld [vmem:[%s2424 + $0xc] sm:%s2417]
                %2451 = vst [vmem:[%s2425 + $0xc0] sm:%s2417] %v2450
                %v2452 = vld [vmem:[%s2424 + $0xd] sm:%s2417]
                %2453 = vst [vmem:[%s2425 + $0xd0] sm:%s2417] %v2452
                %v2454 = vld [vmem:[%s2424 + $0xe] sm:%s2417]
                %2455 = vst [vmem:[%s2425 + $0xe0] sm:%s2417] %v2454
                %v2456 = vld [vmem:[%s2424 + $0xf] sm:%s2417]
                %2457 = vst [vmem:[%s2425 + $0xf0] sm:%s2417] %v2456
                %v2458 = vld [vmem:[%s2424 + $0x10] sm:%s2417]
                %2459 = vst [vmem:[%s2425 + $0x100] sm:%s2417] %v2458
                %v2460 = vld [vmem:[%s2424 + $0x11] sm:%s2417]
                %2461 = vst [vmem:[%s2425 + $0x110] sm:%s2417] %v2460
                %v2462 = vld [vmem:[%s2424 + $0x12] sm:%s2417]
                %2463 = vst [vmem:[%s2425 + $0x120] sm:%s2417] %v2462
                %v2464 = vld [vmem:[%s2424 + $0x13] sm:%s2417]
                %2465 = vst [vmem:[%s2425 + $0x130] sm:%s2417] %v2464
                %v2466 = vld [vmem:[%s2424 + $0x14] sm:%s2417]
                %2467 = vst [vmem:[%s2425 + $0x140] sm:%s2417] %v2466
                %v2468 = vld [vmem:[%s2424 + $0x15] sm:%s2417]
                %2469 = vst [vmem:[%s2425 + $0x150] sm:%s2417] %v2468
                %v2470 = vld [vmem:[%s2424 + $0x16] sm:%s2417]
                %2471 = vst [vmem:[%s2425 + $0x160] sm:%s2417] %v2470
                %v2472 = vld [vmem:[%s2424 + $0x17] sm:%s2417]
                %2473 = vst [vmem:[%s2425 + $0x170] sm:%s2417] %v2472
                %v2474 = vld [vmem:[%s2424 + $0x18] sm:%s2417]
                %2475 = vst [vmem:[%s2425 + $0x180] sm:%s2417] %v2474
                %v2476 = vld [vmem:[%s2424 + $0x19] sm:%s2417]
                %2477 = vst [vmem:[%s2425 + $0x190] sm:%s2417] %v2476
                %v2478 = vld [vmem:[%s2424 + $0x1a] sm:%s2417]
                %2479 = vst [vmem:[%s2425 + $0x1a0] sm:%s2417] %v2478
                %v2480 = vld [vmem:[%s2424 + $0x1b] sm:%s2417]
                %2481 = vst [vmem:[%s2425 + $0x1b0] sm:%s2417] %v2480
                %v2482 = vld [vmem:[%s2424 + $0x1c] sm:%s2417]
                %2483 = vst [vmem:[%s2425 + $0x1c0] sm:%s2417] %v2482
                %v2484 = vld [vmem:[%s2424 + $0x1d] sm:%s2417]
                %2485 = vst [vmem:[%s2425 + $0x1d0] sm:%s2417] %v2484
                %v2486 = vld [vmem:[%s2424 + $0x1e] sm:%s2417]
                %2487 = vst [vmem:[%s2425 + $0x1e0] sm:%s2417] %v2486
                %v2488 = vld [vmem:[%s2424 + $0x1f] sm:%s2417]
                %2489 = vst [vmem:[%s2425 + $0x1f0] sm:%s2417] %v2488
              $region98: #{recurrent_residual_block.19} parent=92 // loop_footer
                %s2423 = sadd.s32 1, %s2419
              $region99: #{recurrent_residual_block.19} parent=92 // loop_footer_branch
                %2418 = sbr.rel target = $region95
              $region100: #{recurrent_residual_block.19} parent=92 // loop_exit
                _
            $region93: #{recurrent_residual_block.19} parent=84 // pred_fallthru
              _
          $region85: #{recurrent_residual_block.19} parent=80 // pred_fallthru
            _
          %2574 = vnop
        $region81: #{recurrent_residual_block.19} parent=68 // pred_fallthru
          _
      $region69: #{recurrent_residual_block.19} parent=5 // pred_fallthru
        _
      %p2575 = scmp.le.s32.totalorder 2, %s9
      // Predicated region
      $region119: #{recurrent_residual_block.19} parent=5 // pred_check
        %p2576 = pneg %p2575
      $region120: #{recurrent_residual_block.19} parent=5 // pred_check_branch
        %2578 = sbr.rel (%p2576) target = $region122
      $region121: #{recurrent_residual_block.19} parent=5 // pred_region
        %s2579 = ssub.s32 %s9, 2
        // Predicated region
        $region123: #{recurrent_residual_block.19} parent=121 // pred_check
          %p2580 = pneg %p152
        $region124: #{recurrent_residual_block.19} parent=121 // pred_check_branch
          %2582 = sbr.rel (%p2580) target = $region126
        $region125: #{recurrent_residual_block.19} parent=121 // pred_region
          %s2583 = sand.u32 %s137, 1
          %s2584 = sand.u32 %s137, 1
          %s2585 = smul.addr %s2584, 32
          %s2586 = scalar_lea.vmem [#allocation4], %s2585
        $region126: #{recurrent_residual_block.19} parent=121 // pred_fallthru
          _
      $region122: #{recurrent_residual_block.19} parent=5 // pred_fallthru
        _
    $region6: #{recurrent_residual_block.19} parent=1 // loop_footer
      %s13 = sadd.s32 1, %s9
    $region7: #{recurrent_residual_block.19} parent=1 // loop_footer_branch
      %8 = sbr.rel target = $region3
    $region8: #{recurrent_residual_block.19} parent=1 // loop_exit
      _

// kernel: recurrent_residual_block.18
$region0: #{recurrent_residual_block.18}
  #allocation0 [shape = 'u32[]', space=smem, size = 0x4, offset = 0x4, fixed_abs, tag = 'smem constant byte address 0x4 - core index']
  #allocation1 [shape = 'u32[144,128]{1,0:T(1,128)}', space=vmem, size = 0x12000, scoped, tag = 'internal scratch']
  %s0 = inlined_call_operand.vmem [shape: f32[512,4], index: 0, kind: input, shape index: {}]
  %s1 = inlined_call_operand.vmem [shape: f32[2,512,2], index: 1, kind: input, shape index: {}]
  %s2 = inlined_call_operand.vmem [shape: f32[4,12], index: 2, kind: input, shape index: {}]
  %s3 = inlined_call_operand.vmem [shape: f32[1,12], index: 3, kind: input, shape index: {}]
  %s4 = inlined_call_operand.vmem [shape: f32[2,512,6], index: 4, kind: output, shape index: {}]
  %s5 = sld [smem:[#allocation0]]
  $region26: #{recurrent_residual_block.18} parent=0
    _
  %s7 = ssub.s32 1, %s5
  %s8 = scalar_select 0, %s7, %s5
  // Predicated region
  $region2: #{recurrent_residual_block.18} parent=0 // pred_check
    _
  $region3: #{recurrent_residual_block.18} parent=0 // pred_check_branch
    %10 = sbr.rel (0) target = $region5
  $region4: #{recurrent_residual_block.18} parent=0 // pred_region
    _
  $region5: #{recurrent_residual_block.18} parent=0 // pred_fallthru
    _
  // Predicated region
  $region6: #{recurrent_residual_block.18} parent=0 // pred_check
    _
  $region7: #{recurrent_residual_block.18} parent=0 // pred_check_branch
    %12 = sbr.rel (0) target = $region9
  $region8: #{recurrent_residual_block.18} parent=0 // pred_region
    _
  $region9: #{recurrent_residual_block.18} parent=0 // pred_fallthru
    _
  // Predicated region
  $region10: #{recurrent_residual_block.18} parent=0 // pred_check
    _
  $region11: #{recurrent_residual_block.18} parent=0 // pred_check_branch
    %14 = sbr.rel (0) target = $region13
  $region12: #{recurrent_residual_block.18} parent=0 // pred_region
    _
  $region13: #{recurrent_residual_block.18} parent=0 // pred_fallthru
    _
  // Predicated region
  $region14: #{recurrent_residual_block.18} parent=0 // pred_check
    _
  $region15: #{recurrent_residual_block.18} parent=0 // pred_check_branch
    %16 = sbr.rel (0) target = $region17
  $region16: #{recurrent_residual_block.18} parent=0 // pred_region
    _
  $region17: #{recurrent_residual_block.18} parent=0 // pred_fallthru
    _
  %v17 = vld [vmem:[%s1] sm:$0xff]
  %v18 = vld [vmem:[%s1 + $0x8] sm:$0xff]
  %v19 = vld [vmem:[%s1 + $0x10] sm:$0xff]
  %v20 = vld [vmem:[%s1 + $0x18] sm:$0xff]
  %v21 = vld [vmem:[%s1 + $0x20] sm:$0xff]
  %v22 = vld [vmem:[%s1 + $0x28] sm:$0xff]
  %v23 = vld [vmem:[%s1 + $0x30] sm:$0xff]
  %v24 = vld [vmem:[%s1 + $0x38] sm:$0xff]
  %v25 = vld [vmem:[%s1 + $0x40] sm:$0xff]
  %v26 = vld [vmem:[%s1 + $0x48] sm:$0xff]
  %v27 = vld [vmem:[%s1 + $0x50] sm:$0xff]
  %v28 = vld [vmem:[%s1 + $0x58] sm:$0xff]
  %v29 = vld [vmem:[%s1 + $0x60] sm:$0xff]
  %v30 = vld [vmem:[%s1 + $0x68] sm:$0xff]
  %v31 = vld [vmem:[%s1 + $0x70] sm:$0xff]
  %v32 = vld [vmem:[%s1 + $0x78] sm:$0xff]
  %v33 = vld [vmem:[%s1 + $0x80] sm:$0xff]
  %v34 = vld [vmem:[%s1 + $0x88] sm:$0xff]
  %v35 = vld [vmem:[%s1 + $0x90] sm:$0xff]
  %v36 = vld [vmem:[%s1 + $0x98] sm:$0xff]
  %v37 = vld [vmem:[%s1 + $0xa0] sm:$0xff]
  %v38 = vld [vmem:[%s1 + $0xa8] sm:$0xff]
  %v39 = vld [vmem:[%s1 + $0xb0] sm:$0xff]
  %v40 = vld [vmem:[%s1 + $0xb8] sm:$0xff]
  %v41 = vld [vmem:[%s1 + $0xc0] sm:$0xff]
  %v42 = vld [vmem:[%s1 + $0xc8] sm:$0xff]
  %v43 = vld [vmem:[%s1 + $0xd0] sm:$0xff]
  %v44 = vld [vmem:[%s1 + $0xd8] sm:$0xff]
  %v45 = vld [vmem:[%s1 + $0xe0] sm:$0xff]
  %v46 = vld [vmem:[%s1 + $0xe8] sm:$0xff]
  %v47 = vld [vmem:[%s1 + $0xf0] sm:$0xff]
  %v48 = vld [vmem:[%s1 + $0xf8] sm:$0xff]
  %v49 = vld [vmem:[%s1 + $0x100] sm:$0xff]
  %v50 = vld [vmem:[%s1 + $0x108] sm:$0xff]
  %v51 = vld [vmem:[%s1 + $0x110] sm:$0xff]
  %v52 = vld [vmem:[%s1 + $0x118] sm:$0xff]
  %v53 = vld [vmem:[%s1 + $0x120] sm:$0xff]
  %v54 = vld [vmem:[%s1 + $0x128] sm:$0xff]
  %v55 = vld [vmem:[%s1 + $0x130] sm:$0xff]
  %v56 = vld [vmem:[%s1 + $0x138] sm:$0xff]
  %v57 = vld [vmem:[%s1 + $0x140] sm:$0xff]
  %v58 = vld [vmem:[%s1 + $0x148] sm:$0xff]
  %v59 = vld [vmem:[%s1 + $0x150] sm:$0xff]
  %v60 = vld [vmem:[%s1 + $0x158] sm:$0xff]
  %v61 = vld [vmem:[%s1 + $0x160] sm:$0xff]
  %v62 = vld [vmem:[%s1 + $0x168] sm:$0xff]
  %v63 = vld [vmem:[%s1 + $0x170] sm:$0xff]
  %v64 = vld [vmem:[%s1 + $0x178] sm:$0xff]
  %v65 = vld [vmem:[%s1 + $0x180] sm:$0xff]
  %v66 = vld [vmem:[%s1 + $0x188] sm:$0xff]
  %v67 = vld [vmem:[%s1 + $0x190] sm:$0xff]
  %v68 = vld [vmem:[%s1 + $0x198] sm:$0xff]
  %v69 = vld [vmem:[%s1 + $0x1a0] sm:$0xff]
  %v70 = vld [vmem:[%s1 + $0x1a8] sm:$0xff]
  %v71 = vld [vmem:[%s1 + $0x1b0] sm:$0xff]
  %v72 = vld [vmem:[%s1 + $0x1b8] sm:$0xff]
  %v73 = vld [vmem:[%s1 + $0x1c0] sm:$0xff]
  %v74 = vld [vmem:[%s1 + $0x1c8] sm:$0xff]
  %v75 = vld [vmem:[%s1 + $0x1d0] sm:$0xff]
  %v76 = vld [vmem:[%s1 + $0x1d8] sm:$0xff]
  %v77 = vld [vmem:[%s1 + $0x1e0] sm:$0xff]
  %v78 = vld [vmem:[%s1 + $0x1e8] sm:$0xff]
  %v79 = vld [vmem:[%s1 + $0x1f0] sm:$0xff]
  %v80 = vld [vmem:[%s1 + $0x1f8] sm:$0xff]
  %s81 = scalar_lea.vmem %s1, 512
  %v82 = vld [vmem:[%s81] sm:$0xff]
  %v83 = vld [vmem:[%s81 + $0x8] sm:$0xff]
  %v84 = vld [vmem:[%s81 + $0x10] sm:$0xff]
  %v85 = vld [vmem:[%s81 + $0x18] sm:$0xff]
  %v86 = vld [vmem:[%s81 + $0x20] sm:$0xff]
  %v87 = vld [vmem:[%s81 + $0x28] sm:$0xff]
  %v88 = vld [vmem:[%s81 + $0x30] sm:$0xff]
  %v89 = vld [vmem:[%s81 + $0x38] sm:$0xff]
  %v90 = vld [vmem:[%s81 + $0x40] sm:$0xff]
  %v91 = vld [vmem:[%s81 + $0x48] sm:$0xff]
  %v92 = vld [vmem:[%s81 + $0x50] sm:$0xff]
  %v93 = vld [vmem:[%s81 + $0x58] sm:$0xff]
  %v94 = vld [vmem:[%s81 + $0x60] sm:$0xff]
  %v95 = vld [vmem:[%s81 + $0x68] sm:$0xff]
  %v96 = vld [vmem:[%s81 + $0x70] sm:$0xff]
  %v97 = vld [vmem:[%s81 + $0x78] sm:$0xff]
  %v98 = vld [vmem:[%s81 + $0x80] sm:$0xff]
  %v99 = vld [vmem:[%s81 + $0x88] sm:$0xff]
  %v100 = vld [vmem:[%s81 + $0x90] sm:$0xff]
  %v101 = vld [vmem:[%s81 + $0x98] sm:$0xff]
  %v102 = vld [vmem:[%s81 + $0xa0] sm:$0xff]
  %v103 = vld [vmem:[%s81 + $0xa8] sm:$0xff]
  %v104 = vld [vmem:[%s81 + $0xb0] sm:$0xff]
  %v105 = vld [vmem:[%s81 + $0xb8] sm:$0xff]
  %v106 = vld [vmem:[%s81 + $0xc0] sm:$0xff]
  %v107 = vld [vmem:[%s81 + $0xc8] sm:$0xff]
  %v108 = vld [vmem:[%s81 + $0xd0] sm:$0xff]
  %v109 = vld [vmem:[%s81 + $0xd8] sm:$0xff]
  %v110 = vld [vmem:[%s81 + $0xe0] sm:$0xff]
  %v111 = vld [vmem:[%s81 + $0xe8] sm:$0xff]
  %v112 = vld [vmem:[%s81 + $0xf0] sm:$0xff]
  %v113 = vld [vmem:[%s81 + $0xf8] sm:$0xff]
  %v114 = vld [vmem:[%s81 + $0x100] sm:$0xff]
  %v115 = vld [vmem:[%s81 + $0x108] sm:$0xff]
  %v116 = vld [vmem:[%s81 + $0x110] sm:$0xff]
  %v117 = vld [vmem:[%s81 + $0x118] sm:$0xff]
  %v118 = vld [vmem:[%s81 + $0x120] sm:$0xff]
  %v119 = vld [vmem:[%s81 + $0x128] sm:$0xff]
  %v120 = vld [vmem:[%s81 + $0x130] sm:$0xff]
  %v121 = vld [vmem:[%s81 + $0x138] sm:$0xff]
  %v122 = vld [vmem:[%s81 + $0x140] sm:$0xff]
  %v123 = vld [vmem:[%s81 + $0x148] sm:$0xff]
  %v124 = vld [vmem:[%s81 + $0x150] sm:$0xff]
  %v125 = vld [vmem:[%s81 + $0x158] sm:$0xff]
  %v126 = vld [vmem:[%s81 + $0x160] sm:$0xff]
  %v127 = vld [vmem:[%s81 + $0x168] sm:$0xff]
  %v128 = vld [vmem:[%s81 + $0x170] sm:$0xff]
  %v129 = vld [vmem:[%s81 + $0x178] sm:$0xff]
  %v130 = vld [vmem:[%s81 + $0x180] sm:$0xff]
  %v131 = vld [vmem:[%s81 + $0x188] sm:$0xff]
  %v132 = vld [vmem:[%s81 + $0x190] sm:$0xff]
  %v133 = vld [vmem:[%s81 + $0x198] sm:$0xff]
  %v134 = vld [vmem:[%s81 + $0x1a0] sm:$0xff]
  %v135 = vld [vmem:[%s81 + $0x1a8] sm:$0xff]
  %v136 = vld [vmem:[%s81 + $0x1b0] sm:$0xff]
  %v137 = vld [vmem:[%s81 + $0x1b8] sm:$0xff]
  %v138 = vld [vmem:[%s81 + $0x1c0] sm:$0xff]
  %v139 = vld [vmem:[%s81 + $0x1c8] sm:$0xff]
  %v140 = vld [vmem:[%s81 + $0x1d0] sm:$0xff]
  %v141 = vld [vmem:[%s81 + $0x1d8] sm:$0xff]
  %v142 = vld [vmem:[%s81 + $0x1e0] sm:$0xff]
  %v143 = vld [vmem:[%s81 + $0x1e8] sm:$0xff]
  %v144 = vld [vmem:[%s81 + $0x1f0] sm:$0xff]
  %v145 = vld [vmem:[%s81 + $0x1f8] sm:$0xff]
  %210 = vrot.lane.b32.xlu0 %v82, 2
  %v211 = vpop.permute.xlu0 %210
  %212 = vrot.lane.b32.xlu0 %v83, 2
  %v213 = vpop.permute.xlu0 %212
  %214 = vrot.lane.b32.xlu0 %v84, 2
  %v215 = vpop.permute.xlu0 %214
  %216 = vrot.lane.b32.xlu0 %v85, 2
  %v217 = vpop.permute.xlu0 %216
  %218 = vrot.lane.b32.xlu0 %v86, 2
  %v219 = vpop.permute.xlu0 %218
  %220 = vrot.lane.b32.xlu0 %v87, 2
  %v221 = vpop.permute.xlu0 %220
  %222 = vrot.lane.b32.xlu0 %v88, 2
  %v223 = vpop.permute.xlu0 %222
  %224 = vrot.lane.b32.xlu0 %v89, 2
  %v225 = vpop.permute.xlu0 %224
  %226 = vrot.lane.b32.xlu0 %v90, 2
  %v227 = vpop.permute.xlu0 %226
  %228 = vrot.lane.b32.xlu0 %v91, 2
  %v229 = vpop.permute.xlu0 %228
  %230 = vrot.lane.b32.xlu0 %v92, 2
  %v231 = vpop.permute.xlu0 %230
  %232 = vrot.lane.b32.xlu0 %v93, 2
  %v233 = vpop.permute.xlu0 %232
  %234 = vrot.lane.b32.xlu0 %v94, 2
  %v235 = vpop.permute.xlu0 %234
  %236 = vrot.lane.b32.xlu0 %v95, 2
  %v237 = vpop.permute.xlu0 %236
  %238 = vrot.lane.b32.xlu0 %v96, 2
  %v239 = vpop.permute.xlu0 %238
  %240 = vrot.lane.b32.xlu0 %v97, 2
  %v241 = vpop.permute.xlu0 %240
  %242 = vrot.lane.b32.xlu0 %v98, 2
  %v243 = vpop.permute.xlu0 %242
  %244 = vrot.lane.b32.xlu0 %v99, 2
  %v245 = vpop.permute.xlu0 %244
  %246 = vrot.lane.b32.xlu0 %v100, 2
  %v247 = vpop.permute.xlu0 %246
  %248 = vrot.lane.b32.xlu0 %v101, 2
  %v249 = vpop.permute.xlu0 %248
  %250 = vrot.lane.b32.xlu0 %v102, 2
  %v251 = vpop.permute.xlu0 %250
  %252 = vrot.lane.b32.xlu0 %v103, 2
  %v253 = vpop.permute.xlu0 %252
  %254 = vrot.lane.b32.xlu0 %v104, 2
  %v255 = vpop.permute.xlu0 %254
  %256 = vrot.lane.b32.xlu0 %v105, 2
  %v257 = vpop.permute.xlu0 %256
  %258 = vrot.lane.b32.xlu0 %v106, 2
  %v259 = vpop.permute.xlu0 %258
  %260 = vrot.lane.b32.xlu0 %v107, 2
  %v261 = vpop.permute.xlu0 %260
  %262 = vrot.lane.b32.xlu0 %v108, 2
  %v263 = vpop.permute.xlu0 %262
  %264 = vrot.lane.b32.xlu0 %v109, 2
  %v265 = vpop.permute.xlu0 %264
  %266 = vrot.lane.b32.xlu0 %v110, 2
  %v267 = vpop.permute.xlu0 %266
  %268 = vrot.lane.b32.xlu0 %v111, 2
  %v269 = vpop.permute.xlu0 %268
  %270 = vrot.lane.b32.xlu0 %v112, 2
  %v271 = vpop.permute.xlu0 %270
  %272 = vrot.lane.b32.xlu0 %v113, 2
  %v273 = vpop.permute.xlu0 %272
  %274 = vrot.lane.b32.xlu0 %v114, 2
  %v275 = vpop.permute.xlu0 %274
  %276 = vrot.lane.b32.xlu0 %v115, 2
  %v277 = vpop.permute.xlu0 %276
  %278 = vrot.lane.b32.xlu0 %v116, 2
  %v279 = vpop.permute.xlu0 %278
  %280 = vrot.lane.b32.xlu0 %v117, 2
  %v281 = vpop.permute.xlu0 %280
  %282 = vrot.lane.b32.xlu0 %v118, 2
  %v283 = vpop.permute.xlu0 %282
  %284 = vrot.lane.b32.xlu0 %v119, 2
  %v285 = vpop.permute.xlu0 %284
  %286 = vrot.lane.b32.xlu0 %v120, 2
  %v287 = vpop.permute.xlu0 %286
  %288 = vrot.lane.b32.xlu0 %v121, 2
  %v289 = vpop.permute.xlu0 %288
  %290 = vrot.lane.b32.xlu0 %v122, 2
  %v291 = vpop.permute.xlu0 %290
  %292 = vrot.lane.b32.xlu0 %v123, 2
  %v293 = vpop.permute.xlu0 %292
  %294 = vrot.lane.b32.xlu0 %v124, 2
  %v295 = vpop.permute.xlu0 %294
  %296 = vrot.lane.b32.xlu0 %v125, 2
  %v297 = vpop.permute.xlu0 %296
  %298 = vrot.lane.b32.xlu0 %v126, 2
  %v299 = vpop.permute.xlu0 %298
  %300 = vrot.lane.b32.xlu0 %v127, 2
  %v301 = vpop.permute.xlu0 %300
  %302 = vrot.lane.b32.xlu0 %v128, 2
  %v303 = vpop.permute.xlu0 %302
  %304 = vrot.lane.b32.xlu0 %v129, 2
  %v305 = vpop.permute.xlu0 %304
  %306 = vrot.lane.b32.xlu0 %v130, 2
  %v307 = vpop.permute.xlu0 %306
  %308 = vrot.lane.b32.xlu0 %v131, 2
  %v309 = vpop.permute.xlu0 %308
  %310 = vrot.lane.b32.xlu0 %v132, 2
  %v311 = vpop.permute.xlu0 %310
  %312 = vrot.lane.b32.xlu0 %v133, 2
  %v313 = vpop.permute.xlu0 %312
  %314 = vrot.lane.b32.xlu0 %v134, 2
  %v315 = vpop.permute.xlu0 %314
  %316 = vrot.lane.b32.xlu0 %v135, 2
  %v317 = vpop.permute.xlu0 %316
  %318 = vrot.lane.b32.xlu0 %v136, 2
  %v319 = vpop.permute.xlu0 %318
  %320 = vrot.lane.b32.xlu0 %v137, 2
  %v321 = vpop.permute.xlu0 %320
  %322 = vrot.lane.b32.xlu0 %v138, 2
  %v323 = vpop.permute.xlu0 %322
  %324 = vrot.lane.b32.xlu0 %v139, 2
  %v325 = vpop.permute.xlu0 %324
  %326 = vrot.lane.b32.xlu0 %v140, 2
  %v327 = vpop.permute.xlu0 %326
  %328 = vrot.lane.b32.xlu0 %v141, 2
  %v329 = vpop.permute.xlu0 %328
  %330 = vrot.lane.b32.xlu0 %v142, 2
  %v331 = vpop.permute.xlu0 %330
  %332 = vrot.lane.b32.xlu0 %v143, 2
  %v333 = vpop.permute.xlu0 %332
  %334 = vrot.lane.b32.xlu0 %v144, 2
  %v335 = vpop.permute.xlu0 %334
  %336 = vrot.lane.b32.xlu0 %v145, 2
  %v337 = vpop.permute.xlu0 %336
  %vm402 = vcmask 15360
  %v403 = vsel %vm402, %v17, %v211
  %v404 = vsel %vm402, %v18, %v213
  %v405 = vsel %vm402, %v19, %v215
  %v406 = vsel %vm402, %v20, %v217
  %v407 = vsel %vm402, %v21, %v219
  %v408 = vsel %vm402, %v22, %v221
  %v409 = vsel %vm402, %v23, %v223
  %v410 = vsel %vm402, %v24, %v225
  %v411 = vsel %vm402, %v25, %v227
  %v412 = vsel %vm402, %v26, %v229
  %v413 = vsel %vm402, %v27, %v231
  %v414 = vsel %vm402, %v28, %v233
  %v415 = vsel %vm402, %v29, %v235
  %v416 = vsel %vm402, %v30, %v237
  %v417 = vsel %vm402, %v31, %v239
  %v418 = vsel %vm402, %v32, %v241
  %v419 = vsel %vm402, %v33, %v243
  %v420 = vsel %vm402, %v34, %v245
  %v421 = vsel %vm402, %v35, %v247
  %v422 = vsel %vm402, %v36, %v249
  %v423 = vsel %vm402, %v37, %v251
  %v424 = vsel %vm402, %v38, %v253
  %v425 = vsel %vm402, %v39, %v255
  %v426 = vsel %vm402, %v40, %v257
  %v427 = vsel %vm402, %v41, %v259
  %v428 = vsel %vm402, %v42, %v261
  %v429 = vsel %vm402, %v43, %v263
  %v430 = vsel %vm402, %v44, %v265
  %v431 = vsel %vm402, %v45, %v267
  %v432 = vsel %vm402, %v46, %v269
  %v433 = vsel %vm402, %v47, %v271
  %v434 = vsel %vm402, %v48, %v273
  %v435 = vsel %vm402, %v49, %v275
  %v436 = vsel %vm402, %v50, %v277
  %v437 = vsel %vm402, %v51, %v279
  %v438 = vsel %vm402, %v52, %v281
  %v439 = vsel %vm402, %v53, %v283
  %v440 = vsel %vm402, %v54, %v285
  %v441 = vsel %vm402, %v55, %v287
  %v442 = vsel %vm402, %v56, %v289
  %v443 = vsel %vm402, %v57, %v291
  %v444 = vsel %vm402, %v58, %v293
  %v445 = vsel %vm402, %v59, %v295
  %v446 = vsel %vm402, %v60, %v297
  %v447 = vsel %vm402, %v61, %v299
  %v448 = vsel %vm402, %v62, %v301
  %v449 = vsel %vm402, %v63, %v303
  %v450 = vsel %vm402, %v64, %v305
  %v451 = vsel %vm402, %v65, %v307
  %v452 = vsel %vm402, %v66, %v309
  %v453 = vsel %vm402, %v67, %v311
  %v454 = vsel %vm402, %v68, %v313
  %v455 = vsel %vm402, %v69, %v315
  %v456 = vsel %vm402, %v70, %v317
  %v457 = vsel %vm402, %v71, %v319
  %v458 = vsel %vm402, %v72, %v321
  %v459 = vsel %vm402, %v73, %v323
  %v460 = vsel %vm402, %v74, %v325
  %v461 = vsel %vm402, %v75, %v327
  %v462 = vsel %vm402, %v76, %v329
  %v463 = vsel %vm402, %v77, %v331
  %v464 = vsel %vm402, %v78, %v333
  %v465 = vsel %vm402, %v79, %v335
  %v466 = vsel %vm402, %v80, %v337
  %v467 = vld [vmem:[%s0] sm:$0xff]
  %v468 = vld [vmem:[%s0 + $0x8] sm:$0xff]
  %v469 = vld [vmem:[%s0 + $0x10] sm:$0xff]
  %v470 = vld [vmem:[%s0 + $0x18] sm:$0xff]
  %v471 = vld [vmem:[%s0 + $0x20] sm:$0xff]
  %v472 = vld [vmem:[%s0 + $0x28] sm:$0xff]
  %v473 = vld [vmem:[%s0 + $0x30] sm:$0xff]
  %v474 = vld [vmem:[%s0 + $0x38] sm:$0xff]
  %v475 = vld [vmem:[%s0 + $0x40] sm:$0xff]
  %v476 = vld [vmem:[%s0 + $0x48] sm:$0xff]
  %v477 = vld [vmem:[%s0 + $0x50] sm:$0xff]
  %v478 = vld [vmem:[%s0 + $0x58] sm:$0xff]
  %v479 = vld [vmem:[%s0 + $0x60] sm:$0xff]
  %v480 = vld [vmem:[%s0 + $0x68] sm:$0xff]
  %v481 = vld [vmem:[%s0 + $0x70] sm:$0xff]
  %v482 = vld [vmem:[%s0 + $0x78] sm:$0xff]
  %v483 = vld [vmem:[%s0 + $0x80] sm:$0xff]
  %v484 = vld [vmem:[%s0 + $0x88] sm:$0xff]
  %v485 = vld [vmem:[%s0 + $0x90] sm:$0xff]
  %v486 = vld [vmem:[%s0 + $0x98] sm:$0xff]
  %v487 = vld [vmem:[%s0 + $0xa0] sm:$0xff]
  %v488 = vld [vmem:[%s0 + $0xa8] sm:$0xff]
  %v489 = vld [vmem:[%s0 + $0xb0] sm:$0xff]
  %v490 = vld [vmem:[%s0 + $0xb8] sm:$0xff]
  %v491 = vld [vmem:[%s0 + $0xc0] sm:$0xff]
  %v492 = vld [vmem:[%s0 + $0xc8] sm:$0xff]
  %v493 = vld [vmem:[%s0 + $0xd0] sm:$0xff]
  %v494 = vld [vmem:[%s0 + $0xd8] sm:$0xff]
  %v495 = vld [vmem:[%s0 + $0xe0] sm:$0xff]
  %v496 = vld [vmem:[%s0 + $0xe8] sm:$0xff]
  %v497 = vld [vmem:[%s0 + $0xf0] sm:$0xff]
  %v498 = vld [vmem:[%s0 + $0xf8] sm:$0xff]
  %v499 = vld [vmem:[%s0 + $0x100] sm:$0xff]
  %v500 = vld [vmem:[%s0 + $0x108] sm:$0xff]
  %v501 = vld [vmem:[%s0 + $0x110] sm:$0xff]
  %v502 = vld [vmem:[%s0 + $0x118] sm:$0xff]
  %v503 = vld [vmem:[%s0 + $0x120] sm:$0xff]
  %v504 = vld [vmem:[%s0 + $0x128] sm:$0xff]
  %v505 = vld [vmem:[%s0 + $0x130] sm:$0xff]
  %v506 = vld [vmem:[%s0 + $0x138] sm:$0xff]
  %v507 = vld [vmem:[%s0 + $0x140] sm:$0xff]
  %v508 = vld [vmem:[%s0 + $0x148] sm:$0xff]
  %v509 = vld [vmem:[%s0 + $0x150] sm:$0xff]
  %v510 = vld [vmem:[%s0 + $0x158] sm:$0xff]
  %v511 = vld [vmem:[%s0 + $0x160] sm:$0xff]
  %v512 = vld [vmem:[%s0 + $0x168] sm:$0xff]
  %v513 = vld [vmem:[%s0 + $0x170] sm:$0xff]
  %v514 = vld [vmem:[%s0 + $0x178] sm:$0xff]
  %v515 = vld [vmem:[%s0 + $0x180] sm:$0xff]
  %v516 = vld [vmem:[%s0 + $0x188] sm:$0xff]
  %v517 = vld [vmem:[%s0 + $0x190] sm:$0xff]
  %v518 = vld [vmem:[%s0 + $0x198] sm:$0xff]
  %v519 = vld [vmem:[%s0 + $0x1a0] sm:$0xff]
  %v520 = vld [vmem:[%s0 + $0x1a8] sm:$0xff]
  %v521 = vld [vmem:[%s0 + $0x1b0] sm:$0xff]
  %v522 = vld [vmem:[%s0 + $0x1b8] sm:$0xff]
  %v523 = vld [vmem:[%s0 + $0x1c0] sm:$0xff]
  %v524 = vld [vmem:[%s0 + $0x1c8] sm:$0xff]
  %v525 = vld [vmem:[%s0 + $0x1d0] sm:$0xff]
  %v526 = vld [vmem:[%s0 + $0x1d8] sm:$0xff]
  %v527 = vld [vmem:[%s0 + $0x1e0] sm:$0xff]
  %v528 = vld [vmem:[%s0 + $0x1e8] sm:$0xff]
  %v529 = vld [vmem:[%s0 + $0x1f0] sm:$0xff]
  %v530 = vld [vmem:[%s0 + $0x1f8] sm:$0xff]
  %v531 = vadd.f32 %v467, %v403
  %v532 = vadd.f32 %v468, %v404
  %v533 = vadd.f32 %v469, %v405
  %v534 = vadd.f32 %v470, %v406
  %v535 = vadd.f32 %v471, %v407
  %v536 = vadd.f32 %v472, %v408
  %v537 = vadd.f32 %v473, %v409
  %v538 = vadd.f32 %v474, %v410
  %v539 = vadd.f32 %v475, %v411
  %v540 = vadd.f32 %v476, %v412
  %v541 = vadd.f32 %v477, %v413
  %v542 = vadd.f32 %v478, %v414
  %v543 = vadd.f32 %v479, %v415
  %v544 = vadd.f32 %v480, %v416
  %v545 = vadd.f32 %v481, %v417
  %v546 = vadd.f32 %v482, %v418
  %v547 = vadd.f32 %v483, %v419
  %v548 = vadd.f32 %v484, %v420
  %v549 = vadd.f32 %v485, %v421
  %v550 = vadd.f32 %v486, %v422
  %v551 = vadd.f32 %v487, %v423
  %v552 = vadd.f32 %v488, %v424
  %v553 = vadd.f32 %v489, %v425
  %v554 = vadd.f32 %v490, %v426
  %v555 = vadd.f32 %v491, %v427
  %v556 = vadd.f32 %v492, %v428
  %v557 = vadd.f32 %v493, %v429
  %v558 = vadd.f32 %v494, %v430
  %v559 = vadd.f32 %v495, %v431
  %v560 = vadd.f32 %v496, %v432
  %v561 = vadd.f32 %v497, %v433
  %v562 = vadd.f32 %v498, %v434
  %v563 = vadd.f32 %v499, %v435
  %v564 = vadd.f32 %v500, %v436
  %v565 = vadd.f32 %v501, %v437
  %v566 = vadd.f32 %v502, %v438
  %v567 = vadd.f32 %v503, %v439
  %v568 = vadd.f32 %v504, %v440
  %v569 = vadd.f32 %v505, %v441
  %v570 = vadd.f32 %v506, %v442
  %v571 = vadd.f32 %v507, %v443
  %v572 = vadd.f32 %v508, %v444
  %v573 = vadd.f32 %v509, %v445
  %v574 = vadd.f32 %v510, %v446
  %v575 = vadd.f32 %v511, %v447
  %v576 = vadd.f32 %v512, %v448
  %v577 = vadd.f32 %v513, %v449
  %v578 = vadd.f32 %v514, %v450
  %v579 = vadd.f32 %v515, %v451
  %v580 = vadd.f32 %v516, %v452
  %v581 = vadd.f32 %v517, %v453
  %v582 = vadd.f32 %v518, %v454
  %v583 = vadd.f32 %v519, %v455
  %v584 = vadd.f32 %v520, %v456
  %v585 = vadd.f32 %v521, %v457
  %v586 = vadd.f32 %v522, %v458
  %v587 = vadd.f32 %v523, %v459
  %v588 = vadd.f32 %v524, %v460
  %v589 = vadd.f32 %v525, %v461
  %v590 = vadd.f32 %v526, %v462
  %v591 = vadd.f32 %v527, %v463
  %v592 = vadd.f32 %v528, %v464
  %v593 = vadd.f32 %v529, %v465
  %v594 = vadd.f32 %v530, %v466
  %v595 = vld [vmem:[%s2] sm:$0xf]
  %v596 = vld [vmem:[%s3] sm:$0x1]
  %v598 = vlaneseq
  %v599 = vshrl.u32 %v598, 7
  %v600 = vsub.s32 0, %v599
  %v601 = vrot.slane %v596, %v600
  %vm603 = vcmask 31744
  %v605 = vsel %vm603, %v531, 0
  %v608 = vsel %vm603, %v532, 0
  %v611 = vsel %vm603, %v533, 0
  %v614 = vsel %vm603, %v534, 0
  %v617 = vsel %vm603, %v535, 0
  %v620 = vsel %vm603, %v536, 0
  %v623 = vsel %vm603, %v537, 0
  %v626 = vsel %vm603, %v538, 0
  %v629 = vsel %vm603, %v539, 0
  %v632 = vsel %vm603, %v540, 0
  %v635 = vsel %vm603, %v541, 0
  %v638 = vsel %vm603, %v542, 0
  %v641 = vsel %vm603, %v543, 0
  %v644 = vsel %vm603, %v544, 0
  %v647 = vsel %vm603, %v545, 0
  %v650 = vsel %vm603, %v546, 0
  %v653 = vsel %vm603, %v547, 0
  %v656 = vsel %vm603, %v548, 0
  %v659 = vsel %vm603, %v549, 0
  %v662 = vsel %vm603, %v550, 0
  %v665 = vsel %vm603, %v551, 0
  %v668 = vsel %vm603, %v552, 0
  %v671 = vsel %vm603, %v553, 0
  %v674 = vsel %vm603, %v554, 0
  %v677 = vsel %vm603, %v555, 0
  %v680 = vsel %vm603, %v556, 0
  %v683 = vsel %vm603, %v557, 0
  %v686 = vsel %vm603, %v558, 0
  %v689 = vsel %vm603, %v559, 0
  %v692 = vsel %vm603, %v560, 0
  %v695 = vsel %vm603, %v561, 0
  %v698 = vsel %vm603, %v562, 0
  %v701 = vsel %vm603, %v563, 0
  %v704 = vsel %vm603, %v564, 0
  %v707 = vsel %vm603, %v565, 0
  %v710 = vsel %vm603, %v566, 0
  %v713 = vsel %vm603, %v567, 0
  %v716 = vsel %vm603, %v568, 0
  %v719 = vsel %vm603, %v569, 0
  %v722 = vsel %vm603, %v570, 0
  %v725 = vsel %vm603, %v571, 0
  %v728 = vsel %vm603, %v572, 0
  %v731 = vsel %vm603, %v573, 0
  %v734 = vsel %vm603, %v574, 0
  %v737 = vsel %vm603, %v575, 0
  %v740 = vsel %vm603, %v576, 0
  %v743 = vsel %vm603, %v577, 0
  %v746 = vsel %vm603, %v578, 0
  %v749 = vsel %vm603, %v579, 0
  %v752 = vsel %vm603, %v580, 0
  %v755 = vsel %vm603, %v581, 0
  %v758 = vsel %vm603, %v582, 0
  %v761 = vsel %vm603, %v583, 0
  %v764 = vsel %vm603, %v584, 0
  %v767 = vsel %vm603, %v585, 0
  %v770 = vsel %vm603, %v586, 0
  %v773 = vsel %vm603, %v587, 0
  %v776 = vsel %vm603, %v588, 0
  %v779 = vsel %vm603, %v589, 0
  %v782 = vsel %vm603, %v590, 0
  %v785 = vsel %vm603, %v591, 0
  %v788 = vsel %vm603, %v592, 0
  %v791 = vsel %vm603, %v593, 0
  %v794 = vsel %vm603, %v594, 0
  %vm796 = vcmask 1043456
  %v798 = vsel %vm796, %v595, 0
  %800 = vmatprep.subr.mxu0 0.0
  %801 = vmatpush1.msra.mxu0 0.0
  %802 = vmatprep.subr.mxu0 0.0
  %803 = vmatpush1.msra.mxu0 0.0
  %804 = vmatprep.subr.mxu0 0.0
  %805 = vmatpush1.msra.mxu0 0.0
  %806 = vmatprep.subr.mxu0 0.0
  %807 = vmatpush1.msra.mxu0 0.0
  %808 = vmatprep.subr.mxu0 0.0
  %809 = vmatpush1.msra.mxu0 0.0
  %810 = vmatprep.subr.mxu0 0.0
  %811 = vmatpush1.msra.mxu0 0.0
  %812 = vmatprep.subr.mxu0 0.0
  %813 = vmatpush1.msra.mxu0 0.0
  %814 = vmatprep.subr.mxu0 0.0
  %815 = vmatpush1.msra.mxu0 0.0
  %816 = vmatprep.subr.mxu0 0.0
  %817 = vmatpush1.msra.mxu0 0.0
  %818 = vmatprep.subr.mxu0 0.0
  %819 = vmatpush1.msra.mxu0 0.0
  %820 = vmatprep.subr.mxu0 0.0
  %821 = vmatpush1.msra.mxu0 0.0
  %822 = vmatprep.subr.mxu0 0.0
  %823 = vmatpush1.msra.mxu0 0.0
  %824 = vmatprep.subr.mxu0 0.0
  %825 = vmatpush1.msra.mxu0 0.0
  %826 = vmatprep.subr.mxu0 0.0
  %827 = vmatpush1.msra.mxu0 0.0
  %828 = vmatprep.subr.mxu0 0.0
  %829 = vmatpush1.msra.mxu0 0.0
  %830 = vmatprep.subr.mxu0 0.0
  %831 = vmatpush1.msra.mxu0 %v798
  %832 = vmatprep.subr.mxu0 0.0
  %833 = vmatpush2.msra.mxu0 0.0
  %834 = vmatprep.subr.mxu0 0.0
  %835 = vmatpush2.msra.mxu0 0.0
  %836 = vmatprep.subr.mxu0 0.0
  %837 = vmatpush2.msra.mxu0 0.0
  %838 = vmatprep.subr.mxu0 0.0
  %839 = vmatpush2.msra.mxu0 0.0
  %840 = vmatprep.subr.mxu0 0.0
  %841 = vmatpush2.msra.mxu0 0.0
  %842 = vmatprep.subr.mxu0 0.0
  %843 = vmatpush2.msra.mxu0 0.0
  %844 = vmatprep.subr.mxu0 0.0
  %845 = vmatpush2.msra.mxu0 0.0
  %846 = vmatprep.subr.mxu0 0.0
  %847 = vmatpush2.msra.mxu0 0.0
  %848 = vmatprep.subr.mxu0 0.0
  %849 = vmatpush2.msra.mxu0 0.0
  %850 = vmatprep.subr.mxu0 0.0
  %851 = vmatpush2.msra.mxu0 0.0
  %852 = vmatprep.subr.mxu0 0.0
  %853 = vmatpush2.msra.mxu0 0.0
  %854 = vmatprep.subr.mxu0 0.0
  %855 = vmatpush2.msra.mxu0 0.0
  %856 = vmatprep.subr.mxu0 0.0
  %857 = vmatpush2.msra.mxu0 0.0
  %858 = vmatprep.subr.mxu0 0.0
  %859 = vmatpush2.msra.mxu0 0.0
  %860 = vmatprep.subr.mxu0 0.0
  %861 = vmatpush2.msra.mxu0 0.0
  %862 = vmatprep.subr.mxu0 0.0
  %863 = vmatpush2.msra.mxu0 0.0
  %864 = vmatprep.mubr.f32.mxu0 0.0
  %865 = vmatmul.mubr.f32.gmra.mxu0 %v605
  %v866 = vpop.f32.mrf.mxu0
  %v867 = vadd.f32 %v601, %v866
  %v868 = vpop.f32.mrf.mxu0
  %869 = vmatprep.mubr.f32.mxu0 0.0
  %870 = vmatmul.mubr.f32.gmra.mxu0 %v608
  %v871 = vpop.f32.mrf.mxu0
  %v872 = vadd.f32 %v601, %v871
  %v873 = vpop.f32.mrf.mxu0
  %874 = vmatprep.mubr.f32.mxu0 0.0
  %875 = vmatmul.mubr.f32.gmra.mxu0 %v611
  %v876 = vpop.f32.mrf.mxu0
  %v877 = vadd.f32 %v601, %v876
  %v878 = vpop.f32.mrf.mxu0
  %879 = vmatprep.mubr.f32.mxu0 0.0
  %880 = vmatmul.mubr.f32.gmra.mxu0 %v614
  %v881 = vpop.f32.mrf.mxu0
  %v882 = vadd.f32 %v601, %v881
  %v883 = vpop.f32.mrf.mxu0
  %884 = vmatprep.mubr.f32.mxu0 0.0
  %885 = vmatmul.mubr.f32.gmra.mxu0 %v617
  %v886 = vpop.f32.mrf.mxu0
  %v887 = vadd.f32 %v601, %v886
  %v888 = vpop.f32.mrf.mxu0
  %889 = vmatprep.mubr.f32.mxu0 0.0
  %890 = vmatmul.mubr.f32.gmra.mxu0 %v620
  %v891 = vpop.f32.mrf.mxu0
  %v892 = vadd.f32 %v601, %v891
  %v893 = vpop.f32.mrf.mxu0
  %894 = vmatprep.mubr.f32.mxu0 0.0
  %895 = vmatmul.mubr.f32.gmra.mxu0 %v623
  %v896 = vpop.f32.mrf.mxu0
  %v897 = vadd.f32 %v601, %v896
  %v898 = vpop.f32.mrf.mxu0
  %899 = vmatprep.mubr.f32.mxu0 0.0
  %900 = vmatmul.mubr.f32.gmra.mxu0 %v626
  %v901 = vpop.f32.mrf.mxu0
  %v902 = vadd.f32 %v601, %v901
  %v903 = vpop.f32.mrf.mxu0
  %904 = vmatprep.mubr.f32.mxu0 0.0
  %905 = vmatmul.mubr.f32.gmra.mxu0 %v629
  %v906 = vpop.f32.mrf.mxu0
  %v907 = vadd.f32 %v601, %v906
  %v908 = vpop.f32.mrf.mxu0
  %909 = vmatprep.mubr.f32.mxu0 0.0
  %910 = vmatmul.mubr.f32.gmra.mxu0 %v632
  %v911 = vpop.f32.mrf.mxu0
  %v912 = vadd.f32 %v601, %v911
  %v913 = vpop.f32.mrf.mxu0
  %914 = vmatprep.mubr.f32.mxu0 0.0
  %915 = vmatmul.mubr.f32.gmra.mxu0 %v635
  %v916 = vpop.f32.mrf.mxu0
  %v917 = vadd.f32 %v601, %v916
  %v918 = vpop.f32.mrf.mxu0
  %919 = vmatprep.mubr.f32.mxu0 0.0
  %920 = vmatmul.mubr.f32.gmra.mxu0 %v638
  %v921 = vpop.f32.mrf.mxu0
  %v922 = vadd.f32 %v601, %v921
  %v923 = vpop.f32.mrf.mxu0
  %924 = vmatprep.mubr.f32.mxu0 0.0
  %925 = vmatmul.mubr.f32.gmra.mxu0 %v641
  %v926 = vpop.f32.mrf.mxu0
  %v927 = vadd.f32 %v601, %v926
  %v928 = vpop.f32.mrf.mxu0
  %929 = vmatprep.mubr.f32.mxu0 0.0
  %930 = vmatmul.mubr.f32.gmra.mxu0 %v644
  %v931 = vpop.f32.mrf.mxu0
  %v932 = vadd.f32 %v601, %v931
  %v933 = vpop.f32.mrf.mxu0
  %934 = vmatprep.mubr.f32.mxu0 0.0
  %935 = vmatmul.mubr.f32.gmra.mxu0 %v647
  %v936 = vpop.f32.mrf.mxu0
  %v937 = vadd.f32 %v601, %v936
  %v938 = vpop.f32.mrf.mxu0
  %939 = vmatprep.mubr.f32.mxu0 0.0
  %940 = vmatmul.mubr.f32.gmra.mxu0 %v650
  %v941 = vpop.f32.mrf.mxu0
  %v942 = vadd.f32 %v601, %v941
  %v943 = vpop.f32.mrf.mxu0
  %944 = vmatprep.mubr.f32.mxu0 0.0
  %945 = vmatmul.mubr.f32.gmra.mxu0 %v653
  %v946 = vpop.f32.mrf.mxu0
  %v947 = vadd.f32 %v601, %v946
  %v948 = vpop.f32.mrf.mxu0
  %949 = vmatprep.mubr.f32.mxu0 0.0
  %950 = vmatmul.mubr.f32.gmra.mxu0 %v656
  %v951 = vpop.f32.mrf.mxu0
  %v952 = vadd.f32 %v601, %v951
  %v953 = vpop.f32.mrf.mxu0
  %954 = vmatprep.mubr.f32.mxu0 0.0
  %955 = vmatmul.mubr.f32.gmra.mxu0 %v659
  %v956 = vpop.f32.mrf.mxu0
  %v957 = vadd.f32 %v601, %v956
  %v958 = vpop.f32.mrf.mxu0
  %959 = vmatprep.mubr.f32.mxu0 0.0
  %960 = vmatmul.mubr.f32.gmra.mxu0 %v662
  %v961 = vpop.f32.mrf.mxu0
  %v962 = vadd.f32 %v601, %v961
  %v963 = vpop.f32.mrf.mxu0
  %964 = vmatprep.mubr.f32.mxu0 0.0
  %965 = vmatmul.mubr.f32.gmra.mxu0 %v665
  %v966 = vpop.f32.mrf.mxu0
  %v967 = vadd.f32 %v601, %v966
  %v968 = vpop.f32.mrf.mxu0
  %969 = vmatprep.mubr.f32.mxu0 0.0
  %970 = vmatmul.mubr.f32.gmra.mxu0 %v668
  %v971 = vpop.f32.mrf.mxu0
  %v972 = vadd.f32 %v601, %v971
  %v973 = vpop.f32.mrf.mxu0
  %974 = vmatprep.mubr.f32.mxu0 0.0
  %975 = vmatmul.mubr.f32.gmra.mxu0 %v671
  %v976 = vpop.f32.mrf.mxu0
  %v977 = vadd.f32 %v601, %v976
  %v978 = vpop.f32.mrf.mxu0
  %979 = vmatprep.mubr.f32.mxu0 0.0
  %980 = vmatmul.mubr.f32.gmra.mxu0 %v674
  %v981 = vpop.f32.mrf.mxu0
  %v982 = vadd.f32 %v601, %v981
  %v983 = vpop.f32.mrf.mxu0
  %984 = vmatprep.mubr.f32.mxu0 0.0
  %985 = vmatmul.mubr.f32.gmra.mxu0 %v677
  %v986 = vpop.f32.mrf.mxu0
  %v987 = vadd.f32 %v601, %v986
  %v988 = vpop.f32.mrf.mxu0
  %989 = vmatprep.mubr.f32.mxu0 0.0
  %990 = vmatmul.mubr.f32.gmra.mxu0 %v680
  %v991 = vpop.f32.mrf.mxu0
  %v992 = vadd.f32 %v601, %v991
  %v993 = vpop.f32.mrf.mxu0
  %994 = vmatprep.mubr.f32.mxu0 0.0
  %995 = vmatmul.mubr.f32.gmra.mxu0 %v683
  %v996 = vpop.f32.mrf.mxu0
  %v997 = vadd.f32 %v601, %v996
  %v998 = vpop.f32.mrf.mxu0
  %999 = vmatprep.mubr.f32.mxu0 0.0
  %1000 = vmatmul.mubr.f32.gmra.mxu0 %v686
  %v1001 = vpop.f32.mrf.mxu0
  %v1002 = vadd.f32 %v601, %v1001
  %v1003 = vpop.f32.mrf.mxu0
  %1004 = vmatprep.mubr.f32.mxu0 0.0
  %1005 = vmatmul.mubr.f32.gmra.mxu0 %v689
  %v1006 = vpop.f32.mrf.mxu0
  %v1007 = vadd.f32 %v601, %v1006
  %v1008 = vpop.f32.mrf.mxu0
  %1009 = vmatprep.mubr.f32.mxu0 0.0
  %1010 = vmatmul.mubr.f32.gmra.mxu0 %v692
  %v1011 = vpop.f32.mrf.mxu0
  %v1012 = vadd.f32 %v601, %v1011
  %v1013 = vpop.f32.mrf.mxu0
  %1014 = vmatprep.mubr.f32.mxu0 0.0
  %1015 = vmatmul.mubr.f32.gmra.mxu0 %v695
  %v1016 = vpop.f32.mrf.mxu0
  %v1017 = vadd.f32 %v601, %v1016
  %v1018 = vpop.f32.mrf.mxu0
  %1019 = vmatprep.mubr.f32.mxu0 0.0
  %1020 = vmatmul.mubr.f32.gmra.mxu0 %v698
  %v1021 = vpop.f32.mrf.mxu0
  %v1022 = vadd.f32 %v601, %v1021
  %v1023 = vpop.f32.mrf.mxu0
  %1024 = vmatprep.mubr.f32.mxu0 0.0
  %1025 = vmatmul.mubr.f32.gmra.mxu0 %v701
  %v1026 = vpop.f32.mrf.mxu0
  %v1027 = vadd.f32 %v601, %v1026
  %v1028 = vpop.f32.mrf.mxu0
  %1029 = vmatprep.mubr.f32.mxu0 0.0
  %1030 = vmatmul.mubr.f32.gmra.mxu0 %v704
  %v1031 = vpop.f32.mrf.mxu0
  %v1032 = vadd.f32 %v601, %v1031
  %v1033 = vpop.f32.mrf.mxu0
  %1034 = vmatprep.mubr.f32.mxu0 0.0
  %1035 = vmatmul.mubr.f32.gmra.mxu0 %v707
  %v1036 = vpop.f32.mrf.mxu0
  %v1037 = vadd.f32 %v601, %v1036
  %v1038 = vpop.f32.mrf.mxu0
  %1039 = vmatprep.mubr.f32.mxu0 0.0
  %1040 = vmatmul.mubr.f32.gmra.mxu0 %v710
  %v1041 = vpop.f32.mrf.mxu0
  %v1042 = vadd.f32 %v601, %v1041
  %v1043 = vpop.f32.mrf.mxu0
  %1044 = vmatprep.mubr.f32.mxu0 0.0
  %1045 = vmatmul.mubr.f32.gmra.mxu0 %v713
  %v1046 = vpop.f32.mrf.mxu0
  %v1047 = vadd.f32 %v601, %v1046
  %v1048 = vpop.f32.mrf.mxu0
  %1049 = vmatprep.mubr.f32.mxu0 0.0
  %1050 = vmatmul.mubr.f32.gmra.mxu0 %v716
  %v1051 = vpop.f32.mrf.mxu0
  %v1052 = vadd.f32 %v601, %v1051
  %v1053 = vpop.f32.mrf.mxu0
  %1054 = vmatprep.mubr.f32.mxu0 0.0
  %1055 = vmatmul.mubr.f32.gmra.mxu0 %v719
  %v1056 = vpop.f32.mrf.mxu0
  %v1057 = vadd.f32 %v601, %v1056
  %v1058 = vpop.f32.mrf.mxu0
  %1059 = vmatprep.mubr.f32.mxu0 0.0
  %1060 = vmatmul.mubr.f32.gmra.mxu0 %v722
  %v1061 = vpop.f32.mrf.mxu0
  %v1062 = vadd.f32 %v601, %v1061
  %v1063 = vpop.f32.mrf.mxu0
  %1064 = vmatprep.mubr.f32.mxu0 0.0
  %1065 = vmatmul.mubr.f32.gmra.mxu0 %v725
  %v1066 = vpop.f32.mrf.mxu0
  %v1067 = vadd.f32 %v601, %v1066
  %v1068 = vpop.f32.mrf.mxu0
  %1069 = vmatprep.mubr.f32.mxu0 0.0
  %1070 = vmatmul.mubr.f32.gmra.mxu0 %v728
  %v1071 = vpop.f32.mrf.mxu0
  %v1072 = vadd.f32 %v601, %v1071
  %v1073 = vpop.f32.mrf.mxu0
  %1074 = vmatprep.mubr.f32.mxu0 0.0
  %1075 = vmatmul.mubr.f32.gmra.mxu0 %v731
  %v1076 = vpop.f32.mrf.mxu0
  %v1077 = vadd.f32 %v601, %v1076
  %v1078 = vpop.f32.mrf.mxu0
  %1079 = vmatprep.mubr.f32.mxu0 0.0
  %1080 = vmatmul.mubr.f32.gmra.mxu0 %v734
  %v1081 = vpop.f32.mrf.mxu0
  %v1082 = vadd.f32 %v601, %v1081
  %v1083 = vpop.f32.mrf.mxu0
  %1084 = vmatprep.mubr.f32.mxu0 0.0
  %1085 = vmatmul.mubr.f32.gmra.mxu0 %v737
  %v1086 = vpop.f32.mrf.mxu0
  %v1087 = vadd.f32 %v601, %v1086
  %v1088 = vpop.f32.mrf.mxu0
  %1089 = vmatprep.mubr.f32.mxu0 0.0
  %1090 = vmatmul.mubr.f32.gmra.mxu0 %v740
  %v1091 = vpop.f32.mrf.mxu0
  %v1092 = vadd.f32 %v601, %v1091
  %v1093 = vpop.f32.mrf.mxu0
  %1094 = vmatprep.mubr.f32.mxu0 0.0
  %1095 = vmatmul.mubr.f32.gmra.mxu0 %v743
  %v1096 = vpop.f32.mrf.mxu0
  %v1097 = vadd.f32 %v601, %v1096
  %v1098 = vpop.f32.mrf.mxu0
  %1099 = vmatprep.mubr.f32.mxu0 0.0
  %1100 = vmatmul.mubr.f32.gmra.mxu0 %v746
  %v1101 = vpop.f32.mrf.mxu0
  %v1102 = vadd.f32 %v601, %v1101
  %v1103 = vpop.f32.mrf.mxu0
  %1104 = vmatprep.mubr.f32.mxu0 0.0
  %1105 = vmatmul.mubr.f32.gmra.mxu0 %v749
  %v1106 = vpop.f32.mrf.mxu0
  %v1107 = vadd.f32 %v601, %v1106
  %v1108 = vpop.f32.mrf.mxu0
  %1109 = vmatprep.mubr.f32.mxu0 0.0
  %1110 = vmatmul.mubr.f32.gmra.mxu0 %v752
  %v1111 = vpop.f32.mrf.mxu0
  %v1112 = vadd.f32 %v601, %v1111
  %v1113 = vpop.f32.mrf.mxu0
  %1114 = vmatprep.mubr.f32.mxu0 0.0
  %1115 = vmatmul.mubr.f32.gmra.mxu0 %v755
  %v1116 = vpop.f32.mrf.mxu0
  %v1117 = vadd.f32 %v601, %v1116
  %v1118 = vpop.f32.mrf.mxu0
  %1119 = vmatprep.mubr.f32.mxu0 0.0
  %1120 = vmatmul.mubr.f32.gmra.mxu0 %v758
  %v1121 = vpop.f32.mrf.mxu0
  %v1122 = vadd.f32 %v601, %v1121
  %v1123 = vpop.f32.mrf.mxu0
  %1124 = vmatprep.mubr.f32.mxu0 0.0
  %1125 = vmatmul.mubr.f32.gmra.mxu0 %v761
  %v1126 = vpop.f32.mrf.mxu0
  %v1127 = vadd.f32 %v601, %v1126
  %v1128 = vpop.f32.mrf.mxu0
  %1129 = vmatprep.mubr.f32.mxu0 0.0
  %1130 = vmatmul.mubr.f32.gmra.mxu0 %v764
  %v1131 = vpop.f32.mrf.mxu0
  %v1132 = vadd.f32 %v601, %v1131
  %v1133 = vpop.f32.mrf.mxu0
  %1134 = vmatprep.mubr.f32.mxu0 0.0
  %1135 = vmatmul.mubr.f32.gmra.mxu0 %v767
  %v1136 = vpop.f32.mrf.mxu0
  %v1137 = vadd.f32 %v601, %v1136
  %v1138 = vpop.f32.mrf.mxu0
  %1139 = vmatprep.mubr.f32.mxu0 0.0
  %1140 = vmatmul.mubr.f32.gmra.mxu0 %v770
  %v1141 = vpop.f32.mrf.mxu0
  %v1142 = vadd.f32 %v601, %v1141
  %v1143 = vpop.f32.mrf.mxu0
  %1144 = vmatprep.mubr.f32.mxu0 0.0
  %1145 = vmatmul.mubr.f32.gmra.mxu0 %v773
  %v1146 = vpop.f32.mrf.mxu0
  %v1147 = vadd.f32 %v601, %v1146
  %v1148 = vpop.f32.mrf.mxu0
  %1149 = vmatprep.mubr.f32.mxu0 0.0
  %1150 = vmatmul.mubr.f32.gmra.mxu0 %v776
  %v1151 = vpop.f32.mrf.mxu0
  %v1152 = vadd.f32 %v601, %v1151
  %v1153 = vpop.f32.mrf.mxu0
  %1154 = vmatprep.mubr.f32.mxu0 0.0
  %1155 = vmatmul.mubr.f32.gmra.mxu0 %v779
  %v1156 = vpop.f32.mrf.mxu0
  %v1157 = vadd.f32 %v601, %v1156
  %v1158 = vpop.f32.mrf.mxu0
  %1159 = vmatprep.mubr.f32.mxu0 0.0
  %1160 = vmatmul.mubr.f32.gmra.mxu0 %v782
  %v1161 = vpop.f32.mrf.mxu0
  %v1162 = vadd.f32 %v601, %v1161
  %v1163 = vpop.f32.mrf.mxu0
  %1164 = vmatprep.mubr.f32.mxu0 0.0
  %1165 = vmatmul.mubr.f32.gmra.mxu0 %v785
  %v1166 = vpop.f32.mrf.mxu0
  %v1167 = vadd.f32 %v601, %v1166
  %v1168 = vpop.f32.mrf.mxu0
  %1169 = vmatprep.mubr.f32.mxu0 0.0
  %1170 = vmatmul.mubr.f32.gmra.mxu0 %v788
  %v1171 = vpop.f32.mrf.mxu0
  %v1172 = vadd.f32 %v601, %v1171
  %v1173 = vpop.f32.mrf.mxu0
  %1174 = vmatprep.mubr.f32.mxu0 0.0
  %1175 = vmatmul.mubr.f32.gmra.mxu0 %v791
  %v1176 = vpop.f32.mrf.mxu0
  %v1177 = vadd.f32 %v601, %v1176
  %v1178 = vpop.f32.mrf.mxu0
  %1179 = vmatprep.mubr.f32.mxu0 0.0
  %1180 = vmatmul.mubr.f32.gmra.mxu0 %v794
  %v1181 = vpop.f32.mrf.mxu0
  %v1182 = vadd.f32 %v601, %v1181
  %v1183 = vpop.f32.mrf.mxu0
  %1184 = vdwg.mxu0
  %vm1185 = vcmask 48128
  %1186 = vst.msk [vmem:[%s4] sm:$0xff] %vm1185, %v867
  %1187 = vst.msk [vmem:[%s4 + $0x8] sm:$0xff] %vm1185, %v872
  %1188 = vst.msk [vmem:[%s4 + $0x10] sm:$0xff] %vm1185, %v877
  %1189 = vst.msk [vmem:[%s4 + $0x18] sm:$0xff] %vm1185, %v882
  %1190 = vst.msk [vmem:[%s4 + $0x20] sm:$0xff] %vm1185, %v887
  %1191 = vst.msk [vmem:[%s4 + $0x28] sm:$0xff] %vm1185, %v892
  %1192 = vst.msk [vmem:[%s4 + $0x30] sm:$0xff] %vm1185, %v897
  %1193 = vst.msk [vmem:[%s4 + $0x38] sm:$0xff] %vm1185, %v902
  %1194 = vst.msk [vmem:[%s4 + $0x40] sm:$0xff] %vm1185, %v907
  %1195 = vst.msk [vmem:[%s4 + $0x48] sm:$0xff] %vm1185, %v912
  %1196 = vst.msk [vmem:[%s4 + $0x50] sm:$0xff] %vm1185, %v917
  %1197 = vst.msk [vmem:[%s4 + $0x58] sm:$0xff] %vm1185, %v922
  %1198 = vst.msk [vmem:[%s4 + $0x60] sm:$0xff] %vm1185, %v927
  %1199 = vst.msk [vmem:[%s4 + $0x68] sm:$0xff] %vm1185, %v932
  %1200 = vst.msk [vmem:[%s4 + $0x70] sm:$0xff] %vm1185, %v937
  %1201 = vst.msk [vmem:[%s4 + $0x78] sm:$0xff] %vm1185, %v942
  %1202 = vst.msk [vmem:[%s4 + $0x80] sm:$0xff] %vm1185, %v947
  %1203 = vst.msk [vmem:[%s4 + $0x88] sm:$0xff] %vm1185, %v952
  %1204 = vst.msk [vmem:[%s4 + $0x90] sm:$0xff] %vm1185, %v957
  %1205 = vst.msk [vmem:[%s4 + $0x98] sm:$0xff] %vm1185, %v962
  %1206 = vst.msk [vmem:[%s4 + $0xa0] sm:$0xff] %vm1185, %v967
  %1207 = vst.msk [vmem:[%s4 + $0xa8] sm:$0xff] %vm1185, %v972
  %1208 = vst.msk [vmem:[%s4 + $0xb0] sm:$0xff] %vm1185, %v977
  %1209 = vst.msk [vmem:[%s4 + $0xb8] sm:$0xff] %vm1185, %v982
  %1210 = vst.msk [vmem:[%s4 + $0xc0] sm:$0xff] %vm1185, %v987
  %1211 = vst.msk [vmem:[%s4 + $0xc8] sm:$0xff] %vm1185, %v992
  %1212 = vst.msk [vmem:[%s4 + $0xd0] sm:$0xff] %vm1185, %v997
  %1213 = vst.msk [vmem:[%s4 + $0xd8] sm:$0xff] %vm1185, %v1002
  %1214 = vst.msk [vmem:[%s4 + $0xe0] sm:$0xff] %vm1185, %v1007
  %1215 = vst.msk [vmem:[%s4 + $0xe8] sm:$0xff] %vm1185, %v1012
  %1216 = vst.msk [vmem:[%s4 + $0xf0] sm:$0xff] %vm1185, %v1017
  %1217 = vst.msk [vmem:[%s4 + $0xf8] sm:$0xff] %vm1185, %v1022
  %1218 = vst.msk [vmem:[%s4 + $0x100] sm:$0xff] %vm1185, %v1027
  %1219 = vst.msk [vmem:[%s4 + $0x108] sm:$0xff] %vm1185, %v1032
  %1220 = vst.msk [vmem:[%s4 + $0x110] sm:$0xff] %vm1185, %v1037
  %1221 = vst.msk [vmem:[%s4 + $0x118] sm:$0xff] %vm1185, %v1042
  %1222 = vst.msk [vmem:[%s4 + $0x120] sm:$0xff] %vm1185, %v1047
  %1223 = vst.msk [vmem:[%s4 + $0x128] sm:$0xff] %vm1185, %v1052
  %1224 = vst.msk [vmem:[%s4 + $0x130] sm:$0xff] %vm1185, %v1057
  %1225 = vst.msk [vmem:[%s4 + $0x138] sm:$0xff] %vm1185, %v1062
  %1226 = vst.msk [vmem:[%s4 + $0x140] sm:$0xff] %vm1185, %v1067
  %1227 = vst.msk [vmem:[%s4 + $0x148] sm:$0xff] %vm1185, %v1072
  %1228 = vst.msk [vmem:[%s4 + $0x150] sm:$0xff] %vm1185, %v1077
  %1229 = vst.msk [vmem:[%s4 + $0x158] sm:$0xff] %vm1185, %v1082
  %1230 = vst.msk [vmem:[%s4 + $0x160] sm:$0xff] %vm1185, %v1087
  %1231 = vst.msk [vmem:[%s4 + $0x168] sm:$0xff] %vm1185, %v1092
  %1232 = vst.msk [vmem:[%s4 + $0x170] sm:$0xff] %vm1185, %v1097
  %1233 = vst.msk [vmem:[%s4 + $0x178] sm:$0xff] %vm1185, %v1102
  %1234 = vst.msk [vmem:[%s4 + $0x180] sm:$0xff] %vm1185, %v1107
  %1235 = vst.msk [vmem:[%s4 + $0x188] sm:$0xff] %vm1185, %v1112
  %1236 = vst.msk [vmem:[%s4 + $0x190] sm:$0xff] %vm1185, %v1117
  %1237 = vst.msk [vmem:[%s4 + $0x198] sm:$0xff] %vm1185, %v1122
  %1238 = vst.msk [vmem:[%s4 + $0x1a0] sm:$0xff] %vm1185, %v1127
  %1239 = vst.msk [vmem:[%s4 + $0x1a8] sm:$0xff] %vm1185, %v1132
  %1240 = vst.msk [vmem:[%s4 + $0x1b0] sm:$0xff] %vm1185, %v1137
  %1241 = vst.msk [vmem:[%s4 + $0x1b8] sm:$0xff] %vm1185, %v1142
  %1242 = vst.msk [vmem:[%s4 + $0x1c0] sm:$0xff] %vm1185, %v1147
  %1243 = vst.msk [vmem:[%s4 + $0x1c8] sm:$0xff] %vm1185, %v1152
  %1244 = vst.msk [vmem:[%s4 + $0x1d0] sm:$0xff] %vm1185, %v1157
  %1245 = vst.msk [vmem:[%s4 + $0x1d8] sm:$0xff] %vm1185, %v1162
  %1246 = vst.msk [vmem:[%s4 + $0x1e0] sm:$0xff] %vm1185, %v1167
  %1247 = vst.msk [vmem:[%s4 + $0x1e8] sm:$0xff] %vm1185, %v1172
  %1248 = vst.msk [vmem:[%s4 + $0x1f0] sm:$0xff] %vm1185, %v1177
  %1249 = vst.msk [vmem:[%s4 + $0x1f8] sm:$0xff] %vm1185, %v1182
  %1314 = vrot.lane.b32.xlu0 %v867, 122
  %v1315 = vpop.permute.xlu0 %1314
  %1316 = vrot.lane.b32.xlu0 %v872, 122
  %v1317 = vpop.permute.xlu0 %1316
  %1318 = vrot.lane.b32.xlu0 %v877, 122
  %v1319 = vpop.permute.xlu0 %1318
  %1320 = vrot.lane.b32.xlu0 %v882, 122
  %v1321 = vpop.permute.xlu0 %1320
  %1322 = vrot.lane.b32.xlu0 %v887, 122
  %v1323 = vpop.permute.xlu0 %1322
  %1324 = vrot.lane.b32.xlu0 %v892, 122
  %v1325 = vpop.permute.xlu0 %1324
  %1326 = vrot.lane.b32.xlu0 %v897, 122
  %v1327 = vpop.permute.xlu0 %1326
  %1328 = vrot.lane.b32.xlu0 %v902, 122
  %v1329 = vpop.permute.xlu0 %1328
  %1330 = vrot.lane.b32.xlu0 %v907, 122
  %v1331 = vpop.permute.xlu0 %1330
  %1332 = vrot.lane.b32.xlu0 %v912, 122
  %v1333 = vpop.permute.xlu0 %1332
  %1334 = vrot.lane.b32.xlu0 %v917, 122
  %v1335 = vpop.permute.xlu0 %1334
  %1336 = vrot.lane.b32.xlu0 %v922, 122
  %v1337 = vpop.permute.xlu0 %1336
  %1338 = vrot.lane.b32.xlu0 %v927, 122
  %v1339 = vpop.permute.xlu0 %1338
  %1340 = vrot.lane.b32.xlu0 %v932, 122
  %v1341 = vpop.permute.xlu0 %1340
  %1342 = vrot.lane.b32.xlu0 %v937, 122
  %v1343 = vpop.permute.xlu0 %1342
  %1344 = vrot.lane.b32.xlu0 %v942, 122
  %v1345 = vpop.permute.xlu0 %1344
  %1346 = vrot.lane.b32.xlu0 %v947, 122
  %v1347 = vpop.permute.xlu0 %1346
  %1348 = vrot.lane.b32.xlu0 %v952, 122
  %v1349 = vpop.permute.xlu0 %1348
  %1350 = vrot.lane.b32.xlu0 %v957, 122
  %v1351 = vpop.permute.xlu0 %1350
  %1352 = vrot.lane.b32.xlu0 %v962, 122
  %v1353 = vpop.permute.xlu0 %1352
  %1354 = vrot.lane.b32.xlu0 %v967, 122
  %v1355 = vpop.permute.xlu0 %1354
  %1356 = vrot.lane.b32.xlu0 %v972, 122
  %v1357 = vpop.permute.xlu0 %1356
  %1358 = vrot.lane.b32.xlu0 %v977, 122
  %v1359 = vpop.permute.xlu0 %1358
  %1360 = vrot.lane.b32.xlu0 %v982, 122
  %v1361 = vpop.permute.xlu0 %1360
  %1362 = vrot.lane.b32.xlu0 %v987, 122
  %v1363 = vpop.permute.xlu0 %1362
  %1364 = vrot.lane.b32.xlu0 %v992, 122
  %v1365 = vpop.permute.xlu0 %1364
  %1366 = vrot.lane.b32.xlu0 %v997, 122
  %v1367 = vpop.permute.xlu0 %1366
  %1368 = vrot.lane.b32.xlu0 %v1002, 122
  %v1369 = vpop.permute.xlu0 %1368
  %1370 = vrot.lane.b32.xlu0 %v1007, 122
  %v1371 = vpop.permute.xlu0 %1370
  %1372 = vrot.lane.b32.xlu0 %v1012, 122
  %v1373 = vpop.permute.xlu0 %1372
  %1374 = vrot.lane.b32.xlu0 %v1017, 122
  %v1375 = vpop.permute.xlu0 %1374
  %1376 = vrot.lane.b32.xlu0 %v1022, 122
  %v1377 = vpop.permute.xlu0 %1376
  %1378 = vrot.lane.b32.xlu0 %v1027, 122
  %v1379 = vpop.permute.xlu0 %1378
  %1380 = vrot.lane.b32.xlu0 %v1032, 122
  %v1381 = vpop.permute.xlu0 %1380
  %1382 = vrot.lane.b32.xlu0 %v1037, 122
  %v1383 = vpop.permute.xlu0 %1382
  %1384 = vrot.lane.b32.xlu0 %v1042, 122
  %v1385 = vpop.permute.xlu0 %1384
  %1386 = vrot.lane.b32.xlu0 %v1047, 122
  %v1387 = vpop.permute.xlu0 %1386
  %1388 = vrot.lane.b32.xlu0 %v1052, 122
  %v1389 = vpop.permute.xlu0 %1388
  %1390 = vrot.lane.b32.xlu0 %v1057, 122
  %v1391 = vpop.permute.xlu0 %1390
  %1392 = vrot.lane.b32.xlu0 %v1062, 122
  %v1393 = vpop.permute.xlu0 %1392
  %1394 = vrot.lane.b32.xlu0 %v1067, 122
  %v1395 = vpop.permute.xlu0 %1394
  %1396 = vrot.lane.b32.xlu0 %v1072, 122
  %v1397 = vpop.permute.xlu0 %1396
  %1398 = vrot.lane.b32.xlu0 %v1077, 122
  %v1399 = vpop.permute.xlu0 %1398
  %1400 = vrot.lane.b32.xlu0 %v1082, 122
  %v1401 = vpop.permute.xlu0 %1400
  %1402 = vrot.lane.b32.xlu0 %v1087, 122
  %v1403 = vpop.permute.xlu0 %1402
  %1404 = vrot.lane.b32.xlu0 %v1092, 122
  %v1405 = vpop.permute.xlu0 %1404
  %1406 = vrot.lane.b32.xlu0 %v1097, 122
  %v1407 = vpop.permute.xlu0 %1406
  %1408 = vrot.lane.b32.xlu0 %v1102, 122
  %v1409 = vpop.permute.xlu0 %1408
  %1410 = vrot.lane.b32.xlu0 %v1107, 122
  %v1411 = vpop.permute.xlu0 %1410
  %1412 = vrot.lane.b32.xlu0 %v1112, 122
  %v1413 = vpop.permute.xlu0 %1412
  %1414 = vrot.lane.b32.xlu0 %v1117, 122
  %v1415 = vpop.permute.xlu0 %1414
  %1416 = vrot.lane.b32.xlu0 %v1122, 122
  %v1417 = vpop.permute.xlu0 %1416
  %1418 = vrot.lane.b32.xlu0 %v1127, 122
  %v1419 = vpop.permute.xlu0 %1418
  %1420 = vrot.lane.b32.xlu0 %v1132, 122
  %v1421 = vpop.permute.xlu0 %1420
  %1422 = vrot.lane.b32.xlu0 %v1137, 122
  %v1423 = vpop.permute.xlu0 %1422
  %1424 = vrot.lane.b32.xlu0 %v1142, 122
  %v1425 = vpop.permute.xlu0 %1424
  %1426 = vrot.lane.b32.xlu0 %v1147, 122
  %v1427 = vpop.permute.xlu0 %1426
  %1428 = vrot.lane.b32.xlu0 %v1152, 122
  %v1429 = vpop.permute.xlu0 %1428
  %1430 = vrot.lane.b32.xlu0 %v1157, 122
  %v1431 = vpop.permute.xlu0 %1430
  %1432 = vrot.lane.b32.xlu0 %v1162, 122
  %v1433 = vpop.permute.xlu0 %1432
  %1434 = vrot.lane.b32.xlu0 %v1167, 122
  %v1435 = vpop.permute.xlu0 %1434
  %1436 = vrot.lane.b32.xlu0 %v1172, 122
  %v1437 = vpop.permute.xlu0 %1436
  %1438 = vrot.lane.b32.xlu0 %v1177, 122
  %v1439 = vpop.permute.xlu0 %1438
  %1440 = vrot.lane.b32.xlu0 %v1182, 122
  %v1441 = vpop.permute.xlu0 %1440
  %s1506 = scalar_lea.vmem %s4, 512
  %1507 = vst.msk [vmem:[%s1506] sm:$0xff] %vm1185, %v1315
  %1508 = vst.msk [vmem:[%s1506 + $0x8] sm:$0xff] %vm1185, %v1317
  %1509 = vst.msk [vmem:[%s1506 + $0x10] sm:$0xff] %vm1185, %v1319
  %1510 = vst.msk [vmem:[%s1506 + $0x18] sm:$0xff] %vm1185, %v1321
  %1511 = vst.msk [vmem:[%s1506 + $0x20] sm:$0xff] %vm1185, %v1323
  %1512 = vst.msk [vmem:[%s1506 + $0x28] sm:$0xff] %vm1185, %v1325
  %1513 = vst.msk [vmem:[%s1506 + $0x30] sm:$0xff] %vm1185, %v1327
  %1514 = vst.msk [vmem:[%s1506 + $0x38] sm:$0xff] %vm1185, %v1329
  %1515 = vst.msk [vmem:[%s1506 + $0x40] sm:$0xff] %vm1185, %v1331
  %1516 = vst.msk [vmem:[%s1506 + $0x48] sm:$0xff] %vm1185, %v1333
  %1517 = vst.msk [vmem:[%s1506 + $0x50] sm:$0xff] %vm1185, %v1335
  %1518 = vst.msk [vmem:[%s1506 + $0x58] sm:$0xff] %vm1185, %v1337
  %1519 = vst.msk [vmem:[%s1506 + $0x60] sm:$0xff] %vm1185, %v1339
  %1520 = vst.msk [vmem:[%s1506 + $0x68] sm:$0xff] %vm1185, %v1341
  %1521 = vst.msk [vmem:[%s1506 + $0x70] sm:$0xff] %vm1185, %v1343
  %1522 = vst.msk [vmem:[%s1506 + $0x78] sm:$0xff] %vm1185, %v1345
  %1523 = vst.msk [vmem:[%s1506 + $0x80] sm:$0xff] %vm1185, %v1347
  %1524 = vst.msk [vmem:[%s1506 + $0x88] sm:$0xff] %vm1185, %v1349
  %1525 = vst.msk [vmem:[%s1506 + $0x90] sm:$0xff] %vm1185, %v1351
  %1526 = vst.msk [vmem:[%s1506 + $0x98] sm:$0xff] %vm1185, %v1353
  %1527 = vst.msk [vmem:[%s1506 + $0xa0] sm:$0xff] %vm1185, %v1355
  %1528 = vst.msk [vmem:[%s1506 + $0xa8] sm:$0xff] %vm1185, %v1357
  %1529 = vst.msk [vmem:[%s1506 + $0xb0] sm:$0xff] %vm1185, %v1359
  %1530 = vst.msk [vmem:[%s1506 + $0xb8] sm:$0xff] %vm1185, %v1361
  %1531 = vst.msk [vmem:[%s1506 + $0xc0] sm:$0xff] %vm1185, %v1363
  %1532 = vst.msk [vmem:[%s1506 + $0xc8] sm:$0xff] %vm1185, %v1365
  %1533 = vst.msk [vmem:[%s1506 + $0xd0] sm:$0xff] %vm1185, %v1367
  %1534 = vst.msk [vmem:[%s1506 + $0xd8] sm:$0xff] %vm1185, %v1369
  %1535 = vst.msk [vmem:[%s1506 + $0xe0] sm:$0xff] %vm1185, %v1371
  %1536 = vst.msk [vmem:[%s1506 + $0xe8] sm:$0xff] %vm1185, %v1373
  %1537 = vst.msk [vmem:[%s1506 + $0xf0] sm:$0xff] %vm1185, %v1375
  %1538 = vst.msk [vmem:[%s1506 + $0xf8] sm:$0xff] %vm1185, %v1377
  %1539 = vst.msk [vmem:[%s1506 + $0x100] sm:$0xff] %vm1185, %v1379
  %1540 = vst.msk [vmem:[%s1506 + $0x108] sm:$0xff] %vm1185, %v1381
  %1541 = vst.msk [vmem:[%s1506 + $0x110] sm:$0xff] %vm1185, %v1383
  %1542 = vst.msk [vmem:[%s1506 + $0x118] sm:$0xff] %vm1185, %v1385
  %1543 = vst.msk [vmem:[%s1506 + $0x120] sm:$0xff] %vm1185, %v1387
  %1544 = vst.msk [vmem:[%s1506 + $0x128] sm:$0xff] %vm1185, %v1389
  %1545 = vst.msk [vmem:[%s1506 + $0x130] sm:$0xff] %vm1185, %v1391
  %1546 = vst.msk [vmem:[%s1506 + $0x138] sm:$0xff] %vm1185, %v1393
  %1547 = vst.msk [vmem:[%s1506 + $0x140] sm:$0xff] %vm1185, %v1395
  %1548 = vst.msk [vmem:[%s1506 + $0x148] sm:$0xff] %vm1185, %v1397
  %1549 = vst.msk [vmem:[%s1506 + $0x150] sm:$0xff] %vm1185, %v1399
  %1550 = vst.msk [vmem:[%s1506 + $0x158] sm:$0xff] %vm1185, %v1401
  %1551 = vst.msk [vmem:[%s1506 + $0x160] sm:$0xff] %vm1185, %v1403
  %1552 = vst.msk [vmem:[%s1506 + $0x168] sm:$0xff] %vm1185, %v1405
  %1553 = vst.msk [vmem:[%s1506 + $0x170] sm:$0xff] %vm1185, %v1407
  %1554 = vst.msk [vmem:[%s1506 + $0x178] sm:$0xff] %vm1185, %v1409
  %1555 = vst.msk [vmem:[%s1506 + $0x180] sm:$0xff] %vm1185, %v1411
  %1556 = vst.msk [vmem:[%s1506 + $0x188] sm:$0xff] %vm1185, %v1413
  %1557 = vst.msk [vmem:[%s1506 + $0x190] sm:$0xff] %vm1185, %v1415
  %1558 = vst.msk [vmem:[%s1506 + $0x198] sm:$0xff] %vm1185, %v1417
  %1559 = vst.msk [vmem:[%s1506 + $0x1a0] sm:$0xff] %vm1185, %v1419
  %1560 = vst.msk [vmem:[%s1506 + $0x1a8] sm:$0xff] %vm1185, %v1421
  %1561 = vst.msk [vmem:[%s1506 + $0x1b0] sm:$0xff] %vm1185, %v1423
  %1562 = vst.msk [vmem:[%s1506 + $0x1b8] sm:$0xff] %vm1185, %v1425
  %1563 = vst.msk [vmem:[%s1506 + $0x1c0] sm:$0xff] %vm1185, %v1427
  %1564 = vst.msk [vmem:[%s1506 + $0x1c8] sm:$0xff] %vm1185, %v1429
  %1565 = vst.msk [vmem:[%s1506 + $0x1d0] sm:$0xff] %vm1185, %v1431
  %1566 = vst.msk [vmem:[%s1506 + $0x1d8] sm:$0xff] %vm1185, %v1433
  %1567 = vst.msk [vmem:[%s1506 + $0x1e0] sm:$0xff] %vm1185, %v1435
  %1568 = vst.msk [vmem:[%s1506 + $0x1e8] sm:$0xff] %vm1185, %v1437
  %1569 = vst.msk [vmem:[%s1506 + $0x1f0] sm:$0xff] %vm1185, %v1439
  %1570 = vst.msk [vmem:[%s1506 + $0x1f8] sm:$0xff] %vm1185, %v1441
  // Predicated region
  $region18: #{recurrent_residual_block.18} parent=0 // pred_check
    _
  $region19: #{recurrent_residual_block.18} parent=0 // pred_check_branch
    %1572 = sbr.rel (0) target = $region21
  $region20: #{recurrent_residual_block.18} parent=0 // pred_region
    _
  $region21: #{recurrent_residual_block.18} parent=0 // pred_fallthru
    _
  // Predicated region
  $region22: #{recurrent_residual_block.18} parent=0 // pred_check
    _
  $region23: #{recurrent_residual_block.18} parent=0 // pred_check_branch
    %1574 = sbr.rel (0) target = $region25
  $region24: #{recurrent_residual_block.18} parent=0 // pred_region
    _
  $region25: #{recurrent_residual_block.18} parent=0 // pred_fallthru
    _

</llo_original>
